<compile_context>
chip_gen: v5e
topology: v5e:2x2
jax: 0.10.0
libtpu: 0.0.40
codegen_flags: <defaults>
</compile_context>

<pallas_src>
import functools

import jax
import jax.numpy as jnp
from jax.experimental import pallas as pl
from jax.experimental.pallas import tpu as pltpu


def _round_up(n, m):
    return ((n + m - 1) // m) * m


def _vmem_capacity_bytes():
    try:
        return int(pltpu.get_tpu_info().vmem_capacity_bytes)
    except Exception:
        return 64 << 20  # conservative default (v7x per-TC VMEM)


# ----------------------------------------------------------------------------
# Fused MLP kernel: all layers in one invocation, activations stay on-chip.
# refs layout: x_ref, (w_ref, b_ref) * num_layers, o_ref
# ----------------------------------------------------------------------------
def _mlp_kernel(*refs, num_layers, negative_slope, use_bf16):
    x_ref = refs[0]
    o_ref = refs[-1]

    x = x_ref[...]                                     # (TB, F0_pad) f32
    for l in range(num_layers):                        # static unroll
        w = refs[1 + 2 * l][...]                       # (Fin_pad, Fout_pad), pre-transposed
        b = refs[2 + 2 * l][...]                       # (1, Fout_pad) f32
        if use_bf16:
            # bf16 operands -> native MXU rate; f32 accumulation.
            y = jnp.dot(x.astype(jnp.bfloat16), w,
                        preferred_element_type=jnp.float32)
        else:
            # Full-precision f32 matmul for parity with the fp32 torch module.
            y = jnp.dot(x, w, preferred_element_type=jnp.float32,
                        precision=jax.lax.Precision.HIGHEST)
        x = y + b
        if l < num_layers - 1:
            # LeakyReLU as a single vmul + vmax (exact for 0 < slope < 1).
            x = jnp.maximum(x, negative_slope * x)
    o_ref[...] = x.astype(o_ref.dtype)


# ----------------------------------------------------------------------------
# One-time parameter prep (hoisted out of the per-call path).
# params: list of (W(out, in), b(out,)) like torch.nn.Linear.
# ----------------------------------------------------------------------------
def prepare_fcn_params(params, *, use_bf16=False):
    compute_dtype = jnp.bfloat16 if use_bf16 else jnp.float32
    feat = [params[0][0].shape[1]] + [w.shape[0] for (w, _) in params]
    feat_pad = [_round_up(f, 128) for f in feat]        # lane-dense feature dims

    wts, bps, raw = [], [], []
    for l, (w, b) in enumerate(params):
        fin, fout = feat[l], feat[l + 1]
        fin_p, fout_p = feat_pad[l], feat_pad[l + 1]
        w = jnp.asarray(w, jnp.float32)
        b = jnp.asarray(b, jnp.float32)
        wt = jnp.zeros((fin_p, fout_p), compute_dtype).at[:fin, :fout].set(
            w.T.astype(compute_dtype))
        bp = jnp.zeros((1, fout_p), jnp.float32).at[:, :fout].set(b)
        wts.append(wt)
        bps.append(bp)
        raw.append((w, b))
    return {"raw": raw, "wts": wts, "bps": bps, "feat": feat,
            "feat_pad": feat_pad, "use_bf16": use_bf16}


# Plain XLA fallback (toy sizes / params that don't fit resident in VMEM).
def _xla_forward(x, raw_params, activation, negative_slope):
    n = len(raw_params)
    for i, (w, b) in enumerate(raw_params):
        x = jnp.dot(x, w.T, precision=jax.lax.Precision.HIGHEST) + b
        if i < n - 1:
            x = jnp.maximum(x, negative_slope * x)
    if activation is not None:
        x = activation(x)
    return x


# ----------------------------------------------------------------------------
# Forward pass on pre-prepared params.
# ----------------------------------------------------------------------------
def fcn_forward(x, prepared, activation=None, *, batch_tile=None,
                negative_slope=0.01, force_pallas=False):
    B, in_features = x.shape
    feat, feat_pad = prepared["feat"], prepared["feat_pad"]
    wts, bps = prepared["wts"], prepared["bps"]
    use_bf16 = prepared["use_bf16"]
    num_layers = len(wts)
    assert in_features == feat[0]
    out_features = feat[-1]

    vmem_cap = _vmem_capacity_bytes()
    vmem_budget = int(0.85 * vmem_cap)
    wbytes = 2 if use_bf16 else 4
    param_bytes = sum(int(wt.size) * wbytes + int(bp.size) * 4
                      for wt, bp in zip(wts, bps))

    # Dispatch: toy-sized layers (padding would waste >=4x MXU work) or params
    # that cannot sit VMEM-resident go through a plain XLA dot chain.
    too_small = (not force_pallas) and max(feat) < 128
    min_need = param_bytes + 4 * 8 * (feat_pad[0] + feat_pad[-1] + 3 * max(feat_pad))
    too_big = min_need > vmem_budget
    if too_small or too_big:
        # TODO(synk): for the too_big case, stream the largest layer over its
        # output-feature dim with an extra grid axis instead of falling back.
        return _xla_forward(x, prepared["raw"], activation, negative_slope)

    # Generation-aware default batch tile (bigger on 128 MiB VMEM parts).
    if batch_tile is None:
        batch_tile = 1024 if vmem_cap >= (100 << 20) else 512

    # Batch tiling: multiple of 8 (f32 sublane); at least 2 grid steps when the
    # batch allows, so ("parallel",) actually splits work across v7x's 2 TCs.
    B8 = _round_up(B, 8)
    if B8 >= 16:
        TB = min(_round_up(batch_tile, 8), _round_up(pl.cdiv(B8, 2), 8))
    else:
        TB = B8

    def _need(tb):  # resident params (1x) + dbl-buffered I/O tiles + live acts
        return (param_bytes
                + 2 * tb * feat_pad[0] * 4
                + 2 * tb * feat_pad[-1] * 4
                + 3 * tb * max(feat_pad) * 4)

    while TB > 8 and _need(TB) > vmem_budget:
        TB = _round_up(TB // 2, 8)
    B_pad = _round_up(B8, TB)

    # Pad the input only as much as needed; skip entirely when aligned.
    pad_rows, pad_cols = B_pad - B, feat_pad[0] - in_features
    if pad_rows == 0 and pad_cols == 0:
        xp = x
    else:
        xp = jnp.pad(x, ((0, pad_rows), (0, pad_cols)))

    kernel = functools.partial(_mlp_kernel, num_layers=num_layers,
                               negative_slope=negative_slope, use_bf16=use_bf16)

    flops = 2 * sum(B_pad * feat_pad[l] * feat_pad[l + 1] for l in range(num_layers))
    bytes_accessed = 4 * int(xp.size) + param_bytes + 4 * B_pad * feat_pad[-1]

    flat_inputs = [xp]
    for wt, bp in zip(wts, bps):
        flat_inputs.extend([wt, bp])

    def _build(single_buffer_weights):
        bufs = 1 if single_buffer_weights else 2
        wkw = {"pipeline_mode": pl.Buffered(1)} if single_buffer_weights else {}
        in_specs = [pl.BlockSpec((TB, feat_pad[0]), lambda i: (i, 0))]
        for wt, bp in zip(wts, bps):
            # Constant index_map -> weights/biases stay VMEM-resident.
            in_specs.append(pl.BlockSpec(wt.shape, lambda i: (0, 0), **wkw))
            in_specs.append(pl.BlockSpec(bp.shape, lambda i: (0, 0), **wkw))
        out_spec = pl.BlockSpec((TB, feat_pad[-1]), lambda i: (i, 0))

        vmem_need = _need(TB) + (bufs - 1) * param_bytes
        vmem_limit = min(int(0.9 * vmem_cap), max(int(1.5 * vmem_need), 32 << 20))
        vmem_limit = min(max(vmem_limit, vmem_need), vmem_cap)

        return pl.pallas_call(
            kernel,
            out_shape=jax.ShapeDtypeStruct((B_pad, feat_pad[-1]), jnp.float32),
            grid=(B_pad // TB,),
            in_specs=in_specs,
            out_specs=out_spec,
            compiler_params=pltpu.CompilerParams(
                dimension_semantics=("parallel",),      # megacore split on v7x
                vmem_limit_bytes=int(vmem_limit)),
            cost_estimate=pl.CostEstimate(
                flops=int(flops), transcendentals=0,
                bytes_accessed=int(bytes_accessed)),
        )

    try:
        out_padded = _build(True)(*flat_inputs)
    except Exception:
        # pl.Buffered(1) not accepted by this JAX build -> default buffering.
        out_padded = _build(False)(*flat_inputs)

    out = out_padded[:B, :out_features]
    if activation is not None:
        # Applied after slicing so row-wise activations (softmax/log_softmax)
        # are not contaminated by the 128-pad zero columns.
        out = activation(out)
    return out


def fully_connected_network(x, params, activation=None, *, use_bf16=False, **kwargs):
    """One-shot convenience wrapper. For repeated calls, run
    prepare_fcn_params() once and reuse it with fcn_forward()."""
    prepared = prepare_fcn_params(params, use_bf16=use_bf16)
    return fcn_forward(x, prepared, activation, **kwargs)


# ----------------------------------------------------------------------------
# Parameter init matching torch.nn.Linear shapes (W: (out, in), b: (out,)).
# ----------------------------------------------------------------------------
def init_fcn_params(key, input_size, layer_sizes, output_size):
    size_list = [input_size] + list(layer_sizes) + [output_size]
    params = []
    for i in range(len(size_list) - 1):
        fan_in, fan_out = size_list[i], size_list[i + 1]
        key, wk, bk = jax.random.split(key, 3)
        bound = 1.0 / jnp.sqrt(jnp.float32(fan_in))   # same scheme as torch Linear
        w = jax.random.uniform(wk, (fan_out, fan_in), jnp.float32, -bound, bound)
        b = jax.random.uniform(bk, (fan_out,), jnp.float32, -bound, bound)
        params.append((w, b))
    return params


# Pure-JAX reference.
def fcn_ref(x, params, activation=None):
    n = len(params)
    for i, (w, b) in enumerate(params):
        x = jnp.dot(x, w.T, precision=jax.lax.Precision.HIGHEST) + b
        if i < n - 1:
            x = jnp.maximum(x, 0.01 * x)
    if activation is not None:
        x = activation(x)
    return x


if __name__ == "__main__":
    key = jax.random.PRNGKey(0)
    kx, kp, kx2, kp2 = jax.random.split(key, 4)

    # --- MuZero-sized MLP: routed through the fused Pallas kernel ---
    batch, input_size, layer_sizes, output_size = 16, 128, [256, 256], 128
    x = jax.random.normal(kx, (batch, input_size), jnp.float32)
    params = init_fcn_params(kp, input_size, layer_sizes, output_size)

    prepared = prepare_fcn_params(params)               # one-time prep (hoisted)
    out = jax.block_until_ready(fcn_forward(x, prepared))
    ref = fcn_ref(x, params)
    assert out.shape == (batch, output_size)
    assert jnp.allclose(out, ref, atol=1e-4, rtol=1e-4)

    # Row-wise output activation: applied after slicing -> correct despite padding.
    out_sm = jax.block_until_ready(fcn_forward(x, prepared, activation=jax.nn.softmax))
    ref_sm = fcn_ref(x, params, activation=jax.nn.softmax)
    assert jnp.allclose(out_sm, ref_sm, atol=1e-4, rtol=1e-4)

    # bf16 MXU fast path (gated behind a flag; looser tolerance by design).
    prepared_bf16 = prepare_fcn_params(params, use_bf16=True)
    out_bf = jax.block_until_ready(fcn_forward(x, prepared_bf16))
    assert jnp.allclose(out_bf, ref, atol=1e-1, rtol=1e-1)

    # --- Toy-sized module: padded Pallas path (forced) and the XLA fallback ---
    x2 = jax.random.normal(kx2, (4, 16), jnp.float32)
    params2 = init_fcn_params(kp2, 16, [32, 32], 8)
    prepared2 = prepare_fcn_params(params2)
    out2_pallas = jax.block_until_ready(fcn_forward(x2, prepared2, force_pallas=True))
    out2_xla = jax.block_until_ready(fcn_forward(x2, prepared2))
    ref2 = fcn_ref(x2, params2)
    assert out2_pallas.shape == (4, 8)
    assert jnp.allclose(out2_pallas, ref2, atol=1e-5, rtol=1e-5)
    assert jnp.allclose(out2_xla, ref2, atol=1e-5, rtol=1e-5)

    print("KERNEL_OK")
</pallas_src>

<mosaic_0001>
module attributes {stable_mosaic.version = 11 : i64} {
  func.func @_mlp_kernel(%arg0: i32, %arg1: memref<8x128xf32, #tpu.memory_space<vmem>>, %arg2: memref<128x256xf32, #tpu.memory_space<vmem>>, %arg3: memref<1x256xf32, #tpu.memory_space<vmem>>, %arg4: memref<256x256xf32, #tpu.memory_space<vmem>>, %arg5: memref<1x256xf32, #tpu.memory_space<vmem>>, %arg6: memref<256x128xf32, #tpu.memory_space<vmem>>, %arg7: memref<1x128xf32, #tpu.memory_space<vmem>>, %arg8: memref<8x128xf32, #tpu.memory_space<vmem>>) attributes {dimension_semantics = [#tpu.dimension_semantics<parallel>], iteration_bounds = array<i64: 2>, scalar_prefetch = 0 : i64, scratch_operands = 0 : i64, tpu.core_type = #tpu.core_type<tc>, window_params = [{transform_indices = @transform_0, window_bounds = array<i64: 8, 128>}, {pipeline_mode = #tpu.pipeline_mode<synchronous>, transform_indices = @transform_1, window_bounds = array<i64: 128, 256>}, {pipeline_mode = #tpu.pipeline_mode<synchronous>, transform_indices = @transform_2, window_bounds = array<i64: 1, 256>}, {pipeline_mode = #tpu.pipeline_mode<synchronous>, transform_indices = @transform_3, window_bounds = array<i64: 256, 256>}, {pipeline_mode = #tpu.pipeline_mode<synchronous>, transform_indices = @transform_4, window_bounds = array<i64: 1, 256>}, {pipeline_mode = #tpu.pipeline_mode<synchronous>, transform_indices = @transform_5, window_bounds = array<i64: 256, 128>}, {pipeline_mode = #tpu.pipeline_mode<synchronous>, transform_indices = @transform_6, window_bounds = array<i64: 1, 128>}, {transform_indices = @transform_7, window_bounds = array<i64: 8, 128>}]} {
    %c0 = arith.constant 0 : index
    %c0_0 = arith.constant 0 : index
    %0 = vector.load %arg1[%c0, %c0_0] : memref<8x128xf32, #tpu.memory_space<vmem>>, vector<8x128xf32>
    %c0_1 = arith.constant 0 : index
    %c0_2 = arith.constant 0 : index
    %1 = vector.load %arg2[%c0_1, %c0_2] : memref<128x256xf32, #tpu.memory_space<vmem>>, vector<128x256xf32>
    %c0_3 = arith.constant 0 : index
    %c0_4 = arith.constant 0 : index
    %2 = vector.load %arg3[%c0_3, %c0_4] : memref<1x256xf32, #tpu.memory_space<vmem>>, vector<1x256xf32>
    %cst = arith.constant dense<0.000000e+00> : vector<8x256xf32>
    %3 = tpu.matmul %0, %1, %cst {dimension_numbers = #tpu.dot_dimension_numbers<[1], [0], [0], [1], [0, 0, 1, 1], [], []>, precision = #tpu.contract_precision<fp32>} : vector<8x128xf32>, vector<128x256xf32>, vector<8x256xf32> -> vector<8x256xf32>
    %4 = vector.broadcast %2 : vector<1x256xf32> to vector<8x256xf32>
    %5 = arith.addf %3, %4 : vector<8x256xf32>
    %cst_5 = arith.constant 0.00999999977 : f32
    %6 = vector.broadcast %cst_5 : f32 to vector<8x256xf32>
    %7 = arith.mulf %6, %5 : vector<8x256xf32>
    %8 = arith.maximumf %5, %7 : vector<8x256xf32>
    %c0_6 = arith.constant 0 : index
    %c0_7 = arith.constant 0 : index
    %9 = vector.load %arg4[%c0_6, %c0_7] : memref<256x256xf32, #tpu.memory_space<vmem>>, vector<256x256xf32>
    %c0_8 = arith.constant 0 : index
    %c0_9 = arith.constant 0 : index
    %10 = vector.load %arg5[%c0_8, %c0_9] : memref<1x256xf32, #tpu.memory_space<vmem>>, vector<1x256xf32>
    %cst_10 = arith.constant dense<0.000000e+00> : vector<8x256xf32>
    %11 = tpu.matmul %8, %9, %cst_10 {dimension_numbers = #tpu.dot_dimension_numbers<[1], [0], [0], [1], [0, 0, 1, 1], [], []>, precision = #tpu.contract_precision<fp32>} : vector<8x256xf32>, vector<256x256xf32>, vector<8x256xf32> -> vector<8x256xf32>
    %12 = vector.broadcast %10 : vector<1x256xf32> to vector<8x256xf32>
    %13 = arith.addf %11, %12 : vector<8x256xf32>
    %cst_11 = arith.constant 0.00999999977 : f32
    %14 = vector.broadcast %cst_11 : f32 to vector<8x256xf32>
    %15 = arith.mulf %14, %13 : vector<8x256xf32>
    %16 = arith.maximumf %13, %15 : vector<8x256xf32>
    %c0_12 = arith.constant 0 : index
    %c0_13 = arith.constant 0 : index
    %17 = vector.load %arg6[%c0_12, %c0_13] : memref<256x128xf32, #tpu.memory_space<vmem>>, vector<256x128xf32>
    %c0_14 = arith.constant 0 : index
    %c0_15 = arith.constant 0 : index
    %18 = vector.load %arg7[%c0_14, %c0_15] : memref<1x128xf32, #tpu.memory_space<vmem>>, vector<1x128xf32>
    %cst_16 = arith.constant dense<0.000000e+00> : vector<8x128xf32>
    %19 = tpu.matmul %16, %17, %cst_16 {dimension_numbers = #tpu.dot_dimension_numbers<[1], [0], [0], [1], [0, 0, 1, 1], [], []>, precision = #tpu.contract_precision<fp32>} : vector<8x256xf32>, vector<256x128xf32>, vector<8x128xf32> -> vector<8x128xf32>
    %20 = vector.broadcast %18 : vector<1x128xf32> to vector<8x128xf32>
    %21 = arith.addf %19, %20 : vector<8x128xf32>
    %c0_17 = arith.constant 0 : index
    %c0_18 = arith.constant 0 : index
    %22 = vector.load %arg8[%c0_17, %c0_18] : memref<8x128xf32, #tpu.memory_space<vmem>>, vector<8x128xf32>
    tpu.vector_store %arg8[%c0_17, %c0_18], %21 {strides = array<i32>} : memref<8x128xf32, #tpu.memory_space<vmem>>, vector<8x128xf32>,
    return
  }
  func.func @transform_0(%arg0: i32) -> (i32, i32) {
    %c0_i32 = arith.constant 0 : i32
    %c0_i32_0 = arith.constant 0 : i32
    return %arg0, %c0_i32 : i32, i32
  }
  func.func @transform_1(%arg0: i32) -> (i32, i32) {
    %c0_i32 = arith.constant 0 : i32
    %c0_i32_0 = arith.constant 0 : i32
    %c0_i32_1 = arith.constant 0 : i32
    return %c0_i32, %c0_i32_0 : i32, i32
  }
  func.func @transform_2(%arg0: i32) -> (i32, i32) {
    %c0_i32 = arith.constant 0 : i32
    %c0_i32_0 = arith.constant 0 : i32
    %c0_i32_1 = arith.constant 0 : i32
    return %c0_i32, %c0_i32_0 : i32, i32
  }
  func.func @transform_3(%arg0: i32) -> (i32, i32) {
    %c0_i32 = arith.constant 0 : i32
    %c0_i32_0 = arith.constant 0 : i32
    %c0_i32_1 = arith.constant 0 : i32
    return %c0_i32, %c0_i32_0 : i32, i32
  }
  func.func @transform_4(%arg0: i32) -> (i32, i32) {
    %c0_i32 = arith.constant 0 : i32
    %c0_i32_0 = arith.constant 0 : i32
    %c0_i32_1 = arith.constant 0 : i32
    return %c0_i32, %c0_i32_0 : i32, i32
  }
  func.func @transform_5(%arg0: i32) -> (i32, i32) {
    %c0_i32 = arith.constant 0 : i32
    %c0_i32_0 = arith.constant 0 : i32
    %c0_i32_1 = arith.constant 0 : i32
    return %c0_i32, %c0_i32_0 : i32, i32
  }
  func.func @transform_6(%arg0: i32) -> (i32, i32) {
    %c0_i32 = arith.constant 0 : i32
    %c0_i32_0 = arith.constant 0 : i32
    %c0_i32_1 = arith.constant 0 : i32
    return %c0_i32, %c0_i32_0 : i32, i32
  }
  func.func @transform_7(%arg0: i32) -> (i32, i32) {
    %c0_i32 = arith.constant 0 : i32
    %c0_i32_0 = arith.constant 0 : i32
    return %arg0, %c0_i32 : i32, i32
  }
}

module attributes {stable_mosaic.version = 11 : i64} {
  func.func @_mlp_kernel(%arg0: i32, %arg1: memref<8x128xf32, #tpu.memory_space<vmem>>, %arg2: memref<128x256xf32, #tpu.memory_space<vmem>>, %arg3: memref<1x256xf32, #tpu.memory_space<vmem>>, %arg4: memref<256x256xf32, #tpu.memory_space<vmem>>, %arg5: memref<1x256xf32, #tpu.memory_space<vmem>>, %arg6: memref<256x128xf32, #tpu.memory_space<vmem>>, %arg7: memref<1x128xf32, #tpu.memory_space<vmem>>, %arg8: memref<8x128xf32, #tpu.memory_space<vmem>>) attributes {dimension_semantics = [#tpu.dimension_semantics<parallel>], iteration_bounds = array<i64: 2>, scalar_prefetch = 0 : i64, scratch_operands = 0 : i64, tpu.core_type = #tpu.core_type<tc>, window_params = [{transform_indices = @transform_0, window_bounds = array<i64: 8, 128>}, {pipeline_mode = #tpu.pipeline_mode<synchronous>, transform_indices = @transform_1, window_bounds = array<i64: 128, 256>}, {pipeline_mode = #tpu.pipeline_mode<synchronous>, transform_indices = @transform_2, window_bounds = array<i64: 1, 256>}, {pipeline_mode = #tpu.pipeline_mode<synchronous>, transform_indices = @transform_3, window_bounds = array<i64: 256, 256>}, {pipeline_mode = #tpu.pipeline_mode<synchronous>, transform_indices = @transform_4, window_bounds = array<i64: 1, 256>}, {pipeline_mode = #tpu.pipeline_mode<synchronous>, transform_indices = @transform_5, window_bounds = array<i64: 256, 128>}, {pipeline_mode = #tpu.pipeline_mode<synchronous>, transform_indices = @transform_6, window_bounds = array<i64: 1, 128>}, {transform_indices = @transform_7, window_bounds = array<i64: 8, 128>}]} {
    %c0 = arith.constant 0 : index
    %c0_0 = arith.constant 0 : index
    %0 = vector.load %arg1[%c0, %c0_0] : memref<8x128xf32, #tpu.memory_space<vmem>>, vector<8x128xf32>
    %c0_1 = arith.constant 0 : index
    %c0_2 = arith.constant 0 : index
    %1 = vector.load %arg2[%c0_1, %c0_2] : memref<128x256xf32, #tpu.memory_space<vmem>>, vector<128x256xf32>
    %c0_3 = arith.constant 0 : index
    %c0_4 = arith.constant 0 : index
    %2 = vector.load %arg3[%c0_3, %c0_4] : memref<1x256xf32, #tpu.memory_space<vmem>>, vector<1x256xf32>
    %cst = arith.constant dense<0.000000e+00> : vector<8x256xf32>
    %3 = tpu.matmul %0, %1, %cst {dimension_numbers = #tpu.dot_dimension_numbers<[1], [0], [0], [1], [0, 0, 1, 1], [], []>, precision = #tpu.contract_precision<fp32>} : vector<8x128xf32>, vector<128x256xf32>, vector<8x256xf32> -> vector<8x256xf32>
    %4 = vector.broadcast %2 : vector<1x256xf32> to vector<8x256xf32>
    %5 = arith.addf %3, %4 : vector<8x256xf32>
    %cst_5 = arith.constant 0.00999999977 : f32
    %6 = vector.broadcast %cst_5 : f32 to vector<8x256xf32>
    %7 = arith.mulf %6, %5 : vector<8x256xf32>
    %8 = arith.maximumf %5, %7 : vector<8x256xf32>
    %c0_6 = arith.constant 0 : index
    %c0_7 = arith.constant 0 : index
    %9 = vector.load %arg4[%c0_6, %c0_7] : memref<256x256xf32, #tpu.memory_space<vmem>>, vector<256x256xf32>
    %c0_8 = arith.constant 0 : index
    %c0_9 = arith.constant 0 : index
    %10 = vector.load %arg5[%c0_8, %c0_9] : memref<1x256xf32, #tpu.memory_space<vmem>>, vector<1x256xf32>
    %cst_10 = arith.constant dense<0.000000e+00> : vector<8x256xf32>
    %11 = tpu.matmul %8, %9, %cst_10 {dimension_numbers = #tpu.dot_dimension_numbers<[1], [0], [0], [1], [0, 0, 1, 1], [], []>, precision = #tpu.contract_precision<fp32>} : vector<8x256xf32>, vector<256x256xf32>, vector<8x256xf32> -> vector<8x256xf32>
    %12 = vector.broadcast %10 : vector<1x256xf32> to vector<8x256xf32>
    %13 = arith.addf %11, %12 : vector<8x256xf32>
    %cst_11 = arith.constant 0.00999999977 : f32
    %14 = vector.broadcast %cst_11 : f32 to vector<8x256xf32>
    %15 = arith.mulf %14, %13 : vector<8x256xf32>
    %16 = arith.maximumf %13, %15 : vector<8x256xf32>
    %c0_12 = arith.constant 0 : index
    %c0_13 = arith.constant 0 : index
    %17 = vector.load %arg6[%c0_12, %c0_13] : memref<256x128xf32, #tpu.memory_space<vmem>>, vector<256x128xf32>
    %c0_14 = arith.constant 0 : index
    %c0_15 = arith.constant 0 : index
    %18 = vector.load %arg7[%c0_14, %c0_15] : memref<1x128xf32, #tpu.memory_space<vmem>>, vector<1x128xf32>
    %cst_16 = arith.constant dense<0.000000e+00> : vector<8x128xf32>
    %19 = tpu.matmul %16, %17, %cst_16 {dimension_numbers = #tpu.dot_dimension_numbers<[1], [0], [0], [1], [0, 0, 1, 1], [], []>, precision = #tpu.contract_precision<fp32>} : vector<8x256xf32>, vector<256x128xf32>, vector<8x128xf32> -> vector<8x128xf32>
    %20 = vector.broadcast %18 : vector<1x128xf32> to vector<8x128xf32>
    %21 = arith.addf %19, %20 : vector<8x128xf32>
    %c0_17 = arith.constant 0 : index
    %c0_18 = arith.constant 0 : index
    %22 = vector.load %arg8[%c0_17, %c0_18] : memref<8x128xf32, #tpu.memory_space<vmem>>, vector<8x128xf32>
    tpu.vector_store %arg8[%c0_17, %c0_18], %21 {strides = array<i32>} : memref<8x128xf32, #tpu.memory_space<vmem>>, vector<8x128xf32>,
    return
  }
  func.func @transform_0(%arg0: i32) -> (i32, i32) {
    %c0_i32 = arith.constant 0 : i32
    %c0_i32_0 = arith.constant 0 : i32
    return %arg0, %c0_i32 : i32, i32
  }
  func.func @transform_1(%arg0: i32) -> (i32, i32) {
    %c0_i32 = arith.constant 0 : i32
    %c0_i32_0 = arith.constant 0 : i32
    %c0_i32_1 = arith.constant 0 : i32
    return %c0_i32, %c0_i32_0 : i32, i32
  }
  func.func @transform_2(%arg0: i32) -> (i32, i32) {
    %c0_i32 = arith.constant 0 : i32
    %c0_i32_0 = arith.constant 0 : i32
    %c0_i32_1 = arith.constant 0 : i32
    return %c0_i32, %c0_i32_0 : i32, i32
  }
  func.func @transform_3(%arg0: i32) -> (i32, i32) {
    %c0_i32 = arith.constant 0 : i32
    %c0_i32_0 = arith.constant 0 : i32
    %c0_i32_1 = arith.constant 0 : i32
    return %c0_i32, %c0_i32_0 : i32, i32
  }
  func.func @transform_4(%arg0: i32) -> (i32, i32) {
    %c0_i32 = arith.constant 0 : i32
    %c0_i32_0 = arith.constant 0 : i32
    %c0_i32_1 = arith.constant 0 : i32
    return %c0_i32, %c0_i32_0 : i32, i32
  }
  func.func @transform_5(%arg0: i32) -> (i32, i32) {
    %c0_i32 = arith.constant 0 : i32
    %c0_i32_0 = arith.constant 0 : i32
    %c0_i32_1 = arith.constant 0 : i32
    return %c0_i32, %c0_i32_0 : i32, i32
  }
  func.func @transform_6(%arg0: i32) -> (i32, i32) {
    %c0_i32 = arith.constant 0 : i32
    %c0_i32_0 = arith.constant 0 : i32
    %c0_i32_1 = arith.constant 0 : i32
    return %c0_i32, %c0_i32_0 : i32, i32
  }
  func.func @transform_7(%arg0: i32) -> (i32, i32) {
    %c0_i32 = arith.constant 0 : i32
    %c0_i32_0 = arith.constant 0 : i32
    return %arg0, %c0_i32 : i32, i32
  }
}

</mosaic_0001>

<llo_original>
// kernel: tpu_custom_call.1
$region0: #{tpu_custom_call.1}
  #allocation0 [shape = 'u32[]', space=smem, size = 0x4, offset = 0x4, fixed_abs, tag = 'smem constant byte address 0x4 - core index']
  #allocation1 [shape = 'u32[72,128]{1,0:T(1,128)}', space=vmem, size = 0x9000, scoped, tag = 'internal scratch']
  %s0 = inlined_call_operand.hbm [shape: f32[16,128], index: 0, kind: input, shape index: {}]
  %s1 = inlined_call_operand.hbm [shape: f32[128,256], index: 1, kind: input, shape index: {}]
  %s2 = inlined_call_operand.hbm [shape: f32[1,256], index: 2, kind: input, shape index: {}]
  %s3 = inlined_call_operand.hbm [shape: f32[256,256], index: 3, kind: input, shape index: {}]
  %s4 = inlined_call_operand.vmem [shape: f32[1,256], index: 4, kind: input, shape index: {}]
  %s5 = inlined_call_operand.hbm [shape: f32[256,128], index: 5, kind: input, shape index: {}]
  %s6 = inlined_call_operand.vmem [shape: f32[1,128], index: 6, kind: input, shape index: {}]
  %s7 = inlined_call_operand.hbm [shape: f32[16,128], index: 7, kind: output, shape index: {}]
  %s8 = sld [smem:[#allocation0]]
  $region81: #{tpu_custom_call.1} parent=0
    _
  %s10 = ssub.s32 1, %s8
  %s11 = scalar_select 0, %s10, %s8
  $region1: #{tpu_custom_call.1} parent=0
    #allocation2 [shape = 'u8[8192]{0}', space=vmem, size = 0x2000, scoped, tag = 'input window, operand 0']
    #allocation3 [shape = 's32[2]{0}', space=sflag, size = 0x8, scoped, tag = 'scoped memory for tpu_custom_call.1']
    #allocation4 [shape = 's32[2]{0}', space=sflag, size = 0x8, scoped, tag = 'scoped memory for tpu_custom_call.1']
    #allocation5 [shape = 'u8[131072]{0}', space=vmem, size = 0x20000, scoped, tag = 'input window, operand 1, single buffered']
    #allocation6 [shape = 's32[1]{0}', space=sflag, size = 0x4, scoped, tag = 'scoped memory for tpu_custom_call.1']
    #allocation7 [shape = 'u8[1024]{0}', space=vmem, size = 0x400, scoped, tag = 'input window, operand 2, single buffered']
    #allocation8 [shape = 'u8[262144]{0}', space=vmem, size = 0x40000, scoped, tag = 'input window, operand 3, single buffered']
    #allocation9 [shape = 's32[1]{0}', space=sflag, size = 0x4, scoped, tag = 'scoped memory for tpu_custom_call.1']
    #allocation10 [shape = 'u8[131072]{0}', space=vmem, size = 0x20000, scoped, tag = 'input window, operand 5, single buffered']
    #allocation11 [shape = 'u8[8192]{0}', space=vmem, size = 0x2000, scoped, tag = 'output window, operand 0']
    %12 = vsyncpa [#allocation3], 0
    %s13 = scalar_lea.sflag [#allocation3], 1
    %14 = vsyncpa %s13, 0
    %15 = vsyncpa [#allocation6], 0
    %16 = vsyncpa [#allocation9], 0
    %17 = vsyncpa [#allocation4], 0
    %s18 = scalar_lea.sflag [#allocation4], 1
    %19 = vsyncpa %s18, 0
    loop: start=0, step=1, limit=4
    $region2: #{tpu_custom_call.1} parent=1 // loop_pre_header
      _
    $region3: #{tpu_custom_call.1} parent=1 // loop_header
      %s21 = sphi 0, %s25
      %p22 = scmp.ge.s32.totalorder %s21, 4
      %s31 = sphi 0, %s33
      %s34 = sphi 0, %s31
      %s35 = sphi 0, %s34
      %s51 = sphi 0, %s35
      %s55 = sphi 0, %s55
      %s57 = sphi 0, %s55
      %s58 = sphi 0, %s57
      %s72 = sphi 0, %s58
      %s76 = sphi 0, %s76
      %s78 = sphi 0, %s76
      %s79 = sphi 0, %s78
      %s93 = sphi 0, %s79
      %s97 = sphi 0, %s97
      %s99 = sphi 0, %s97
      %s100 = sphi 0, %s99
      %s114 = sphi 0, %s100
      %s118 = sphi 0, %s118
      %s120 = sphi 0, %s118
      %s121 = sphi 0, %s120
      %s135 = sphi 0, %s121
      %s139 = sphi 0, %s139
      %s141 = sphi 0, %s139
      %s142 = sphi 0, %s141
      %s156 = sphi 0, %s142
      %s160 = sphi 0, %s160
      %s162 = sphi 0, %s160
      %s163 = sphi 0, %s162
      %s177 = sphi 0, %s163
      %s183 = sphi 0, %s185
      %s186 = sphi 0, %s183
      %s187 = sphi 0, %s186
      %s203 = sphi 0, %s187
    $region4: #{tpu_custom_call.1} parent=1 // loop_header_branch
      %24 = sbr.rel (%p22) target = $region8
    $region5: #{tpu_custom_call.1} parent=1 // loop_body
      %s26 = ssub.s32 %s21, 1
      %s27 = ssub.s32 %s21, 2
      %s28 = sadd.s32 %s21, 1
      %s29 = ssub.s32 %s21, %s28
      %p30 = scmp.eq.s32.totalorder %s29, 0
      %s32 = sadd.s32 %s31, 1
      %s33 = scalar_select %p30, %s31, %s32
      %p36 = pneg %p30
      %p37 = scmp.eq.s32.totalorder %s21, 1
      %p38 = por %p36, %p37
      %p39 = scmp.ne.s32.totalorder %s31, %s34
      %p40 = scmp.eq.s32.totalorder %s21, 0
      %p41 = por %p39, %p40
      %p42 = scmp.ne.s32.totalorder %s31, %s34
      %p43 = scmp.eq.s32.totalorder %s26, 1
      %p44 = por %p42, %p43
      %p45 = scmp.ne.s32.totalorder %s34, %s35
      %p46 = scmp.eq.s32.totalorder %s26, 0
      %p47 = por %p45, %p46
      %p48 = scmp.ne.s32.totalorder %s34, %s35
      %p49 = scmp.eq.s32.totalorder %s27, 1
      %p50 = por %p48, %p49
      %p52 = scmp.ne.s32.totalorder %s35, %s51
      %p53 = scmp.eq.s32.totalorder %s27, 0
      %p54 = por %p52, %p53
      %s56 = sadd.s32 %s55, 1
      %p59 = scmp.eq.s32.totalorder %s21, 1
      %p60 = scmp.ne.s32.totalorder %s55, %s57
      %p61 = scmp.eq.s32.totalorder %s21, 0
      %p62 = por %p60, %p61
      %p63 = scmp.ne.s32.totalorder %s55, %s57
      %p64 = scmp.eq.s32.totalorder %s26, 1
      %p65 = por %p63, %p64
      %p66 = scmp.ne.s32.totalorder %s57, %s58
      %p67 = scmp.eq.s32.totalorder %s26, 0
      %p68 = por %p66, %p67
      %p69 = scmp.ne.s32.totalorder %s57, %s58
      %p70 = scmp.eq.s32.totalorder %s27, 1
      %p71 = por %p69, %p70
      %p73 = scmp.ne.s32.totalorder %s58, %s72
      %p74 = scmp.eq.s32.totalorder %s27, 0
      %p75 = por %p73, %p74
      %s77 = sadd.s32 %s76, 1
      %p80 = scmp.eq.s32.totalorder %s21, 1
      %p81 = scmp.ne.s32.totalorder %s76, %s78
      %p82 = scmp.eq.s32.totalorder %s21, 0
      %p83 = por %p81, %p82
      %p84 = scmp.ne.s32.totalorder %s76, %s78
      %p85 = scmp.eq.s32.totalorder %s26, 1
      %p86 = por %p84, %p85
      %p87 = scmp.ne.s32.totalorder %s78, %s79
      %p88 = scmp.eq.s32.totalorder %s26, 0
      %p89 = por %p87, %p88
      %p90 = scmp.ne.s32.totalorder %s78, %s79
      %p91 = scmp.eq.s32.totalorder %s27, 1
      %p92 = por %p90, %p91
      %p94 = scmp.ne.s32.totalorder %s79, %s93
      %p95 = scmp.eq.s32.totalorder %s27, 0
      %p96 = por %p94, %p95
      %s98 = sadd.s32 %s97, 1
      %p101 = scmp.eq.s32.totalorder %s21, 1
      %p102 = scmp.ne.s32.totalorder %s97, %s99
      %p103 = scmp.eq.s32.totalorder %s21, 0
      %p104 = por %p102, %p103
      %p105 = scmp.ne.s32.totalorder %s97, %s99
      %p106 = scmp.eq.s32.totalorder %s26, 1
      %p107 = por %p105, %p106
      %p108 = scmp.ne.s32.totalorder %s99, %s100
      %p109 = scmp.eq.s32.totalorder %s26, 0
      %p110 = por %p108, %p109
      %p111 = scmp.ne.s32.totalorder %s99, %s100
      %p112 = scmp.eq.s32.totalorder %s27, 1
      %p113 = por %p111, %p112
      %p115 = scmp.ne.s32.totalorder %s100, %s114
      %p116 = scmp.eq.s32.totalorder %s27, 0
      %p117 = por %p115, %p116
      %s119 = sadd.s32 %s118, 1
      %p122 = scmp.eq.s32.totalorder %s21, 1
      %p123 = scmp.ne.s32.totalorder %s118, %s120
      %p124 = scmp.eq.s32.totalorder %s21, 0
      %p125 = por %p123, %p124
      %p126 = scmp.ne.s32.totalorder %s118, %s120
      %p127 = scmp.eq.s32.totalorder %s26, 1
      %p128 = por %p126, %p127
      %p129 = scmp.ne.s32.totalorder %s120, %s121
      %p130 = scmp.eq.s32.totalorder %s26, 0
      %p131 = por %p129, %p130
      %p132 = scmp.ne.s32.totalorder %s120, %s121
      %p133 = scmp.eq.s32.totalorder %s27, 1
      %p134 = por %p132, %p133
      %p136 = scmp.ne.s32.totalorder %s121, %s135
      %p137 = scmp.eq.s32.totalorder %s27, 0
      %p138 = por %p136, %p137
      %s140 = sadd.s32 %s139, 1
      %p143 = scmp.eq.s32.totalorder %s21, 1
      %p144 = scmp.ne.s32.totalorder %s139, %s141
      %p145 = scmp.eq.s32.totalorder %s21, 0
      %p146 = por %p144, %p145
      %p147 = scmp.ne.s32.totalorder %s139, %s141
      %p148 = scmp.eq.s32.totalorder %s26, 1
      %p149 = por %p147, %p148
      %p150 = scmp.ne.s32.totalorder %s141, %s142
      %p151 = scmp.eq.s32.totalorder %s26, 0
      %p152 = por %p150, %p151
      %p153 = scmp.ne.s32.totalorder %s141, %s142
      %p154 = scmp.eq.s32.totalorder %s27, 1
      %p155 = por %p153, %p154
      %p157 = scmp.ne.s32.totalorder %s142, %s156
      %p158 = scmp.eq.s32.totalorder %s27, 0
      %p159 = por %p157, %p158
      %s161 = sadd.s32 %s160, 1
      %p164 = scmp.eq.s32.totalorder %s21, 1
      %p165 = scmp.ne.s32.totalorder %s160, %s162
      %p166 = scmp.eq.s32.totalorder %s21, 0
      %p167 = por %p165, %p166
      %p168 = scmp.ne.s32.totalorder %s160, %s162
      %p169 = scmp.eq.s32.totalorder %s26, 1
      %p170 = por %p168, %p169
      %p171 = scmp.ne.s32.totalorder %s162, %s163
      %p172 = scmp.eq.s32.totalorder %s26, 0
      %p173 = por %p171, %p172
      %p174 = scmp.ne.s32.totalorder %s162, %s163
      %p175 = scmp.eq.s32.totalorder %s27, 1
      %p176 = por %p174, %p175
      %p178 = scmp.ne.s32.totalorder %s163, %s177
      %p179 = scmp.eq.s32.totalorder %s27, 0
      %p180 = por %p178, %p179
      %s181 = ssub.s32 %s21, %s28
      %p182 = scmp.eq.s32.totalorder %s181, 0
      %s184 = sadd.s32 %s183, 1
      %s185 = scalar_select %p182, %s183, %s184
      %p188 = pneg %p182
      %p189 = scmp.eq.s32.totalorder %s21, 1
      %p190 = por %p188, %p189
      %p191 = scmp.ne.s32.totalorder %s183, %s186
      %p192 = scmp.eq.s32.totalorder %s21, 0
      %p193 = por %p191, %p192
      %p194 = scmp.ne.s32.totalorder %s183, %s186
      %p195 = scmp.eq.s32.totalorder %s26, 1
      %p196 = por %p194, %p195
      %p197 = scmp.ne.s32.totalorder %s186, %s187
      %p198 = scmp.eq.s32.totalorder %s26, 0
      %p199 = por %p197, %p198
      %p200 = scmp.ne.s32.totalorder %s186, %s187
      %p201 = scmp.eq.s32.totalorder %s27, 1
      %p202 = por %p200, %p201
      %p204 = scmp.ne.s32.totalorder %s187, %s203
      %p205 = scmp.eq.s32.totalorder %s27, 0
      %p206 = por %p204, %p205
      %p207 = scmp.le.s32.totalorder 1, %s21
      %p208 = scmp.lt.s32.totalorder %s21, 3
      %p209 = pnand %p207, %p208
      %p210 = pneg %p209
      // Predicated region
      $region9: #{tpu_custom_call.1} parent=5 // pred_check
        _
      $region10: #{tpu_custom_call.1} parent=5 // pred_check_branch
        %212 = sbr.rel (%p209) target = $region12
      $region11: #{tpu_custom_call.1} parent=5 // pred_region
        %s213 = ssub.s32 %s21, 1
        // Predicated region
        $region13: #{tpu_custom_call.1} parent=11 // pred_check
          %p214 = pneg %p68
        $region14: #{tpu_custom_call.1} parent=11 // pred_check_branch
          %216 = sbr.rel (%p214) target = $region16
        $region15: #{tpu_custom_call.1} parent=11 // pred_region
          %218 = vsyncadd [#allocation6], 0
          %s219 = sshll.u32 %s1, 4
          %s220 = int_to_ptr.hbm [resolvable:$true] %s219
          %s221 = sshll.u32 [#allocation5], 4
          %s222 = int_to_ptr.vmem [resolvable:$true] %s221
          %227 = dma.hbm_to_vmem [thread:$0]  %s220, 4096, %s222, [#allocation6], 256, 256, 16
        $region16: #{tpu_custom_call.1} parent=11 // pred_fallthru
          _
        // Predicated region
        $region17: #{tpu_custom_call.1} parent=11 // pred_check
          %p228 = pneg %p89
        $region18: #{tpu_custom_call.1} parent=11 // pred_check_branch
          %230 = sbr.rel (%p228) target = $region20
        $region19: #{tpu_custom_call.1} parent=11 // pred_region
          %232 = vsyncadd [#allocation6], 0
          %s234 = sshll.u32 %s2, 4
          %s235 = int_to_ptr.hbm [resolvable:$true] %s234
          %s236 = sshll.u32 [#allocation7], 4
          %s237 = int_to_ptr.vmem [resolvable:$true] %s236
          %239 = dma.hbm_to_vmem [thread:$0]  %s235, 32, %s237, [#allocation6]
        $region20: #{tpu_custom_call.1} parent=11 // pred_fallthru
          _
        // Predicated region
        $region21: #{tpu_custom_call.1} parent=11 // pred_check
          %p240 = pneg %p110
        $region22: #{tpu_custom_call.1} parent=11 // pred_check_branch
          %242 = sbr.rel (%p240) target = $region24
        $region23: #{tpu_custom_call.1} parent=11 // pred_region
          %244 = vsyncadd [#allocation9], 0
          %s245 = sshll.u32 %s3, 4
          %s246 = int_to_ptr.hbm [resolvable:$true] %s245
          %s247 = sshll.u32 [#allocation8], 4
          %s248 = int_to_ptr.vmem [resolvable:$true] %s247
          %253 = dma.hbm_to_vmem [thread:$0]  %s246, 8192, %s248, [#allocation9], 256, 256, 16
        $region24: #{tpu_custom_call.1} parent=11 // pred_fallthru
          _
        // Predicated region
        $region25: #{tpu_custom_call.1} parent=11 // pred_check
          %p254 = pneg %p131
        $region26: #{tpu_custom_call.1} parent=11 // pred_check_branch
          %256 = sbr.rel (%p254) target = $region28
        $region27: #{tpu_custom_call.1} parent=11 // pred_region
          _
        $region28: #{tpu_custom_call.1} parent=11 // pred_fallthru
          _
        // Predicated region
        $region29: #{tpu_custom_call.1} parent=11 // pred_check
          %p257 = pneg %p152
        $region30: #{tpu_custom_call.1} parent=11 // pred_check_branch
          %259 = sbr.rel (%p257) target = $region32
        $region31: #{tpu_custom_call.1} parent=11 // pred_region
          %261 = vsyncadd [#allocation9], 0
          %s262 = sshll.u32 %s5, 4
          %s263 = int_to_ptr.hbm [resolvable:$true] %s262
          %s264 = sshll.u32 [#allocation10], 4
          %s265 = int_to_ptr.vmem [resolvable:$true] %s264
          %270 = dma.hbm_to_vmem [thread:$0]  %s263, 4096, %s265, [#allocation9], 128, 128, 8
        $region32: #{tpu_custom_call.1} parent=11 // pred_fallthru
          _
        // Predicated region
        $region33: #{tpu_custom_call.1} parent=11 // pred_check
          %p271 = pneg %p173
        $region34: #{tpu_custom_call.1} parent=11 // pred_check_branch
          %273 = sbr.rel (%p271) target = $region36
        $region35: #{tpu_custom_call.1} parent=11 // pred_region
          _
        $region36: #{tpu_custom_call.1} parent=11 // pred_fallthru
          _
      $region12: #{tpu_custom_call.1} parent=5 // pred_fallthru
        _
      %p274 = scmp.lt.s32.totalorder %s21, 2
      // Predicated region
      $region37: #{tpu_custom_call.1} parent=5 // pred_check
        %p275 = pneg %p274
      $region38: #{tpu_custom_call.1} parent=5 // pred_check_branch
        %277 = sbr.rel (%p275) target = $region40
      $region39: #{tpu_custom_call.1} parent=5 // pred_region
        // Predicated region
        $region41: #{tpu_custom_call.1} parent=39 // pred_check
          %p278 = pneg %p41
        $region42: #{tpu_custom_call.1} parent=39 // pred_check_branch
          %280 = sbr.rel (%p278) target = $region44
        $region43: #{tpu_custom_call.1} parent=39 // pred_region
          %s281 = sand.u32 %s31, 1
          %s282 = scalar_lea.sflag [#allocation3], %s281
          %s283 = sand.u32 %s31, 1
          %s284 = smul.addr %s283, 8
          %s285 = scalar_lea.vmem [#allocation2], %s284
          %287 = vsyncadd %s282, 0
          %s288 = smul.addr %s21, 8
          %s289 = scalar_lea.hbm %s0, %s288
          %s291 = sshll.u32 %s289, 4
          %s292 = int_to_ptr.hbm [resolvable:$true] %s291
          %s293 = sshll.u32 %s285, 4
          %s294 = int_to_ptr.vmem [resolvable:$true] %s293
          %296 = dma.hbm_to_vmem [thread:$0]  %s292, 128, %s294, %s282
        $region44: #{tpu_custom_call.1} parent=39 // pred_fallthru
          _
      $region40: #{tpu_custom_call.1} parent=5 // pred_fallthru
        _
      %p297 = scmp.le.s32.totalorder 1, %s21
      %p298 = scmp.lt.s32.totalorder %s21, 3
      %p299 = pnand %p297, %p298
      %p300 = pneg %p299
      // Predicated region
      $region45: #{tpu_custom_call.1} parent=5 // pred_check
        _
      $region46: #{tpu_custom_call.1} parent=5 // pred_check_branch
        %302 = sbr.rel (%p299) target = $region48
      $region47: #{tpu_custom_call.1} parent=5 // pred_region
        %s303 = ssub.s32 %s21, 1
        %s304 = sand.u32 %s34, 1
        %s305 = scalar_lea.sflag [#allocation3], %s304
        %s306 = sand.u32 %s34, 1
        %s307 = smul.addr %s306, 8
        %s308 = scalar_lea.vmem [#allocation2], %s307
        // Predicated region
        $region49: #{tpu_custom_call.1} parent=47 // pred_check
          %p309 = pneg %p47
        $region50: #{tpu_custom_call.1} parent=47 // pred_check_branch
          %311 = sbr.rel (%p309) target = $region52
        $region51: #{tpu_custom_call.1} parent=47 // pred_region
          %313 = dma.done %s305, 128
        $region52: #{tpu_custom_call.1} parent=47 // pred_fallthru
          _
        // Predicated region
        $region53: #{tpu_custom_call.1} parent=47 // pred_check
          %p314 = pneg %p68
        $region54: #{tpu_custom_call.1} parent=47 // pred_check_branch
          %316 = sbr.rel (%p314) target = $region56
        $region55: #{tpu_custom_call.1} parent=47 // pred_region
          %318 = dma.done [#allocation6], 4096
        $region56: #{tpu_custom_call.1} parent=47 // pred_fallthru
          _
        // Predicated region
        $region57: #{tpu_custom_call.1} parent=47 // pred_check
          %p319 = pneg %p89
        $region58: #{tpu_custom_call.1} parent=47 // pred_check_branch
          %321 = sbr.rel (%p319) target = $region60
        $region59: #{tpu_custom_call.1} parent=47 // pred_region
          %323 = dma.done [#allocation6], 32
        $region60: #{tpu_custom_call.1} parent=47 // pred_fallthru
          _
        // Predicated region
        $region61: #{tpu_custom_call.1} parent=47 // pred_check
          %p324 = pneg %p110
        $region62: #{tpu_custom_call.1} parent=47 // pred_check_branch
          %326 = sbr.rel (%p324) target = $region64
        $region63: #{tpu_custom_call.1} parent=47 // pred_region
          %328 = dma.done [#allocation9], 8192
        $region64: #{tpu_custom_call.1} parent=47 // pred_fallthru
          _
        // Predicated region
        $region65: #{tpu_custom_call.1} parent=47 // pred_check
          %p329 = pneg %p152
        $region66: #{tpu_custom_call.1} parent=47 // pred_check_branch
          %331 = sbr.rel (%p329) target = $region68
        $region67: #{tpu_custom_call.1} parent=47 // pred_region
          %333 = dma.done [#allocation9], 4096
        $region68: #{tpu_custom_call.1} parent=47 // pred_fallthru
          _
        %s334 = sand.u32 %s34, 1
        %s335 = scalar_lea.sflag [#allocation3], %s334
        %s336 = sand.u32 %s34, 1
        %s337 = smul.addr %s336, 8
        %s338 = scalar_lea.vmem [#allocation2], %s337
        %p339 = pneg %p47
        %p340 = pneg %p44
        %p341 = pneg %p68
        %p342 = pneg %p65
        %p343 = pneg %p89
        %p344 = pneg %p86
        %p345 = pneg %p110
        %p346 = pneg %p107
        %p347 = pneg %p131
        %p348 = pneg %p128
        %p349 = pneg %p152
        %p350 = pneg %p149
        %p351 = pneg %p173
        %p352 = pneg %p170
        %p353 = pneg %p199
        %p354 = pneg %p196
        %s355 = sand.u32 %s186, 1
        %s356 = scalar_lea.sflag [#allocation4], %s355
        %s357 = sand.u32 %s186, 1
        %s358 = smul.addr %s357, 8
        %s359 = scalar_lea.vmem [#allocation11], %s358
        %v360 = vld [vmem:[%s308] sm:$0xff]
        %v361 = vld [vmem:[#allocation5] sm:$0xff]
        %v362 = vld [vmem:[#allocation5 + $0x8] sm:$0xff]
        %v363 = vld [vmem:[#allocation5 + $0x10] sm:$0xff]
        %v364 = vld [vmem:[#allocation5 + $0x18] sm:$0xff]
        %v365 = vld [vmem:[#allocation5 + $0x20] sm:$0xff]
        %v366 = vld [vmem:[#allocation5 + $0x28] sm:$0xff]
        %v367 = vld [vmem:[#allocation5 + $0x30] sm:$0xff]
        %v368 = vld [vmem:[#allocation5 + $0x38] sm:$0xff]
        %v369 = vld [vmem:[#allocation5 + $0x40] sm:$0xff]
        %v370 = vld [vmem:[#allocation5 + $0x48] sm:$0xff]
        %v371 = vld [vmem:[#allocation5 + $0x50] sm:$0xff]
        %v372 = vld [vmem:[#allocation5 + $0x58] sm:$0xff]
        %v373 = vld [vmem:[#allocation5 + $0x60] sm:$0xff]
        %v374 = vld [vmem:[#allocation5 + $0x68] sm:$0xff]
        %v375 = vld [vmem:[#allocation5 + $0x70] sm:$0xff]
        %v376 = vld [vmem:[#allocation5 + $0x78] sm:$0xff]
        %v377 = vld [vmem:[#allocation5 + $0x80] sm:$0xff]
        %v378 = vld [vmem:[#allocation5 + $0x88] sm:$0xff]
        %v379 = vld [vmem:[#allocation5 + $0x90] sm:$0xff]
        %v380 = vld [vmem:[#allocation5 + $0x98] sm:$0xff]
        %v381 = vld [vmem:[#allocation5 + $0xa0] sm:$0xff]
        %v382 = vld [vmem:[#allocation5 + $0xa8] sm:$0xff]
        %v383 = vld [vmem:[#allocation5 + $0xb0] sm:$0xff]
        %v384 = vld [vmem:[#allocation5 + $0xb8] sm:$0xff]
        %v385 = vld [vmem:[#allocation5 + $0xc0] sm:$0xff]
        %v386 = vld [vmem:[#allocation5 + $0xc8] sm:$0xff]
        %v387 = vld [vmem:[#allocation5 + $0xd0] sm:$0xff]
        %v388 = vld [vmem:[#allocation5 + $0xd8] sm:$0xff]
        %v389 = vld [vmem:[#allocation5 + $0xe0] sm:$0xff]
        %v390 = vld [vmem:[#allocation5 + $0xe8] sm:$0xff]
        %v391 = vld [vmem:[#allocation5 + $0xf0] sm:$0xff]
        %v392 = vld [vmem:[#allocation5 + $0xf8] sm:$0xff]
        %v393 = vld [vmem:[#allocation7] sm:$0x3]
        %v395 = vperm.slane %v393, 0
        %v396 = vperm.slane %v393, 1
        %v399 = vand.u32 %v391, 4294901760
        %400 = vmatpush.msra.mxu0 %v399
        %v401 = vand.u32 %v389, 4294901760
        %402 = vmatpush.msra.mxu0 %v401
        %v403 = vand.u32 %v387, 4294901760
        %404 = vmatpush.msra.mxu0 %v403
        %v405 = vand.u32 %v385, 4294901760
        %406 = vmatpush.msra.mxu0 %v405
        %v407 = vand.u32 %v383, 4294901760
        %408 = vmatpush.msra.mxu0 %v407
        %v409 = vand.u32 %v381, 4294901760
        %410 = vmatpush.msra.mxu0 %v409
        %v411 = vand.u32 %v379, 4294901760
        %412 = vmatpush.msra.mxu0 %v411
        %v413 = vand.u32 %v377, 4294901760
        %414 = vmatpush.msra.mxu0 %v413
        %v415 = vand.u32 %v375, 4294901760
        %416 = vmatpush.msra.mxu0 %v415
        %v417 = vand.u32 %v373, 4294901760
        %418 = vmatpush.msra.mxu0 %v417
        %v419 = vand.u32 %v371, 4294901760
        %420 = vmatpush.msra.mxu0 %v419
        %v421 = vand.u32 %v369, 4294901760
        %422 = vmatpush.msra.mxu0 %v421
        %v423 = vand.u32 %v367, 4294901760
        %424 = vmatpush.msra.mxu0 %v423
        %v425 = vand.u32 %v365, 4294901760
        %426 = vmatpush.msra.mxu0 %v425
        %v427 = vand.u32 %v363, 4294901760
        %428 = vmatpush.msra.mxu0 %v427
        %v429 = vand.u32 %v361, 4294901760
        %430 = vmatpush.msra.mxu0 %v429
        %v431 = vand.u32 %v360, 4294901760
        %v432 = vsub.f32 %v360, %v431
        %v433 = vand.u32 %v432, 4294901760
        %v434 = vsub.f32 %v432, %v433
        %v435 = vand.u32 %v434, 4294901760
        %436 = vmatmul.f32.gmra.mxu0 %v435
        %v437 = vpop.f32.mrf.mxu0
        %v438 = vadd.f32 %v395, %v437
        %439 = vdwg.mxu0
        %v440 = vand.u32 %v391, 4294901760
        %v441 = vsub.f32 %v391, %v440
        %v442 = vand.u32 %v441, 4294901760
        %v443 = vsub.f32 %v441, %v442
        %v444 = vand.u32 %v443, 4294901760
        %445 = vmatpush.msra.mxu0 %v444
        %v446 = vand.u32 %v389, 4294901760
        %v447 = vsub.f32 %v389, %v446
        %v448 = vand.u32 %v447, 4294901760
        %v449 = vsub.f32 %v447, %v448
        %v450 = vand.u32 %v449, 4294901760
        %451 = vmatpush.msra.mxu0 %v450
        %v452 = vand.u32 %v387, 4294901760
        %v453 = vsub.f32 %v387, %v452
        %v454 = vand.u32 %v453, 4294901760
        %v455 = vsub.f32 %v453, %v454
        %v456 = vand.u32 %v455, 4294901760
        %457 = vmatpush.msra.mxu0 %v456
        %v458 = vand.u32 %v385, 4294901760
        %v459 = vsub.f32 %v385, %v458
        %v460 = vand.u32 %v459, 4294901760
        %v461 = vsub.f32 %v459, %v460
        %v462 = vand.u32 %v461, 4294901760
        %463 = vmatpush.msra.mxu0 %v462
        %v464 = vand.u32 %v383, 4294901760
        %v465 = vsub.f32 %v383, %v464
        %v466 = vand.u32 %v465, 4294901760
        %v467 = vsub.f32 %v465, %v466
        %v468 = vand.u32 %v467, 4294901760
        %469 = vmatpush.msra.mxu0 %v468
        %v470 = vand.u32 %v381, 4294901760
        %v471 = vsub.f32 %v381, %v470
        %v472 = vand.u32 %v471, 4294901760
        %v473 = vsub.f32 %v471, %v472
        %v474 = vand.u32 %v473, 4294901760
        %475 = vmatpush.msra.mxu0 %v474
        %v476 = vand.u32 %v379, 4294901760
        %v477 = vsub.f32 %v379, %v476
        %v478 = vand.u32 %v477, 4294901760
        %v479 = vsub.f32 %v477, %v478
        %v480 = vand.u32 %v479, 4294901760
        %481 = vmatpush.msra.mxu0 %v480
        %v482 = vand.u32 %v377, 4294901760
        %v483 = vsub.f32 %v377, %v482
        %v484 = vand.u32 %v483, 4294901760
        %v485 = vsub.f32 %v483, %v484
        %v486 = vand.u32 %v485, 4294901760
        %487 = vmatpush.msra.mxu0 %v486
        %v488 = vand.u32 %v375, 4294901760
        %v489 = vsub.f32 %v375, %v488
        %v490 = vand.u32 %v489, 4294901760
        %v491 = vsub.f32 %v489, %v490
        %v492 = vand.u32 %v491, 4294901760
        %493 = vmatpush.msra.mxu0 %v492
        %v494 = vand.u32 %v373, 4294901760
        %v495 = vsub.f32 %v373, %v494
        %v496 = vand.u32 %v495, 4294901760
        %v497 = vsub.f32 %v495, %v496
        %v498 = vand.u32 %v497, 4294901760
        %499 = vmatpush.msra.mxu0 %v498
        %v500 = vand.u32 %v371, 4294901760
        %v501 = vsub.f32 %v371, %v500
        %v502 = vand.u32 %v501, 4294901760
        %v503 = vsub.f32 %v501, %v502
        %v504 = vand.u32 %v503, 4294901760
        %505 = vmatpush.msra.mxu0 %v504
        %v506 = vand.u32 %v369, 4294901760
        %v507 = vsub.f32 %v369, %v506
        %v508 = vand.u32 %v507, 4294901760
        %v509 = vsub.f32 %v507, %v508
        %v510 = vand.u32 %v509, 4294901760
        %511 = vmatpush.msra.mxu0 %v510
        %v512 = vand.u32 %v367, 4294901760
        %v513 = vsub.f32 %v367, %v512
        %v514 = vand.u32 %v513, 4294901760
        %v515 = vsub.f32 %v513, %v514
        %v516 = vand.u32 %v515, 4294901760
        %517 = vmatpush.msra.mxu0 %v516
        %v518 = vand.u32 %v365, 4294901760
        %v519 = vsub.f32 %v365, %v518
        %v520 = vand.u32 %v519, 4294901760
        %v521 = vsub.f32 %v519, %v520
        %v522 = vand.u32 %v521, 4294901760
        %523 = vmatpush.msra.mxu0 %v522
        %v524 = vand.u32 %v363, 4294901760
        %v525 = vsub.f32 %v363, %v524
        %v526 = vand.u32 %v525, 4294901760
        %v527 = vsub.f32 %v525, %v526
        %v528 = vand.u32 %v527, 4294901760
        %529 = vmatpush.msra.mxu0 %v528
        %v530 = vand.u32 %v361, 4294901760
        %v531 = vsub.f32 %v361, %v530
        %v532 = vand.u32 %v531, 4294901760
        %v533 = vsub.f32 %v531, %v532
        %v534 = vand.u32 %v533, 4294901760
        %535 = vmatpush.msra.mxu0 %v534
        %v536 = vand.u32 %v360, 4294901760
        %537 = vmatmul.f32.gmra.mxu0 %v536
        %v538 = vpop.f32.mrf.mxu0
        %v539 = vadd.f32 %v438, %v538
        %540 = vdwg.mxu0
        %v541 = vand.u32 %v391, 4294901760
        %v542 = vsub.f32 %v391, %v541
        %543 = vmatpush.msra.mxu0 %v542
        %v544 = vand.u32 %v389, 4294901760
        %v545 = vsub.f32 %v389, %v544
        %546 = vmatpush.msra.mxu0 %v545
        %v547 = vand.u32 %v387, 4294901760
        %v548 = vsub.f32 %v387, %v547
        %549 = vmatpush.msra.mxu0 %v548
        %v550 = vand.u32 %v385, 4294901760
        %v551 = vsub.f32 %v385, %v550
        %552 = vmatpush.msra.mxu0 %v551
        %v553 = vand.u32 %v383, 4294901760
        %v554 = vsub.f32 %v383, %v553
        %555 = vmatpush.msra.mxu0 %v554
        %v556 = vand.u32 %v381, 4294901760
        %v557 = vsub.f32 %v381, %v556
        %558 = vmatpush.msra.mxu0 %v557
        %v559 = vand.u32 %v379, 4294901760
        %v560 = vsub.f32 %v379, %v559
        %561 = vmatpush.msra.mxu0 %v560
        %v562 = vand.u32 %v377, 4294901760
        %v563 = vsub.f32 %v377, %v562
        %564 = vmatpush.msra.mxu0 %v563
        %v565 = vand.u32 %v375, 4294901760
        %v566 = vsub.f32 %v375, %v565
        %567 = vmatpush.msra.mxu0 %v566
        %v568 = vand.u32 %v373, 4294901760
        %v569 = vsub.f32 %v373, %v568
        %570 = vmatpush.msra.mxu0 %v569
        %v571 = vand.u32 %v371, 4294901760
        %v572 = vsub.f32 %v371, %v571
        %573 = vmatpush.msra.mxu0 %v572
        %v574 = vand.u32 %v369, 4294901760
        %v575 = vsub.f32 %v369, %v574
        %576 = vmatpush.msra.mxu0 %v575
        %v577 = vand.u32 %v367, 4294901760
        %v578 = vsub.f32 %v367, %v577
        %579 = vmatpush.msra.mxu0 %v578
        %v580 = vand.u32 %v365, 4294901760
        %v581 = vsub.f32 %v365, %v580
        %582 = vmatpush.msra.mxu0 %v581
        %v583 = vand.u32 %v363, 4294901760
        %v584 = vsub.f32 %v363, %v583
        %585 = vmatpush.msra.mxu0 %v584
        %v586 = vand.u32 %v361, 4294901760
        %v587 = vsub.f32 %v361, %v586
        %588 = vmatpush.msra.mxu0 %v587
        %v589 = vand.u32 %v360, 4294901760
        %v590 = vsub.f32 %v360, %v589
        %591 = vmatmul.f32.gmra.mxu0 %v590
        %v592 = vpop.f32.mrf.mxu0
        %v593 = vadd.f32 %v539, %v592
        %594 = vdwg.mxu0
        %v595 = vand.u32 %v391, 4294901760
        %596 = vmatpush.msra.mxu0 %v595
        %v597 = vand.u32 %v389, 4294901760
        %598 = vmatpush.msra.mxu0 %v597
        %v599 = vand.u32 %v387, 4294901760
        %600 = vmatpush.msra.mxu0 %v599
        %v601 = vand.u32 %v385, 4294901760
        %602 = vmatpush.msra.mxu0 %v601
        %v603 = vand.u32 %v383, 4294901760
        %604 = vmatpush.msra.mxu0 %v603
        %v605 = vand.u32 %v381, 4294901760
        %606 = vmatpush.msra.mxu0 %v605
        %v607 = vand.u32 %v379, 4294901760
        %608 = vmatpush.msra.mxu0 %v607
        %v609 = vand.u32 %v377, 4294901760
        %610 = vmatpush.msra.mxu0 %v609
        %v611 = vand.u32 %v375, 4294901760
        %612 = vmatpush.msra.mxu0 %v611
        %v613 = vand.u32 %v373, 4294901760
        %614 = vmatpush.msra.mxu0 %v613
        %v615 = vand.u32 %v371, 4294901760
        %616 = vmatpush.msra.mxu0 %v615
        %v617 = vand.u32 %v369, 4294901760
        %618 = vmatpush.msra.mxu0 %v617
        %v619 = vand.u32 %v367, 4294901760
        %620 = vmatpush.msra.mxu0 %v619
        %v621 = vand.u32 %v365, 4294901760
        %622 = vmatpush.msra.mxu0 %v621
        %v623 = vand.u32 %v363, 4294901760
        %624 = vmatpush.msra.mxu0 %v623
        %v625 = vand.u32 %v361, 4294901760
        %626 = vmatpush.msra.mxu0 %v625
        %v627 = vand.u32 %v360, 4294901760
        %v628 = vsub.f32 %v360, %v627
        %v629 = vand.u32 %v628, 4294901760
        %630 = vmatmul.f32.gmra.mxu0 %v629
        %v631 = vpop.f32.mrf.mxu0
        %v632 = vadd.f32 %v593, %v631
        %633 = vdwg.mxu0
        %v634 = vand.u32 %v391, 4294901760
        %v635 = vsub.f32 %v391, %v634
        %v636 = vand.u32 %v635, 4294901760
        %637 = vmatpush.msra.mxu0 %v636
        %v638 = vand.u32 %v389, 4294901760
        %v639 = vsub.f32 %v389, %v638
        %v640 = vand.u32 %v639, 4294901760
        %641 = vmatpush.msra.mxu0 %v640
        %v642 = vand.u32 %v387, 4294901760
        %v643 = vsub.f32 %v387, %v642
        %v644 = vand.u32 %v643, 4294901760
        %645 = vmatpush.msra.mxu0 %v644
        %v646 = vand.u32 %v385, 4294901760
        %v647 = vsub.f32 %v385, %v646
        %v648 = vand.u32 %v647, 4294901760
        %649 = vmatpush.msra.mxu0 %v648
        %v650 = vand.u32 %v383, 4294901760
        %v651 = vsub.f32 %v383, %v650
        %v652 = vand.u32 %v651, 4294901760
        %653 = vmatpush.msra.mxu0 %v652
        %v654 = vand.u32 %v381, 4294901760
        %v655 = vsub.f32 %v381, %v654
        %v656 = vand.u32 %v655, 4294901760
        %657 = vmatpush.msra.mxu0 %v656
        %v658 = vand.u32 %v379, 4294901760
        %v659 = vsub.f32 %v379, %v658
        %v660 = vand.u32 %v659, 4294901760
        %661 = vmatpush.msra.mxu0 %v660
        %v662 = vand.u32 %v377, 4294901760
        %v663 = vsub.f32 %v377, %v662
        %v664 = vand.u32 %v663, 4294901760
        %665 = vmatpush.msra.mxu0 %v664
        %v666 = vand.u32 %v375, 4294901760
        %v667 = vsub.f32 %v375, %v666
        %v668 = vand.u32 %v667, 4294901760
        %669 = vmatpush.msra.mxu0 %v668
        %v670 = vand.u32 %v373, 4294901760
        %v671 = vsub.f32 %v373, %v670
        %v672 = vand.u32 %v671, 4294901760
        %673 = vmatpush.msra.mxu0 %v672
        %v674 = vand.u32 %v371, 4294901760
        %v675 = vsub.f32 %v371, %v674
        %v676 = vand.u32 %v675, 4294901760
        %677 = vmatpush.msra.mxu0 %v676
        %v678 = vand.u32 %v369, 4294901760
        %v679 = vsub.f32 %v369, %v678
        %v680 = vand.u32 %v679, 4294901760
        %681 = vmatpush.msra.mxu0 %v680
        %v682 = vand.u32 %v367, 4294901760
        %v683 = vsub.f32 %v367, %v682
        %v684 = vand.u32 %v683, 4294901760
        %685 = vmatpush.msra.mxu0 %v684
        %v686 = vand.u32 %v365, 4294901760
        %v687 = vsub.f32 %v365, %v686
        %v688 = vand.u32 %v687, 4294901760
        %689 = vmatpush.msra.mxu0 %v688
        %v690 = vand.u32 %v363, 4294901760
        %v691 = vsub.f32 %v363, %v690
        %v692 = vand.u32 %v691, 4294901760
        %693 = vmatpush.msra.mxu0 %v692
        %v694 = vand.u32 %v361, 4294901760
        %v695 = vsub.f32 %v361, %v694
        %v696 = vand.u32 %v695, 4294901760
        %697 = vmatpush.msra.mxu0 %v696
        %v698 = vand.u32 %v360, 4294901760
        %699 = vmatmul.f32.gmra.mxu0 %v698
        %v700 = vpop.f32.mrf.mxu0
        %v701 = vadd.f32 %v632, %v700
        %702 = vdwg.mxu0
        %v703 = vand.u32 %v391, 4294901760
        %704 = vmatpush.msra.mxu0 %v703
        %v705 = vand.u32 %v389, 4294901760
        %706 = vmatpush.msra.mxu0 %v705
        %v707 = vand.u32 %v387, 4294901760
        %708 = vmatpush.msra.mxu0 %v707
        %v709 = vand.u32 %v385, 4294901760
        %710 = vmatpush.msra.mxu0 %v709
        %v711 = vand.u32 %v383, 4294901760
        %712 = vmatpush.msra.mxu0 %v711
        %v713 = vand.u32 %v381, 4294901760
        %714 = vmatpush.msra.mxu0 %v713
        %v715 = vand.u32 %v379, 4294901760
        %716 = vmatpush.msra.mxu0 %v715
        %v717 = vand.u32 %v377, 4294901760
        %718 = vmatpush.msra.mxu0 %v717
        %v719 = vand.u32 %v375, 4294901760
        %720 = vmatpush.msra.mxu0 %v719
        %v721 = vand.u32 %v373, 4294901760
        %722 = vmatpush.msra.mxu0 %v721
        %v723 = vand.u32 %v371, 4294901760
        %724 = vmatpush.msra.mxu0 %v723
        %v725 = vand.u32 %v369, 4294901760
        %726 = vmatpush.msra.mxu0 %v725
        %v727 = vand.u32 %v367, 4294901760
        %728 = vmatpush.msra.mxu0 %v727
        %v729 = vand.u32 %v365, 4294901760
        %730 = vmatpush.msra.mxu0 %v729
        %v731 = vand.u32 %v363, 4294901760
        %732 = vmatpush.msra.mxu0 %v731
        %v733 = vand.u32 %v361, 4294901760
        %734 = vmatpush.msra.mxu0 %v733
        %v735 = vand.u32 %v360, 4294901760
        %736 = vmatmul.f32.gmra.mxu0 %v735
        %v737 = vpop.f32.mrf.mxu0
        %v738 = vadd.f32 %v701, %v737
        %739 = vdwg.mxu0
        %v740 = vand.u32 %v392, 4294901760
        %741 = vmatpush.msra.mxu0 %v740
        %v742 = vand.u32 %v390, 4294901760
        %743 = vmatpush.msra.mxu0 %v742
        %v744 = vand.u32 %v388, 4294901760
        %745 = vmatpush.msra.mxu0 %v744
        %v746 = vand.u32 %v386, 4294901760
        %747 = vmatpush.msra.mxu0 %v746
        %v748 = vand.u32 %v384, 4294901760
        %749 = vmatpush.msra.mxu0 %v748
        %v750 = vand.u32 %v382, 4294901760
        %751 = vmatpush.msra.mxu0 %v750
        %v752 = vand.u32 %v380, 4294901760
        %753 = vmatpush.msra.mxu0 %v752
        %v754 = vand.u32 %v378, 4294901760
        %755 = vmatpush.msra.mxu0 %v754
        %v756 = vand.u32 %v376, 4294901760
        %757 = vmatpush.msra.mxu0 %v756
        %v758 = vand.u32 %v374, 4294901760
        %759 = vmatpush.msra.mxu0 %v758
        %v760 = vand.u32 %v372, 4294901760
        %761 = vmatpush.msra.mxu0 %v760
        %v762 = vand.u32 %v370, 4294901760
        %763 = vmatpush.msra.mxu0 %v762
        %v764 = vand.u32 %v368, 4294901760
        %765 = vmatpush.msra.mxu0 %v764
        %v766 = vand.u32 %v366, 4294901760
        %767 = vmatpush.msra.mxu0 %v766
        %v768 = vand.u32 %v364, 4294901760
        %769 = vmatpush.msra.mxu0 %v768
        %v770 = vand.u32 %v362, 4294901760
        %771 = vmatpush.msra.mxu0 %v770
        %v772 = vand.u32 %v360, 4294901760
        %v773 = vsub.f32 %v360, %v772
        %v774 = vand.u32 %v773, 4294901760
        %v775 = vsub.f32 %v773, %v774
        %v776 = vand.u32 %v775, 4294901760
        %777 = vmatmul.f32.gmra.mxu0 %v776
        %v778 = vpop.f32.mrf.mxu0
        %v779 = vadd.f32 %v396, %v778
        %780 = vdwg.mxu0
        %v781 = vand.u32 %v392, 4294901760
        %v782 = vsub.f32 %v392, %v781
        %v783 = vand.u32 %v782, 4294901760
        %v784 = vsub.f32 %v782, %v783
        %v785 = vand.u32 %v784, 4294901760
        %786 = vmatpush.msra.mxu0 %v785
        %v787 = vand.u32 %v390, 4294901760
        %v788 = vsub.f32 %v390, %v787
        %v789 = vand.u32 %v788, 4294901760
        %v790 = vsub.f32 %v788, %v789
        %v791 = vand.u32 %v790, 4294901760
        %792 = vmatpush.msra.mxu0 %v791
        %v793 = vand.u32 %v388, 4294901760
        %v794 = vsub.f32 %v388, %v793
        %v795 = vand.u32 %v794, 4294901760
        %v796 = vsub.f32 %v794, %v795
        %v797 = vand.u32 %v796, 4294901760
        %798 = vmatpush.msra.mxu0 %v797
        %v799 = vand.u32 %v386, 4294901760
        %v800 = vsub.f32 %v386, %v799
        %v801 = vand.u32 %v800, 4294901760
        %v802 = vsub.f32 %v800, %v801
        %v803 = vand.u32 %v802, 4294901760
        %804 = vmatpush.msra.mxu0 %v803
        %v805 = vand.u32 %v384, 4294901760
        %v806 = vsub.f32 %v384, %v805
        %v807 = vand.u32 %v806, 4294901760
        %v808 = vsub.f32 %v806, %v807
        %v809 = vand.u32 %v808, 4294901760
        %810 = vmatpush.msra.mxu0 %v809
        %v811 = vand.u32 %v382, 4294901760
        %v812 = vsub.f32 %v382, %v811
        %v813 = vand.u32 %v812, 4294901760
        %v814 = vsub.f32 %v812, %v813
        %v815 = vand.u32 %v814, 4294901760
        %816 = vmatpush.msra.mxu0 %v815
        %v817 = vand.u32 %v380, 4294901760
        %v818 = vsub.f32 %v380, %v817
        %v819 = vand.u32 %v818, 4294901760
        %v820 = vsub.f32 %v818, %v819
        %v821 = vand.u32 %v820, 4294901760
        %822 = vmatpush.msra.mxu0 %v821
        %v823 = vand.u32 %v378, 4294901760
        %v824 = vsub.f32 %v378, %v823
        %v825 = vand.u32 %v824, 4294901760
        %v826 = vsub.f32 %v824, %v825
        %v827 = vand.u32 %v826, 4294901760
        %828 = vmatpush.msra.mxu0 %v827
        %v829 = vand.u32 %v376, 4294901760
        %v830 = vsub.f32 %v376, %v829
        %v831 = vand.u32 %v830, 4294901760
        %v832 = vsub.f32 %v830, %v831
        %v833 = vand.u32 %v832, 4294901760
        %834 = vmatpush.msra.mxu0 %v833
        %v835 = vand.u32 %v374, 4294901760
        %v836 = vsub.f32 %v374, %v835
        %v837 = vand.u32 %v836, 4294901760
        %v838 = vsub.f32 %v836, %v837
        %v839 = vand.u32 %v838, 4294901760
        %840 = vmatpush.msra.mxu0 %v839
        %v841 = vand.u32 %v372, 4294901760
        %v842 = vsub.f32 %v372, %v841
        %v843 = vand.u32 %v842, 4294901760
        %v844 = vsub.f32 %v842, %v843
        %v845 = vand.u32 %v844, 4294901760
        %846 = vmatpush.msra.mxu0 %v845
        %v847 = vand.u32 %v370, 4294901760
        %v848 = vsub.f32 %v370, %v847
        %v849 = vand.u32 %v848, 4294901760
        %v850 = vsub.f32 %v848, %v849
        %v851 = vand.u32 %v850, 4294901760
        %852 = vmatpush.msra.mxu0 %v851
        %v853 = vand.u32 %v368, 4294901760
        %v854 = vsub.f32 %v368, %v853
        %v855 = vand.u32 %v854, 4294901760
        %v856 = vsub.f32 %v854, %v855
        %v857 = vand.u32 %v856, 4294901760
        %858 = vmatpush.msra.mxu0 %v857
        %v859 = vand.u32 %v366, 4294901760
        %v860 = vsub.f32 %v366, %v859
        %v861 = vand.u32 %v860, 4294901760
        %v862 = vsub.f32 %v860, %v861
        %v863 = vand.u32 %v862, 4294901760
        %864 = vmatpush.msra.mxu0 %v863
        %v865 = vand.u32 %v364, 4294901760
        %v866 = vsub.f32 %v364, %v865
        %v867 = vand.u32 %v866, 4294901760
        %v868 = vsub.f32 %v866, %v867
        %v869 = vand.u32 %v868, 4294901760
        %870 = vmatpush.msra.mxu0 %v869
        %v871 = vand.u32 %v362, 4294901760
        %v872 = vsub.f32 %v362, %v871
        %v873 = vand.u32 %v872, 4294901760
        %v874 = vsub.f32 %v872, %v873
        %v875 = vand.u32 %v874, 4294901760
        %876 = vmatpush.msra.mxu0 %v875
        %v877 = vand.u32 %v360, 4294901760
        %878 = vmatmul.f32.gmra.mxu0 %v877
        %v879 = vpop.f32.mrf.mxu0
        %v880 = vadd.f32 %v779, %v879
        %881 = vdwg.mxu0
        %v882 = vand.u32 %v392, 4294901760
        %v883 = vsub.f32 %v392, %v882
        %884 = vmatpush.msra.mxu0 %v883
        %v885 = vand.u32 %v390, 4294901760
        %v886 = vsub.f32 %v390, %v885
        %887 = vmatpush.msra.mxu0 %v886
        %v888 = vand.u32 %v388, 4294901760
        %v889 = vsub.f32 %v388, %v888
        %890 = vmatpush.msra.mxu0 %v889
        %v891 = vand.u32 %v386, 4294901760
        %v892 = vsub.f32 %v386, %v891
        %893 = vmatpush.msra.mxu0 %v892
        %v894 = vand.u32 %v384, 4294901760
        %v895 = vsub.f32 %v384, %v894
        %896 = vmatpush.msra.mxu0 %v895
        %v897 = vand.u32 %v382, 4294901760
        %v898 = vsub.f32 %v382, %v897
        %899 = vmatpush.msra.mxu0 %v898
        %v900 = vand.u32 %v380, 4294901760
        %v901 = vsub.f32 %v380, %v900
        %902 = vmatpush.msra.mxu0 %v901
        %v903 = vand.u32 %v378, 4294901760
        %v904 = vsub.f32 %v378, %v903
        %905 = vmatpush.msra.mxu0 %v904
        %v906 = vand.u32 %v376, 4294901760
        %v907 = vsub.f32 %v376, %v906
        %908 = vmatpush.msra.mxu0 %v907
        %v909 = vand.u32 %v374, 4294901760
        %v910 = vsub.f32 %v374, %v909
        %911 = vmatpush.msra.mxu0 %v910
        %v912 = vand.u32 %v372, 4294901760
        %v913 = vsub.f32 %v372, %v912
        %914 = vmatpush.msra.mxu0 %v913
        %v915 = vand.u32 %v370, 4294901760
        %v916 = vsub.f32 %v370, %v915
        %917 = vmatpush.msra.mxu0 %v916
        %v918 = vand.u32 %v368, 4294901760
        %v919 = vsub.f32 %v368, %v918
        %920 = vmatpush.msra.mxu0 %v919
        %v921 = vand.u32 %v366, 4294901760
        %v922 = vsub.f32 %v366, %v921
        %923 = vmatpush.msra.mxu0 %v922
        %v924 = vand.u32 %v364, 4294901760
        %v925 = vsub.f32 %v364, %v924
        %926 = vmatpush.msra.mxu0 %v925
        %v927 = vand.u32 %v362, 4294901760
        %v928 = vsub.f32 %v362, %v927
        %929 = vmatpush.msra.mxu0 %v928
        %v930 = vand.u32 %v360, 4294901760
        %v931 = vsub.f32 %v360, %v930
        %932 = vmatmul.f32.gmra.mxu0 %v931
        %v933 = vpop.f32.mrf.mxu0
        %v934 = vadd.f32 %v880, %v933
        %935 = vdwg.mxu0
        %v936 = vand.u32 %v392, 4294901760
        %937 = vmatpush.msra.mxu0 %v936
        %v938 = vand.u32 %v390, 4294901760
        %939 = vmatpush.msra.mxu0 %v938
        %v940 = vand.u32 %v388, 4294901760
        %941 = vmatpush.msra.mxu0 %v940
        %v942 = vand.u32 %v386, 4294901760
        %943 = vmatpush.msra.mxu0 %v942
        %v944 = vand.u32 %v384, 4294901760
        %945 = vmatpush.msra.mxu0 %v944
        %v946 = vand.u32 %v382, 4294901760
        %947 = vmatpush.msra.mxu0 %v946
        %v948 = vand.u32 %v380, 4294901760
        %949 = vmatpush.msra.mxu0 %v948
        %v950 = vand.u32 %v378, 4294901760
        %951 = vmatpush.msra.mxu0 %v950
        %v952 = vand.u32 %v376, 4294901760
        %953 = vmatpush.msra.mxu0 %v952
        %v954 = vand.u32 %v374, 4294901760
        %955 = vmatpush.msra.mxu0 %v954
        %v956 = vand.u32 %v372, 4294901760
        %957 = vmatpush.msra.mxu0 %v956
        %v958 = vand.u32 %v370, 4294901760
        %959 = vmatpush.msra.mxu0 %v958
        %v960 = vand.u32 %v368, 4294901760
        %961 = vmatpush.msra.mxu0 %v960
        %v962 = vand.u32 %v366, 4294901760
        %963 = vmatpush.msra.mxu0 %v962
        %v964 = vand.u32 %v364, 4294901760
        %965 = vmatpush.msra.mxu0 %v964
        %v966 = vand.u32 %v362, 4294901760
        %967 = vmatpush.msra.mxu0 %v966
        %v968 = vand.u32 %v360, 4294901760
        %v969 = vsub.f32 %v360, %v968
        %v970 = vand.u32 %v969, 4294901760
        %971 = vmatmul.f32.gmra.mxu0 %v970
        %v972 = vpop.f32.mrf.mxu0
        %v973 = vadd.f32 %v934, %v972
        %974 = vdwg.mxu0
        %v975 = vand.u32 %v392, 4294901760
        %v976 = vsub.f32 %v392, %v975
        %v977 = vand.u32 %v976, 4294901760
        %978 = vmatpush.msra.mxu0 %v977
        %v979 = vand.u32 %v390, 4294901760
        %v980 = vsub.f32 %v390, %v979
        %v981 = vand.u32 %v980, 4294901760
        %982 = vmatpush.msra.mxu0 %v981
        %v983 = vand.u32 %v388, 4294901760
        %v984 = vsub.f32 %v388, %v983
        %v985 = vand.u32 %v984, 4294901760
        %986 = vmatpush.msra.mxu0 %v985
        %v987 = vand.u32 %v386, 4294901760
        %v988 = vsub.f32 %v386, %v987
        %v989 = vand.u32 %v988, 4294901760
        %990 = vmatpush.msra.mxu0 %v989
        %v991 = vand.u32 %v384, 4294901760
        %v992 = vsub.f32 %v384, %v991
        %v993 = vand.u32 %v992, 4294901760
        %994 = vmatpush.msra.mxu0 %v993
        %v995 = vand.u32 %v382, 4294901760
        %v996 = vsub.f32 %v382, %v995
        %v997 = vand.u32 %v996, 4294901760
        %998 = vmatpush.msra.mxu0 %v997
        %v999 = vand.u32 %v380, 4294901760
        %v1000 = vsub.f32 %v380, %v999
        %v1001 = vand.u32 %v1000, 4294901760
        %1002 = vmatpush.msra.mxu0 %v1001
        %v1003 = vand.u32 %v378, 4294901760
        %v1004 = vsub.f32 %v378, %v1003
        %v1005 = vand.u32 %v1004, 4294901760
        %1006 = vmatpush.msra.mxu0 %v1005
        %v1007 = vand.u32 %v376, 4294901760
        %v1008 = vsub.f32 %v376, %v1007
        %v1009 = vand.u32 %v1008, 4294901760
        %1010 = vmatpush.msra.mxu0 %v1009
        %v1011 = vand.u32 %v374, 4294901760
        %v1012 = vsub.f32 %v374, %v1011
        %v1013 = vand.u32 %v1012, 4294901760
        %1014 = vmatpush.msra.mxu0 %v1013
        %v1015 = vand.u32 %v372, 4294901760
        %v1016 = vsub.f32 %v372, %v1015
        %v1017 = vand.u32 %v1016, 4294901760
        %1018 = vmatpush.msra.mxu0 %v1017
        %v1019 = vand.u32 %v370, 4294901760
        %v1020 = vsub.f32 %v370, %v1019
        %v1021 = vand.u32 %v1020, 4294901760
        %1022 = vmatpush.msra.mxu0 %v1021
        %v1023 = vand.u32 %v368, 4294901760
        %v1024 = vsub.f32 %v368, %v1023
        %v1025 = vand.u32 %v1024, 4294901760
        %1026 = vmatpush.msra.mxu0 %v1025
        %v1027 = vand.u32 %v366, 4294901760
        %v1028 = vsub.f32 %v366, %v1027
        %v1029 = vand.u32 %v1028, 4294901760
        %1030 = vmatpush.msra.mxu0 %v1029
        %v1031 = vand.u32 %v364, 4294901760
        %v1032 = vsub.f32 %v364, %v1031
        %v1033 = vand.u32 %v1032, 4294901760
        %1034 = vmatpush.msra.mxu0 %v1033
        %v1035 = vand.u32 %v362, 4294901760
        %v1036 = vsub.f32 %v362, %v1035
        %v1037 = vand.u32 %v1036, 4294901760
        %1038 = vmatpush.msra.mxu0 %v1037
        %v1039 = vand.u32 %v360, 4294901760
        %1040 = vmatmul.f32.gmra.mxu0 %v1039
        %v1041 = vpop.f32.mrf.mxu0
        %v1042 = vadd.f32 %v973, %v1041
        %1043 = vdwg.mxu0
        %v1044 = vand.u32 %v392, 4294901760
        %1045 = vmatpush.msra.mxu0 %v1044
        %v1046 = vand.u32 %v390, 4294901760
        %1047 = vmatpush.msra.mxu0 %v1046
        %v1048 = vand.u32 %v388, 4294901760
        %1049 = vmatpush.msra.mxu0 %v1048
        %v1050 = vand.u32 %v386, 4294901760
        %1051 = vmatpush.msra.mxu0 %v1050
        %v1052 = vand.u32 %v384, 4294901760
        %1053 = vmatpush.msra.mxu0 %v1052
        %v1054 = vand.u32 %v382, 4294901760
        %1055 = vmatpush.msra.mxu0 %v1054
        %v1056 = vand.u32 %v380, 4294901760
        %1057 = vmatpush.msra.mxu0 %v1056
        %v1058 = vand.u32 %v378, 4294901760
        %1059 = vmatpush.msra.mxu0 %v1058
        %v1060 = vand.u32 %v376, 4294901760
        %1061 = vmatpush.msra.mxu0 %v1060
        %v1062 = vand.u32 %v374, 4294901760
        %1063 = vmatpush.msra.mxu0 %v1062
        %v1064 = vand.u32 %v372, 4294901760
        %1065 = vmatpush.msra.mxu0 %v1064
        %v1066 = vand.u32 %v370, 4294901760
        %1067 = vmatpush.msra.mxu0 %v1066
        %v1068 = vand.u32 %v368, 4294901760
        %1069 = vmatpush.msra.mxu0 %v1068
        %v1070 = vand.u32 %v366, 4294901760
        %1071 = vmatpush.msra.mxu0 %v1070
        %v1072 = vand.u32 %v364, 4294901760
        %1073 = vmatpush.msra.mxu0 %v1072
        %v1074 = vand.u32 %v362, 4294901760
        %1075 = vmatpush.msra.mxu0 %v1074
        %v1076 = vand.u32 %v360, 4294901760
        %1077 = vmatmul.f32.gmra.mxu0 %v1076
        %v1078 = vpop.f32.mrf.mxu0
        %v1079 = vadd.f32 %v1042, %v1078
        %1080 = vdwg.mxu0
        %v1081 = vmul.f32 %v738, 0.01
        %v1082 = vmul.f32 %v1079, 0.01
        %v1083 = vmax.f32 %v738, %v1081
        %v1084 = vmax.f32 %v1079, %v1082
        %v1085 = vld [vmem:[#allocation8] sm:$0xff]
        %v1086 = vld [vmem:[#allocation8 + $0x8] sm:$0xff]
        %v1087 = vld [vmem:[#allocation8 + $0x10] sm:$0xff]
        %v1088 = vld [vmem:[#allocation8 + $0x18] sm:$0xff]
        %v1089 = vld [vmem:[#allocation8 + $0x20] sm:$0xff]
        %v1090 = vld [vmem:[#allocation8 + $0x28] sm:$0xff]
        %v1091 = vld [vmem:[#allocation8 + $0x30] sm:$0xff]
        %v1092 = vld [vmem:[#allocation8 + $0x38] sm:$0xff]
        %v1093 = vld [vmem:[#allocation8 + $0x40] sm:$0xff]
        %v1094 = vld [vmem:[#allocation8 + $0x48] sm:$0xff]
        %v1095 = vld [vmem:[#allocation8 + $0x50] sm:$0xff]
        %v1096 = vld [vmem:[#allocation8 + $0x58] sm:$0xff]
        %v1097 = vld [vmem:[#allocation8 + $0x60] sm:$0xff]
        %v1098 = vld [vmem:[#allocation8 + $0x68] sm:$0xff]
        %v1099 = vld [vmem:[#allocation8 + $0x70] sm:$0xff]
        %v1100 = vld [vmem:[#allocation8 + $0x78] sm:$0xff]
        %v1101 = vld [vmem:[#allocation8 + $0x80] sm:$0xff]
        %v1102 = vld [vmem:[#allocation8 + $0x88] sm:$0xff]
        %v1103 = vld [vmem:[#allocation8 + $0x90] sm:$0xff]
        %v1104 = vld [vmem:[#allocation8 + $0x98] sm:$0xff]
        %v1105 = vld [vmem:[#allocation8 + $0xa0] sm:$0xff]
        %v1106 = vld [vmem:[#allocation8 + $0xa8] sm:$0xff]
        %v1107 = vld [vmem:[#allocation8 + $0xb0] sm:$0xff]
        %v1108 = vld [vmem:[#allocation8 + $0xb8] sm:$0xff]
        %v1109 = vld [vmem:[#allocation8 + $0xc0] sm:$0xff]
        %v1110 = vld [vmem:[#allocation8 + $0xc8] sm:$0xff]
        %v1111 = vld [vmem:[#allocation8 + $0xd0] sm:$0xff]
        %v1112 = vld [vmem:[#allocation8 + $0xd8] sm:$0xff]
        %v1113 = vld [vmem:[#allocation8 + $0xe0] sm:$0xff]
        %v1114 = vld [vmem:[#allocation8 + $0xe8] sm:$0xff]
        %v1115 = vld [vmem:[#allocation8 + $0xf0] sm:$0xff]
        %v1116 = vld [vmem:[#allocation8 + $0xf8] sm:$0xff]
        %v1117 = vld [vmem:[#allocation8 + $0x100] sm:$0xff]
        %v1118 = vld [vmem:[#allocation8 + $0x108] sm:$0xff]
        %v1119 = vld [vmem:[#allocation8 + $0x110] sm:$0xff]
        %v1120 = vld [vmem:[#allocation8 + $0x118] sm:$0xff]
        %v1121 = vld [vmem:[#allocation8 + $0x120] sm:$0xff]
        %v1122 = vld [vmem:[#allocation8 + $0x128] sm:$0xff]
        %v1123 = vld [vmem:[#allocation8 + $0x130] sm:$0xff]
        %v1124 = vld [vmem:[#allocation8 + $0x138] sm:$0xff]
        %v1125 = vld [vmem:[#allocation8 + $0x140] sm:$0xff]
        %v1126 = vld [vmem:[#allocation8 + $0x148] sm:$0xff]
        %v1127 = vld [vmem:[#allocation8 + $0x150] sm:$0xff]
        %v1128 = vld [vmem:[#allocation8 + $0x158] sm:$0xff]
        %v1129 = vld [vmem:[#allocation8 + $0x160] sm:$0xff]
        %v1130 = vld [vmem:[#allocation8 + $0x168] sm:$0xff]
        %v1131 = vld [vmem:[#allocation8 + $0x170] sm:$0xff]
        %v1132 = vld [vmem:[#allocation8 + $0x178] sm:$0xff]
        %v1133 = vld [vmem:[#allocation8 + $0x180] sm:$0xff]
        %v1134 = vld [vmem:[#allocation8 + $0x188] sm:$0xff]
        %v1135 = vld [vmem:[#allocation8 + $0x190] sm:$0xff]
        %v1136 = vld [vmem:[#allocation8 + $0x198] sm:$0xff]
        %v1137 = vld [vmem:[#allocation8 + $0x1a0] sm:$0xff]
        %v1138 = vld [vmem:[#allocation8 + $0x1a8] sm:$0xff]
        %v1139 = vld [vmem:[#allocation8 + $0x1b0] sm:$0xff]
        %v1140 = vld [vmem:[#allocation8 + $0x1b8] sm:$0xff]
        %v1141 = vld [vmem:[#allocation8 + $0x1c0] sm:$0xff]
        %v1142 = vld [vmem:[#allocation8 + $0x1c8] sm:$0xff]
        %v1143 = vld [vmem:[#allocation8 + $0x1d0] sm:$0xff]
        %v1144 = vld [vmem:[#allocation8 + $0x1d8] sm:$0xff]
        %v1145 = vld [vmem:[#allocation8 + $0x1e0] sm:$0xff]
        %v1146 = vld [vmem:[#allocation8 + $0x1e8] sm:$0xff]
        %v1147 = vld [vmem:[#allocation8 + $0x1f0] sm:$0xff]
        %v1148 = vld [vmem:[#allocation8 + $0x1f8] sm:$0xff]
        %v1149 = vld [vmem:[%s4] sm:$0x3]
        %v1151 = vperm.slane %v1149, 0
        %v1152 = vperm.slane %v1149, 1
        %v1155 = vand.u32 %v1115, 4294901760
        %1156 = vmatpush.msra.mxu0 %v1155
        %v1157 = vand.u32 %v1113, 4294901760
        %1158 = vmatpush.msra.mxu0 %v1157
        %v1159 = vand.u32 %v1111, 4294901760
        %1160 = vmatpush.msra.mxu0 %v1159
        %v1161 = vand.u32 %v1109, 4294901760
        %1162 = vmatpush.msra.mxu0 %v1161
        %v1163 = vand.u32 %v1107, 4294901760
        %1164 = vmatpush.msra.mxu0 %v1163
        %v1165 = vand.u32 %v1105, 4294901760
        %1166 = vmatpush.msra.mxu0 %v1165
        %v1167 = vand.u32 %v1103, 4294901760
        %1168 = vmatpush.msra.mxu0 %v1167
        %v1169 = vand.u32 %v1101, 4294901760
        %1170 = vmatpush.msra.mxu0 %v1169
        %v1171 = vand.u32 %v1099, 4294901760
        %1172 = vmatpush.msra.mxu0 %v1171
        %v1173 = vand.u32 %v1097, 4294901760
        %1174 = vmatpush.msra.mxu0 %v1173
        %v1175 = vand.u32 %v1095, 4294901760
        %1176 = vmatpush.msra.mxu0 %v1175
        %v1177 = vand.u32 %v1093, 4294901760
        %1178 = vmatpush.msra.mxu0 %v1177
        %v1179 = vand.u32 %v1091, 4294901760
        %1180 = vmatpush.msra.mxu0 %v1179
        %v1181 = vand.u32 %v1089, 4294901760
        %1182 = vmatpush.msra.mxu0 %v1181
        %v1183 = vand.u32 %v1087, 4294901760
        %1184 = vmatpush.msra.mxu0 %v1183
        %v1185 = vand.u32 %v1085, 4294901760
        %1186 = vmatpush.msra.mxu0 %v1185
        %v1187 = vand.u32 %v1083, 4294901760
        %v1188 = vsub.f32 %v1083, %v1187
        %v1189 = vand.u32 %v1188, 4294901760
        %v1190 = vsub.f32 %v1188, %v1189
        %v1191 = vand.u32 %v1190, 4294901760
        %1192 = vmatmul.f32.gmra.mxu0 %v1191
        %v1193 = vpop.f32.mrf.mxu0
        %v1194 = vadd.f32 %v1151, %v1193
        %1195 = vdwg.mxu0
        %v1196 = vand.u32 %v1115, 4294901760
        %v1197 = vsub.f32 %v1115, %v1196
        %v1198 = vand.u32 %v1197, 4294901760
        %v1199 = vsub.f32 %v1197, %v1198
        %v1200 = vand.u32 %v1199, 4294901760
        %1201 = vmatpush.msra.mxu0 %v1200
        %v1202 = vand.u32 %v1113, 4294901760
        %v1203 = vsub.f32 %v1113, %v1202
        %v1204 = vand.u32 %v1203, 4294901760
        %v1205 = vsub.f32 %v1203, %v1204
        %v1206 = vand.u32 %v1205, 4294901760
        %1207 = vmatpush.msra.mxu0 %v1206
        %v1208 = vand.u32 %v1111, 4294901760
        %v1209 = vsub.f32 %v1111, %v1208
        %v1210 = vand.u32 %v1209, 4294901760
        %v1211 = vsub.f32 %v1209, %v1210
        %v1212 = vand.u32 %v1211, 4294901760
        %1213 = vmatpush.msra.mxu0 %v1212
        %v1214 = vand.u32 %v1109, 4294901760
        %v1215 = vsub.f32 %v1109, %v1214
        %v1216 = vand.u32 %v1215, 4294901760
        %v1217 = vsub.f32 %v1215, %v1216
        %v1218 = vand.u32 %v1217, 4294901760
        %1219 = vmatpush.msra.mxu0 %v1218
        %v1220 = vand.u32 %v1107, 4294901760
        %v1221 = vsub.f32 %v1107, %v1220
        %v1222 = vand.u32 %v1221, 4294901760
        %v1223 = vsub.f32 %v1221, %v1222
        %v1224 = vand.u32 %v1223, 4294901760
        %1225 = vmatpush.msra.mxu0 %v1224
        %v1226 = vand.u32 %v1105, 4294901760
        %v1227 = vsub.f32 %v1105, %v1226
        %v1228 = vand.u32 %v1227, 4294901760
        %v1229 = vsub.f32 %v1227, %v1228
        %v1230 = vand.u32 %v1229, 4294901760
        %1231 = vmatpush.msra.mxu0 %v1230
        %v1232 = vand.u32 %v1103, 4294901760
        %v1233 = vsub.f32 %v1103, %v1232
        %v1234 = vand.u32 %v1233, 4294901760
        %v1235 = vsub.f32 %v1233, %v1234
        %v1236 = vand.u32 %v1235, 4294901760
        %1237 = vmatpush.msra.mxu0 %v1236
        %v1238 = vand.u32 %v1101, 4294901760
        %v1239 = vsub.f32 %v1101, %v1238
        %v1240 = vand.u32 %v1239, 4294901760
        %v1241 = vsub.f32 %v1239, %v1240
        %v1242 = vand.u32 %v1241, 4294901760
        %1243 = vmatpush.msra.mxu0 %v1242
        %v1244 = vand.u32 %v1099, 4294901760
        %v1245 = vsub.f32 %v1099, %v1244
        %v1246 = vand.u32 %v1245, 4294901760
        %v1247 = vsub.f32 %v1245, %v1246
        %v1248 = vand.u32 %v1247, 4294901760
        %1249 = vmatpush.msra.mxu0 %v1248
        %v1250 = vand.u32 %v1097, 4294901760
        %v1251 = vsub.f32 %v1097, %v1250
        %v1252 = vand.u32 %v1251, 4294901760
        %v1253 = vsub.f32 %v1251, %v1252
        %v1254 = vand.u32 %v1253, 4294901760
        %1255 = vmatpush.msra.mxu0 %v1254
        %v1256 = vand.u32 %v1095, 4294901760
        %v1257 = vsub.f32 %v1095, %v1256
        %v1258 = vand.u32 %v1257, 4294901760
        %v1259 = vsub.f32 %v1257, %v1258
        %v1260 = vand.u32 %v1259, 4294901760
        %1261 = vmatpush.msra.mxu0 %v1260
        %v1262 = vand.u32 %v1093, 4294901760
        %v1263 = vsub.f32 %v1093, %v1262
        %v1264 = vand.u32 %v1263, 4294901760
        %v1265 = vsub.f32 %v1263, %v1264
        %v1266 = vand.u32 %v1265, 4294901760
        %1267 = vmatpush.msra.mxu0 %v1266
        %v1268 = vand.u32 %v1091, 4294901760
        %v1269 = vsub.f32 %v1091, %v1268
        %v1270 = vand.u32 %v1269, 4294901760
        %v1271 = vsub.f32 %v1269, %v1270
        %v1272 = vand.u32 %v1271, 4294901760
        %1273 = vmatpush.msra.mxu0 %v1272
        %v1274 = vand.u32 %v1089, 4294901760
        %v1275 = vsub.f32 %v1089, %v1274
        %v1276 = vand.u32 %v1275, 4294901760
        %v1277 = vsub.f32 %v1275, %v1276
        %v1278 = vand.u32 %v1277, 4294901760
        %1279 = vmatpush.msra.mxu0 %v1278
        %v1280 = vand.u32 %v1087, 4294901760
        %v1281 = vsub.f32 %v1087, %v1280
        %v1282 = vand.u32 %v1281, 4294901760
        %v1283 = vsub.f32 %v1281, %v1282
        %v1284 = vand.u32 %v1283, 4294901760
        %1285 = vmatpush.msra.mxu0 %v1284
        %v1286 = vand.u32 %v1085, 4294901760
        %v1287 = vsub.f32 %v1085, %v1286
        %v1288 = vand.u32 %v1287, 4294901760
        %v1289 = vsub.f32 %v1287, %v1288
        %v1290 = vand.u32 %v1289, 4294901760
        %1291 = vmatpush.msra.mxu0 %v1290
        %v1292 = vand.u32 %v1083, 4294901760
        %1293 = vmatmul.f32.gmra.mxu0 %v1292
        %v1294 = vpop.f32.mrf.mxu0
        %v1295 = vadd.f32 %v1194, %v1294
        %1296 = vdwg.mxu0
        %v1297 = vand.u32 %v1115, 4294901760
        %v1298 = vsub.f32 %v1115, %v1297
        %1299 = vmatpush.msra.mxu0 %v1298
        %v1300 = vand.u32 %v1113, 4294901760
        %v1301 = vsub.f32 %v1113, %v1300
        %1302 = vmatpush.msra.mxu0 %v1301
        %v1303 = vand.u32 %v1111, 4294901760
        %v1304 = vsub.f32 %v1111, %v1303
        %1305 = vmatpush.msra.mxu0 %v1304
        %v1306 = vand.u32 %v1109, 4294901760
        %v1307 = vsub.f32 %v1109, %v1306
        %1308 = vmatpush.msra.mxu0 %v1307
        %v1309 = vand.u32 %v1107, 4294901760
        %v1310 = vsub.f32 %v1107, %v1309
        %1311 = vmatpush.msra.mxu0 %v1310
        %v1312 = vand.u32 %v1105, 4294901760
        %v1313 = vsub.f32 %v1105, %v1312
        %1314 = vmatpush.msra.mxu0 %v1313
        %v1315 = vand.u32 %v1103, 4294901760
        %v1316 = vsub.f32 %v1103, %v1315
        %1317 = vmatpush.msra.mxu0 %v1316
        %v1318 = vand.u32 %v1101, 4294901760
        %v1319 = vsub.f32 %v1101, %v1318
        %1320 = vmatpush.msra.mxu0 %v1319
        %v1321 = vand.u32 %v1099, 4294901760
        %v1322 = vsub.f32 %v1099, %v1321
        %1323 = vmatpush.msra.mxu0 %v1322
        %v1324 = vand.u32 %v1097, 4294901760
        %v1325 = vsub.f32 %v1097, %v1324
        %1326 = vmatpush.msra.mxu0 %v1325
        %v1327 = vand.u32 %v1095, 4294901760
        %v1328 = vsub.f32 %v1095, %v1327
        %1329 = vmatpush.msra.mxu0 %v1328
        %v1330 = vand.u32 %v1093, 4294901760
        %v1331 = vsub.f32 %v1093, %v1330
        %1332 = vmatpush.msra.mxu0 %v1331
        %v1333 = vand.u32 %v1091, 4294901760
        %v1334 = vsub.f32 %v1091, %v1333
        %1335 = vmatpush.msra.mxu0 %v1334
        %v1336 = vand.u32 %v1089, 4294901760
        %v1337 = vsub.f32 %v1089, %v1336
        %1338 = vmatpush.msra.mxu0 %v1337
        %v1339 = vand.u32 %v1087, 4294901760
        %v1340 = vsub.f32 %v1087, %v1339
        %1341 = vmatpush.msra.mxu0 %v1340
        %v1342 = vand.u32 %v1085, 4294901760
        %v1343 = vsub.f32 %v1085, %v1342
        %1344 = vmatpush.msra.mxu0 %v1343
        %v1345 = vand.u32 %v1083, 4294901760
        %v1346 = vsub.f32 %v1083, %v1345
        %1347 = vmatmul.f32.gmra.mxu0 %v1346
        %v1348 = vpop.f32.mrf.mxu0
        %v1349 = vadd.f32 %v1295, %v1348
        %1350 = vdwg.mxu0
        %v1351 = vand.u32 %v1115, 4294901760
        %1352 = vmatpush.msra.mxu0 %v1351
        %v1353 = vand.u32 %v1113, 4294901760
        %1354 = vmatpush.msra.mxu0 %v1353
        %v1355 = vand.u32 %v1111, 4294901760
        %1356 = vmatpush.msra.mxu0 %v1355
        %v1357 = vand.u32 %v1109, 4294901760
        %1358 = vmatpush.msra.mxu0 %v1357
        %v1359 = vand.u32 %v1107, 4294901760
        %1360 = vmatpush.msra.mxu0 %v1359
        %v1361 = vand.u32 %v1105, 4294901760
        %1362 = vmatpush.msra.mxu0 %v1361
        %v1363 = vand.u32 %v1103, 4294901760
        %1364 = vmatpush.msra.mxu0 %v1363
        %v1365 = vand.u32 %v1101, 4294901760
        %1366 = vmatpush.msra.mxu0 %v1365
        %v1367 = vand.u32 %v1099, 4294901760
        %1368 = vmatpush.msra.mxu0 %v1367
        %v1369 = vand.u32 %v1097, 4294901760
        %1370 = vmatpush.msra.mxu0 %v1369
        %v1371 = vand.u32 %v1095, 4294901760
        %1372 = vmatpush.msra.mxu0 %v1371
        %v1373 = vand.u32 %v1093, 4294901760
        %1374 = vmatpush.msra.mxu0 %v1373
        %v1375 = vand.u32 %v1091, 4294901760
        %1376 = vmatpush.msra.mxu0 %v1375
        %v1377 = vand.u32 %v1089, 4294901760
        %1378 = vmatpush.msra.mxu0 %v1377
        %v1379 = vand.u32 %v1087, 4294901760
        %1380 = vmatpush.msra.mxu0 %v1379
        %v1381 = vand.u32 %v1085, 4294901760
        %1382 = vmatpush.msra.mxu0 %v1381
        %v1383 = vand.u32 %v1083, 4294901760
        %v1384 = vsub.f32 %v1083, %v1383
        %v1385 = vand.u32 %v1384, 4294901760
        %1386 = vmatmul.f32.gmra.mxu0 %v1385
        %v1387 = vpop.f32.mrf.mxu0
        %v1388 = vadd.f32 %v1349, %v1387
        %1389 = vdwg.mxu0
        %v1390 = vand.u32 %v1115, 4294901760
        %v1391 = vsub.f32 %v1115, %v1390
        %v1392 = vand.u32 %v1391, 4294901760
        %1393 = vmatpush.msra.mxu0 %v1392
        %v1394 = vand.u32 %v1113, 4294901760
        %v1395 = vsub.f32 %v1113, %v1394
        %v1396 = vand.u32 %v1395, 4294901760
        %1397 = vmatpush.msra.mxu0 %v1396
        %v1398 = vand.u32 %v1111, 4294901760
        %v1399 = vsub.f32 %v1111, %v1398
        %v1400 = vand.u32 %v1399, 4294901760
        %1401 = vmatpush.msra.mxu0 %v1400
        %v1402 = vand.u32 %v1109, 4294901760
        %v1403 = vsub.f32 %v1109, %v1402
        %v1404 = vand.u32 %v1403, 4294901760
        %1405 = vmatpush.msra.mxu0 %v1404
        %v1406 = vand.u32 %v1107, 4294901760
        %v1407 = vsub.f32 %v1107, %v1406
        %v1408 = vand.u32 %v1407, 4294901760
        %1409 = vmatpush.msra.mxu0 %v1408
        %v1410 = vand.u32 %v1105, 4294901760
        %v1411 = vsub.f32 %v1105, %v1410
        %v1412 = vand.u32 %v1411, 4294901760
        %1413 = vmatpush.msra.mxu0 %v1412
        %v1414 = vand.u32 %v1103, 4294901760
        %v1415 = vsub.f32 %v1103, %v1414
        %v1416 = vand.u32 %v1415, 4294901760
        %1417 = vmatpush.msra.mxu0 %v1416
        %v1418 = vand.u32 %v1101, 4294901760
        %v1419 = vsub.f32 %v1101, %v1418
        %v1420 = vand.u32 %v1419, 4294901760
        %1421 = vmatpush.msra.mxu0 %v1420
        %v1422 = vand.u32 %v1099, 4294901760
        %v1423 = vsub.f32 %v1099, %v1422
        %v1424 = vand.u32 %v1423, 4294901760
        %1425 = vmatpush.msra.mxu0 %v1424
        %v1426 = vand.u32 %v1097, 4294901760
        %v1427 = vsub.f32 %v1097, %v1426
        %v1428 = vand.u32 %v1427, 4294901760
        %1429 = vmatpush.msra.mxu0 %v1428
        %v1430 = vand.u32 %v1095, 4294901760
        %v1431 = vsub.f32 %v1095, %v1430
        %v1432 = vand.u32 %v1431, 4294901760
        %1433 = vmatpush.msra.mxu0 %v1432
        %v1434 = vand.u32 %v1093, 4294901760
        %v1435 = vsub.f32 %v1093, %v1434
        %v1436 = vand.u32 %v1435, 4294901760
        %1437 = vmatpush.msra.mxu0 %v1436
        %v1438 = vand.u32 %v1091, 4294901760
        %v1439 = vsub.f32 %v1091, %v1438
        %v1440 = vand.u32 %v1439, 4294901760
        %1441 = vmatpush.msra.mxu0 %v1440
        %v1442 = vand.u32 %v1089, 4294901760
        %v1443 = vsub.f32 %v1089, %v1442
        %v1444 = vand.u32 %v1443, 4294901760
        %1445 = vmatpush.msra.mxu0 %v1444
        %v1446 = vand.u32 %v1087, 4294901760
        %v1447 = vsub.f32 %v1087, %v1446
        %v1448 = vand.u32 %v1447, 4294901760
        %1449 = vmatpush.msra.mxu0 %v1448
        %v1450 = vand.u32 %v1085, 4294901760
        %v1451 = vsub.f32 %v1085, %v1450
        %v1452 = vand.u32 %v1451, 4294901760
        %1453 = vmatpush.msra.mxu0 %v1452
        %v1454 = vand.u32 %v1083, 4294901760
        %1455 = vmatmul.f32.gmra.mxu0 %v1454
        %v1456 = vpop.f32.mrf.mxu0
        %v1457 = vadd.f32 %v1388, %v1456
        %1458 = vdwg.mxu0
        %v1459 = vand.u32 %v1115, 4294901760
        %1460 = vmatpush.msra.mxu0 %v1459
        %v1461 = vand.u32 %v1113, 4294901760
        %1462 = vmatpush.msra.mxu0 %v1461
        %v1463 = vand.u32 %v1111, 4294901760
        %1464 = vmatpush.msra.mxu0 %v1463
        %v1465 = vand.u32 %v1109, 4294901760
        %1466 = vmatpush.msra.mxu0 %v1465
        %v1467 = vand.u32 %v1107, 4294901760
        %1468 = vmatpush.msra.mxu0 %v1467
        %v1469 = vand.u32 %v1105, 4294901760
        %1470 = vmatpush.msra.mxu0 %v1469
        %v1471 = vand.u32 %v1103, 4294901760
        %1472 = vmatpush.msra.mxu0 %v1471
        %v1473 = vand.u32 %v1101, 4294901760
        %1474 = vmatpush.msra.mxu0 %v1473
        %v1475 = vand.u32 %v1099, 4294901760
        %1476 = vmatpush.msra.mxu0 %v1475
        %v1477 = vand.u32 %v1097, 4294901760
        %1478 = vmatpush.msra.mxu0 %v1477
        %v1479 = vand.u32 %v1095, 4294901760
        %1480 = vmatpush.msra.mxu0 %v1479
        %v1481 = vand.u32 %v1093, 4294901760
        %1482 = vmatpush.msra.mxu0 %v1481
        %v1483 = vand.u32 %v1091, 4294901760
        %1484 = vmatpush.msra.mxu0 %v1483
        %v1485 = vand.u32 %v1089, 4294901760
        %1486 = vmatpush.msra.mxu0 %v1485
        %v1487 = vand.u32 %v1087, 4294901760
        %1488 = vmatpush.msra.mxu0 %v1487
        %v1489 = vand.u32 %v1085, 4294901760
        %1490 = vmatpush.msra.mxu0 %v1489
        %v1491 = vand.u32 %v1083, 4294901760
        %1492 = vmatmul.f32.gmra.mxu0 %v1491
        %v1493 = vpop.f32.mrf.mxu0
        %v1494 = vadd.f32 %v1457, %v1493
        %1495 = vdwg.mxu0
        %v1496 = vand.u32 %v1147, 4294901760
        %1497 = vmatpush.msra.mxu0 %v1496
        %v1498 = vand.u32 %v1145, 4294901760
        %1499 = vmatpush.msra.mxu0 %v1498
        %v1500 = vand.u32 %v1143, 4294901760
        %1501 = vmatpush.msra.mxu0 %v1500
        %v1502 = vand.u32 %v1141, 4294901760
        %1503 = vmatpush.msra.mxu0 %v1502
        %v1504 = vand.u32 %v1139, 4294901760
        %1505 = vmatpush.msra.mxu0 %v1504
        %v1506 = vand.u32 %v1137, 4294901760
        %1507 = vmatpush.msra.mxu0 %v1506
        %v1508 = vand.u32 %v1135, 4294901760
        %1509 = vmatpush.msra.mxu0 %v1508
        %v1510 = vand.u32 %v1133, 4294901760
        %1511 = vmatpush.msra.mxu0 %v1510
        %v1512 = vand.u32 %v1131, 4294901760
        %1513 = vmatpush.msra.mxu0 %v1512
        %v1514 = vand.u32 %v1129, 4294901760
        %1515 = vmatpush.msra.mxu0 %v1514
        %v1516 = vand.u32 %v1127, 4294901760
        %1517 = vmatpush.msra.mxu0 %v1516
        %v1518 = vand.u32 %v1125, 4294901760
        %1519 = vmatpush.msra.mxu0 %v1518
        %v1520 = vand.u32 %v1123, 4294901760
        %1521 = vmatpush.msra.mxu0 %v1520
        %v1522 = vand.u32 %v1121, 4294901760
        %1523 = vmatpush.msra.mxu0 %v1522
        %v1524 = vand.u32 %v1119, 4294901760
        %1525 = vmatpush.msra.mxu0 %v1524
        %v1526 = vand.u32 %v1117, 4294901760
        %1527 = vmatpush.msra.mxu0 %v1526
        %v1528 = vand.u32 %v1084, 4294901760
        %v1529 = vsub.f32 %v1084, %v1528
        %v1530 = vand.u32 %v1529, 4294901760
        %v1531 = vsub.f32 %v1529, %v1530
        %v1532 = vand.u32 %v1531, 4294901760
        %1533 = vmatmul.f32.gmra.mxu0 %v1532
        %v1534 = vpop.f32.mrf.mxu0
        %v1535 = vadd.f32 %v1494, %v1534
        %1536 = vdwg.mxu0
        %v1537 = vand.u32 %v1147, 4294901760
        %v1538 = vsub.f32 %v1147, %v1537
        %v1539 = vand.u32 %v1538, 4294901760
        %v1540 = vsub.f32 %v1538, %v1539
        %v1541 = vand.u32 %v1540, 4294901760
        %1542 = vmatpush.msra.mxu0 %v1541
        %v1543 = vand.u32 %v1145, 4294901760
        %v1544 = vsub.f32 %v1145, %v1543
        %v1545 = vand.u32 %v1544, 4294901760
        %v1546 = vsub.f32 %v1544, %v1545
        %v1547 = vand.u32 %v1546, 4294901760
        %1548 = vmatpush.msra.mxu0 %v1547
        %v1549 = vand.u32 %v1143, 4294901760
        %v1550 = vsub.f32 %v1143, %v1549
        %v1551 = vand.u32 %v1550, 4294901760
        %v1552 = vsub.f32 %v1550, %v1551
        %v1553 = vand.u32 %v1552, 4294901760
        %1554 = vmatpush.msra.mxu0 %v1553
        %v1555 = vand.u32 %v1141, 4294901760
        %v1556 = vsub.f32 %v1141, %v1555
        %v1557 = vand.u32 %v1556, 4294901760
        %v1558 = vsub.f32 %v1556, %v1557
        %v1559 = vand.u32 %v1558, 4294901760
        %1560 = vmatpush.msra.mxu0 %v1559
        %v1561 = vand.u32 %v1139, 4294901760
        %v1562 = vsub.f32 %v1139, %v1561
        %v1563 = vand.u32 %v1562, 4294901760
        %v1564 = vsub.f32 %v1562, %v1563
        %v1565 = vand.u32 %v1564, 4294901760
        %1566 = vmatpush.msra.mxu0 %v1565
        %v1567 = vand.u32 %v1137, 4294901760
        %v1568 = vsub.f32 %v1137, %v1567
        %v1569 = vand.u32 %v1568, 4294901760
        %v1570 = vsub.f32 %v1568, %v1569
        %v1571 = vand.u32 %v1570, 4294901760
        %1572 = vmatpush.msra.mxu0 %v1571
        %v1573 = vand.u32 %v1135, 4294901760
        %v1574 = vsub.f32 %v1135, %v1573
        %v1575 = vand.u32 %v1574, 4294901760
        %v1576 = vsub.f32 %v1574, %v1575
        %v1577 = vand.u32 %v1576, 4294901760
        %1578 = vmatpush.msra.mxu0 %v1577
        %v1579 = vand.u32 %v1133, 4294901760
        %v1580 = vsub.f32 %v1133, %v1579
        %v1581 = vand.u32 %v1580, 4294901760
        %v1582 = vsub.f32 %v1580, %v1581
        %v1583 = vand.u32 %v1582, 4294901760
        %1584 = vmatpush.msra.mxu0 %v1583
        %v1585 = vand.u32 %v1131, 4294901760
        %v1586 = vsub.f32 %v1131, %v1585
        %v1587 = vand.u32 %v1586, 4294901760
        %v1588 = vsub.f32 %v1586, %v1587
        %v1589 = vand.u32 %v1588, 4294901760
        %1590 = vmatpush.msra.mxu0 %v1589
        %v1591 = vand.u32 %v1129, 4294901760
        %v1592 = vsub.f32 %v1129, %v1591
        %v1593 = vand.u32 %v1592, 4294901760
        %v1594 = vsub.f32 %v1592, %v1593
        %v1595 = vand.u32 %v1594, 4294901760
        %1596 = vmatpush.msra.mxu0 %v1595
        %v1597 = vand.u32 %v1127, 4294901760
        %v1598 = vsub.f32 %v1127, %v1597
        %v1599 = vand.u32 %v1598, 4294901760
        %v1600 = vsub.f32 %v1598, %v1599
        %v1601 = vand.u32 %v1600, 4294901760
        %1602 = vmatpush.msra.mxu0 %v1601
        %v1603 = vand.u32 %v1125, 4294901760
        %v1604 = vsub.f32 %v1125, %v1603
        %v1605 = vand.u32 %v1604, 4294901760
        %v1606 = vsub.f32 %v1604, %v1605
        %v1607 = vand.u32 %v1606, 4294901760
        %1608 = vmatpush.msra.mxu0 %v1607
        %v1609 = vand.u32 %v1123, 4294901760
        %v1610 = vsub.f32 %v1123, %v1609
        %v1611 = vand.u32 %v1610, 4294901760
        %v1612 = vsub.f32 %v1610, %v1611
        %v1613 = vand.u32 %v1612, 4294901760
        %1614 = vmatpush.msra.mxu0 %v1613
        %v1615 = vand.u32 %v1121, 4294901760
        %v1616 = vsub.f32 %v1121, %v1615
        %v1617 = vand.u32 %v1616, 4294901760
        %v1618 = vsub.f32 %v1616, %v1617
        %v1619 = vand.u32 %v1618, 4294901760
        %1620 = vmatpush.msra.mxu0 %v1619
        %v1621 = vand.u32 %v1119, 4294901760
        %v1622 = vsub.f32 %v1119, %v1621
        %v1623 = vand.u32 %v1622, 4294901760
        %v1624 = vsub.f32 %v1622, %v1623
        %v1625 = vand.u32 %v1624, 4294901760
        %1626 = vmatpush.msra.mxu0 %v1625
        %v1627 = vand.u32 %v1117, 4294901760
        %v1628 = vsub.f32 %v1117, %v1627
        %v1629 = vand.u32 %v1628, 4294901760
        %v1630 = vsub.f32 %v1628, %v1629
        %v1631 = vand.u32 %v1630, 4294901760
        %1632 = vmatpush.msra.mxu0 %v1631
        %v1633 = vand.u32 %v1084, 4294901760
        %1634 = vmatmul.f32.gmra.mxu0 %v1633
        %v1635 = vpop.f32.mrf.mxu0
        %v1636 = vadd.f32 %v1535, %v1635
        %1637 = vdwg.mxu0
        %v1638 = vand.u32 %v1147, 4294901760
        %v1639 = vsub.f32 %v1147, %v1638
        %1640 = vmatpush.msra.mxu0 %v1639
        %v1641 = vand.u32 %v1145, 4294901760
        %v1642 = vsub.f32 %v1145, %v1641
        %1643 = vmatpush.msra.mxu0 %v1642
        %v1644 = vand.u32 %v1143, 4294901760
        %v1645 = vsub.f32 %v1143, %v1644
        %1646 = vmatpush.msra.mxu0 %v1645
        %v1647 = vand.u32 %v1141, 4294901760
        %v1648 = vsub.f32 %v1141, %v1647
        %1649 = vmatpush.msra.mxu0 %v1648
        %v1650 = vand.u32 %v1139, 4294901760
        %v1651 = vsub.f32 %v1139, %v1650
        %1652 = vmatpush.msra.mxu0 %v1651
        %v1653 = vand.u32 %v1137, 4294901760
        %v1654 = vsub.f32 %v1137, %v1653
        %1655 = vmatpush.msra.mxu0 %v1654
        %v1656 = vand.u32 %v1135, 4294901760
        %v1657 = vsub.f32 %v1135, %v1656
        %1658 = vmatpush.msra.mxu0 %v1657
        %v1659 = vand.u32 %v1133, 4294901760
        %v1660 = vsub.f32 %v1133, %v1659
        %1661 = vmatpush.msra.mxu0 %v1660
        %v1662 = vand.u32 %v1131, 4294901760
        %v1663 = vsub.f32 %v1131, %v1662
        %1664 = vmatpush.msra.mxu0 %v1663
        %v1665 = vand.u32 %v1129, 4294901760
        %v1666 = vsub.f32 %v1129, %v1665
        %1667 = vmatpush.msra.mxu0 %v1666
        %v1668 = vand.u32 %v1127, 4294901760
        %v1669 = vsub.f32 %v1127, %v1668
        %1670 = vmatpush.msra.mxu0 %v1669
        %v1671 = vand.u32 %v1125, 4294901760
        %v1672 = vsub.f32 %v1125, %v1671
        %1673 = vmatpush.msra.mxu0 %v1672
        %v1674 = vand.u32 %v1123, 4294901760
        %v1675 = vsub.f32 %v1123, %v1674
        %1676 = vmatpush.msra.mxu0 %v1675
        %v1677 = vand.u32 %v1121, 4294901760
        %v1678 = vsub.f32 %v1121, %v1677
        %1679 = vmatpush.msra.mxu0 %v1678
        %v1680 = vand.u32 %v1119, 4294901760
        %v1681 = vsub.f32 %v1119, %v1680
        %1682 = vmatpush.msra.mxu0 %v1681
        %v1683 = vand.u32 %v1117, 4294901760
        %v1684 = vsub.f32 %v1117, %v1683
        %1685 = vmatpush.msra.mxu0 %v1684
        %v1686 = vand.u32 %v1084, 4294901760
        %v1687 = vsub.f32 %v1084, %v1686
        %1688 = vmatmul.f32.gmra.mxu0 %v1687
        %v1689 = vpop.f32.mrf.mxu0
        %v1690 = vadd.f32 %v1636, %v1689
        %1691 = vdwg.mxu0
        %v1692 = vand.u32 %v1147, 4294901760
        %1693 = vmatpush.msra.mxu0 %v1692
        %v1694 = vand.u32 %v1145, 4294901760
        %1695 = vmatpush.msra.mxu0 %v1694
        %v1696 = vand.u32 %v1143, 4294901760
        %1697 = vmatpush.msra.mxu0 %v1696
        %v1698 = vand.u32 %v1141, 4294901760
        %1699 = vmatpush.msra.mxu0 %v1698
        %v1700 = vand.u32 %v1139, 4294901760
        %1701 = vmatpush.msra.mxu0 %v1700
        %v1702 = vand.u32 %v1137, 4294901760
        %1703 = vmatpush.msra.mxu0 %v1702
        %v1704 = vand.u32 %v1135, 4294901760
        %1705 = vmatpush.msra.mxu0 %v1704
        %v1706 = vand.u32 %v1133, 4294901760
        %1707 = vmatpush.msra.mxu0 %v1706
        %v1708 = vand.u32 %v1131, 4294901760
        %1709 = vmatpush.msra.mxu0 %v1708
        %v1710 = vand.u32 %v1129, 4294901760
        %1711 = vmatpush.msra.mxu0 %v1710
        %v1712 = vand.u32 %v1127, 4294901760
        %1713 = vmatpush.msra.mxu0 %v1712
        %v1714 = vand.u32 %v1125, 4294901760
        %1715 = vmatpush.msra.mxu0 %v1714
        %v1716 = vand.u32 %v1123, 4294901760
        %1717 = vmatpush.msra.mxu0 %v1716
        %v1718 = vand.u32 %v1121, 4294901760
        %1719 = vmatpush.msra.mxu0 %v1718
        %v1720 = vand.u32 %v1119, 4294901760
        %1721 = vmatpush.msra.mxu0 %v1720
        %v1722 = vand.u32 %v1117, 4294901760
        %1723 = vmatpush.msra.mxu0 %v1722
        %v1724 = vand.u32 %v1084, 4294901760
        %v1725 = vsub.f32 %v1084, %v1724
        %v1726 = vand.u32 %v1725, 4294901760
        %1727 = vmatmul.f32.gmra.mxu0 %v1726
        %v1728 = vpop.f32.mrf.mxu0
        %v1729 = vadd.f32 %v1690, %v1728
        %1730 = vdwg.mxu0
        %v1731 = vand.u32 %v1147, 4294901760
        %v1732 = vsub.f32 %v1147, %v1731
        %v1733 = vand.u32 %v1732, 4294901760
        %1734 = vmatpush.msra.mxu0 %v1733
        %v1735 = vand.u32 %v1145, 4294901760
        %v1736 = vsub.f32 %v1145, %v1735
        %v1737 = vand.u32 %v1736, 4294901760
        %1738 = vmatpush.msra.mxu0 %v1737
        %v1739 = vand.u32 %v1143, 4294901760
        %v1740 = vsub.f32 %v1143, %v1739
        %v1741 = vand.u32 %v1740, 4294901760
        %1742 = vmatpush.msra.mxu0 %v1741
        %v1743 = vand.u32 %v1141, 4294901760
        %v1744 = vsub.f32 %v1141, %v1743
        %v1745 = vand.u32 %v1744, 4294901760
        %1746 = vmatpush.msra.mxu0 %v1745
        %v1747 = vand.u32 %v1139, 4294901760
        %v1748 = vsub.f32 %v1139, %v1747
        %v1749 = vand.u32 %v1748, 4294901760
        %1750 = vmatpush.msra.mxu0 %v1749
        %v1751 = vand.u32 %v1137, 4294901760
        %v1752 = vsub.f32 %v1137, %v1751
        %v1753 = vand.u32 %v1752, 4294901760
        %1754 = vmatpush.msra.mxu0 %v1753
        %v1755 = vand.u32 %v1135, 4294901760
        %v1756 = vsub.f32 %v1135, %v1755
        %v1757 = vand.u32 %v1756, 4294901760
        %1758 = vmatpush.msra.mxu0 %v1757
        %v1759 = vand.u32 %v1133, 4294901760
        %v1760 = vsub.f32 %v1133, %v1759
        %v1761 = vand.u32 %v1760, 4294901760
        %1762 = vmatpush.msra.mxu0 %v1761
        %v1763 = vand.u32 %v1131, 4294901760
        %v1764 = vsub.f32 %v1131, %v1763
        %v1765 = vand.u32 %v1764, 4294901760
        %1766 = vmatpush.msra.mxu0 %v1765
        %v1767 = vand.u32 %v1129, 4294901760
        %v1768 = vsub.f32 %v1129, %v1767
        %v1769 = vand.u32 %v1768, 4294901760
        %1770 = vmatpush.msra.mxu0 %v1769
        %v1771 = vand.u32 %v1127, 4294901760
        %v1772 = vsub.f32 %v1127, %v1771
        %v1773 = vand.u32 %v1772, 4294901760
        %1774 = vmatpush.msra.mxu0 %v1773
        %v1775 = vand.u32 %v1125, 4294901760
        %v1776 = vsub.f32 %v1125, %v1775
        %v1777 = vand.u32 %v1776, 4294901760
        %1778 = vmatpush.msra.mxu0 %v1777
        %v1779 = vand.u32 %v1123, 4294901760
        %v1780 = vsub.f32 %v1123, %v1779
        %v1781 = vand.u32 %v1780, 4294901760
        %1782 = vmatpush.msra.mxu0 %v1781
        %v1783 = vand.u32 %v1121, 4294901760
        %v1784 = vsub.f32 %v1121, %v1783
        %v1785 = vand.u32 %v1784, 4294901760
        %1786 = vmatpush.msra.mxu0 %v1785
        %v1787 = vand.u32 %v1119, 4294901760
        %v1788 = vsub.f32 %v1119, %v1787
        %v1789 = vand.u32 %v1788, 4294901760
        %1790 = vmatpush.msra.mxu0 %v1789
        %v1791 = vand.u32 %v1117, 4294901760
        %v1792 = vsub.f32 %v1117, %v1791
        %v1793 = vand.u32 %v1792, 4294901760
        %1794 = vmatpush.msra.mxu0 %v1793
        %v1795 = vand.u32 %v1084, 4294901760
        %1796 = vmatmul.f32.gmra.mxu0 %v1795
        %v1797 = vpop.f32.mrf.mxu0
        %v1798 = vadd.f32 %v1729, %v1797
        %1799 = vdwg.mxu0
        %v1800 = vand.u32 %v1147, 4294901760
        %1801 = vmatpush.msra.mxu0 %v1800
        %v1802 = vand.u32 %v1145, 4294901760
        %1803 = vmatpush.msra.mxu0 %v1802
        %v1804 = vand.u32 %v1143, 4294901760
        %1805 = vmatpush.msra.mxu0 %v1804
        %v1806 = vand.u32 %v1141, 4294901760
        %1807 = vmatpush.msra.mxu0 %v1806
        %v1808 = vand.u32 %v1139, 4294901760
        %1809 = vmatpush.msra.mxu0 %v1808
        %v1810 = vand.u32 %v1137, 4294901760
        %1811 = vmatpush.msra.mxu0 %v1810
        %v1812 = vand.u32 %v1135, 4294901760
        %1813 = vmatpush.msra.mxu0 %v1812
        %v1814 = vand.u32 %v1133, 4294901760
        %1815 = vmatpush.msra.mxu0 %v1814
        %v1816 = vand.u32 %v1131, 4294901760
        %1817 = vmatpush.msra.mxu0 %v1816
        %v1818 = vand.u32 %v1129, 4294901760
        %1819 = vmatpush.msra.mxu0 %v1818
        %v1820 = vand.u32 %v1127, 4294901760
        %1821 = vmatpush.msra.mxu0 %v1820
        %v1822 = vand.u32 %v1125, 4294901760
        %1823 = vmatpush.msra.mxu0 %v1822
        %v1824 = vand.u32 %v1123, 4294901760
        %1825 = vmatpush.msra.mxu0 %v1824
        %v1826 = vand.u32 %v1121, 4294901760
        %1827 = vmatpush.msra.mxu0 %v1826
        %v1828 = vand.u32 %v1119, 4294901760
        %1829 = vmatpush.msra.mxu0 %v1828
        %v1830 = vand.u32 %v1117, 4294901760
        %1831 = vmatpush.msra.mxu0 %v1830
        %v1832 = vand.u32 %v1084, 4294901760
        %1833 = vmatmul.f32.gmra.mxu0 %v1832
        %v1834 = vpop.f32.mrf.mxu0
        %v1835 = vadd.f32 %v1798, %v1834
        %1836 = vdwg.mxu0
        %v1837 = vand.u32 %v1116, 4294901760
        %1838 = vmatpush.msra.mxu0 %v1837
        %v1839 = vand.u32 %v1114, 4294901760
        %1840 = vmatpush.msra.mxu0 %v1839
        %v1841 = vand.u32 %v1112, 4294901760
        %1842 = vmatpush.msra.mxu0 %v1841
        %v1843 = vand.u32 %v1110, 4294901760
        %1844 = vmatpush.msra.mxu0 %v1843
        %v1845 = vand.u32 %v1108, 4294901760
        %1846 = vmatpush.msra.mxu0 %v1845
        %v1847 = vand.u32 %v1106, 4294901760
        %1848 = vmatpush.msra.mxu0 %v1847
        %v1849 = vand.u32 %v1104, 4294901760
        %1850 = vmatpush.msra.mxu0 %v1849
        %v1851 = vand.u32 %v1102, 4294901760
        %1852 = vmatpush.msra.mxu0 %v1851
        %v1853 = vand.u32 %v1100, 4294901760
        %1854 = vmatpush.msra.mxu0 %v1853
        %v1855 = vand.u32 %v1098, 4294901760
        %1856 = vmatpush.msra.mxu0 %v1855
        %v1857 = vand.u32 %v1096, 4294901760
        %1858 = vmatpush.msra.mxu0 %v1857
        %v1859 = vand.u32 %v1094, 4294901760
        %1860 = vmatpush.msra.mxu0 %v1859
        %v1861 = vand.u32 %v1092, 4294901760
        %1862 = vmatpush.msra.mxu0 %v1861
        %v1863 = vand.u32 %v1090, 4294901760
        %1864 = vmatpush.msra.mxu0 %v1863
        %v1865 = vand.u32 %v1088, 4294901760
        %1866 = vmatpush.msra.mxu0 %v1865
        %v1867 = vand.u32 %v1086, 4294901760
        %1868 = vmatpush.msra.mxu0 %v1867
        %v1869 = vand.u32 %v1083, 4294901760
        %v1870 = vsub.f32 %v1083, %v1869
        %v1871 = vand.u32 %v1870, 4294901760
        %v1872 = vsub.f32 %v1870, %v1871
        %v1873 = vand.u32 %v1872, 4294901760
        %1874 = vmatmul.f32.gmra.mxu0 %v1873
        %v1875 = vpop.f32.mrf.mxu0
        %v1876 = vadd.f32 %v1152, %v1875
        %1877 = vdwg.mxu0
        %v1878 = vand.u32 %v1116, 4294901760
        %v1879 = vsub.f32 %v1116, %v1878
        %v1880 = vand.u32 %v1879, 4294901760
        %v1881 = vsub.f32 %v1879, %v1880
        %v1882 = vand.u32 %v1881, 4294901760
        %1883 = vmatpush.msra.mxu0 %v1882
        %v1884 = vand.u32 %v1114, 4294901760
        %v1885 = vsub.f32 %v1114, %v1884
        %v1886 = vand.u32 %v1885, 4294901760
        %v1887 = vsub.f32 %v1885, %v1886
        %v1888 = vand.u32 %v1887, 4294901760
        %1889 = vmatpush.msra.mxu0 %v1888
        %v1890 = vand.u32 %v1112, 4294901760
        %v1891 = vsub.f32 %v1112, %v1890
        %v1892 = vand.u32 %v1891, 4294901760
        %v1893 = vsub.f32 %v1891, %v1892
        %v1894 = vand.u32 %v1893, 4294901760
        %1895 = vmatpush.msra.mxu0 %v1894
        %v1896 = vand.u32 %v1110, 4294901760
        %v1897 = vsub.f32 %v1110, %v1896
        %v1898 = vand.u32 %v1897, 4294901760
        %v1899 = vsub.f32 %v1897, %v1898
        %v1900 = vand.u32 %v1899, 4294901760
        %1901 = vmatpush.msra.mxu0 %v1900
        %v1902 = vand.u32 %v1108, 4294901760
        %v1903 = vsub.f32 %v1108, %v1902
        %v1904 = vand.u32 %v1903, 4294901760
        %v1905 = vsub.f32 %v1903, %v1904
        %v1906 = vand.u32 %v1905, 4294901760
        %1907 = vmatpush.msra.mxu0 %v1906
        %v1908 = vand.u32 %v1106, 4294901760
        %v1909 = vsub.f32 %v1106, %v1908
        %v1910 = vand.u32 %v1909, 4294901760
        %v1911 = vsub.f32 %v1909, %v1910
        %v1912 = vand.u32 %v1911, 4294901760
        %1913 = vmatpush.msra.mxu0 %v1912
        %v1914 = vand.u32 %v1104, 4294901760
        %v1915 = vsub.f32 %v1104, %v1914
        %v1916 = vand.u32 %v1915, 4294901760
        %v1917 = vsub.f32 %v1915, %v1916
        %v1918 = vand.u32 %v1917, 4294901760
        %1919 = vmatpush.msra.mxu0 %v1918
        %v1920 = vand.u32 %v1102, 4294901760
        %v1921 = vsub.f32 %v1102, %v1920
        %v1922 = vand.u32 %v1921, 4294901760
        %v1923 = vsub.f32 %v1921, %v1922
        %v1924 = vand.u32 %v1923, 4294901760
        %1925 = vmatpush.msra.mxu0 %v1924
        %v1926 = vand.u32 %v1100, 4294901760
        %v1927 = vsub.f32 %v1100, %v1926
        %v1928 = vand.u32 %v1927, 4294901760
        %v1929 = vsub.f32 %v1927, %v1928
        %v1930 = vand.u32 %v1929, 4294901760
        %1931 = vmatpush.msra.mxu0 %v1930
        %v1932 = vand.u32 %v1098, 4294901760
        %v1933 = vsub.f32 %v1098, %v1932
        %v1934 = vand.u32 %v1933, 4294901760
        %v1935 = vsub.f32 %v1933, %v1934
        %v1936 = vand.u32 %v1935, 4294901760
        %1937 = vmatpush.msra.mxu0 %v1936
        %v1938 = vand.u32 %v1096, 4294901760
        %v1939 = vsub.f32 %v1096, %v1938
        %v1940 = vand.u32 %v1939, 4294901760
        %v1941 = vsub.f32 %v1939, %v1940
        %v1942 = vand.u32 %v1941, 4294901760
        %1943 = vmatpush.msra.mxu0 %v1942
        %v1944 = vand.u32 %v1094, 4294901760
        %v1945 = vsub.f32 %v1094, %v1944
        %v1946 = vand.u32 %v1945, 4294901760
        %v1947 = vsub.f32 %v1945, %v1946
        %v1948 = vand.u32 %v1947, 4294901760
        %1949 = vmatpush.msra.mxu0 %v1948
        %v1950 = vand.u32 %v1092, 4294901760
        %v1951 = vsub.f32 %v1092, %v1950
        %v1952 = vand.u32 %v1951, 4294901760
        %v1953 = vsub.f32 %v1951, %v1952
        %v1954 = vand.u32 %v1953, 4294901760
        %1955 = vmatpush.msra.mxu0 %v1954
        %v1956 = vand.u32 %v1090, 4294901760
        %v1957 = vsub.f32 %v1090, %v1956
        %v1958 = vand.u32 %v1957, 4294901760
        %v1959 = vsub.f32 %v1957, %v1958
        %v1960 = vand.u32 %v1959, 4294901760
        %1961 = vmatpush.msra.mxu0 %v1960
        %v1962 = vand.u32 %v1088, 4294901760
        %v1963 = vsub.f32 %v1088, %v1962
        %v1964 = vand.u32 %v1963, 4294901760
        %v1965 = vsub.f32 %v1963, %v1964
        %v1966 = vand.u32 %v1965, 4294901760
        %1967 = vmatpush.msra.mxu0 %v1966
        %v1968 = vand.u32 %v1086, 4294901760
        %v1969 = vsub.f32 %v1086, %v1968
        %v1970 = vand.u32 %v1969, 4294901760
        %v1971 = vsub.f32 %v1969, %v1970
        %v1972 = vand.u32 %v1971, 4294901760
        %1973 = vmatpush.msra.mxu0 %v1972
        %v1974 = vand.u32 %v1083, 4294901760
        %1975 = vmatmul.f32.gmra.mxu0 %v1974
        %v1976 = vpop.f32.mrf.mxu0
        %v1977 = vadd.f32 %v1876, %v1976
        %1978 = vdwg.mxu0
        %v1979 = vand.u32 %v1116, 4294901760
        %v1980 = vsub.f32 %v1116, %v1979
        %1981 = vmatpush.msra.mxu0 %v1980
        %v1982 = vand.u32 %v1114, 4294901760
        %v1983 = vsub.f32 %v1114, %v1982
        %1984 = vmatpush.msra.mxu0 %v1983
        %v1985 = vand.u32 %v1112, 4294901760
        %v1986 = vsub.f32 %v1112, %v1985
        %1987 = vmatpush.msra.mxu0 %v1986
        %v1988 = vand.u32 %v1110, 4294901760
        %v1989 = vsub.f32 %v1110, %v1988
        %1990 = vmatpush.msra.mxu0 %v1989
        %v1991 = vand.u32 %v1108, 4294901760
        %v1992 = vsub.f32 %v1108, %v1991
        %1993 = vmatpush.msra.mxu0 %v1992
        %v1994 = vand.u32 %v1106, 4294901760
        %v1995 = vsub.f32 %v1106, %v1994
        %1996 = vmatpush.msra.mxu0 %v1995
        %v1997 = vand.u32 %v1104, 4294901760
        %v1998 = vsub.f32 %v1104, %v1997
        %1999 = vmatpush.msra.mxu0 %v1998
        %v2000 = vand.u32 %v1102, 4294901760
        %v2001 = vsub.f32 %v1102, %v2000
        %2002 = vmatpush.msra.mxu0 %v2001
        %v2003 = vand.u32 %v1100, 4294901760
        %v2004 = vsub.f32 %v1100, %v2003
        %2005 = vmatpush.msra.mxu0 %v2004
        %v2006 = vand.u32 %v1098, 4294901760
        %v2007 = vsub.f32 %v1098, %v2006
        %2008 = vmatpush.msra.mxu0 %v2007
        %v2009 = vand.u32 %v1096, 4294901760
        %v2010 = vsub.f32 %v1096, %v2009
        %2011 = vmatpush.msra.mxu0 %v2010
        %v2012 = vand.u32 %v1094, 4294901760
        %v2013 = vsub.f32 %v1094, %v2012
        %2014 = vmatpush.msra.mxu0 %v2013
        %v2015 = vand.u32 %v1092, 4294901760
        %v2016 = vsub.f32 %v1092, %v2015
        %2017 = vmatpush.msra.mxu0 %v2016
        %v2018 = vand.u32 %v1090, 4294901760
        %v2019 = vsub.f32 %v1090, %v2018
        %2020 = vmatpush.msra.mxu0 %v2019
        %v2021 = vand.u32 %v1088, 4294901760
        %v2022 = vsub.f32 %v1088, %v2021
        %2023 = vmatpush.msra.mxu0 %v2022
        %v2024 = vand.u32 %v1086, 4294901760
        %v2025 = vsub.f32 %v1086, %v2024
        %2026 = vmatpush.msra.mxu0 %v2025
        %v2027 = vand.u32 %v1083, 4294901760
        %v2028 = vsub.f32 %v1083, %v2027
        %2029 = vmatmul.f32.gmra.mxu0 %v2028
        %v2030 = vpop.f32.mrf.mxu0
        %v2031 = vadd.f32 %v1977, %v2030
        %2032 = vdwg.mxu0
        %v2033 = vand.u32 %v1116, 4294901760
        %2034 = vmatpush.msra.mxu0 %v2033
        %v2035 = vand.u32 %v1114, 4294901760
        %2036 = vmatpush.msra.mxu0 %v2035
        %v2037 = vand.u32 %v1112, 4294901760
        %2038 = vmatpush.msra.mxu0 %v2037
        %v2039 = vand.u32 %v1110, 4294901760
        %2040 = vmatpush.msra.mxu0 %v2039
        %v2041 = vand.u32 %v1108, 4294901760
        %2042 = vmatpush.msra.mxu0 %v2041
        %v2043 = vand.u32 %v1106, 4294901760
        %2044 = vmatpush.msra.mxu0 %v2043
        %v2045 = vand.u32 %v1104, 4294901760
        %2046 = vmatpush.msra.mxu0 %v2045
        %v2047 = vand.u32 %v1102, 4294901760
        %2048 = vmatpush.msra.mxu0 %v2047
        %v2049 = vand.u32 %v1100, 4294901760
        %2050 = vmatpush.msra.mxu0 %v2049
        %v2051 = vand.u32 %v1098, 4294901760
        %2052 = vmatpush.msra.mxu0 %v2051
        %v2053 = vand.u32 %v1096, 4294901760
        %2054 = vmatpush.msra.mxu0 %v2053
        %v2055 = vand.u32 %v1094, 4294901760
        %2056 = vmatpush.msra.mxu0 %v2055
        %v2057 = vand.u32 %v1092, 4294901760
        %2058 = vmatpush.msra.mxu0 %v2057
        %v2059 = vand.u32 %v1090, 4294901760
        %2060 = vmatpush.msra.mxu0 %v2059
        %v2061 = vand.u32 %v1088, 4294901760
        %2062 = vmatpush.msra.mxu0 %v2061
        %v2063 = vand.u32 %v1086, 4294901760
        %2064 = vmatpush.msra.mxu0 %v2063
        %v2065 = vand.u32 %v1083, 4294901760
        %v2066 = vsub.f32 %v1083, %v2065
        %v2067 = vand.u32 %v2066, 4294901760
        %2068 = vmatmul.f32.gmra.mxu0 %v2067
        %v2069 = vpop.f32.mrf.mxu0
        %v2070 = vadd.f32 %v2031, %v2069
        %2071 = vdwg.mxu0
        %v2072 = vand.u32 %v1116, 4294901760
        %v2073 = vsub.f32 %v1116, %v2072
        %v2074 = vand.u32 %v2073, 4294901760
        %2075 = vmatpush.msra.mxu0 %v2074
        %v2076 = vand.u32 %v1114, 4294901760
        %v2077 = vsub.f32 %v1114, %v2076
        %v2078 = vand.u32 %v2077, 4294901760
        %2079 = vmatpush.msra.mxu0 %v2078
        %v2080 = vand.u32 %v1112, 4294901760
        %v2081 = vsub.f32 %v1112, %v2080
        %v2082 = vand.u32 %v2081, 4294901760
        %2083 = vmatpush.msra.mxu0 %v2082
        %v2084 = vand.u32 %v1110, 4294901760
        %v2085 = vsub.f32 %v1110, %v2084
        %v2086 = vand.u32 %v2085, 4294901760
        %2087 = vmatpush.msra.mxu0 %v2086
        %v2088 = vand.u32 %v1108, 4294901760
        %v2089 = vsub.f32 %v1108, %v2088
        %v2090 = vand.u32 %v2089, 4294901760
        %2091 = vmatpush.msra.mxu0 %v2090
        %v2092 = vand.u32 %v1106, 4294901760
        %v2093 = vsub.f32 %v1106, %v2092
        %v2094 = vand.u32 %v2093, 4294901760
        %2095 = vmatpush.msra.mxu0 %v2094
        %v2096 = vand.u32 %v1104, 4294901760
        %v2097 = vsub.f32 %v1104, %v2096
        %v2098 = vand.u32 %v2097, 4294901760
        %2099 = vmatpush.msra.mxu0 %v2098
        %v2100 = vand.u32 %v1102, 4294901760
        %v2101 = vsub.f32 %v1102, %v2100
        %v2102 = vand.u32 %v2101, 4294901760
        %2103 = vmatpush.msra.mxu0 %v2102
        %v2104 = vand.u32 %v1100, 4294901760
        %v2105 = vsub.f32 %v1100, %v2104
        %v2106 = vand.u32 %v2105, 4294901760
        %2107 = vmatpush.msra.mxu0 %v2106
        %v2108 = vand.u32 %v1098, 4294901760
        %v2109 = vsub.f32 %v1098, %v2108
        %v2110 = vand.u32 %v2109, 4294901760
        %2111 = vmatpush.msra.mxu0 %v2110
        %v2112 = vand.u32 %v1096, 4294901760
        %v2113 = vsub.f32 %v1096, %v2112
        %v2114 = vand.u32 %v2113, 4294901760
        %2115 = vmatpush.msra.mxu0 %v2114
        %v2116 = vand.u32 %v1094, 4294901760
        %v2117 = vsub.f32 %v1094, %v2116
        %v2118 = vand.u32 %v2117, 4294901760
        %2119 = vmatpush.msra.mxu0 %v2118
        %v2120 = vand.u32 %v1092, 4294901760
        %v2121 = vsub.f32 %v1092, %v2120
        %v2122 = vand.u32 %v2121, 4294901760
        %2123 = vmatpush.msra.mxu0 %v2122
        %v2124 = vand.u32 %v1090, 4294901760
        %v2125 = vsub.f32 %v1090, %v2124
        %v2126 = vand.u32 %v2125, 4294901760
        %2127 = vmatpush.msra.mxu0 %v2126
        %v2128 = vand.u32 %v1088, 4294901760
        %v2129 = vsub.f32 %v1088, %v2128
        %v2130 = vand.u32 %v2129, 4294901760
        %2131 = vmatpush.msra.mxu0 %v2130
        %v2132 = vand.u32 %v1086, 4294901760
        %v2133 = vsub.f32 %v1086, %v2132
        %v2134 = vand.u32 %v2133, 4294901760
        %2135 = vmatpush.msra.mxu0 %v2134
        %v2136 = vand.u32 %v1083, 4294901760
        %2137 = vmatmul.f32.gmra.mxu0 %v2136
        %v2138 = vpop.f32.mrf.mxu0
        %v2139 = vadd.f32 %v2070, %v2138
        %2140 = vdwg.mxu0
        %v2141 = vand.u32 %v1116, 4294901760
        %2142 = vmatpush.msra.mxu0 %v2141
        %v2143 = vand.u32 %v1114, 4294901760
        %2144 = vmatpush.msra.mxu0 %v2143
        %v2145 = vand.u32 %v1112, 4294901760
        %2146 = vmatpush.msra.mxu0 %v2145
        %v2147 = vand.u32 %v1110, 4294901760
        %2148 = vmatpush.msra.mxu0 %v2147
        %v2149 = vand.u32 %v1108, 4294901760
        %2150 = vmatpush.msra.mxu0 %v2149
        %v2151 = vand.u32 %v1106, 4294901760
        %2152 = vmatpush.msra.mxu0 %v2151
        %v2153 = vand.u32 %v1104, 4294901760
        %2154 = vmatpush.msra.mxu0 %v2153
        %v2155 = vand.u32 %v1102, 4294901760
        %2156 = vmatpush.msra.mxu0 %v2155
        %v2157 = vand.u32 %v1100, 4294901760
        %2158 = vmatpush.msra.mxu0 %v2157
        %v2159 = vand.u32 %v1098, 4294901760
        %2160 = vmatpush.msra.mxu0 %v2159
        %v2161 = vand.u32 %v1096, 4294901760
        %2162 = vmatpush.msra.mxu0 %v2161
        %v2163 = vand.u32 %v1094, 4294901760
        %2164 = vmatpush.msra.mxu0 %v2163
        %v2165 = vand.u32 %v1092, 4294901760
        %2166 = vmatpush.msra.mxu0 %v2165
        %v2167 = vand.u32 %v1090, 4294901760
        %2168 = vmatpush.msra.mxu0 %v2167
        %v2169 = vand.u32 %v1088, 4294901760
        %2170 = vmatpush.msra.mxu0 %v2169
        %v2171 = vand.u32 %v1086, 4294901760
        %2172 = vmatpush.msra.mxu0 %v2171
        %v2173 = vand.u32 %v1083, 4294901760
        %2174 = vmatmul.f32.gmra.mxu0 %v2173
        %v2175 = vpop.f32.mrf.mxu0
        %v2176 = vadd.f32 %v2139, %v2175
        %2177 = vdwg.mxu0
        %v2178 = vand.u32 %v1148, 4294901760
        %2179 = vmatpush.msra.mxu0 %v2178
        %v2180 = vand.u32 %v1146, 4294901760
        %2181 = vmatpush.msra.mxu0 %v2180
        %v2182 = vand.u32 %v1144, 4294901760
        %2183 = vmatpush.msra.mxu0 %v2182
        %v2184 = vand.u32 %v1142, 4294901760
        %2185 = vmatpush.msra.mxu0 %v2184
        %v2186 = vand.u32 %v1140, 4294901760
        %2187 = vmatpush.msra.mxu0 %v2186
        %v2188 = vand.u32 %v1138, 4294901760
        %2189 = vmatpush.msra.mxu0 %v2188
        %v2190 = vand.u32 %v1136, 4294901760
        %2191 = vmatpush.msra.mxu0 %v2190
        %v2192 = vand.u32 %v1134, 4294901760
        %2193 = vmatpush.msra.mxu0 %v2192
        %v2194 = vand.u32 %v1132, 4294901760
        %2195 = vmatpush.msra.mxu0 %v2194
        %v2196 = vand.u32 %v1130, 4294901760
        %2197 = vmatpush.msra.mxu0 %v2196
        %v2198 = vand.u32 %v1128, 4294901760
        %2199 = vmatpush.msra.mxu0 %v2198
        %v2200 = vand.u32 %v1126, 4294901760
        %2201 = vmatpush.msra.mxu0 %v2200
        %v2202 = vand.u32 %v1124, 4294901760
        %2203 = vmatpush.msra.mxu0 %v2202
        %v2204 = vand.u32 %v1122, 4294901760
        %2205 = vmatpush.msra.mxu0 %v2204
        %v2206 = vand.u32 %v1120, 4294901760
        %2207 = vmatpush.msra.mxu0 %v2206
        %v2208 = vand.u32 %v1118, 4294901760
        %2209 = vmatpush.msra.mxu0 %v2208
        %v2210 = vand.u32 %v1084, 4294901760
        %v2211 = vsub.f32 %v1084, %v2210
        %v2212 = vand.u32 %v2211, 4294901760
        %v2213 = vsub.f32 %v2211, %v2212
        %v2214 = vand.u32 %v2213, 4294901760
        %2215 = vmatmul.f32.gmra.mxu0 %v2214
        %v2216 = vpop.f32.mrf.mxu0
        %v2217 = vadd.f32 %v2176, %v2216
        %2218 = vdwg.mxu0
        %v2219 = vand.u32 %v1148, 4294901760
        %v2220 = vsub.f32 %v1148, %v2219
        %v2221 = vand.u32 %v2220, 4294901760
        %v2222 = vsub.f32 %v2220, %v2221
        %v2223 = vand.u32 %v2222, 4294901760
        %2224 = vmatpush.msra.mxu0 %v2223
        %v2225 = vand.u32 %v1146, 4294901760
        %v2226 = vsub.f32 %v1146, %v2225
        %v2227 = vand.u32 %v2226, 4294901760
        %v2228 = vsub.f32 %v2226, %v2227
        %v2229 = vand.u32 %v2228, 4294901760
        %2230 = vmatpush.msra.mxu0 %v2229
        %v2231 = vand.u32 %v1144, 4294901760
        %v2232 = vsub.f32 %v1144, %v2231
        %v2233 = vand.u32 %v2232, 4294901760
        %v2234 = vsub.f32 %v2232, %v2233
        %v2235 = vand.u32 %v2234, 4294901760
        %2236 = vmatpush.msra.mxu0 %v2235
        %v2237 = vand.u32 %v1142, 4294901760
        %v2238 = vsub.f32 %v1142, %v2237
        %v2239 = vand.u32 %v2238, 4294901760
        %v2240 = vsub.f32 %v2238, %v2239
        %v2241 = vand.u32 %v2240, 4294901760
        %2242 = vmatpush.msra.mxu0 %v2241
        %v2243 = vand.u32 %v1140, 4294901760
        %v2244 = vsub.f32 %v1140, %v2243
        %v2245 = vand.u32 %v2244, 4294901760
        %v2246 = vsub.f32 %v2244, %v2245
        %v2247 = vand.u32 %v2246, 4294901760
        %2248 = vmatpush.msra.mxu0 %v2247
        %v2249 = vand.u32 %v1138, 4294901760
        %v2250 = vsub.f32 %v1138, %v2249
        %v2251 = vand.u32 %v2250, 4294901760
        %v2252 = vsub.f32 %v2250, %v2251
        %v2253 = vand.u32 %v2252, 4294901760
        %2254 = vmatpush.msra.mxu0 %v2253
        %v2255 = vand.u32 %v1136, 4294901760
        %v2256 = vsub.f32 %v1136, %v2255
        %v2257 = vand.u32 %v2256, 4294901760
        %v2258 = vsub.f32 %v2256, %v2257
        %v2259 = vand.u32 %v2258, 4294901760
        %2260 = vmatpush.msra.mxu0 %v2259
        %v2261 = vand.u32 %v1134, 4294901760
        %v2262 = vsub.f32 %v1134, %v2261
        %v2263 = vand.u32 %v2262, 4294901760
        %v2264 = vsub.f32 %v2262, %v2263
        %v2265 = vand.u32 %v2264, 4294901760
        %2266 = vmatpush.msra.mxu0 %v2265
        %v2267 = vand.u32 %v1132, 4294901760
        %v2268 = vsub.f32 %v1132, %v2267
        %v2269 = vand.u32 %v2268, 4294901760
        %v2270 = vsub.f32 %v2268, %v2269
        %v2271 = vand.u32 %v2270, 4294901760
        %2272 = vmatpush.msra.mxu0 %v2271
        %v2273 = vand.u32 %v1130, 4294901760
        %v2274 = vsub.f32 %v1130, %v2273
        %v2275 = vand.u32 %v2274, 4294901760
        %v2276 = vsub.f32 %v2274, %v2275
        %v2277 = vand.u32 %v2276, 4294901760
        %2278 = vmatpush.msra.mxu0 %v2277
        %v2279 = vand.u32 %v1128, 4294901760
        %v2280 = vsub.f32 %v1128, %v2279
        %v2281 = vand.u32 %v2280, 4294901760
        %v2282 = vsub.f32 %v2280, %v2281
        %v2283 = vand.u32 %v2282, 4294901760
        %2284 = vmatpush.msra.mxu0 %v2283
        %v2285 = vand.u32 %v1126, 4294901760
        %v2286 = vsub.f32 %v1126, %v2285
        %v2287 = vand.u32 %v2286, 4294901760
        %v2288 = vsub.f32 %v2286, %v2287
        %v2289 = vand.u32 %v2288, 4294901760
        %2290 = vmatpush.msra.mxu0 %v2289
        %v2291 = vand.u32 %v1124, 4294901760
        %v2292 = vsub.f32 %v1124, %v2291
        %v2293 = vand.u32 %v2292, 4294901760
        %v2294 = vsub.f32 %v2292, %v2293
        %v2295 = vand.u32 %v2294, 4294901760
        %2296 = vmatpush.msra.mxu0 %v2295
        %v2297 = vand.u32 %v1122, 4294901760
        %v2298 = vsub.f32 %v1122, %v2297
        %v2299 = vand.u32 %v2298, 4294901760
        %v2300 = vsub.f32 %v2298, %v2299
        %v2301 = vand.u32 %v2300, 4294901760
        %2302 = vmatpush.msra.mxu0 %v2301
        %v2303 = vand.u32 %v1120, 4294901760
        %v2304 = vsub.f32 %v1120, %v2303
        %v2305 = vand.u32 %v2304, 4294901760
        %v2306 = vsub.f32 %v2304, %v2305
        %v2307 = vand.u32 %v2306, 4294901760
        %2308 = vmatpush.msra.mxu0 %v2307
        %v2309 = vand.u32 %v1118, 4294901760
        %v2310 = vsub.f32 %v1118, %v2309
        %v2311 = vand.u32 %v2310, 4294901760
        %v2312 = vsub.f32 %v2310, %v2311
        %v2313 = vand.u32 %v2312, 4294901760
        %2314 = vmatpush.msra.mxu0 %v2313
        %v2315 = vand.u32 %v1084, 4294901760
        %2316 = vmatmul.f32.gmra.mxu0 %v2315
        %v2317 = vpop.f32.mrf.mxu0
        %v2318 = vadd.f32 %v2217, %v2317
        %2319 = vdwg.mxu0
        %v2320 = vand.u32 %v1148, 4294901760
        %v2321 = vsub.f32 %v1148, %v2320
        %2322 = vmatpush.msra.mxu0 %v2321
        %v2323 = vand.u32 %v1146, 4294901760
        %v2324 = vsub.f32 %v1146, %v2323
        %2325 = vmatpush.msra.mxu0 %v2324
        %v2326 = vand.u32 %v1144, 4294901760
        %v2327 = vsub.f32 %v1144, %v2326
        %2328 = vmatpush.msra.mxu0 %v2327
        %v2329 = vand.u32 %v1142, 4294901760
        %v2330 = vsub.f32 %v1142, %v2329
        %2331 = vmatpush.msra.mxu0 %v2330
        %v2332 = vand.u32 %v1140, 4294901760
        %v2333 = vsub.f32 %v1140, %v2332
        %2334 = vmatpush.msra.mxu0 %v2333
        %v2335 = vand.u32 %v1138, 4294901760
        %v2336 = vsub.f32 %v1138, %v2335
        %2337 = vmatpush.msra.mxu0 %v2336
        %v2338 = vand.u32 %v1136, 4294901760
        %v2339 = vsub.f32 %v1136, %v2338
        %2340 = vmatpush.msra.mxu0 %v2339
        %v2341 = vand.u32 %v1134, 4294901760
        %v2342 = vsub.f32 %v1134, %v2341
        %2343 = vmatpush.msra.mxu0 %v2342
        %v2344 = vand.u32 %v1132, 4294901760
        %v2345 = vsub.f32 %v1132, %v2344
        %2346 = vmatpush.msra.mxu0 %v2345
        %v2347 = vand.u32 %v1130, 4294901760
        %v2348 = vsub.f32 %v1130, %v2347
        %2349 = vmatpush.msra.mxu0 %v2348
        %v2350 = vand.u32 %v1128, 4294901760
        %v2351 = vsub.f32 %v1128, %v2350
        %2352 = vmatpush.msra.mxu0 %v2351
        %v2353 = vand.u32 %v1126, 4294901760
        %v2354 = vsub.f32 %v1126, %v2353
        %2355 = vmatpush.msra.mxu0 %v2354
        %v2356 = vand.u32 %v1124, 4294901760
        %v2357 = vsub.f32 %v1124, %v2356
        %2358 = vmatpush.msra.mxu0 %v2357
        %v2359 = vand.u32 %v1122, 4294901760
        %v2360 = vsub.f32 %v1122, %v2359
        %2361 = vmatpush.msra.mxu0 %v2360
        %v2362 = vand.u32 %v1120, 4294901760
        %v2363 = vsub.f32 %v1120, %v2362
        %2364 = vmatpush.msra.mxu0 %v2363
        %v2365 = vand.u32 %v1118, 4294901760
        %v2366 = vsub.f32 %v1118, %v2365
        %2367 = vmatpush.msra.mxu0 %v2366
        %v2368 = vand.u32 %v1084, 4294901760
        %v2369 = vsub.f32 %v1084, %v2368
        %2370 = vmatmul.f32.gmra.mxu0 %v2369
        %v2371 = vpop.f32.mrf.mxu0
        %v2372 = vadd.f32 %v2318, %v2371
        %2373 = vdwg.mxu0
        %v2374 = vand.u32 %v1148, 4294901760
        %2375 = vmatpush.msra.mxu0 %v2374
        %v2376 = vand.u32 %v1146, 4294901760
        %2377 = vmatpush.msra.mxu0 %v2376
        %v2378 = vand.u32 %v1144, 4294901760
        %2379 = vmatpush.msra.mxu0 %v2378
        %v2380 = vand.u32 %v1142, 4294901760
        %2381 = vmatpush.msra.mxu0 %v2380
        %v2382 = vand.u32 %v1140, 4294901760
        %2383 = vmatpush.msra.mxu0 %v2382
        %v2384 = vand.u32 %v1138, 4294901760
        %2385 = vmatpush.msra.mxu0 %v2384
        %v2386 = vand.u32 %v1136, 4294901760
        %2387 = vmatpush.msra.mxu0 %v2386
        %v2388 = vand.u32 %v1134, 4294901760
        %2389 = vmatpush.msra.mxu0 %v2388
        %v2390 = vand.u32 %v1132, 4294901760
        %2391 = vmatpush.msra.mxu0 %v2390
        %v2392 = vand.u32 %v1130, 4294901760
        %2393 = vmatpush.msra.mxu0 %v2392
        %v2394 = vand.u32 %v1128, 4294901760
        %2395 = vmatpush.msra.mxu0 %v2394
        %v2396 = vand.u32 %v1126, 4294901760
        %2397 = vmatpush.msra.mxu0 %v2396
        %v2398 = vand.u32 %v1124, 4294901760
        %2399 = vmatpush.msra.mxu0 %v2398
        %v2400 = vand.u32 %v1122, 4294901760
        %2401 = vmatpush.msra.mxu0 %v2400
        %v2402 = vand.u32 %v1120, 4294901760
        %2403 = vmatpush.msra.mxu0 %v2402
        %v2404 = vand.u32 %v1118, 4294901760
        %2405 = vmatpush.msra.mxu0 %v2404
        %v2406 = vand.u32 %v1084, 4294901760
        %v2407 = vsub.f32 %v1084, %v2406
        %v2408 = vand.u32 %v2407, 4294901760
        %2409 = vmatmul.f32.gmra.mxu0 %v2408
        %v2410 = vpop.f32.mrf.mxu0
        %v2411 = vadd.f32 %v2372, %v2410
        %2412 = vdwg.mxu0
        %v2413 = vand.u32 %v1148, 4294901760
        %v2414 = vsub.f32 %v1148, %v2413
        %v2415 = vand.u32 %v2414, 4294901760
        %2416 = vmatpush.msra.mxu0 %v2415
        %v2417 = vand.u32 %v1146, 4294901760
        %v2418 = vsub.f32 %v1146, %v2417
        %v2419 = vand.u32 %v2418, 4294901760
        %2420 = vmatpush.msra.mxu0 %v2419
        %v2421 = vand.u32 %v1144, 4294901760
        %v2422 = vsub.f32 %v1144, %v2421
        %v2423 = vand.u32 %v2422, 4294901760
        %2424 = vmatpush.msra.mxu0 %v2423
        %v2425 = vand.u32 %v1142, 4294901760
        %v2426 = vsub.f32 %v1142, %v2425
        %v2427 = vand.u32 %v2426, 4294901760
        %2428 = vmatpush.msra.mxu0 %v2427
        %v2429 = vand.u32 %v1140, 4294901760
        %v2430 = vsub.f32 %v1140, %v2429
        %v2431 = vand.u32 %v2430, 4294901760
        %2432 = vmatpush.msra.mxu0 %v2431
        %v2433 = vand.u32 %v1138, 4294901760
        %v2434 = vsub.f32 %v1138, %v2433
        %v2435 = vand.u32 %v2434, 4294901760
        %2436 = vmatpush.msra.mxu0 %v2435
        %v2437 = vand.u32 %v1136, 4294901760
        %v2438 = vsub.f32 %v1136, %v2437
        %v2439 = vand.u32 %v2438, 4294901760
        %2440 = vmatpush.msra.mxu0 %v2439
        %v2441 = vand.u32 %v1134, 4294901760
        %v2442 = vsub.f32 %v1134, %v2441
        %v2443 = vand.u32 %v2442, 4294901760
        %2444 = vmatpush.msra.mxu0 %v2443
        %v2445 = vand.u32 %v1132, 4294901760
        %v2446 = vsub.f32 %v1132, %v2445
        %v2447 = vand.u32 %v2446, 4294901760
        %2448 = vmatpush.msra.mxu0 %v2447
        %v2449 = vand.u32 %v1130, 4294901760
        %v2450 = vsub.f32 %v1130, %v2449
        %v2451 = vand.u32 %v2450, 4294901760
        %2452 = vmatpush.msra.mxu0 %v2451
        %v2453 = vand.u32 %v1128, 4294901760
        %v2454 = vsub.f32 %v1128, %v2453
        %v2455 = vand.u32 %v2454, 4294901760
        %2456 = vmatpush.msra.mxu0 %v2455
        %v2457 = vand.u32 %v1126, 4294901760
        %v2458 = vsub.f32 %v1126, %v2457
        %v2459 = vand.u32 %v2458, 4294901760
        %2460 = vmatpush.msra.mxu0 %v2459
        %v2461 = vand.u32 %v1124, 4294901760
        %v2462 = vsub.f32 %v1124, %v2461
        %v2463 = vand.u32 %v2462, 4294901760
        %2464 = vmatpush.msra.mxu0 %v2463
        %v2465 = vand.u32 %v1122, 4294901760
        %v2466 = vsub.f32 %v1122, %v2465
        %v2467 = vand.u32 %v2466, 4294901760
        %2468 = vmatpush.msra.mxu0 %v2467
        %v2469 = vand.u32 %v1120, 4294901760
        %v2470 = vsub.f32 %v1120, %v2469
        %v2471 = vand.u32 %v2470, 4294901760
        %2472 = vmatpush.msra.mxu0 %v2471
        %v2473 = vand.u32 %v1118, 4294901760
        %v2474 = vsub.f32 %v1118, %v2473
        %v2475 = vand.u32 %v2474, 4294901760
        %2476 = vmatpush.msra.mxu0 %v2475
        %v2477 = vand.u32 %v1084, 4294901760
        %2478 = vmatmul.f32.gmra.mxu0 %v2477
        %v2479 = vpop.f32.mrf.mxu0
        %v2480 = vadd.f32 %v2411, %v2479
        %2481 = vdwg.mxu0
        %v2482 = vand.u32 %v1148, 4294901760
        %2483 = vmatpush.msra.mxu0 %v2482
        %v2484 = vand.u32 %v1146, 4294901760
        %2485 = vmatpush.msra.mxu0 %v2484
        %v2486 = vand.u32 %v1144, 4294901760
        %2487 = vmatpush.msra.mxu0 %v2486
        %v2488 = vand.u32 %v1142, 4294901760
        %2489 = vmatpush.msra.mxu0 %v2488
        %v2490 = vand.u32 %v1140, 4294901760
        %2491 = vmatpush.msra.mxu0 %v2490
        %v2492 = vand.u32 %v1138, 4294901760
        %2493 = vmatpush.msra.mxu0 %v2492
        %v2494 = vand.u32 %v1136, 4294901760
        %2495 = vmatpush.msra.mxu0 %v2494
        %v2496 = vand.u32 %v1134, 4294901760
        %2497 = vmatpush.msra.mxu0 %v2496
        %v2498 = vand.u32 %v1132, 4294901760
        %2499 = vmatpush.msra.mxu0 %v2498
        %v2500 = vand.u32 %v1130, 4294901760
        %2501 = vmatpush.msra.mxu0 %v2500
        %v2502 = vand.u32 %v1128, 4294901760
        %2503 = vmatpush.msra.mxu0 %v2502
        %v2504 = vand.u32 %v1126, 4294901760
        %2505 = vmatpush.msra.mxu0 %v2504
        %v2506 = vand.u32 %v1124, 4294901760
        %2507 = vmatpush.msra.mxu0 %v2506
        %v2508 = vand.u32 %v1122, 4294901760
        %2509 = vmatpush.msra.mxu0 %v2508
        %v2510 = vand.u32 %v1120, 4294901760
        %2511 = vmatpush.msra.mxu0 %v2510
        %v2512 = vand.u32 %v1118, 4294901760
        %2513 = vmatpush.msra.mxu0 %v2512
        %v2514 = vand.u32 %v1084, 4294901760
        %2515 = vmatmul.f32.gmra.mxu0 %v2514
        %v2516 = vpop.f32.mrf.mxu0
        %v2517 = vadd.f32 %v2480, %v2516
        %2518 = vdwg.mxu0
        %v2519 = vmul.f32 %v1835, 0.01
        %v2520 = vmul.f32 %v2517, 0.01
        %v2521 = vmax.f32 %v1835, %v2519
        %v2522 = vmax.f32 %v2517, %v2520
        %v2523 = vld [vmem:[#allocation10] sm:$0xff]
        %v2524 = vld [vmem:[#allocation10 + $0x8] sm:$0xff]
        %v2525 = vld [vmem:[#allocation10 + $0x10] sm:$0xff]
        %v2526 = vld [vmem:[#allocation10 + $0x18] sm:$0xff]
        %v2527 = vld [vmem:[#allocation10 + $0x20] sm:$0xff]
        %v2528 = vld [vmem:[#allocation10 + $0x28] sm:$0xff]
        %v2529 = vld [vmem:[#allocation10 + $0x30] sm:$0xff]
        %v2530 = vld [vmem:[#allocation10 + $0x38] sm:$0xff]
        %v2531 = vld [vmem:[#allocation10 + $0x40] sm:$0xff]
        %v2532 = vld [vmem:[#allocation10 + $0x48] sm:$0xff]
        %v2533 = vld [vmem:[#allocation10 + $0x50] sm:$0xff]
        %v2534 = vld [vmem:[#allocation10 + $0x58] sm:$0xff]
        %v2535 = vld [vmem:[#allocation10 + $0x60] sm:$0xff]
        %v2536 = vld [vmem:[#allocation10 + $0x68] sm:$0xff]
        %v2537 = vld [vmem:[#allocation10 + $0x70] sm:$0xff]
        %v2538 = vld [vmem:[#allocation10 + $0x78] sm:$0xff]
        %v2539 = vld [vmem:[#allocation10 + $0x80] sm:$0xff]
        %v2540 = vld [vmem:[#allocation10 + $0x88] sm:$0xff]
        %v2541 = vld [vmem:[#allocation10 + $0x90] sm:$0xff]
        %v2542 = vld [vmem:[#allocation10 + $0x98] sm:$0xff]
        %v2543 = vld [vmem:[#allocation10 + $0xa0] sm:$0xff]
        %v2544 = vld [vmem:[#allocation10 + $0xa8] sm:$0xff]
        %v2545 = vld [vmem:[#allocation10 + $0xb0] sm:$0xff]
        %v2546 = vld [vmem:[#allocation10 + $0xb8] sm:$0xff]
        %v2547 = vld [vmem:[#allocation10 + $0xc0] sm:$0xff]
        %v2548 = vld [vmem:[#allocation10 + $0xc8] sm:$0xff]
        %v2549 = vld [vmem:[#allocation10 + $0xd0] sm:$0xff]
        %v2550 = vld [vmem:[#allocation10 + $0xd8] sm:$0xff]
        %v2551 = vld [vmem:[#allocation10 + $0xe0] sm:$0xff]
        %v2552 = vld [vmem:[#allocation10 + $0xe8] sm:$0xff]
        %v2553 = vld [vmem:[#allocation10 + $0xf0] sm:$0xff]
        %v2554 = vld [vmem:[#allocation10 + $0xf8] sm:$0xff]
        %v2555 = vld [vmem:[%s6] sm:$0x1]
        %v2557 = vperm.slane %v2555, 0
        %v2559 = vand.u32 %v2538, 4294901760
        %2560 = vmatpush.msra.mxu0 %v2559
        %v2561 = vand.u32 %v2537, 4294901760
        %2562 = vmatpush.msra.mxu0 %v2561
        %v2563 = vand.u32 %v2536, 4294901760
        %2564 = vmatpush.msra.mxu0 %v2563
        %v2565 = vand.u32 %v2535, 4294901760
        %2566 = vmatpush.msra.mxu0 %v2565
        %v2567 = vand.u32 %v2534, 4294901760
        %2568 = vmatpush.msra.mxu0 %v2567
        %v2569 = vand.u32 %v2533, 4294901760
        %2570 = vmatpush.msra.mxu0 %v2569
        %v2571 = vand.u32 %v2532, 4294901760
        %2572 = vmatpush.msra.mxu0 %v2571
        %v2573 = vand.u32 %v2531, 4294901760
        %2574 = vmatpush.msra.mxu0 %v2573
        %v2575 = vand.u32 %v2530, 4294901760
        %2576 = vmatpush.msra.mxu0 %v2575
        %v2577 = vand.u32 %v2529, 4294901760
        %2578 = vmatpush.msra.mxu0 %v2577
        %v2579 = vand.u32 %v2528, 4294901760
        %2580 = vmatpush.msra.mxu0 %v2579
        %v2581 = vand.u32 %v2527, 4294901760
        %2582 = vmatpush.msra.mxu0 %v2581
        %v2583 = vand.u32 %v2526, 4294901760
        %2584 = vmatpush.msra.mxu0 %v2583
        %v2585 = vand.u32 %v2525, 4294901760
        %2586 = vmatpush.msra.mxu0 %v2585
        %v2587 = vand.u32 %v2524, 4294901760
        %2588 = vmatpush.msra.mxu0 %v2587
        %v2589 = vand.u32 %v2523, 4294901760
        %2590 = vmatpush.msra.mxu0 %v2589
        %v2591 = vand.u32 %v2521, 4294901760
        %v2592 = vsub.f32 %v2521, %v2591
        %v2593 = vand.u32 %v2592, 4294901760
        %v2594 = vsub.f32 %v2592, %v2593
        %v2595 = vand.u32 %v2594, 4294901760
        %2596 = vmatmul.f32.gmra.mxu0 %v2595
        %v2597 = vpop.f32.mrf.mxu0
        %v2598 = vadd.f32 %v2557, %v2597
        %2599 = vdwg.mxu0
        %v2600 = vand.u32 %v2538, 4294901760
        %v2601 = vsub.f32 %v2538, %v2600
        %v2602 = vand.u32 %v2601, 4294901760
        %v2603 = vsub.f32 %v2601, %v2602
        %v2604 = vand.u32 %v2603, 4294901760
        %2605 = vmatpush.msra.mxu0 %v2604
        %v2606 = vand.u32 %v2537, 4294901760
        %v2607 = vsub.f32 %v2537, %v2606
        %v2608 = vand.u32 %v2607, 4294901760
        %v2609 = vsub.f32 %v2607, %v2608
        %v2610 = vand.u32 %v2609, 4294901760
        %2611 = vmatpush.msra.mxu0 %v2610
        %v2612 = vand.u32 %v2536, 4294901760
        %v2613 = vsub.f32 %v2536, %v2612
        %v2614 = vand.u32 %v2613, 4294901760
        %v2615 = vsub.f32 %v2613, %v2614
        %v2616 = vand.u32 %v2615, 4294901760
        %2617 = vmatpush.msra.mxu0 %v2616
        %v2618 = vand.u32 %v2535, 4294901760
        %v2619 = vsub.f32 %v2535, %v2618
        %v2620 = vand.u32 %v2619, 4294901760
        %v2621 = vsub.f32 %v2619, %v2620
        %v2622 = vand.u32 %v2621, 4294901760
        %2623 = vmatpush.msra.mxu0 %v2622
        %v2624 = vand.u32 %v2534, 4294901760
        %v2625 = vsub.f32 %v2534, %v2624
        %v2626 = vand.u32 %v2625, 4294901760
        %v2627 = vsub.f32 %v2625, %v2626
        %v2628 = vand.u32 %v2627, 4294901760
        %2629 = vmatpush.msra.mxu0 %v2628
        %v2630 = vand.u32 %v2533, 4294901760
        %v2631 = vsub.f32 %v2533, %v2630
        %v2632 = vand.u32 %v2631, 4294901760
        %v2633 = vsub.f32 %v2631, %v2632
        %v2634 = vand.u32 %v2633, 4294901760
        %2635 = vmatpush.msra.mxu0 %v2634
        %v2636 = vand.u32 %v2532, 4294901760
        %v2637 = vsub.f32 %v2532, %v2636
        %v2638 = vand.u32 %v2637, 4294901760
        %v2639 = vsub.f32 %v2637, %v2638
        %v2640 = vand.u32 %v2639, 4294901760
        %2641 = vmatpush.msra.mxu0 %v2640
        %v2642 = vand.u32 %v2531, 4294901760
        %v2643 = vsub.f32 %v2531, %v2642
        %v2644 = vand.u32 %v2643, 4294901760
        %v2645 = vsub.f32 %v2643, %v2644
        %v2646 = vand.u32 %v2645, 4294901760
        %2647 = vmatpush.msra.mxu0 %v2646
        %v2648 = vand.u32 %v2530, 4294901760
        %v2649 = vsub.f32 %v2530, %v2648
        %v2650 = vand.u32 %v2649, 4294901760
        %v2651 = vsub.f32 %v2649, %v2650
        %v2652 = vand.u32 %v2651, 4294901760
        %2653 = vmatpush.msra.mxu0 %v2652
        %v2654 = vand.u32 %v2529, 4294901760
        %v2655 = vsub.f32 %v2529, %v2654
        %v2656 = vand.u32 %v2655, 4294901760
        %v2657 = vsub.f32 %v2655, %v2656
        %v2658 = vand.u32 %v2657, 4294901760
        %2659 = vmatpush.msra.mxu0 %v2658
        %v2660 = vand.u32 %v2528, 4294901760
        %v2661 = vsub.f32 %v2528, %v2660
        %v2662 = vand.u32 %v2661, 4294901760
        %v2663 = vsub.f32 %v2661, %v2662
        %v2664 = vand.u32 %v2663, 4294901760
        %2665 = vmatpush.msra.mxu0 %v2664
        %v2666 = vand.u32 %v2527, 4294901760
        %v2667 = vsub.f32 %v2527, %v2666
        %v2668 = vand.u32 %v2667, 4294901760
        %v2669 = vsub.f32 %v2667, %v2668
        %v2670 = vand.u32 %v2669, 4294901760
        %2671 = vmatpush.msra.mxu0 %v2670
        %v2672 = vand.u32 %v2526, 4294901760
        %v2673 = vsub.f32 %v2526, %v2672
        %v2674 = vand.u32 %v2673, 4294901760
        %v2675 = vsub.f32 %v2673, %v2674
        %v2676 = vand.u32 %v2675, 4294901760
        %2677 = vmatpush.msra.mxu0 %v2676
        %v2678 = vand.u32 %v2525, 4294901760
        %v2679 = vsub.f32 %v2525, %v2678
        %v2680 = vand.u32 %v2679, 4294901760
        %v2681 = vsub.f32 %v2679, %v2680
        %v2682 = vand.u32 %v2681, 4294901760
        %2683 = vmatpush.msra.mxu0 %v2682
        %v2684 = vand.u32 %v2524, 4294901760
        %v2685 = vsub.f32 %v2524, %v2684
        %v2686 = vand.u32 %v2685, 4294901760
        %v2687 = vsub.f32 %v2685, %v2686
        %v2688 = vand.u32 %v2687, 4294901760
        %2689 = vmatpush.msra.mxu0 %v2688
        %v2690 = vand.u32 %v2523, 4294901760
        %v2691 = vsub.f32 %v2523, %v2690
        %v2692 = vand.u32 %v2691, 4294901760
        %v2693 = vsub.f32 %v2691, %v2692
        %v2694 = vand.u32 %v2693, 4294901760
        %2695 = vmatpush.msra.mxu0 %v2694
        %v2696 = vand.u32 %v2521, 4294901760
        %2697 = vmatmul.f32.gmra.mxu0 %v2696
        %v2698 = vpop.f32.mrf.mxu0
        %v2699 = vadd.f32 %v2598, %v2698
        %2700 = vdwg.mxu0
        %v2701 = vand.u32 %v2538, 4294901760
        %v2702 = vsub.f32 %v2538, %v2701
        %2703 = vmatpush.msra.mxu0 %v2702
        %v2704 = vand.u32 %v2537, 4294901760
        %v2705 = vsub.f32 %v2537, %v2704
        %2706 = vmatpush.msra.mxu0 %v2705
        %v2707 = vand.u32 %v2536, 4294901760
        %v2708 = vsub.f32 %v2536, %v2707
        %2709 = vmatpush.msra.mxu0 %v2708
        %v2710 = vand.u32 %v2535, 4294901760
        %v2711 = vsub.f32 %v2535, %v2710
        %2712 = vmatpush.msra.mxu0 %v2711
        %v2713 = vand.u32 %v2534, 4294901760
        %v2714 = vsub.f32 %v2534, %v2713
        %2715 = vmatpush.msra.mxu0 %v2714
        %v2716 = vand.u32 %v2533, 4294901760
        %v2717 = vsub.f32 %v2533, %v2716
        %2718 = vmatpush.msra.mxu0 %v2717
        %v2719 = vand.u32 %v2532, 4294901760
        %v2720 = vsub.f32 %v2532, %v2719
        %2721 = vmatpush.msra.mxu0 %v2720
        %v2722 = vand.u32 %v2531, 4294901760
        %v2723 = vsub.f32 %v2531, %v2722
        %2724 = vmatpush.msra.mxu0 %v2723
        %v2725 = vand.u32 %v2530, 4294901760
        %v2726 = vsub.f32 %v2530, %v2725
        %2727 = vmatpush.msra.mxu0 %v2726
        %v2728 = vand.u32 %v2529, 4294901760
        %v2729 = vsub.f32 %v2529, %v2728
        %2730 = vmatpush.msra.mxu0 %v2729
        %v2731 = vand.u32 %v2528, 4294901760
        %v2732 = vsub.f32 %v2528, %v2731
        %2733 = vmatpush.msra.mxu0 %v2732
        %v2734 = vand.u32 %v2527, 4294901760
        %v2735 = vsub.f32 %v2527, %v2734
        %2736 = vmatpush.msra.mxu0 %v2735
        %v2737 = vand.u32 %v2526, 4294901760
        %v2738 = vsub.f32 %v2526, %v2737
        %2739 = vmatpush.msra.mxu0 %v2738
        %v2740 = vand.u32 %v2525, 4294901760
        %v2741 = vsub.f32 %v2525, %v2740
        %2742 = vmatpush.msra.mxu0 %v2741
        %v2743 = vand.u32 %v2524, 4294901760
        %v2744 = vsub.f32 %v2524, %v2743
        %2745 = vmatpush.msra.mxu0 %v2744
        %v2746 = vand.u32 %v2523, 4294901760
        %v2747 = vsub.f32 %v2523, %v2746
        %2748 = vmatpush.msra.mxu0 %v2747
        %v2749 = vand.u32 %v2521, 4294901760
        %v2750 = vsub.f32 %v2521, %v2749
        %2751 = vmatmul.f32.gmra.mxu0 %v2750
        %v2752 = vpop.f32.mrf.mxu0
        %v2753 = vadd.f32 %v2699, %v2752
        %2754 = vdwg.mxu0
        %v2755 = vand.u32 %v2538, 4294901760
        %2756 = vmatpush.msra.mxu0 %v2755
        %v2757 = vand.u32 %v2537, 4294901760
        %2758 = vmatpush.msra.mxu0 %v2757
        %v2759 = vand.u32 %v2536, 4294901760
        %2760 = vmatpush.msra.mxu0 %v2759
        %v2761 = vand.u32 %v2535, 4294901760
        %2762 = vmatpush.msra.mxu0 %v2761
        %v2763 = vand.u32 %v2534, 4294901760
        %2764 = vmatpush.msra.mxu0 %v2763
        %v2765 = vand.u32 %v2533, 4294901760
        %2766 = vmatpush.msra.mxu0 %v2765
        %v2767 = vand.u32 %v2532, 4294901760
        %2768 = vmatpush.msra.mxu0 %v2767
        %v2769 = vand.u32 %v2531, 4294901760
        %2770 = vmatpush.msra.mxu0 %v2769
        %v2771 = vand.u32 %v2530, 4294901760
        %2772 = vmatpush.msra.mxu0 %v2771
        %v2773 = vand.u32 %v2529, 4294901760
        %2774 = vmatpush.msra.mxu0 %v2773
        %v2775 = vand.u32 %v2528, 4294901760
        %2776 = vmatpush.msra.mxu0 %v2775
        %v2777 = vand.u32 %v2527, 4294901760
        %2778 = vmatpush.msra.mxu0 %v2777
        %v2779 = vand.u32 %v2526, 4294901760
        %2780 = vmatpush.msra.mxu0 %v2779
        %v2781 = vand.u32 %v2525, 4294901760
        %2782 = vmatpush.msra.mxu0 %v2781
        %v2783 = vand.u32 %v2524, 4294901760
        %2784 = vmatpush.msra.mxu0 %v2783
        %v2785 = vand.u32 %v2523, 4294901760
        %2786 = vmatpush.msra.mxu0 %v2785
        %v2787 = vand.u32 %v2521, 4294901760
        %v2788 = vsub.f32 %v2521, %v2787
        %v2789 = vand.u32 %v2788, 4294901760
        %2790 = vmatmul.f32.gmra.mxu0 %v2789
        %v2791 = vpop.f32.mrf.mxu0
        %v2792 = vadd.f32 %v2753, %v2791
        %2793 = vdwg.mxu0
        %v2794 = vand.u32 %v2538, 4294901760
        %v2795 = vsub.f32 %v2538, %v2794
        %v2796 = vand.u32 %v2795, 4294901760
        %2797 = vmatpush.msra.mxu0 %v2796
        %v2798 = vand.u32 %v2537, 4294901760
        %v2799 = vsub.f32 %v2537, %v2798
        %v2800 = vand.u32 %v2799, 4294901760
        %2801 = vmatpush.msra.mxu0 %v2800
        %v2802 = vand.u32 %v2536, 4294901760
        %v2803 = vsub.f32 %v2536, %v2802
        %v2804 = vand.u32 %v2803, 4294901760
        %2805 = vmatpush.msra.mxu0 %v2804
        %v2806 = vand.u32 %v2535, 4294901760
        %v2807 = vsub.f32 %v2535, %v2806
        %v2808 = vand.u32 %v2807, 4294901760
        %2809 = vmatpush.msra.mxu0 %v2808
        %v2810 = vand.u32 %v2534, 4294901760
        %v2811 = vsub.f32 %v2534, %v2810
        %v2812 = vand.u32 %v2811, 4294901760
        %2813 = vmatpush.msra.mxu0 %v2812
        %v2814 = vand.u32 %v2533, 4294901760
        %v2815 = vsub.f32 %v2533, %v2814
        %v2816 = vand.u32 %v2815, 4294901760
        %2817 = vmatpush.msra.mxu0 %v2816
        %v2818 = vand.u32 %v2532, 4294901760
        %v2819 = vsub.f32 %v2532, %v2818
        %v2820 = vand.u32 %v2819, 4294901760
        %2821 = vmatpush.msra.mxu0 %v2820
        %v2822 = vand.u32 %v2531, 4294901760
        %v2823 = vsub.f32 %v2531, %v2822
        %v2824 = vand.u32 %v2823, 4294901760
        %2825 = vmatpush.msra.mxu0 %v2824
        %v2826 = vand.u32 %v2530, 4294901760
        %v2827 = vsub.f32 %v2530, %v2826
        %v2828 = vand.u32 %v2827, 4294901760
        %2829 = vmatpush.msra.mxu0 %v2828
        %v2830 = vand.u32 %v2529, 4294901760
        %v2831 = vsub.f32 %v2529, %v2830
        %v2832 = vand.u32 %v2831, 4294901760
        %2833 = vmatpush.msra.mxu0 %v2832
        %v2834 = vand.u32 %v2528, 4294901760
        %v2835 = vsub.f32 %v2528, %v2834
        %v2836 = vand.u32 %v2835, 4294901760
        %2837 = vmatpush.msra.mxu0 %v2836
        %v2838 = vand.u32 %v2527, 4294901760
        %v2839 = vsub.f32 %v2527, %v2838
        %v2840 = vand.u32 %v2839, 4294901760
        %2841 = vmatpush.msra.mxu0 %v2840
        %v2842 = vand.u32 %v2526, 4294901760
        %v2843 = vsub.f32 %v2526, %v2842
        %v2844 = vand.u32 %v2843, 4294901760
        %2845 = vmatpush.msra.mxu0 %v2844
        %v2846 = vand.u32 %v2525, 4294901760
        %v2847 = vsub.f32 %v2525, %v2846
        %v2848 = vand.u32 %v2847, 4294901760
        %2849 = vmatpush.msra.mxu0 %v2848
        %v2850 = vand.u32 %v2524, 4294901760
        %v2851 = vsub.f32 %v2524, %v2850
        %v2852 = vand.u32 %v2851, 4294901760
        %2853 = vmatpush.msra.mxu0 %v2852
        %v2854 = vand.u32 %v2523, 4294901760
        %v2855 = vsub.f32 %v2523, %v2854
        %v2856 = vand.u32 %v2855, 4294901760
        %2857 = vmatpush.msra.mxu0 %v2856
        %v2858 = vand.u32 %v2521, 4294901760
        %2859 = vmatmul.f32.gmra.mxu0 %v2858
        %v2860 = vpop.f32.mrf.mxu0
        %v2861 = vadd.f32 %v2792, %v2860
        %2862 = vdwg.mxu0
        %v2863 = vand.u32 %v2538, 4294901760
        %2864 = vmatpush.msra.mxu0 %v2863
        %v2865 = vand.u32 %v2537, 4294901760
        %2866 = vmatpush.msra.mxu0 %v2865
        %v2867 = vand.u32 %v2536, 4294901760
        %2868 = vmatpush.msra.mxu0 %v2867
        %v2869 = vand.u32 %v2535, 4294901760
        %2870 = vmatpush.msra.mxu0 %v2869
        %v2871 = vand.u32 %v2534, 4294901760
        %2872 = vmatpush.msra.mxu0 %v2871
        %v2873 = vand.u32 %v2533, 4294901760
        %2874 = vmatpush.msra.mxu0 %v2873
        %v2875 = vand.u32 %v2532, 4294901760
        %2876 = vmatpush.msra.mxu0 %v2875
        %v2877 = vand.u32 %v2531, 4294901760
        %2878 = vmatpush.msra.mxu0 %v2877
        %v2879 = vand.u32 %v2530, 4294901760
        %2880 = vmatpush.msra.mxu0 %v2879
        %v2881 = vand.u32 %v2529, 4294901760
        %2882 = vmatpush.msra.mxu0 %v2881
        %v2883 = vand.u32 %v2528, 4294901760
        %2884 = vmatpush.msra.mxu0 %v2883
        %v2885 = vand.u32 %v2527, 4294901760
        %2886 = vmatpush.msra.mxu0 %v2885
        %v2887 = vand.u32 %v2526, 4294901760
        %2888 = vmatpush.msra.mxu0 %v2887
        %v2889 = vand.u32 %v2525, 4294901760
        %2890 = vmatpush.msra.mxu0 %v2889
        %v2891 = vand.u32 %v2524, 4294901760
        %2892 = vmatpush.msra.mxu0 %v2891
        %v2893 = vand.u32 %v2523, 4294901760
        %2894 = vmatpush.msra.mxu0 %v2893
        %v2895 = vand.u32 %v2521, 4294901760
        %2896 = vmatmul.f32.gmra.mxu0 %v2895
        %v2897 = vpop.f32.mrf.mxu0
        %v2898 = vadd.f32 %v2861, %v2897
        %2899 = vdwg.mxu0
        %v2900 = vand.u32 %v2554, 4294901760
        %2901 = vmatpush.msra.mxu0 %v2900
        %v2902 = vand.u32 %v2553, 4294901760
        %2903 = vmatpush.msra.mxu0 %v2902
        %v2904 = vand.u32 %v2552, 4294901760
        %2905 = vmatpush.msra.mxu0 %v2904
        %v2906 = vand.u32 %v2551, 4294901760
        %2907 = vmatpush.msra.mxu0 %v2906
        %v2908 = vand.u32 %v2550, 4294901760
        %2909 = vmatpush.msra.mxu0 %v2908
        %v2910 = vand.u32 %v2549, 4294901760
        %2911 = vmatpush.msra.mxu0 %v2910
        %v2912 = vand.u32 %v2548, 4294901760
        %2913 = vmatpush.msra.mxu0 %v2912
        %v2914 = vand.u32 %v2547, 4294901760
        %2915 = vmatpush.msra.mxu0 %v2914
        %v2916 = vand.u32 %v2546, 4294901760
        %2917 = vmatpush.msra.mxu0 %v2916
        %v2918 = vand.u32 %v2545, 4294901760
        %2919 = vmatpush.msra.mxu0 %v2918
        %v2920 = vand.u32 %v2544, 4294901760
        %2921 = vmatpush.msra.mxu0 %v2920
        %v2922 = vand.u32 %v2543, 4294901760
        %2923 = vmatpush.msra.mxu0 %v2922
        %v2924 = vand.u32 %v2542, 4294901760
        %2925 = vmatpush.msra.mxu0 %v2924
        %v2926 = vand.u32 %v2541, 4294901760
        %2927 = vmatpush.msra.mxu0 %v2926
        %v2928 = vand.u32 %v2540, 4294901760
        %2929 = vmatpush.msra.mxu0 %v2928
        %v2930 = vand.u32 %v2539, 4294901760
        %2931 = vmatpush.msra.mxu0 %v2930
        %v2932 = vand.u32 %v2522, 4294901760
        %v2933 = vsub.f32 %v2522, %v2932
        %v2934 = vand.u32 %v2933, 4294901760
        %v2935 = vsub.f32 %v2933, %v2934
        %v2936 = vand.u32 %v2935, 4294901760
        %2937 = vmatmul.f32.gmra.mxu0 %v2936
        %v2938 = vpop.f32.mrf.mxu0
        %v2939 = vadd.f32 %v2898, %v2938
        %2940 = vdwg.mxu0
        %v2941 = vand.u32 %v2554, 4294901760
        %v2942 = vsub.f32 %v2554, %v2941
        %v2943 = vand.u32 %v2942, 4294901760
        %v2944 = vsub.f32 %v2942, %v2943
        %v2945 = vand.u32 %v2944, 4294901760
        %2946 = vmatpush.msra.mxu0 %v2945
        %v2947 = vand.u32 %v2553, 4294901760
        %v2948 = vsub.f32 %v2553, %v2947
        %v2949 = vand.u32 %v2948, 4294901760
        %v2950 = vsub.f32 %v2948, %v2949
        %v2951 = vand.u32 %v2950, 4294901760
        %2952 = vmatpush.msra.mxu0 %v2951
        %v2953 = vand.u32 %v2552, 4294901760
        %v2954 = vsub.f32 %v2552, %v2953
        %v2955 = vand.u32 %v2954, 4294901760
        %v2956 = vsub.f32 %v2954, %v2955
        %v2957 = vand.u32 %v2956, 4294901760
        %2958 = vmatpush.msra.mxu0 %v2957
        %v2959 = vand.u32 %v2551, 4294901760
        %v2960 = vsub.f32 %v2551, %v2959
        %v2961 = vand.u32 %v2960, 4294901760
        %v2962 = vsub.f32 %v2960, %v2961
        %v2963 = vand.u32 %v2962, 4294901760
        %2964 = vmatpush.msra.mxu0 %v2963
        %v2965 = vand.u32 %v2550, 4294901760
        %v2966 = vsub.f32 %v2550, %v2965
        %v2967 = vand.u32 %v2966, 4294901760
        %v2968 = vsub.f32 %v2966, %v2967
        %v2969 = vand.u32 %v2968, 4294901760
        %2970 = vmatpush.msra.mxu0 %v2969
        %v2971 = vand.u32 %v2549, 4294901760
        %v2972 = vsub.f32 %v2549, %v2971
        %v2973 = vand.u32 %v2972, 4294901760
        %v2974 = vsub.f32 %v2972, %v2973
        %v2975 = vand.u32 %v2974, 4294901760
        %2976 = vmatpush.msra.mxu0 %v2975
        %v2977 = vand.u32 %v2548, 4294901760
        %v2978 = vsub.f32 %v2548, %v2977
        %v2979 = vand.u32 %v2978, 4294901760
        %v2980 = vsub.f32 %v2978, %v2979
        %v2981 = vand.u32 %v2980, 4294901760
        %2982 = vmatpush.msra.mxu0 %v2981
        %v2983 = vand.u32 %v2547, 4294901760
        %v2984 = vsub.f32 %v2547, %v2983
        %v2985 = vand.u32 %v2984, 4294901760
        %v2986 = vsub.f32 %v2984, %v2985
        %v2987 = vand.u32 %v2986, 4294901760
        %2988 = vmatpush.msra.mxu0 %v2987
        %v2989 = vand.u32 %v2546, 4294901760
        %v2990 = vsub.f32 %v2546, %v2989
        %v2991 = vand.u32 %v2990, 4294901760
        %v2992 = vsub.f32 %v2990, %v2991
        %v2993 = vand.u32 %v2992, 4294901760
        %2994 = vmatpush.msra.mxu0 %v2993
        %v2995 = vand.u32 %v2545, 4294901760
        %v2996 = vsub.f32 %v2545, %v2995
        %v2997 = vand.u32 %v2996, 4294901760
        %v2998 = vsub.f32 %v2996, %v2997
        %v2999 = vand.u32 %v2998, 4294901760
        %3000 = vmatpush.msra.mxu0 %v2999
        %v3001 = vand.u32 %v2544, 4294901760
        %v3002 = vsub.f32 %v2544, %v3001
        %v3003 = vand.u32 %v3002, 4294901760
        %v3004 = vsub.f32 %v3002, %v3003
        %v3005 = vand.u32 %v3004, 4294901760
        %3006 = vmatpush.msra.mxu0 %v3005
        %v3007 = vand.u32 %v2543, 4294901760
        %v3008 = vsub.f32 %v2543, %v3007
        %v3009 = vand.u32 %v3008, 4294901760
        %v3010 = vsub.f32 %v3008, %v3009
        %v3011 = vand.u32 %v3010, 4294901760
        %3012 = vmatpush.msra.mxu0 %v3011
        %v3013 = vand.u32 %v2542, 4294901760
        %v3014 = vsub.f32 %v2542, %v3013
        %v3015 = vand.u32 %v3014, 4294901760
        %v3016 = vsub.f32 %v3014, %v3015
        %v3017 = vand.u32 %v3016, 4294901760
        %3018 = vmatpush.msra.mxu0 %v3017
        %v3019 = vand.u32 %v2541, 4294901760
        %v3020 = vsub.f32 %v2541, %v3019
        %v3021 = vand.u32 %v3020, 4294901760
        %v3022 = vsub.f32 %v3020, %v3021
        %v3023 = vand.u32 %v3022, 4294901760
        %3024 = vmatpush.msra.mxu0 %v3023
        %v3025 = vand.u32 %v2540, 4294901760
        %v3026 = vsub.f32 %v2540, %v3025
        %v3027 = vand.u32 %v3026, 4294901760
        %v3028 = vsub.f32 %v3026, %v3027
        %v3029 = vand.u32 %v3028, 4294901760
        %3030 = vmatpush.msra.mxu0 %v3029
        %v3031 = vand.u32 %v2539, 4294901760
        %v3032 = vsub.f32 %v2539, %v3031
        %v3033 = vand.u32 %v3032, 4294901760
        %v3034 = vsub.f32 %v3032, %v3033
        %v3035 = vand.u32 %v3034, 4294901760
        %3036 = vmatpush.msra.mxu0 %v3035
        %v3037 = vand.u32 %v2522, 4294901760
        %3038 = vmatmul.f32.gmra.mxu0 %v3037
        %v3039 = vpop.f32.mrf.mxu0
        %v3040 = vadd.f32 %v2939, %v3039
        %3041 = vdwg.mxu0
        %v3042 = vand.u32 %v2554, 4294901760
        %v3043 = vsub.f32 %v2554, %v3042
        %3044 = vmatpush.msra.mxu0 %v3043
        %v3045 = vand.u32 %v2553, 4294901760
        %v3046 = vsub.f32 %v2553, %v3045
        %3047 = vmatpush.msra.mxu0 %v3046
        %v3048 = vand.u32 %v2552, 4294901760
        %v3049 = vsub.f32 %v2552, %v3048
        %3050 = vmatpush.msra.mxu0 %v3049
        %v3051 = vand.u32 %v2551, 4294901760
        %v3052 = vsub.f32 %v2551, %v3051
        %3053 = vmatpush.msra.mxu0 %v3052
        %v3054 = vand.u32 %v2550, 4294901760
        %v3055 = vsub.f32 %v2550, %v3054
        %3056 = vmatpush.msra.mxu0 %v3055
        %v3057 = vand.u32 %v2549, 4294901760
        %v3058 = vsub.f32 %v2549, %v3057
        %3059 = vmatpush.msra.mxu0 %v3058
        %v3060 = vand.u32 %v2548, 4294901760
        %v3061 = vsub.f32 %v2548, %v3060
        %3062 = vmatpush.msra.mxu0 %v3061
        %v3063 = vand.u32 %v2547, 4294901760
        %v3064 = vsub.f32 %v2547, %v3063
        %3065 = vmatpush.msra.mxu0 %v3064
        %v3066 = vand.u32 %v2546, 4294901760
        %v3067 = vsub.f32 %v2546, %v3066
        %3068 = vmatpush.msra.mxu0 %v3067
        %v3069 = vand.u32 %v2545, 4294901760
        %v3070 = vsub.f32 %v2545, %v3069
        %3071 = vmatpush.msra.mxu0 %v3070
        %v3072 = vand.u32 %v2544, 4294901760
        %v3073 = vsub.f32 %v2544, %v3072
        %3074 = vmatpush.msra.mxu0 %v3073
        %v3075 = vand.u32 %v2543, 4294901760
        %v3076 = vsub.f32 %v2543, %v3075
        %3077 = vmatpush.msra.mxu0 %v3076
        %v3078 = vand.u32 %v2542, 4294901760
        %v3079 = vsub.f32 %v2542, %v3078
        %3080 = vmatpush.msra.mxu0 %v3079
        %v3081 = vand.u32 %v2541, 4294901760
        %v3082 = vsub.f32 %v2541, %v3081
        %3083 = vmatpush.msra.mxu0 %v3082
        %v3084 = vand.u32 %v2540, 4294901760
        %v3085 = vsub.f32 %v2540, %v3084
        %3086 = vmatpush.msra.mxu0 %v3085
        %v3087 = vand.u32 %v2539, 4294901760
        %v3088 = vsub.f32 %v2539, %v3087
        %3089 = vmatpush.msra.mxu0 %v3088
        %v3090 = vand.u32 %v2522, 4294901760
        %v3091 = vsub.f32 %v2522, %v3090
        %3092 = vmatmul.f32.gmra.mxu0 %v3091
        %v3093 = vpop.f32.mrf.mxu0
        %v3094 = vadd.f32 %v3040, %v3093
        %3095 = vdwg.mxu0
        %v3096 = vand.u32 %v2554, 4294901760
        %3097 = vmatpush.msra.mxu0 %v3096
        %v3098 = vand.u32 %v2553, 4294901760
        %3099 = vmatpush.msra.mxu0 %v3098
        %v3100 = vand.u32 %v2552, 4294901760
        %3101 = vmatpush.msra.mxu0 %v3100
        %v3102 = vand.u32 %v2551, 4294901760
        %3103 = vmatpush.msra.mxu0 %v3102
        %v3104 = vand.u32 %v2550, 4294901760
        %3105 = vmatpush.msra.mxu0 %v3104
        %v3106 = vand.u32 %v2549, 4294901760
        %3107 = vmatpush.msra.mxu0 %v3106
        %v3108 = vand.u32 %v2548, 4294901760
        %3109 = vmatpush.msra.mxu0 %v3108
        %v3110 = vand.u32 %v2547, 4294901760
        %3111 = vmatpush.msra.mxu0 %v3110
        %v3112 = vand.u32 %v2546, 4294901760
        %3113 = vmatpush.msra.mxu0 %v3112
        %v3114 = vand.u32 %v2545, 4294901760
        %3115 = vmatpush.msra.mxu0 %v3114
        %v3116 = vand.u32 %v2544, 4294901760
        %3117 = vmatpush.msra.mxu0 %v3116
        %v3118 = vand.u32 %v2543, 4294901760
        %3119 = vmatpush.msra.mxu0 %v3118
        %v3120 = vand.u32 %v2542, 4294901760
        %3121 = vmatpush.msra.mxu0 %v3120
        %v3122 = vand.u32 %v2541, 4294901760
        %3123 = vmatpush.msra.mxu0 %v3122
        %v3124 = vand.u32 %v2540, 4294901760
        %3125 = vmatpush.msra.mxu0 %v3124
        %v3126 = vand.u32 %v2539, 4294901760
        %3127 = vmatpush.msra.mxu0 %v3126
        %v3128 = vand.u32 %v2522, 4294901760
        %v3129 = vsub.f32 %v2522, %v3128
        %v3130 = vand.u32 %v3129, 4294901760
        %3131 = vmatmul.f32.gmra.mxu0 %v3130
        %v3132 = vpop.f32.mrf.mxu0
        %v3133 = vadd.f32 %v3094, %v3132
        %3134 = vdwg.mxu0
        %v3135 = vand.u32 %v2554, 4294901760
        %v3136 = vsub.f32 %v2554, %v3135
        %v3137 = vand.u32 %v3136, 4294901760
        %3138 = vmatpush.msra.mxu0 %v3137
        %v3139 = vand.u32 %v2553, 4294901760
        %v3140 = vsub.f32 %v2553, %v3139
        %v3141 = vand.u32 %v3140, 4294901760
        %3142 = vmatpush.msra.mxu0 %v3141
        %v3143 = vand.u32 %v2552, 4294901760
        %v3144 = vsub.f32 %v2552, %v3143
        %v3145 = vand.u32 %v3144, 4294901760
        %3146 = vmatpush.msra.mxu0 %v3145
        %v3147 = vand.u32 %v2551, 4294901760
        %v3148 = vsub.f32 %v2551, %v3147
        %v3149 = vand.u32 %v3148, 4294901760
        %3150 = vmatpush.msra.mxu0 %v3149
        %v3151 = vand.u32 %v2550, 4294901760
        %v3152 = vsub.f32 %v2550, %v3151
        %v3153 = vand.u32 %v3152, 4294901760
        %3154 = vmatpush.msra.mxu0 %v3153
        %v3155 = vand.u32 %v2549, 4294901760
        %v3156 = vsub.f32 %v2549, %v3155
        %v3157 = vand.u32 %v3156, 4294901760
        %3158 = vmatpush.msra.mxu0 %v3157
        %v3159 = vand.u32 %v2548, 4294901760
        %v3160 = vsub.f32 %v2548, %v3159
        %v3161 = vand.u32 %v3160, 4294901760
        %3162 = vmatpush.msra.mxu0 %v3161
        %v3163 = vand.u32 %v2547, 4294901760
        %v3164 = vsub.f32 %v2547, %v3163
        %v3165 = vand.u32 %v3164, 4294901760
        %3166 = vmatpush.msra.mxu0 %v3165
        %v3167 = vand.u32 %v2546, 4294901760
        %v3168 = vsub.f32 %v2546, %v3167
        %v3169 = vand.u32 %v3168, 4294901760
        %3170 = vmatpush.msra.mxu0 %v3169
        %v3171 = vand.u32 %v2545, 4294901760
        %v3172 = vsub.f32 %v2545, %v3171
        %v3173 = vand.u32 %v3172, 4294901760
        %3174 = vmatpush.msra.mxu0 %v3173
        %v3175 = vand.u32 %v2544, 4294901760
        %v3176 = vsub.f32 %v2544, %v3175
        %v3177 = vand.u32 %v3176, 4294901760
        %3178 = vmatpush.msra.mxu0 %v3177
        %v3179 = vand.u32 %v2543, 4294901760
        %v3180 = vsub.f32 %v2543, %v3179
        %v3181 = vand.u32 %v3180, 4294901760
        %3182 = vmatpush.msra.mxu0 %v3181
        %v3183 = vand.u32 %v2542, 4294901760
        %v3184 = vsub.f32 %v2542, %v3183
        %v3185 = vand.u32 %v3184, 4294901760
        %3186 = vmatpush.msra.mxu0 %v3185
        %v3187 = vand.u32 %v2541, 4294901760
        %v3188 = vsub.f32 %v2541, %v3187
        %v3189 = vand.u32 %v3188, 4294901760
        %3190 = vmatpush.msra.mxu0 %v3189
        %v3191 = vand.u32 %v2540, 4294901760
        %v3192 = vsub.f32 %v2540, %v3191
        %v3193 = vand.u32 %v3192, 4294901760
        %3194 = vmatpush.msra.mxu0 %v3193
        %v3195 = vand.u32 %v2539, 4294901760
        %v3196 = vsub.f32 %v2539, %v3195
        %v3197 = vand.u32 %v3196, 4294901760
        %3198 = vmatpush.msra.mxu0 %v3197
        %v3199 = vand.u32 %v2522, 4294901760
        %3200 = vmatmul.f32.gmra.mxu0 %v3199
        %v3201 = vpop.f32.mrf.mxu0
        %v3202 = vadd.f32 %v3133, %v3201
        %3203 = vdwg.mxu0
        %v3204 = vand.u32 %v2554, 4294901760
        %3205 = vmatpush.msra.mxu0 %v3204
        %v3206 = vand.u32 %v2553, 4294901760
        %3207 = vmatpush.msra.mxu0 %v3206
        %v3208 = vand.u32 %v2552, 4294901760
        %3209 = vmatpush.msra.mxu0 %v3208
        %v3210 = vand.u32 %v2551, 4294901760
        %3211 = vmatpush.msra.mxu0 %v3210
        %v3212 = vand.u32 %v2550, 4294901760
        %3213 = vmatpush.msra.mxu0 %v3212
        %v3214 = vand.u32 %v2549, 4294901760
        %3215 = vmatpush.msra.mxu0 %v3214
        %v3216 = vand.u32 %v2548, 4294901760
        %3217 = vmatpush.msra.mxu0 %v3216
        %v3218 = vand.u32 %v2547, 4294901760
        %3219 = vmatpush.msra.mxu0 %v3218
        %v3220 = vand.u32 %v2546, 4294901760
        %3221 = vmatpush.msra.mxu0 %v3220
        %v3222 = vand.u32 %v2545, 4294901760
        %3223 = vmatpush.msra.mxu0 %v3222
        %v3224 = vand.u32 %v2544, 4294901760
        %3225 = vmatpush.msra.mxu0 %v3224
        %v3226 = vand.u32 %v2543, 4294901760
        %3227 = vmatpush.msra.mxu0 %v3226
        %v3228 = vand.u32 %v2542, 4294901760
        %3229 = vmatpush.msra.mxu0 %v3228
        %v3230 = vand.u32 %v2541, 4294901760
        %3231 = vmatpush.msra.mxu0 %v3230
        %v3232 = vand.u32 %v2540, 4294901760
        %3233 = vmatpush.msra.mxu0 %v3232
        %v3234 = vand.u32 %v2539, 4294901760
        %3235 = vmatpush.msra.mxu0 %v3234
        %v3236 = vand.u32 %v2522, 4294901760
        %3237 = vmatmul.f32.gmra.mxu0 %v3236
        %v3238 = vpop.f32.mrf.mxu0
        %v3239 = vadd.f32 %v3202, %v3238
        %3240 = vdwg.mxu0
        %3241 = vst [vmem:[%s359] sm:$0xff] %v3239
        %s3242 = sand.u32 %s186, 1
        %s3243 = scalar_lea.sflag [#allocation4], %s3242
        %s3244 = sand.u32 %s186, 1
        %s3245 = smul.addr %s3244, 8
        %s3246 = scalar_lea.vmem [#allocation11], %s3245
        // Predicated region
        $region69: #{tpu_custom_call.1} parent=47 // pred_check
          %p3247 = pneg %p196
        $region70: #{tpu_custom_call.1} parent=47 // pred_check_branch
          %3249 = sbr.rel (%p3247) target = $region72
        $region71: #{tpu_custom_call.1} parent=47 // pred_region
          %3251 = vsyncadd %s3243, 0
          %s3252 = smul.addr %s26, 8
          %s3253 = scalar_lea.hbm %s7, %s3252
          %s3255 = sshll.u32 %s3246, 4
          %s3256 = int_to_ptr.vmem [resolvable:$true] %s3255
          %s3257 = sshll.u32 %s3253, 4
          %s3258 = int_to_ptr.hbm [resolvable:$true] %s3257
          %3260 = dma.vmem_to_hbm [thread:$0]  %s3256, 128, %s3258, %s3243
        $region72: #{tpu_custom_call.1} parent=47 // pred_fallthru
          _
      $region48: #{tpu_custom_call.1} parent=5 // pred_fallthru
        _
      %p3261 = scmp.le.s32.totalorder 2, %s21
      // Predicated region
      $region73: #{tpu_custom_call.1} parent=5 // pred_check
        %p3262 = pneg %p3261
      $region74: #{tpu_custom_call.1} parent=5 // pred_check_branch
        %3264 = sbr.rel (%p3262) target = $region76
      $region75: #{tpu_custom_call.1} parent=5 // pred_region
        %s3265 = ssub.s32 %s21, 2
        // Predicated region
        $region77: #{tpu_custom_call.1} parent=75 // pred_check
          %p3266 = pneg %p202
        $region78: #{tpu_custom_call.1} parent=75 // pred_check_branch
          %3268 = sbr.rel (%p3266) target = $region80
        $region79: #{tpu_custom_call.1} parent=75 // pred_region
          %s3269 = sand.u32 %s187, 1
          %s3270 = scalar_lea.sflag [#allocation4], %s3269
          %s3271 = sand.u32 %s187, 1
          %s3272 = smul.addr %s3271, 8
          %s3273 = scalar_lea.vmem [#allocation11], %s3272
          %3275 = dma.done %s3270, 128
        $region80: #{tpu_custom_call.1} parent=75 // pred_fallthru
          _
      $region76: #{tpu_custom_call.1} parent=5 // pred_fallthru
        _
    $region6: #{tpu_custom_call.1} parent=1 // loop_footer
      %s25 = sadd.s32 1, %s21
    $region7: #{tpu_custom_call.1} parent=1 // loop_footer_branch
      %20 = sbr.rel target = $region3
    $region8: #{tpu_custom_call.1} parent=1 // loop_exit
      _
    %3276 = vsyncpa [#allocation3], 1
    %s3277 = scalar_lea.sflag [#allocation3], 1
    %3278 = vsyncpa %s3277, 1
    %3279 = vsyncpa [#allocation6], 1
    %3280 = vsyncpa [#allocation9], 1
    %3281 = vsyncpa [#allocation4], 1
    %s3282 = scalar_lea.sflag [#allocation4], 1
    %3283 = vsyncpa %s3282, 1

// kernel: tpu_custom_call.1
$region0: #{tpu_custom_call.1}
  #allocation0 [shape = 'u32[]', space=smem, size = 0x4, offset = 0x4, fixed_abs, tag = 'smem constant byte address 0x4 - core index']
  #allocation1 [shape = 'u32[72,128]{1,0:T(1,128)}', space=vmem, size = 0x9000, scoped, tag = 'internal scratch']
  %s0 = inlined_call_operand.hbm [shape: f32[16,128], index: 0, kind: input, shape index: {}]
  %s1 = inlined_call_operand.hbm [shape: f32[128,256], index: 1, kind: input, shape index: {}]
  %s2 = inlined_call_operand.hbm [shape: f32[1,256], index: 2, kind: input, shape index: {}]
  %s3 = inlined_call_operand.hbm [shape: f32[256,256], index: 3, kind: input, shape index: {}]
  %s4 = inlined_call_operand.vmem [shape: f32[1,256], index: 4, kind: input, shape index: {}]
  %s5 = inlined_call_operand.hbm [shape: f32[256,128], index: 5, kind: input, shape index: {}]
  %s6 = inlined_call_operand.vmem [shape: f32[1,128], index: 6, kind: input, shape index: {}]
  %s7 = inlined_call_operand.hbm [shape: f32[16,128], index: 7, kind: output, shape index: {}]
  %s8 = sld [smem:[#allocation0]]
  $region81: #{tpu_custom_call.1} parent=0
    _
  %s10 = ssub.s32 1, %s8
  %s11 = scalar_select 0, %s10, %s8
  $region1: #{tpu_custom_call.1} parent=0
    #allocation2 [shape = 'u8[8192]{0}', space=vmem, size = 0x2000, scoped, tag = 'input window, operand 0']
    #allocation3 [shape = 's32[2]{0}', space=sflag, size = 0x8, scoped, tag = 'scoped memory for tpu_custom_call.1']
    #allocation4 [shape = 's32[2]{0}', space=sflag, size = 0x8, scoped, tag = 'scoped memory for tpu_custom_call.1']
    #allocation5 [shape = 'u8[131072]{0}', space=vmem, size = 0x20000, scoped, tag = 'input window, operand 1, single buffered']
    #allocation6 [shape = 's32[1]{0}', space=sflag, size = 0x4, scoped, tag = 'scoped memory for tpu_custom_call.1']
    #allocation7 [shape = 'u8[1024]{0}', space=vmem, size = 0x400, scoped, tag = 'input window, operand 2, single buffered']
    #allocation8 [shape = 'u8[262144]{0}', space=vmem, size = 0x40000, scoped, tag = 'input window, operand 3, single buffered']
    #allocation9 [shape = 's32[1]{0}', space=sflag, size = 0x4, scoped, tag = 'scoped memory for tpu_custom_call.1']
    #allocation10 [shape = 'u8[131072]{0}', space=vmem, size = 0x20000, scoped, tag = 'input window, operand 5, single buffered']
    #allocation11 [shape = 'u8[8192]{0}', space=vmem, size = 0x2000, scoped, tag = 'output window, operand 0']
    %12 = vsyncpa [#allocation3], 0
    %s13 = scalar_lea.sflag [#allocation3], 1
    %14 = vsyncpa %s13, 0
    %15 = vsyncpa [#allocation6], 0
    %16 = vsyncpa [#allocation9], 0
    %17 = vsyncpa [#allocation4], 0
    %s18 = scalar_lea.sflag [#allocation4], 1
    %19 = vsyncpa %s18, 0
    loop: start=0, step=1, limit=4
    $region2: #{tpu_custom_call.1} parent=1 // loop_pre_header
      _
    $region3: #{tpu_custom_call.1} parent=1 // loop_header
      %s21 = sphi 0, %s25
      %p22 = scmp.ge.s32.totalorder %s21, 4
      %s31 = sphi 0, %s33
      %s34 = sphi 0, %s31
      %s35 = sphi 0, %s34
      %s51 = sphi 0, %s35
      %s55 = sphi 0, %s55
      %s57 = sphi 0, %s55
      %s58 = sphi 0, %s57
      %s72 = sphi 0, %s58
      %s76 = sphi 0, %s76
      %s78 = sphi 0, %s76
      %s79 = sphi 0, %s78
      %s93 = sphi 0, %s79
      %s97 = sphi 0, %s97
      %s99 = sphi 0, %s97
      %s100 = sphi 0, %s99
      %s114 = sphi 0, %s100
      %s118 = sphi 0, %s118
      %s120 = sphi 0, %s118
      %s121 = sphi 0, %s120
      %s135 = sphi 0, %s121
      %s139 = sphi 0, %s139
      %s141 = sphi 0, %s139
      %s142 = sphi 0, %s141
      %s156 = sphi 0, %s142
      %s160 = sphi 0, %s160
      %s162 = sphi 0, %s160
      %s163 = sphi 0, %s162
      %s177 = sphi 0, %s163
      %s183 = sphi 0, %s185
      %s186 = sphi 0, %s183
      %s187 = sphi 0, %s186
      %s203 = sphi 0, %s187
    $region4: #{tpu_custom_call.1} parent=1 // loop_header_branch
      %24 = sbr.rel (%p22) target = $region8
    $region5: #{tpu_custom_call.1} parent=1 // loop_body
      %s26 = ssub.s32 %s21, 1
      %s27 = ssub.s32 %s21, 2
      %s28 = sadd.s32 %s21, 1
      %s29 = ssub.s32 %s21, %s28
      %p30 = scmp.eq.s32.totalorder %s29, 0
      %s32 = sadd.s32 %s31, 1
      %s33 = scalar_select %p30, %s31, %s32
      %p36 = pneg %p30
      %p37 = scmp.eq.s32.totalorder %s21, 1
      %p38 = por %p36, %p37
      %p39 = scmp.ne.s32.totalorder %s31, %s34
      %p40 = scmp.eq.s32.totalorder %s21, 0
      %p41 = por %p39, %p40
      %p42 = scmp.ne.s32.totalorder %s31, %s34
      %p43 = scmp.eq.s32.totalorder %s26, 1
      %p44 = por %p42, %p43
      %p45 = scmp.ne.s32.totalorder %s34, %s35
      %p46 = scmp.eq.s32.totalorder %s26, 0
      %p47 = por %p45, %p46
      %p48 = scmp.ne.s32.totalorder %s34, %s35
      %p49 = scmp.eq.s32.totalorder %s27, 1
      %p50 = por %p48, %p49
      %p52 = scmp.ne.s32.totalorder %s35, %s51
      %p53 = scmp.eq.s32.totalorder %s27, 0
      %p54 = por %p52, %p53
      %s56 = sadd.s32 %s55, 1
      %p59 = scmp.eq.s32.totalorder %s21, 1
      %p60 = scmp.ne.s32.totalorder %s55, %s57
      %p61 = scmp.eq.s32.totalorder %s21, 0
      %p62 = por %p60, %p61
      %p63 = scmp.ne.s32.totalorder %s55, %s57
      %p64 = scmp.eq.s32.totalorder %s26, 1
      %p65 = por %p63, %p64
      %p66 = scmp.ne.s32.totalorder %s57, %s58
      %p67 = scmp.eq.s32.totalorder %s26, 0
      %p68 = por %p66, %p67
      %p69 = scmp.ne.s32.totalorder %s57, %s58
      %p70 = scmp.eq.s32.totalorder %s27, 1
      %p71 = por %p69, %p70
      %p73 = scmp.ne.s32.totalorder %s58, %s72
      %p74 = scmp.eq.s32.totalorder %s27, 0
      %p75 = por %p73, %p74
      %s77 = sadd.s32 %s76, 1
      %p80 = scmp.eq.s32.totalorder %s21, 1
      %p81 = scmp.ne.s32.totalorder %s76, %s78
      %p82 = scmp.eq.s32.totalorder %s21, 0
      %p83 = por %p81, %p82
      %p84 = scmp.ne.s32.totalorder %s76, %s78
      %p85 = scmp.eq.s32.totalorder %s26, 1
      %p86 = por %p84, %p85
      %p87 = scmp.ne.s32.totalorder %s78, %s79
      %p88 = scmp.eq.s32.totalorder %s26, 0
      %p89 = por %p87, %p88
      %p90 = scmp.ne.s32.totalorder %s78, %s79
      %p91 = scmp.eq.s32.totalorder %s27, 1
      %p92 = por %p90, %p91
      %p94 = scmp.ne.s32.totalorder %s79, %s93
      %p95 = scmp.eq.s32.totalorder %s27, 0
      %p96 = por %p94, %p95
      %s98 = sadd.s32 %s97, 1
      %p101 = scmp.eq.s32.totalorder %s21, 1
      %p102 = scmp.ne.s32.totalorder %s97, %s99
      %p103 = scmp.eq.s32.totalorder %s21, 0
      %p104 = por %p102, %p103
      %p105 = scmp.ne.s32.totalorder %s97, %s99
      %p106 = scmp.eq.s32.totalorder %s26, 1
      %p107 = por %p105, %p106
      %p108 = scmp.ne.s32.totalorder %s99, %s100
      %p109 = scmp.eq.s32.totalorder %s26, 0
      %p110 = por %p108, %p109
      %p111 = scmp.ne.s32.totalorder %s99, %s100
      %p112 = scmp.eq.s32.totalorder %s27, 1
      %p113 = por %p111, %p112
      %p115 = scmp.ne.s32.totalorder %s100, %s114
      %p116 = scmp.eq.s32.totalorder %s27, 0
      %p117 = por %p115, %p116
      %s119 = sadd.s32 %s118, 1
      %p122 = scmp.eq.s32.totalorder %s21, 1
      %p123 = scmp.ne.s32.totalorder %s118, %s120
      %p124 = scmp.eq.s32.totalorder %s21, 0
      %p125 = por %p123, %p124
      %p126 = scmp.ne.s32.totalorder %s118, %s120
      %p127 = scmp.eq.s32.totalorder %s26, 1
      %p128 = por %p126, %p127
      %p129 = scmp.ne.s32.totalorder %s120, %s121
      %p130 = scmp.eq.s32.totalorder %s26, 0
      %p131 = por %p129, %p130
      %p132 = scmp.ne.s32.totalorder %s120, %s121
      %p133 = scmp.eq.s32.totalorder %s27, 1
      %p134 = por %p132, %p133
      %p136 = scmp.ne.s32.totalorder %s121, %s135
      %p137 = scmp.eq.s32.totalorder %s27, 0
      %p138 = por %p136, %p137
      %s140 = sadd.s32 %s139, 1
      %p143 = scmp.eq.s32.totalorder %s21, 1
      %p144 = scmp.ne.s32.totalorder %s139, %s141
      %p145 = scmp.eq.s32.totalorder %s21, 0
      %p146 = por %p144, %p145
      %p147 = scmp.ne.s32.totalorder %s139, %s141
      %p148 = scmp.eq.s32.totalorder %s26, 1
      %p149 = por %p147, %p148
      %p150 = scmp.ne.s32.totalorder %s141, %s142
      %p151 = scmp.eq.s32.totalorder %s26, 0
      %p152 = por %p150, %p151
      %p153 = scmp.ne.s32.totalorder %s141, %s142
      %p154 = scmp.eq.s32.totalorder %s27, 1
      %p155 = por %p153, %p154
      %p157 = scmp.ne.s32.totalorder %s142, %s156
      %p158 = scmp.eq.s32.totalorder %s27, 0
      %p159 = por %p157, %p158
      %s161 = sadd.s32 %s160, 1
      %p164 = scmp.eq.s32.totalorder %s21, 1
      %p165 = scmp.ne.s32.totalorder %s160, %s162
      %p166 = scmp.eq.s32.totalorder %s21, 0
      %p167 = por %p165, %p166
      %p168 = scmp.ne.s32.totalorder %s160, %s162
      %p169 = scmp.eq.s32.totalorder %s26, 1
      %p170 = por %p168, %p169
      %p171 = scmp.ne.s32.totalorder %s162, %s163
      %p172 = scmp.eq.s32.totalorder %s26, 0
      %p173 = por %p171, %p172
      %p174 = scmp.ne.s32.totalorder %s162, %s163
      %p175 = scmp.eq.s32.totalorder %s27, 1
      %p176 = por %p174, %p175
      %p178 = scmp.ne.s32.totalorder %s163, %s177
      %p179 = scmp.eq.s32.totalorder %s27, 0
      %p180 = por %p178, %p179
      %s181 = ssub.s32 %s21, %s28
      %p182 = scmp.eq.s32.totalorder %s181, 0
      %s184 = sadd.s32 %s183, 1
      %s185 = scalar_select %p182, %s183, %s184
      %p188 = pneg %p182
      %p189 = scmp.eq.s32.totalorder %s21, 1
      %p190 = por %p188, %p189
      %p191 = scmp.ne.s32.totalorder %s183, %s186
      %p192 = scmp.eq.s32.totalorder %s21, 0
      %p193 = por %p191, %p192
      %p194 = scmp.ne.s32.totalorder %s183, %s186
      %p195 = scmp.eq.s32.totalorder %s26, 1
      %p196 = por %p194, %p195
      %p197 = scmp.ne.s32.totalorder %s186, %s187
      %p198 = scmp.eq.s32.totalorder %s26, 0
      %p199 = por %p197, %p198
      %p200 = scmp.ne.s32.totalorder %s186, %s187
      %p201 = scmp.eq.s32.totalorder %s27, 1
      %p202 = por %p200, %p201
      %p204 = scmp.ne.s32.totalorder %s187, %s203
      %p205 = scmp.eq.s32.totalorder %s27, 0
      %p206 = por %p204, %p205
      %p207 = scmp.le.s32.totalorder 1, %s21
      %p208 = scmp.lt.s32.totalorder %s21, 3
      %p209 = pnand %p207, %p208
      %p210 = pneg %p209
      // Predicated region
      $region9: #{tpu_custom_call.1} parent=5 // pred_check
        _
      $region10: #{tpu_custom_call.1} parent=5 // pred_check_branch
        %212 = sbr.rel (%p209) target = $region12
      $region11: #{tpu_custom_call.1} parent=5 // pred_region
        %s213 = ssub.s32 %s21, 1
        // Predicated region
        $region13: #{tpu_custom_call.1} parent=11 // pred_check
          %p214 = pneg %p68
        $region14: #{tpu_custom_call.1} parent=11 // pred_check_branch
          %216 = sbr.rel (%p214) target = $region16
        $region15: #{tpu_custom_call.1} parent=11 // pred_region
          %218 = vsyncadd [#allocation6], 0
          %s219 = sshll.u32 %s1, 4
          %s220 = int_to_ptr.hbm [resolvable:$true] %s219
          %s221 = sshll.u32 [#allocation5], 4
          %s222 = int_to_ptr.vmem [resolvable:$true] %s221
          %227 = dma.hbm_to_vmem [thread:$0]  %s220, 4096, %s222, [#allocation6], 256, 256, 16
        $region16: #{tpu_custom_call.1} parent=11 // pred_fallthru
          _
        // Predicated region
        $region17: #{tpu_custom_call.1} parent=11 // pred_check
          %p228 = pneg %p89
        $region18: #{tpu_custom_call.1} parent=11 // pred_check_branch
          %230 = sbr.rel (%p228) target = $region20
        $region19: #{tpu_custom_call.1} parent=11 // pred_region
          %232 = vsyncadd [#allocation6], 0
          %s234 = sshll.u32 %s2, 4
          %s235 = int_to_ptr.hbm [resolvable:$true] %s234
          %s236 = sshll.u32 [#allocation7], 4
          %s237 = int_to_ptr.vmem [resolvable:$true] %s236
          %239 = dma.hbm_to_vmem [thread:$0]  %s235, 32, %s237, [#allocation6]
        $region20: #{tpu_custom_call.1} parent=11 // pred_fallthru
          _
        // Predicated region
        $region21: #{tpu_custom_call.1} parent=11 // pred_check
          %p240 = pneg %p110
        $region22: #{tpu_custom_call.1} parent=11 // pred_check_branch
          %242 = sbr.rel (%p240) target = $region24
        $region23: #{tpu_custom_call.1} parent=11 // pred_region
          %244 = vsyncadd [#allocation9], 0
          %s245 = sshll.u32 %s3, 4
          %s246 = int_to_ptr.hbm [resolvable:$true] %s245
          %s247 = sshll.u32 [#allocation8], 4
          %s248 = int_to_ptr.vmem [resolvable:$true] %s247
          %253 = dma.hbm_to_vmem [thread:$0]  %s246, 8192, %s248, [#allocation9], 256, 256, 16
        $region24: #{tpu_custom_call.1} parent=11 // pred_fallthru
          _
        // Predicated region
        $region25: #{tpu_custom_call.1} parent=11 // pred_check
          %p254 = pneg %p131
        $region26: #{tpu_custom_call.1} parent=11 // pred_check_branch
          %256 = sbr.rel (%p254) target = $region28
        $region27: #{tpu_custom_call.1} parent=11 // pred_region
          _
        $region28: #{tpu_custom_call.1} parent=11 // pred_fallthru
          _
        // Predicated region
        $region29: #{tpu_custom_call.1} parent=11 // pred_check
          %p257 = pneg %p152
        $region30: #{tpu_custom_call.1} parent=11 // pred_check_branch
          %259 = sbr.rel (%p257) target = $region32
        $region31: #{tpu_custom_call.1} parent=11 // pred_region
          %261 = vsyncadd [#allocation9], 0
          %s262 = sshll.u32 %s5, 4
          %s263 = int_to_ptr.hbm [resolvable:$true] %s262
          %s264 = sshll.u32 [#allocation10], 4
          %s265 = int_to_ptr.vmem [resolvable:$true] %s264
          %270 = dma.hbm_to_vmem [thread:$0]  %s263, 4096, %s265, [#allocation9], 128, 128, 8
        $region32: #{tpu_custom_call.1} parent=11 // pred_fallthru
          _
        // Predicated region
        $region33: #{tpu_custom_call.1} parent=11 // pred_check
          %p271 = pneg %p173
        $region34: #{tpu_custom_call.1} parent=11 // pred_check_branch
          %273 = sbr.rel (%p271) target = $region36
        $region35: #{tpu_custom_call.1} parent=11 // pred_region
          _
        $region36: #{tpu_custom_call.1} parent=11 // pred_fallthru
          _
      $region12: #{tpu_custom_call.1} parent=5 // pred_fallthru
        _
      %p274 = scmp.lt.s32.totalorder %s21, 2
      // Predicated region
      $region37: #{tpu_custom_call.1} parent=5 // pred_check
        %p275 = pneg %p274
      $region38: #{tpu_custom_call.1} parent=5 // pred_check_branch
        %277 = sbr.rel (%p275) target = $region40
      $region39: #{tpu_custom_call.1} parent=5 // pred_region
        // Predicated region
        $region41: #{tpu_custom_call.1} parent=39 // pred_check
          %p278 = pneg %p41
        $region42: #{tpu_custom_call.1} parent=39 // pred_check_branch
          %280 = sbr.rel (%p278) target = $region44
        $region43: #{tpu_custom_call.1} parent=39 // pred_region
          %s281 = sand.u32 %s31, 1
          %s282 = scalar_lea.sflag [#allocation3], %s281
          %s283 = sand.u32 %s31, 1
          %s284 = smul.addr %s283, 8
          %s285 = scalar_lea.vmem [#allocation2], %s284
          %287 = vsyncadd %s282, 0
          %s288 = smul.addr %s21, 8
          %s289 = scalar_lea.hbm %s0, %s288
          %s291 = sshll.u32 %s289, 4
          %s292 = int_to_ptr.hbm [resolvable:$true] %s291
          %s293 = sshll.u32 %s285, 4
          %s294 = int_to_ptr.vmem [resolvable:$true] %s293
          %296 = dma.hbm_to_vmem [thread:$0]  %s292, 128, %s294, %s282
        $region44: #{tpu_custom_call.1} parent=39 // pred_fallthru
          _
      $region40: #{tpu_custom_call.1} parent=5 // pred_fallthru
        _
      %p297 = scmp.le.s32.totalorder 1, %s21
      %p298 = scmp.lt.s32.totalorder %s21, 3
      %p299 = pnand %p297, %p298
      %p300 = pneg %p299
      // Predicated region
      $region45: #{tpu_custom_call.1} parent=5 // pred_check
        _
      $region46: #{tpu_custom_call.1} parent=5 // pred_check_branch
        %302 = sbr.rel (%p299) target = $region48
      $region47: #{tpu_custom_call.1} parent=5 // pred_region
        %s303 = ssub.s32 %s21, 1
        %s304 = sand.u32 %s34, 1
        %s305 = scalar_lea.sflag [#allocation3], %s304
        %s306 = sand.u32 %s34, 1
        %s307 = smul.addr %s306, 8
        %s308 = scalar_lea.vmem [#allocation2], %s307
        // Predicated region
        $region49: #{tpu_custom_call.1} parent=47 // pred_check
          %p309 = pneg %p47
        $region50: #{tpu_custom_call.1} parent=47 // pred_check_branch
          %311 = sbr.rel (%p309) target = $region52
        $region51: #{tpu_custom_call.1} parent=47 // pred_region
          %313 = dma.done %s305, 128
        $region52: #{tpu_custom_call.1} parent=47 // pred_fallthru
          _
        // Predicated region
        $region53: #{tpu_custom_call.1} parent=47 // pred_check
          %p314 = pneg %p68
        $region54: #{tpu_custom_call.1} parent=47 // pred_check_branch
          %316 = sbr.rel (%p314) target = $region56
        $region55: #{tpu_custom_call.1} parent=47 // pred_region
          %318 = dma.done [#allocation6], 4096
        $region56: #{tpu_custom_call.1} parent=47 // pred_fallthru
          _
        // Predicated region
        $region57: #{tpu_custom_call.1} parent=47 // pred_check
          %p319 = pneg %p89
        $region58: #{tpu_custom_call.1} parent=47 // pred_check_branch
          %321 = sbr.rel (%p319) target = $region60
        $region59: #{tpu_custom_call.1} parent=47 // pred_region
          %323 = dma.done [#allocation6], 32
        $region60: #{tpu_custom_call.1} parent=47 // pred_fallthru
          _
        // Predicated region
        $region61: #{tpu_custom_call.1} parent=47 // pred_check
          %p324 = pneg %p110
        $region62: #{tpu_custom_call.1} parent=47 // pred_check_branch
          %326 = sbr.rel (%p324) target = $region64
        $region63: #{tpu_custom_call.1} parent=47 // pred_region
          %328 = dma.done [#allocation9], 8192
        $region64: #{tpu_custom_call.1} parent=47 // pred_fallthru
          _
        // Predicated region
        $region65: #{tpu_custom_call.1} parent=47 // pred_check
          %p329 = pneg %p152
        $region66: #{tpu_custom_call.1} parent=47 // pred_check_branch
          %331 = sbr.rel (%p329) target = $region68
        $region67: #{tpu_custom_call.1} parent=47 // pred_region
          %333 = dma.done [#allocation9], 4096
        $region68: #{tpu_custom_call.1} parent=47 // pred_fallthru
          _
        %s334 = sand.u32 %s34, 1
        %s335 = scalar_lea.sflag [#allocation3], %s334
        %s336 = sand.u32 %s34, 1
        %s337 = smul.addr %s336, 8
        %s338 = scalar_lea.vmem [#allocation2], %s337
        %p339 = pneg %p47
        %p340 = pneg %p44
        %p341 = pneg %p68
        %p342 = pneg %p65
        %p343 = pneg %p89
        %p344 = pneg %p86
        %p345 = pneg %p110
        %p346 = pneg %p107
        %p347 = pneg %p131
        %p348 = pneg %p128
        %p349 = pneg %p152
        %p350 = pneg %p149
        %p351 = pneg %p173
        %p352 = pneg %p170
        %p353 = pneg %p199
        %p354 = pneg %p196
        %s355 = sand.u32 %s186, 1
        %s356 = scalar_lea.sflag [#allocation4], %s355
        %s357 = sand.u32 %s186, 1
        %s358 = smul.addr %s357, 8
        %s359 = scalar_lea.vmem [#allocation11], %s358
        %v360 = vld [vmem:[%s308] sm:$0xff]
        %v361 = vld [vmem:[#allocation5] sm:$0xff]
        %v362 = vld [vmem:[#allocation5 + $0x8] sm:$0xff]
        %v363 = vld [vmem:[#allocation5 + $0x10] sm:$0xff]
        %v364 = vld [vmem:[#allocation5 + $0x18] sm:$0xff]
        %v365 = vld [vmem:[#allocation5 + $0x20] sm:$0xff]
        %v366 = vld [vmem:[#allocation5 + $0x28] sm:$0xff]
        %v367 = vld [vmem:[#allocation5 + $0x30] sm:$0xff]
        %v368 = vld [vmem:[#allocation5 + $0x38] sm:$0xff]
        %v369 = vld [vmem:[#allocation5 + $0x40] sm:$0xff]
        %v370 = vld [vmem:[#allocation5 + $0x48] sm:$0xff]
        %v371 = vld [vmem:[#allocation5 + $0x50] sm:$0xff]
        %v372 = vld [vmem:[#allocation5 + $0x58] sm:$0xff]
        %v373 = vld [vmem:[#allocation5 + $0x60] sm:$0xff]
        %v374 = vld [vmem:[#allocation5 + $0x68] sm:$0xff]
        %v375 = vld [vmem:[#allocation5 + $0x70] sm:$0xff]
        %v376 = vld [vmem:[#allocation5 + $0x78] sm:$0xff]
        %v377 = vld [vmem:[#allocation5 + $0x80] sm:$0xff]
        %v378 = vld [vmem:[#allocation5 + $0x88] sm:$0xff]
        %v379 = vld [vmem:[#allocation5 + $0x90] sm:$0xff]
        %v380 = vld [vmem:[#allocation5 + $0x98] sm:$0xff]
        %v381 = vld [vmem:[#allocation5 + $0xa0] sm:$0xff]
        %v382 = vld [vmem:[#allocation5 + $0xa8] sm:$0xff]
        %v383 = vld [vmem:[#allocation5 + $0xb0] sm:$0xff]
        %v384 = vld [vmem:[#allocation5 + $0xb8] sm:$0xff]
        %v385 = vld [vmem:[#allocation5 + $0xc0] sm:$0xff]
        %v386 = vld [vmem:[#allocation5 + $0xc8] sm:$0xff]
        %v387 = vld [vmem:[#allocation5 + $0xd0] sm:$0xff]
        %v388 = vld [vmem:[#allocation5 + $0xd8] sm:$0xff]
        %v389 = vld [vmem:[#allocation5 + $0xe0] sm:$0xff]
        %v390 = vld [vmem:[#allocation5 + $0xe8] sm:$0xff]
        %v391 = vld [vmem:[#allocation5 + $0xf0] sm:$0xff]
        %v392 = vld [vmem:[#allocation5 + $0xf8] sm:$0xff]
        %v393 = vld [vmem:[#allocation7] sm:$0x3]
        %v395 = vperm.slane %v393, 0
        %v396 = vperm.slane %v393, 1
        %v399 = vand.u32 %v391, 4294901760
        %400 = vmatpush.msra.mxu0 %v399
        %v401 = vand.u32 %v389, 4294901760
        %402 = vmatpush.msra.mxu0 %v401
        %v403 = vand.u32 %v387, 4294901760
        %404 = vmatpush.msra.mxu0 %v403
        %v405 = vand.u32 %v385, 4294901760
        %406 = vmatpush.msra.mxu0 %v405
        %v407 = vand.u32 %v383, 4294901760
        %408 = vmatpush.msra.mxu0 %v407
        %v409 = vand.u32 %v381, 4294901760
        %410 = vmatpush.msra.mxu0 %v409
        %v411 = vand.u32 %v379, 4294901760
        %412 = vmatpush.msra.mxu0 %v411
        %v413 = vand.u32 %v377, 4294901760
        %414 = vmatpush.msra.mxu0 %v413
        %v415 = vand.u32 %v375, 4294901760
        %416 = vmatpush.msra.mxu0 %v415
        %v417 = vand.u32 %v373, 4294901760
        %418 = vmatpush.msra.mxu0 %v417
        %v419 = vand.u32 %v371, 4294901760
        %420 = vmatpush.msra.mxu0 %v419
        %v421 = vand.u32 %v369, 4294901760
        %422 = vmatpush.msra.mxu0 %v421
        %v423 = vand.u32 %v367, 4294901760
        %424 = vmatpush.msra.mxu0 %v423
        %v425 = vand.u32 %v365, 4294901760
        %426 = vmatpush.msra.mxu0 %v425
        %v427 = vand.u32 %v363, 4294901760
        %428 = vmatpush.msra.mxu0 %v427
        %v429 = vand.u32 %v361, 4294901760
        %430 = vmatpush.msra.mxu0 %v429
        %v431 = vand.u32 %v360, 4294901760
        %v432 = vsub.f32 %v360, %v431
        %v433 = vand.u32 %v432, 4294901760
        %v434 = vsub.f32 %v432, %v433
        %v435 = vand.u32 %v434, 4294901760
        %436 = vmatmul.f32.gmra.mxu0 %v435
        %v437 = vpop.f32.mrf.mxu0
        %v438 = vadd.f32 %v395, %v437
        %439 = vdwg.mxu0
        %v440 = vand.u32 %v391, 4294901760
        %v441 = vsub.f32 %v391, %v440
        %v442 = vand.u32 %v441, 4294901760
        %v443 = vsub.f32 %v441, %v442
        %v444 = vand.u32 %v443, 4294901760
        %445 = vmatpush.msra.mxu0 %v444
        %v446 = vand.u32 %v389, 4294901760
        %v447 = vsub.f32 %v389, %v446
        %v448 = vand.u32 %v447, 4294901760
        %v449 = vsub.f32 %v447, %v448
        %v450 = vand.u32 %v449, 4294901760
        %451 = vmatpush.msra.mxu0 %v450
        %v452 = vand.u32 %v387, 4294901760
        %v453 = vsub.f32 %v387, %v452
        %v454 = vand.u32 %v453, 4294901760
        %v455 = vsub.f32 %v453, %v454
        %v456 = vand.u32 %v455, 4294901760
        %457 = vmatpush.msra.mxu0 %v456
        %v458 = vand.u32 %v385, 4294901760
        %v459 = vsub.f32 %v385, %v458
        %v460 = vand.u32 %v459, 4294901760
        %v461 = vsub.f32 %v459, %v460
        %v462 = vand.u32 %v461, 4294901760
        %463 = vmatpush.msra.mxu0 %v462
        %v464 = vand.u32 %v383, 4294901760
        %v465 = vsub.f32 %v383, %v464
        %v466 = vand.u32 %v465, 4294901760
        %v467 = vsub.f32 %v465, %v466
        %v468 = vand.u32 %v467, 4294901760
        %469 = vmatpush.msra.mxu0 %v468
        %v470 = vand.u32 %v381, 4294901760
        %v471 = vsub.f32 %v381, %v470
        %v472 = vand.u32 %v471, 4294901760
        %v473 = vsub.f32 %v471, %v472
        %v474 = vand.u32 %v473, 4294901760
        %475 = vmatpush.msra.mxu0 %v474
        %v476 = vand.u32 %v379, 4294901760
        %v477 = vsub.f32 %v379, %v476
        %v478 = vand.u32 %v477, 4294901760
        %v479 = vsub.f32 %v477, %v478
        %v480 = vand.u32 %v479, 4294901760
        %481 = vmatpush.msra.mxu0 %v480
        %v482 = vand.u32 %v377, 4294901760
        %v483 = vsub.f32 %v377, %v482
        %v484 = vand.u32 %v483, 4294901760
        %v485 = vsub.f32 %v483, %v484
        %v486 = vand.u32 %v485, 4294901760
        %487 = vmatpush.msra.mxu0 %v486
        %v488 = vand.u32 %v375, 4294901760
        %v489 = vsub.f32 %v375, %v488
        %v490 = vand.u32 %v489, 4294901760
        %v491 = vsub.f32 %v489, %v490
        %v492 = vand.u32 %v491, 4294901760
        %493 = vmatpush.msra.mxu0 %v492
        %v494 = vand.u32 %v373, 4294901760
        %v495 = vsub.f32 %v373, %v494
        %v496 = vand.u32 %v495, 4294901760
        %v497 = vsub.f32 %v495, %v496
        %v498 = vand.u32 %v497, 4294901760
        %499 = vmatpush.msra.mxu0 %v498
        %v500 = vand.u32 %v371, 4294901760
        %v501 = vsub.f32 %v371, %v500
        %v502 = vand.u32 %v501, 4294901760
        %v503 = vsub.f32 %v501, %v502
        %v504 = vand.u32 %v503, 4294901760
        %505 = vmatpush.msra.mxu0 %v504
        %v506 = vand.u32 %v369, 4294901760
        %v507 = vsub.f32 %v369, %v506
        %v508 = vand.u32 %v507, 4294901760
        %v509 = vsub.f32 %v507, %v508
        %v510 = vand.u32 %v509, 4294901760
        %511 = vmatpush.msra.mxu0 %v510
        %v512 = vand.u32 %v367, 4294901760
        %v513 = vsub.f32 %v367, %v512
        %v514 = vand.u32 %v513, 4294901760
        %v515 = vsub.f32 %v513, %v514
        %v516 = vand.u32 %v515, 4294901760
        %517 = vmatpush.msra.mxu0 %v516
        %v518 = vand.u32 %v365, 4294901760
        %v519 = vsub.f32 %v365, %v518
        %v520 = vand.u32 %v519, 4294901760
        %v521 = vsub.f32 %v519, %v520
        %v522 = vand.u32 %v521, 4294901760
        %523 = vmatpush.msra.mxu0 %v522
        %v524 = vand.u32 %v363, 4294901760
        %v525 = vsub.f32 %v363, %v524
        %v526 = vand.u32 %v525, 4294901760
        %v527 = vsub.f32 %v525, %v526
        %v528 = vand.u32 %v527, 4294901760
        %529 = vmatpush.msra.mxu0 %v528
        %v530 = vand.u32 %v361, 4294901760
        %v531 = vsub.f32 %v361, %v530
        %v532 = vand.u32 %v531, 4294901760
        %v533 = vsub.f32 %v531, %v532
        %v534 = vand.u32 %v533, 4294901760
        %535 = vmatpush.msra.mxu0 %v534
        %v536 = vand.u32 %v360, 4294901760
        %537 = vmatmul.f32.gmra.mxu0 %v536
        %v538 = vpop.f32.mrf.mxu0
        %v539 = vadd.f32 %v438, %v538
        %540 = vdwg.mxu0
        %v541 = vand.u32 %v391, 4294901760
        %v542 = vsub.f32 %v391, %v541
        %543 = vmatpush.msra.mxu0 %v542
        %v544 = vand.u32 %v389, 4294901760
        %v545 = vsub.f32 %v389, %v544
        %546 = vmatpush.msra.mxu0 %v545
        %v547 = vand.u32 %v387, 4294901760
        %v548 = vsub.f32 %v387, %v547
        %549 = vmatpush.msra.mxu0 %v548
        %v550 = vand.u32 %v385, 4294901760
        %v551 = vsub.f32 %v385, %v550
        %552 = vmatpush.msra.mxu0 %v551
        %v553 = vand.u32 %v383, 4294901760
        %v554 = vsub.f32 %v383, %v553
        %555 = vmatpush.msra.mxu0 %v554
        %v556 = vand.u32 %v381, 4294901760
        %v557 = vsub.f32 %v381, %v556
        %558 = vmatpush.msra.mxu0 %v557
        %v559 = vand.u32 %v379, 4294901760
        %v560 = vsub.f32 %v379, %v559
        %561 = vmatpush.msra.mxu0 %v560
        %v562 = vand.u32 %v377, 4294901760
        %v563 = vsub.f32 %v377, %v562
        %564 = vmatpush.msra.mxu0 %v563
        %v565 = vand.u32 %v375, 4294901760
        %v566 = vsub.f32 %v375, %v565
        %567 = vmatpush.msra.mxu0 %v566
        %v568 = vand.u32 %v373, 4294901760
        %v569 = vsub.f32 %v373, %v568
        %570 = vmatpush.msra.mxu0 %v569
        %v571 = vand.u32 %v371, 4294901760
        %v572 = vsub.f32 %v371, %v571
        %573 = vmatpush.msra.mxu0 %v572
        %v574 = vand.u32 %v369, 4294901760
        %v575 = vsub.f32 %v369, %v574
        %576 = vmatpush.msra.mxu0 %v575
        %v577 = vand.u32 %v367, 4294901760
        %v578 = vsub.f32 %v367, %v577
        %579 = vmatpush.msra.mxu0 %v578
        %v580 = vand.u32 %v365, 4294901760
        %v581 = vsub.f32 %v365, %v580
        %582 = vmatpush.msra.mxu0 %v581
        %v583 = vand.u32 %v363, 4294901760
        %v584 = vsub.f32 %v363, %v583
        %585 = vmatpush.msra.mxu0 %v584
        %v586 = vand.u32 %v361, 4294901760
        %v587 = vsub.f32 %v361, %v586
        %588 = vmatpush.msra.mxu0 %v587
        %v589 = vand.u32 %v360, 4294901760
        %v590 = vsub.f32 %v360, %v589
        %591 = vmatmul.f32.gmra.mxu0 %v590
        %v592 = vpop.f32.mrf.mxu0
        %v593 = vadd.f32 %v539, %v592
        %594 = vdwg.mxu0
        %v595 = vand.u32 %v391, 4294901760
        %596 = vmatpush.msra.mxu0 %v595
        %v597 = vand.u32 %v389, 4294901760
        %598 = vmatpush.msra.mxu0 %v597
        %v599 = vand.u32 %v387, 4294901760
        %600 = vmatpush.msra.mxu0 %v599
        %v601 = vand.u32 %v385, 4294901760
        %602 = vmatpush.msra.mxu0 %v601
        %v603 = vand.u32 %v383, 4294901760
        %604 = vmatpush.msra.mxu0 %v603
        %v605 = vand.u32 %v381, 4294901760
        %606 = vmatpush.msra.mxu0 %v605
        %v607 = vand.u32 %v379, 4294901760
        %608 = vmatpush.msra.mxu0 %v607
        %v609 = vand.u32 %v377, 4294901760
        %610 = vmatpush.msra.mxu0 %v609
        %v611 = vand.u32 %v375, 4294901760
        %612 = vmatpush.msra.mxu0 %v611
        %v613 = vand.u32 %v373, 4294901760
        %614 = vmatpush.msra.mxu0 %v613
        %v615 = vand.u32 %v371, 4294901760
        %616 = vmatpush.msra.mxu0 %v615
        %v617 = vand.u32 %v369, 4294901760
        %618 = vmatpush.msra.mxu0 %v617
        %v619 = vand.u32 %v367, 4294901760
        %620 = vmatpush.msra.mxu0 %v619
        %v621 = vand.u32 %v365, 4294901760
        %622 = vmatpush.msra.mxu0 %v621
        %v623 = vand.u32 %v363, 4294901760
        %624 = vmatpush.msra.mxu0 %v623
        %v625 = vand.u32 %v361, 4294901760
        %626 = vmatpush.msra.mxu0 %v625
        %v627 = vand.u32 %v360, 4294901760
        %v628 = vsub.f32 %v360, %v627
        %v629 = vand.u32 %v628, 4294901760
        %630 = vmatmul.f32.gmra.mxu0 %v629
        %v631 = vpop.f32.mrf.mxu0
        %v632 = vadd.f32 %v593, %v631
        %633 = vdwg.mxu0
        %v634 = vand.u32 %v391, 4294901760
        %v635 = vsub.f32 %v391, %v634
        %v636 = vand.u32 %v635, 4294901760
        %637 = vmatpush.msra.mxu0 %v636
        %v638 = vand.u32 %v389, 4294901760
        %v639 = vsub.f32 %v389, %v638
        %v640 = vand.u32 %v639, 4294901760
        %641 = vmatpush.msra.mxu0 %v640
        %v642 = vand.u32 %v387, 4294901760
        %v643 = vsub.f32 %v387, %v642
        %v644 = vand.u32 %v643, 4294901760
        %645 = vmatpush.msra.mxu0 %v644
        %v646 = vand.u32 %v385, 4294901760
        %v647 = vsub.f32 %v385, %v646
        %v648 = vand.u32 %v647, 4294901760
        %649 = vmatpush.msra.mxu0 %v648
        %v650 = vand.u32 %v383, 4294901760
        %v651 = vsub.f32 %v383, %v650
        %v652 = vand.u32 %v651, 4294901760
        %653 = vmatpush.msra.mxu0 %v652
        %v654 = vand.u32 %v381, 4294901760
        %v655 = vsub.f32 %v381, %v654
        %v656 = vand.u32 %v655, 4294901760
        %657 = vmatpush.msra.mxu0 %v656
        %v658 = vand.u32 %v379, 4294901760
        %v659 = vsub.f32 %v379, %v658
        %v660 = vand.u32 %v659, 4294901760
        %661 = vmatpush.msra.mxu0 %v660
        %v662 = vand.u32 %v377, 4294901760
        %v663 = vsub.f32 %v377, %v662
        %v664 = vand.u32 %v663, 4294901760
        %665 = vmatpush.msra.mxu0 %v664
        %v666 = vand.u32 %v375, 4294901760
        %v667 = vsub.f32 %v375, %v666
        %v668 = vand.u32 %v667, 4294901760
        %669 = vmatpush.msra.mxu0 %v668
        %v670 = vand.u32 %v373, 4294901760
        %v671 = vsub.f32 %v373, %v670
        %v672 = vand.u32 %v671, 4294901760
        %673 = vmatpush.msra.mxu0 %v672
        %v674 = vand.u32 %v371, 4294901760
        %v675 = vsub.f32 %v371, %v674
        %v676 = vand.u32 %v675, 4294901760
        %677 = vmatpush.msra.mxu0 %v676
        %v678 = vand.u32 %v369, 4294901760
        %v679 = vsub.f32 %v369, %v678
        %v680 = vand.u32 %v679, 4294901760
        %681 = vmatpush.msra.mxu0 %v680
        %v682 = vand.u32 %v367, 4294901760
        %v683 = vsub.f32 %v367, %v682
        %v684 = vand.u32 %v683, 4294901760
        %685 = vmatpush.msra.mxu0 %v684
        %v686 = vand.u32 %v365, 4294901760
        %v687 = vsub.f32 %v365, %v686
        %v688 = vand.u32 %v687, 4294901760
        %689 = vmatpush.msra.mxu0 %v688
        %v690 = vand.u32 %v363, 4294901760
        %v691 = vsub.f32 %v363, %v690
        %v692 = vand.u32 %v691, 4294901760
        %693 = vmatpush.msra.mxu0 %v692
        %v694 = vand.u32 %v361, 4294901760
        %v695 = vsub.f32 %v361, %v694
        %v696 = vand.u32 %v695, 4294901760
        %697 = vmatpush.msra.mxu0 %v696
        %v698 = vand.u32 %v360, 4294901760
        %699 = vmatmul.f32.gmra.mxu0 %v698
        %v700 = vpop.f32.mrf.mxu0
        %v701 = vadd.f32 %v632, %v700
        %702 = vdwg.mxu0
        %v703 = vand.u32 %v391, 4294901760
        %704 = vmatpush.msra.mxu0 %v703
        %v705 = vand.u32 %v389, 4294901760
        %706 = vmatpush.msra.mxu0 %v705
        %v707 = vand.u32 %v387, 4294901760
        %708 = vmatpush.msra.mxu0 %v707
        %v709 = vand.u32 %v385, 4294901760
        %710 = vmatpush.msra.mxu0 %v709
        %v711 = vand.u32 %v383, 4294901760
        %712 = vmatpush.msra.mxu0 %v711
        %v713 = vand.u32 %v381, 4294901760
        %714 = vmatpush.msra.mxu0 %v713
        %v715 = vand.u32 %v379, 4294901760
        %716 = vmatpush.msra.mxu0 %v715
        %v717 = vand.u32 %v377, 4294901760
        %718 = vmatpush.msra.mxu0 %v717
        %v719 = vand.u32 %v375, 4294901760
        %720 = vmatpush.msra.mxu0 %v719
        %v721 = vand.u32 %v373, 4294901760
        %722 = vmatpush.msra.mxu0 %v721
        %v723 = vand.u32 %v371, 4294901760
        %724 = vmatpush.msra.mxu0 %v723
        %v725 = vand.u32 %v369, 4294901760
        %726 = vmatpush.msra.mxu0 %v725
        %v727 = vand.u32 %v367, 4294901760
        %728 = vmatpush.msra.mxu0 %v727
        %v729 = vand.u32 %v365, 4294901760
        %730 = vmatpush.msra.mxu0 %v729
        %v731 = vand.u32 %v363, 4294901760
        %732 = vmatpush.msra.mxu0 %v731
        %v733 = vand.u32 %v361, 4294901760
        %734 = vmatpush.msra.mxu0 %v733
        %v735 = vand.u32 %v360, 4294901760
        %736 = vmatmul.f32.gmra.mxu0 %v735
        %v737 = vpop.f32.mrf.mxu0
        %v738 = vadd.f32 %v701, %v737
        %739 = vdwg.mxu0
        %v740 = vand.u32 %v392, 4294901760
        %741 = vmatpush.msra.mxu0 %v740
        %v742 = vand.u32 %v390, 4294901760
        %743 = vmatpush.msra.mxu0 %v742
        %v744 = vand.u32 %v388, 4294901760
        %745 = vmatpush.msra.mxu0 %v744
        %v746 = vand.u32 %v386, 4294901760
        %747 = vmatpush.msra.mxu0 %v746
        %v748 = vand.u32 %v384, 4294901760
        %749 = vmatpush.msra.mxu0 %v748
        %v750 = vand.u32 %v382, 4294901760
        %751 = vmatpush.msra.mxu0 %v750
        %v752 = vand.u32 %v380, 4294901760
        %753 = vmatpush.msra.mxu0 %v752
        %v754 = vand.u32 %v378, 4294901760
        %755 = vmatpush.msra.mxu0 %v754
        %v756 = vand.u32 %v376, 4294901760
        %757 = vmatpush.msra.mxu0 %v756
        %v758 = vand.u32 %v374, 4294901760
        %759 = vmatpush.msra.mxu0 %v758
        %v760 = vand.u32 %v372, 4294901760
        %761 = vmatpush.msra.mxu0 %v760
        %v762 = vand.u32 %v370, 4294901760
        %763 = vmatpush.msra.mxu0 %v762
        %v764 = vand.u32 %v368, 4294901760
        %765 = vmatpush.msra.mxu0 %v764
        %v766 = vand.u32 %v366, 4294901760
        %767 = vmatpush.msra.mxu0 %v766
        %v768 = vand.u32 %v364, 4294901760
        %769 = vmatpush.msra.mxu0 %v768
        %v770 = vand.u32 %v362, 4294901760
        %771 = vmatpush.msra.mxu0 %v770
        %v772 = vand.u32 %v360, 4294901760
        %v773 = vsub.f32 %v360, %v772
        %v774 = vand.u32 %v773, 4294901760
        %v775 = vsub.f32 %v773, %v774
        %v776 = vand.u32 %v775, 4294901760
        %777 = vmatmul.f32.gmra.mxu0 %v776
        %v778 = vpop.f32.mrf.mxu0
        %v779 = vadd.f32 %v396, %v778
        %780 = vdwg.mxu0
        %v781 = vand.u32 %v392, 4294901760
        %v782 = vsub.f32 %v392, %v781
        %v783 = vand.u32 %v782, 4294901760
        %v784 = vsub.f32 %v782, %v783
        %v785 = vand.u32 %v784, 4294901760
        %786 = vmatpush.msra.mxu0 %v785
        %v787 = vand.u32 %v390, 4294901760
        %v788 = vsub.f32 %v390, %v787
        %v789 = vand.u32 %v788, 4294901760
        %v790 = vsub.f32 %v788, %v789
        %v791 = vand.u32 %v790, 4294901760
        %792 = vmatpush.msra.mxu0 %v791
        %v793 = vand.u32 %v388, 4294901760
        %v794 = vsub.f32 %v388, %v793
        %v795 = vand.u32 %v794, 4294901760
        %v796 = vsub.f32 %v794, %v795
        %v797 = vand.u32 %v796, 4294901760
        %798 = vmatpush.msra.mxu0 %v797
        %v799 = vand.u32 %v386, 4294901760
        %v800 = vsub.f32 %v386, %v799
        %v801 = vand.u32 %v800, 4294901760
        %v802 = vsub.f32 %v800, %v801
        %v803 = vand.u32 %v802, 4294901760
        %804 = vmatpush.msra.mxu0 %v803
        %v805 = vand.u32 %v384, 4294901760
        %v806 = vsub.f32 %v384, %v805
        %v807 = vand.u32 %v806, 4294901760
        %v808 = vsub.f32 %v806, %v807
        %v809 = vand.u32 %v808, 4294901760
        %810 = vmatpush.msra.mxu0 %v809
        %v811 = vand.u32 %v382, 4294901760
        %v812 = vsub.f32 %v382, %v811
        %v813 = vand.u32 %v812, 4294901760
        %v814 = vsub.f32 %v812, %v813
        %v815 = vand.u32 %v814, 4294901760
        %816 = vmatpush.msra.mxu0 %v815
        %v817 = vand.u32 %v380, 4294901760
        %v818 = vsub.f32 %v380, %v817
        %v819 = vand.u32 %v818, 4294901760
        %v820 = vsub.f32 %v818, %v819
        %v821 = vand.u32 %v820, 4294901760
        %822 = vmatpush.msra.mxu0 %v821
        %v823 = vand.u32 %v378, 4294901760
        %v824 = vsub.f32 %v378, %v823
        %v825 = vand.u32 %v824, 4294901760
        %v826 = vsub.f32 %v824, %v825
        %v827 = vand.u32 %v826, 4294901760
        %828 = vmatpush.msra.mxu0 %v827
        %v829 = vand.u32 %v376, 4294901760
        %v830 = vsub.f32 %v376, %v829
        %v831 = vand.u32 %v830, 4294901760
        %v832 = vsub.f32 %v830, %v831
        %v833 = vand.u32 %v832, 4294901760
        %834 = vmatpush.msra.mxu0 %v833
        %v835 = vand.u32 %v374, 4294901760
        %v836 = vsub.f32 %v374, %v835
        %v837 = vand.u32 %v836, 4294901760
        %v838 = vsub.f32 %v836, %v837
        %v839 = vand.u32 %v838, 4294901760
        %840 = vmatpush.msra.mxu0 %v839
        %v841 = vand.u32 %v372, 4294901760
        %v842 = vsub.f32 %v372, %v841
        %v843 = vand.u32 %v842, 4294901760
        %v844 = vsub.f32 %v842, %v843
        %v845 = vand.u32 %v844, 4294901760
        %846 = vmatpush.msra.mxu0 %v845
        %v847 = vand.u32 %v370, 4294901760
        %v848 = vsub.f32 %v370, %v847
        %v849 = vand.u32 %v848, 4294901760
        %v850 = vsub.f32 %v848, %v849
        %v851 = vand.u32 %v850, 4294901760
        %852 = vmatpush.msra.mxu0 %v851
        %v853 = vand.u32 %v368, 4294901760
        %v854 = vsub.f32 %v368, %v853
        %v855 = vand.u32 %v854, 4294901760
        %v856 = vsub.f32 %v854, %v855
        %v857 = vand.u32 %v856, 4294901760
        %858 = vmatpush.msra.mxu0 %v857
        %v859 = vand.u32 %v366, 4294901760
        %v860 = vsub.f32 %v366, %v859
        %v861 = vand.u32 %v860, 4294901760
        %v862 = vsub.f32 %v860, %v861
        %v863 = vand.u32 %v862, 4294901760
        %864 = vmatpush.msra.mxu0 %v863
        %v865 = vand.u32 %v364, 4294901760
        %v866 = vsub.f32 %v364, %v865
        %v867 = vand.u32 %v866, 4294901760
        %v868 = vsub.f32 %v866, %v867
        %v869 = vand.u32 %v868, 4294901760
        %870 = vmatpush.msra.mxu0 %v869
        %v871 = vand.u32 %v362, 4294901760
        %v872 = vsub.f32 %v362, %v871
        %v873 = vand.u32 %v872, 4294901760
        %v874 = vsub.f32 %v872, %v873
        %v875 = vand.u32 %v874, 4294901760
        %876 = vmatpush.msra.mxu0 %v875
        %v877 = vand.u32 %v360, 4294901760
        %878 = vmatmul.f32.gmra.mxu0 %v877
        %v879 = vpop.f32.mrf.mxu0
        %v880 = vadd.f32 %v779, %v879
        %881 = vdwg.mxu0
        %v882 = vand.u32 %v392, 4294901760
        %v883 = vsub.f32 %v392, %v882
        %884 = vmatpush.msra.mxu0 %v883
        %v885 = vand.u32 %v390, 4294901760
        %v886 = vsub.f32 %v390, %v885
        %887 = vmatpush.msra.mxu0 %v886
        %v888 = vand.u32 %v388, 4294901760
        %v889 = vsub.f32 %v388, %v888
        %890 = vmatpush.msra.mxu0 %v889
        %v891 = vand.u32 %v386, 4294901760
        %v892 = vsub.f32 %v386, %v891
        %893 = vmatpush.msra.mxu0 %v892
        %v894 = vand.u32 %v384, 4294901760
        %v895 = vsub.f32 %v384, %v894
        %896 = vmatpush.msra.mxu0 %v895
        %v897 = vand.u32 %v382, 4294901760
        %v898 = vsub.f32 %v382, %v897
        %899 = vmatpush.msra.mxu0 %v898
        %v900 = vand.u32 %v380, 4294901760
        %v901 = vsub.f32 %v380, %v900
        %902 = vmatpush.msra.mxu0 %v901
        %v903 = vand.u32 %v378, 4294901760
        %v904 = vsub.f32 %v378, %v903
        %905 = vmatpush.msra.mxu0 %v904
        %v906 = vand.u32 %v376, 4294901760
        %v907 = vsub.f32 %v376, %v906
        %908 = vmatpush.msra.mxu0 %v907
        %v909 = vand.u32 %v374, 4294901760
        %v910 = vsub.f32 %v374, %v909
        %911 = vmatpush.msra.mxu0 %v910
        %v912 = vand.u32 %v372, 4294901760
        %v913 = vsub.f32 %v372, %v912
        %914 = vmatpush.msra.mxu0 %v913
        %v915 = vand.u32 %v370, 4294901760
        %v916 = vsub.f32 %v370, %v915
        %917 = vmatpush.msra.mxu0 %v916
        %v918 = vand.u32 %v368, 4294901760
        %v919 = vsub.f32 %v368, %v918
        %920 = vmatpush.msra.mxu0 %v919
        %v921 = vand.u32 %v366, 4294901760
        %v922 = vsub.f32 %v366, %v921
        %923 = vmatpush.msra.mxu0 %v922
        %v924 = vand.u32 %v364, 4294901760
        %v925 = vsub.f32 %v364, %v924
        %926 = vmatpush.msra.mxu0 %v925
        %v927 = vand.u32 %v362, 4294901760
        %v928 = vsub.f32 %v362, %v927
        %929 = vmatpush.msra.mxu0 %v928
        %v930 = vand.u32 %v360, 4294901760
        %v931 = vsub.f32 %v360, %v930
        %932 = vmatmul.f32.gmra.mxu0 %v931
        %v933 = vpop.f32.mrf.mxu0
        %v934 = vadd.f32 %v880, %v933
        %935 = vdwg.mxu0
        %v936 = vand.u32 %v392, 4294901760
        %937 = vmatpush.msra.mxu0 %v936
        %v938 = vand.u32 %v390, 4294901760
        %939 = vmatpush.msra.mxu0 %v938
        %v940 = vand.u32 %v388, 4294901760
        %941 = vmatpush.msra.mxu0 %v940
        %v942 = vand.u32 %v386, 4294901760
        %943 = vmatpush.msra.mxu0 %v942
        %v944 = vand.u32 %v384, 4294901760
        %945 = vmatpush.msra.mxu0 %v944
        %v946 = vand.u32 %v382, 4294901760
        %947 = vmatpush.msra.mxu0 %v946
        %v948 = vand.u32 %v380, 4294901760
        %949 = vmatpush.msra.mxu0 %v948
        %v950 = vand.u32 %v378, 4294901760
        %951 = vmatpush.msra.mxu0 %v950
        %v952 = vand.u32 %v376, 4294901760
        %953 = vmatpush.msra.mxu0 %v952
        %v954 = vand.u32 %v374, 4294901760
        %955 = vmatpush.msra.mxu0 %v954
        %v956 = vand.u32 %v372, 4294901760
        %957 = vmatpush.msra.mxu0 %v956
        %v958 = vand.u32 %v370, 4294901760
        %959 = vmatpush.msra.mxu0 %v958
        %v960 = vand.u32 %v368, 4294901760
        %961 = vmatpush.msra.mxu0 %v960
        %v962 = vand.u32 %v366, 4294901760
        %963 = vmatpush.msra.mxu0 %v962
        %v964 = vand.u32 %v364, 4294901760
        %965 = vmatpush.msra.mxu0 %v964
        %v966 = vand.u32 %v362, 4294901760
        %967 = vmatpush.msra.mxu0 %v966
        %v968 = vand.u32 %v360, 4294901760
        %v969 = vsub.f32 %v360, %v968
        %v970 = vand.u32 %v969, 4294901760
        %971 = vmatmul.f32.gmra.mxu0 %v970
        %v972 = vpop.f32.mrf.mxu0
        %v973 = vadd.f32 %v934, %v972
        %974 = vdwg.mxu0
        %v975 = vand.u32 %v392, 4294901760
        %v976 = vsub.f32 %v392, %v975
        %v977 = vand.u32 %v976, 4294901760
        %978 = vmatpush.msra.mxu0 %v977
        %v979 = vand.u32 %v390, 4294901760
        %v980 = vsub.f32 %v390, %v979
        %v981 = vand.u32 %v980, 4294901760
        %982 = vmatpush.msra.mxu0 %v981
        %v983 = vand.u32 %v388, 4294901760
        %v984 = vsub.f32 %v388, %v983
        %v985 = vand.u32 %v984, 4294901760
        %986 = vmatpush.msra.mxu0 %v985
        %v987 = vand.u32 %v386, 4294901760
        %v988 = vsub.f32 %v386, %v987
        %v989 = vand.u32 %v988, 4294901760
        %990 = vmatpush.msra.mxu0 %v989
        %v991 = vand.u32 %v384, 4294901760
        %v992 = vsub.f32 %v384, %v991
        %v993 = vand.u32 %v992, 4294901760
        %994 = vmatpush.msra.mxu0 %v993
        %v995 = vand.u32 %v382, 4294901760
        %v996 = vsub.f32 %v382, %v995
        %v997 = vand.u32 %v996, 4294901760
        %998 = vmatpush.msra.mxu0 %v997
        %v999 = vand.u32 %v380, 4294901760
        %v1000 = vsub.f32 %v380, %v999
        %v1001 = vand.u32 %v1000, 4294901760
        %1002 = vmatpush.msra.mxu0 %v1001
        %v1003 = vand.u32 %v378, 4294901760
        %v1004 = vsub.f32 %v378, %v1003
        %v1005 = vand.u32 %v1004, 4294901760
        %1006 = vmatpush.msra.mxu0 %v1005
        %v1007 = vand.u32 %v376, 4294901760
        %v1008 = vsub.f32 %v376, %v1007
        %v1009 = vand.u32 %v1008, 4294901760
        %1010 = vmatpush.msra.mxu0 %v1009
        %v1011 = vand.u32 %v374, 4294901760
        %v1012 = vsub.f32 %v374, %v1011
        %v1013 = vand.u32 %v1012, 4294901760
        %1014 = vmatpush.msra.mxu0 %v1013
        %v1015 = vand.u32 %v372, 4294901760
        %v1016 = vsub.f32 %v372, %v1015
        %v1017 = vand.u32 %v1016, 4294901760
        %1018 = vmatpush.msra.mxu0 %v1017
        %v1019 = vand.u32 %v370, 4294901760
        %v1020 = vsub.f32 %v370, %v1019
        %v1021 = vand.u32 %v1020, 4294901760
        %1022 = vmatpush.msra.mxu0 %v1021
        %v1023 = vand.u32 %v368, 4294901760
        %v1024 = vsub.f32 %v368, %v1023
        %v1025 = vand.u32 %v1024, 4294901760
        %1026 = vmatpush.msra.mxu0 %v1025
        %v1027 = vand.u32 %v366, 4294901760
        %v1028 = vsub.f32 %v366, %v1027
        %v1029 = vand.u32 %v1028, 4294901760
        %1030 = vmatpush.msra.mxu0 %v1029
        %v1031 = vand.u32 %v364, 4294901760
        %v1032 = vsub.f32 %v364, %v1031
        %v1033 = vand.u32 %v1032, 4294901760
        %1034 = vmatpush.msra.mxu0 %v1033
        %v1035 = vand.u32 %v362, 4294901760
        %v1036 = vsub.f32 %v362, %v1035
        %v1037 = vand.u32 %v1036, 4294901760
        %1038 = vmatpush.msra.mxu0 %v1037
        %v1039 = vand.u32 %v360, 4294901760
        %1040 = vmatmul.f32.gmra.mxu0 %v1039
        %v1041 = vpop.f32.mrf.mxu0
        %v1042 = vadd.f32 %v973, %v1041
        %1043 = vdwg.mxu0
        %v1044 = vand.u32 %v392, 4294901760
        %1045 = vmatpush.msra.mxu0 %v1044
        %v1046 = vand.u32 %v390, 4294901760
        %1047 = vmatpush.msra.mxu0 %v1046
        %v1048 = vand.u32 %v388, 4294901760
        %1049 = vmatpush.msra.mxu0 %v1048
        %v1050 = vand.u32 %v386, 4294901760
        %1051 = vmatpush.msra.mxu0 %v1050
        %v1052 = vand.u32 %v384, 4294901760
        %1053 = vmatpush.msra.mxu0 %v1052
        %v1054 = vand.u32 %v382, 4294901760
        %1055 = vmatpush.msra.mxu0 %v1054
        %v1056 = vand.u32 %v380, 4294901760
        %1057 = vmatpush.msra.mxu0 %v1056
        %v1058 = vand.u32 %v378, 4294901760
        %1059 = vmatpush.msra.mxu0 %v1058
        %v1060 = vand.u32 %v376, 4294901760
        %1061 = vmatpush.msra.mxu0 %v1060
        %v1062 = vand.u32 %v374, 4294901760
        %1063 = vmatpush.msra.mxu0 %v1062
        %v1064 = vand.u32 %v372, 4294901760
        %1065 = vmatpush.msra.mxu0 %v1064
        %v1066 = vand.u32 %v370, 4294901760
        %1067 = vmatpush.msra.mxu0 %v1066
        %v1068 = vand.u32 %v368, 4294901760
        %1069 = vmatpush.msra.mxu0 %v1068
        %v1070 = vand.u32 %v366, 4294901760
        %1071 = vmatpush.msra.mxu0 %v1070
        %v1072 = vand.u32 %v364, 4294901760
        %1073 = vmatpush.msra.mxu0 %v1072
        %v1074 = vand.u32 %v362, 4294901760
        %1075 = vmatpush.msra.mxu0 %v1074
        %v1076 = vand.u32 %v360, 4294901760
        %1077 = vmatmul.f32.gmra.mxu0 %v1076
        %v1078 = vpop.f32.mrf.mxu0
        %v1079 = vadd.f32 %v1042, %v1078
        %1080 = vdwg.mxu0
        %v1081 = vmul.f32 %v738, 0.01
        %v1082 = vmul.f32 %v1079, 0.01
        %v1083 = vmax.f32 %v738, %v1081
        %v1084 = vmax.f32 %v1079, %v1082
        %v1085 = vld [vmem:[#allocation8] sm:$0xff]
        %v1086 = vld [vmem:[#allocation8 + $0x8] sm:$0xff]
        %v1087 = vld [vmem:[#allocation8 + $0x10] sm:$0xff]
        %v1088 = vld [vmem:[#allocation8 + $0x18] sm:$0xff]
        %v1089 = vld [vmem:[#allocation8 + $0x20] sm:$0xff]
        %v1090 = vld [vmem:[#allocation8 + $0x28] sm:$0xff]
        %v1091 = vld [vmem:[#allocation8 + $0x30] sm:$0xff]
        %v1092 = vld [vmem:[#allocation8 + $0x38] sm:$0xff]
        %v1093 = vld [vmem:[#allocation8 + $0x40] sm:$0xff]
        %v1094 = vld [vmem:[#allocation8 + $0x48] sm:$0xff]
        %v1095 = vld [vmem:[#allocation8 + $0x50] sm:$0xff]
        %v1096 = vld [vmem:[#allocation8 + $0x58] sm:$0xff]
        %v1097 = vld [vmem:[#allocation8 + $0x60] sm:$0xff]
        %v1098 = vld [vmem:[#allocation8 + $0x68] sm:$0xff]
        %v1099 = vld [vmem:[#allocation8 + $0x70] sm:$0xff]
        %v1100 = vld [vmem:[#allocation8 + $0x78] sm:$0xff]
        %v1101 = vld [vmem:[#allocation8 + $0x80] sm:$0xff]
        %v1102 = vld [vmem:[#allocation8 + $0x88] sm:$0xff]
        %v1103 = vld [vmem:[#allocation8 + $0x90] sm:$0xff]
        %v1104 = vld [vmem:[#allocation8 + $0x98] sm:$0xff]
        %v1105 = vld [vmem:[#allocation8 + $0xa0] sm:$0xff]
        %v1106 = vld [vmem:[#allocation8 + $0xa8] sm:$0xff]
        %v1107 = vld [vmem:[#allocation8 + $0xb0] sm:$0xff]
        %v1108 = vld [vmem:[#allocation8 + $0xb8] sm:$0xff]
        %v1109 = vld [vmem:[#allocation8 + $0xc0] sm:$0xff]
        %v1110 = vld [vmem:[#allocation8 + $0xc8] sm:$0xff]
        %v1111 = vld [vmem:[#allocation8 + $0xd0] sm:$0xff]
        %v1112 = vld [vmem:[#allocation8 + $0xd8] sm:$0xff]
        %v1113 = vld [vmem:[#allocation8 + $0xe0] sm:$0xff]
        %v1114 = vld [vmem:[#allocation8 + $0xe8] sm:$0xff]
        %v1115 = vld [vmem:[#allocation8 + $0xf0] sm:$0xff]
        %v1116 = vld [vmem:[#allocation8 + $0xf8] sm:$0xff]
        %v1117 = vld [vmem:[#allocation8 + $0x100] sm:$0xff]
        %v1118 = vld [vmem:[#allocation8 + $0x108] sm:$0xff]
        %v1119 = vld [vmem:[#allocation8 + $0x110] sm:$0xff]
        %v1120 = vld [vmem:[#allocation8 + $0x118] sm:$0xff]
        %v1121 = vld [vmem:[#allocation8 + $0x120] sm:$0xff]
        %v1122 = vld [vmem:[#allocation8 + $0x128] sm:$0xff]
        %v1123 = vld [vmem:[#allocation8 + $0x130] sm:$0xff]
        %v1124 = vld [vmem:[#allocation8 + $0x138] sm:$0xff]
        %v1125 = vld [vmem:[#allocation8 + $0x140] sm:$0xff]
        %v1126 = vld [vmem:[#allocation8 + $0x148] sm:$0xff]
        %v1127 = vld [vmem:[#allocation8 + $0x150] sm:$0xff]
        %v1128 = vld [vmem:[#allocation8 + $0x158] sm:$0xff]
        %v1129 = vld [vmem:[#allocation8 + $0x160] sm:$0xff]
        %v1130 = vld [vmem:[#allocation8 + $0x168] sm:$0xff]
        %v1131 = vld [vmem:[#allocation8 + $0x170] sm:$0xff]
        %v1132 = vld [vmem:[#allocation8 + $0x178] sm:$0xff]
        %v1133 = vld [vmem:[#allocation8 + $0x180] sm:$0xff]
        %v1134 = vld [vmem:[#allocation8 + $0x188] sm:$0xff]
        %v1135 = vld [vmem:[#allocation8 + $0x190] sm:$0xff]
        %v1136 = vld [vmem:[#allocation8 + $0x198] sm:$0xff]
        %v1137 = vld [vmem:[#allocation8 + $0x1a0] sm:$0xff]
        %v1138 = vld [vmem:[#allocation8 + $0x1a8] sm:$0xff]
        %v1139 = vld [vmem:[#allocation8 + $0x1b0] sm:$0xff]
        %v1140 = vld [vmem:[#allocation8 + $0x1b8] sm:$0xff]
        %v1141 = vld [vmem:[#allocation8 + $0x1c0] sm:$0xff]
        %v1142 = vld [vmem:[#allocation8 + $0x1c8] sm:$0xff]
        %v1143 = vld [vmem:[#allocation8 + $0x1d0] sm:$0xff]
        %v1144 = vld [vmem:[#allocation8 + $0x1d8] sm:$0xff]
        %v1145 = vld [vmem:[#allocation8 + $0x1e0] sm:$0xff]
        %v1146 = vld [vmem:[#allocation8 + $0x1e8] sm:$0xff]
        %v1147 = vld [vmem:[#allocation8 + $0x1f0] sm:$0xff]
        %v1148 = vld [vmem:[#allocation8 + $0x1f8] sm:$0xff]
        %v1149 = vld [vmem:[%s4] sm:$0x3]
        %v1151 = vperm.slane %v1149, 0
        %v1152 = vperm.slane %v1149, 1
        %v1155 = vand.u32 %v1115, 4294901760
        %1156 = vmatpush.msra.mxu0 %v1155
        %v1157 = vand.u32 %v1113, 4294901760
        %1158 = vmatpush.msra.mxu0 %v1157
        %v1159 = vand.u32 %v1111, 4294901760
        %1160 = vmatpush.msra.mxu0 %v1159
        %v1161 = vand.u32 %v1109, 4294901760
        %1162 = vmatpush.msra.mxu0 %v1161
        %v1163 = vand.u32 %v1107, 4294901760
        %1164 = vmatpush.msra.mxu0 %v1163
        %v1165 = vand.u32 %v1105, 4294901760
        %1166 = vmatpush.msra.mxu0 %v1165
        %v1167 = vand.u32 %v1103, 4294901760
        %1168 = vmatpush.msra.mxu0 %v1167
        %v1169 = vand.u32 %v1101, 4294901760
        %1170 = vmatpush.msra.mxu0 %v1169
        %v1171 = vand.u32 %v1099, 4294901760
        %1172 = vmatpush.msra.mxu0 %v1171
        %v1173 = vand.u32 %v1097, 4294901760
        %1174 = vmatpush.msra.mxu0 %v1173
        %v1175 = vand.u32 %v1095, 4294901760
        %1176 = vmatpush.msra.mxu0 %v1175
        %v1177 = vand.u32 %v1093, 4294901760
        %1178 = vmatpush.msra.mxu0 %v1177
        %v1179 = vand.u32 %v1091, 4294901760
        %1180 = vmatpush.msra.mxu0 %v1179
        %v1181 = vand.u32 %v1089, 4294901760
        %1182 = vmatpush.msra.mxu0 %v1181
        %v1183 = vand.u32 %v1087, 4294901760
        %1184 = vmatpush.msra.mxu0 %v1183
        %v1185 = vand.u32 %v1085, 4294901760
        %1186 = vmatpush.msra.mxu0 %v1185
        %v1187 = vand.u32 %v1083, 4294901760
        %v1188 = vsub.f32 %v1083, %v1187
        %v1189 = vand.u32 %v1188, 4294901760
        %v1190 = vsub.f32 %v1188, %v1189
        %v1191 = vand.u32 %v1190, 4294901760
        %1192 = vmatmul.f32.gmra.mxu0 %v1191
        %v1193 = vpop.f32.mrf.mxu0
        %v1194 = vadd.f32 %v1151, %v1193
        %1195 = vdwg.mxu0
        %v1196 = vand.u32 %v1115, 4294901760
        %v1197 = vsub.f32 %v1115, %v1196
        %v1198 = vand.u32 %v1197, 4294901760
        %v1199 = vsub.f32 %v1197, %v1198
        %v1200 = vand.u32 %v1199, 4294901760
        %1201 = vmatpush.msra.mxu0 %v1200
        %v1202 = vand.u32 %v1113, 4294901760
        %v1203 = vsub.f32 %v1113, %v1202
        %v1204 = vand.u32 %v1203, 4294901760
        %v1205 = vsub.f32 %v1203, %v1204
        %v1206 = vand.u32 %v1205, 4294901760
        %1207 = vmatpush.msra.mxu0 %v1206
        %v1208 = vand.u32 %v1111, 4294901760
        %v1209 = vsub.f32 %v1111, %v1208
        %v1210 = vand.u32 %v1209, 4294901760
        %v1211 = vsub.f32 %v1209, %v1210
        %v1212 = vand.u32 %v1211, 4294901760
        %1213 = vmatpush.msra.mxu0 %v1212
        %v1214 = vand.u32 %v1109, 4294901760
        %v1215 = vsub.f32 %v1109, %v1214
        %v1216 = vand.u32 %v1215, 4294901760
        %v1217 = vsub.f32 %v1215, %v1216
        %v1218 = vand.u32 %v1217, 4294901760
        %1219 = vmatpush.msra.mxu0 %v1218
        %v1220 = vand.u32 %v1107, 4294901760
        %v1221 = vsub.f32 %v1107, %v1220
        %v1222 = vand.u32 %v1221, 4294901760
        %v1223 = vsub.f32 %v1221, %v1222
        %v1224 = vand.u32 %v1223, 4294901760
        %1225 = vmatpush.msra.mxu0 %v1224
        %v1226 = vand.u32 %v1105, 4294901760
        %v1227 = vsub.f32 %v1105, %v1226
        %v1228 = vand.u32 %v1227, 4294901760
        %v1229 = vsub.f32 %v1227, %v1228
        %v1230 = vand.u32 %v1229, 4294901760
        %1231 = vmatpush.msra.mxu0 %v1230
        %v1232 = vand.u32 %v1103, 4294901760
        %v1233 = vsub.f32 %v1103, %v1232
        %v1234 = vand.u32 %v1233, 4294901760
        %v1235 = vsub.f32 %v1233, %v1234
        %v1236 = vand.u32 %v1235, 4294901760
        %1237 = vmatpush.msra.mxu0 %v1236
        %v1238 = vand.u32 %v1101, 4294901760
        %v1239 = vsub.f32 %v1101, %v1238
        %v1240 = vand.u32 %v1239, 4294901760
        %v1241 = vsub.f32 %v1239, %v1240
        %v1242 = vand.u32 %v1241, 4294901760
        %1243 = vmatpush.msra.mxu0 %v1242
        %v1244 = vand.u32 %v1099, 4294901760
        %v1245 = vsub.f32 %v1099, %v1244
        %v1246 = vand.u32 %v1245, 4294901760
        %v1247 = vsub.f32 %v1245, %v1246
        %v1248 = vand.u32 %v1247, 4294901760
        %1249 = vmatpush.msra.mxu0 %v1248
        %v1250 = vand.u32 %v1097, 4294901760
        %v1251 = vsub.f32 %v1097, %v1250
        %v1252 = vand.u32 %v1251, 4294901760
        %v1253 = vsub.f32 %v1251, %v1252
        %v1254 = vand.u32 %v1253, 4294901760
        %1255 = vmatpush.msra.mxu0 %v1254
        %v1256 = vand.u32 %v1095, 4294901760
        %v1257 = vsub.f32 %v1095, %v1256
        %v1258 = vand.u32 %v1257, 4294901760
        %v1259 = vsub.f32 %v1257, %v1258
        %v1260 = vand.u32 %v1259, 4294901760
        %1261 = vmatpush.msra.mxu0 %v1260
        %v1262 = vand.u32 %v1093, 4294901760
        %v1263 = vsub.f32 %v1093, %v1262
        %v1264 = vand.u32 %v1263, 4294901760
        %v1265 = vsub.f32 %v1263, %v1264
        %v1266 = vand.u32 %v1265, 4294901760
        %1267 = vmatpush.msra.mxu0 %v1266
        %v1268 = vand.u32 %v1091, 4294901760
        %v1269 = vsub.f32 %v1091, %v1268
        %v1270 = vand.u32 %v1269, 4294901760
        %v1271 = vsub.f32 %v1269, %v1270
        %v1272 = vand.u32 %v1271, 4294901760
        %1273 = vmatpush.msra.mxu0 %v1272
        %v1274 = vand.u32 %v1089, 4294901760
        %v1275 = vsub.f32 %v1089, %v1274
        %v1276 = vand.u32 %v1275, 4294901760
        %v1277 = vsub.f32 %v1275, %v1276
        %v1278 = vand.u32 %v1277, 4294901760
        %1279 = vmatpush.msra.mxu0 %v1278
        %v1280 = vand.u32 %v1087, 4294901760
        %v1281 = vsub.f32 %v1087, %v1280
        %v1282 = vand.u32 %v1281, 4294901760
        %v1283 = vsub.f32 %v1281, %v1282
        %v1284 = vand.u32 %v1283, 4294901760
        %1285 = vmatpush.msra.mxu0 %v1284
        %v1286 = vand.u32 %v1085, 4294901760
        %v1287 = vsub.f32 %v1085, %v1286
        %v1288 = vand.u32 %v1287, 4294901760
        %v1289 = vsub.f32 %v1287, %v1288
        %v1290 = vand.u32 %v1289, 4294901760
        %1291 = vmatpush.msra.mxu0 %v1290
        %v1292 = vand.u32 %v1083, 4294901760
        %1293 = vmatmul.f32.gmra.mxu0 %v1292
        %v1294 = vpop.f32.mrf.mxu0
        %v1295 = vadd.f32 %v1194, %v1294
        %1296 = vdwg.mxu0
        %v1297 = vand.u32 %v1115, 4294901760
        %v1298 = vsub.f32 %v1115, %v1297
        %1299 = vmatpush.msra.mxu0 %v1298
        %v1300 = vand.u32 %v1113, 4294901760
        %v1301 = vsub.f32 %v1113, %v1300
        %1302 = vmatpush.msra.mxu0 %v1301
        %v1303 = vand.u32 %v1111, 4294901760
        %v1304 = vsub.f32 %v1111, %v1303
        %1305 = vmatpush.msra.mxu0 %v1304
        %v1306 = vand.u32 %v1109, 4294901760
        %v1307 = vsub.f32 %v1109, %v1306
        %1308 = vmatpush.msra.mxu0 %v1307
        %v1309 = vand.u32 %v1107, 4294901760
        %v1310 = vsub.f32 %v1107, %v1309
        %1311 = vmatpush.msra.mxu0 %v1310
        %v1312 = vand.u32 %v1105, 4294901760
        %v1313 = vsub.f32 %v1105, %v1312
        %1314 = vmatpush.msra.mxu0 %v1313
        %v1315 = vand.u32 %v1103, 4294901760
        %v1316 = vsub.f32 %v1103, %v1315
        %1317 = vmatpush.msra.mxu0 %v1316
        %v1318 = vand.u32 %v1101, 4294901760
        %v1319 = vsub.f32 %v1101, %v1318
        %1320 = vmatpush.msra.mxu0 %v1319
        %v1321 = vand.u32 %v1099, 4294901760
        %v1322 = vsub.f32 %v1099, %v1321
        %1323 = vmatpush.msra.mxu0 %v1322
        %v1324 = vand.u32 %v1097, 4294901760
        %v1325 = vsub.f32 %v1097, %v1324
        %1326 = vmatpush.msra.mxu0 %v1325
        %v1327 = vand.u32 %v1095, 4294901760
        %v1328 = vsub.f32 %v1095, %v1327
        %1329 = vmatpush.msra.mxu0 %v1328
        %v1330 = vand.u32 %v1093, 4294901760
        %v1331 = vsub.f32 %v1093, %v1330
        %1332 = vmatpush.msra.mxu0 %v1331
        %v1333 = vand.u32 %v1091, 4294901760
        %v1334 = vsub.f32 %v1091, %v1333
        %1335 = vmatpush.msra.mxu0 %v1334
        %v1336 = vand.u32 %v1089, 4294901760
        %v1337 = vsub.f32 %v1089, %v1336
        %1338 = vmatpush.msra.mxu0 %v1337
        %v1339 = vand.u32 %v1087, 4294901760
        %v1340 = vsub.f32 %v1087, %v1339
        %1341 = vmatpush.msra.mxu0 %v1340
        %v1342 = vand.u32 %v1085, 4294901760
        %v1343 = vsub.f32 %v1085, %v1342
        %1344 = vmatpush.msra.mxu0 %v1343
        %v1345 = vand.u32 %v1083, 4294901760
        %v1346 = vsub.f32 %v1083, %v1345
        %1347 = vmatmul.f32.gmra.mxu0 %v1346
        %v1348 = vpop.f32.mrf.mxu0
        %v1349 = vadd.f32 %v1295, %v1348
        %1350 = vdwg.mxu0
        %v1351 = vand.u32 %v1115, 4294901760
        %1352 = vmatpush.msra.mxu0 %v1351
        %v1353 = vand.u32 %v1113, 4294901760
        %1354 = vmatpush.msra.mxu0 %v1353
        %v1355 = vand.u32 %v1111, 4294901760
        %1356 = vmatpush.msra.mxu0 %v1355
        %v1357 = vand.u32 %v1109, 4294901760
        %1358 = vmatpush.msra.mxu0 %v1357
        %v1359 = vand.u32 %v1107, 4294901760
        %1360 = vmatpush.msra.mxu0 %v1359
        %v1361 = vand.u32 %v1105, 4294901760
        %1362 = vmatpush.msra.mxu0 %v1361
        %v1363 = vand.u32 %v1103, 4294901760
        %1364 = vmatpush.msra.mxu0 %v1363
        %v1365 = vand.u32 %v1101, 4294901760
        %1366 = vmatpush.msra.mxu0 %v1365
        %v1367 = vand.u32 %v1099, 4294901760
        %1368 = vmatpush.msra.mxu0 %v1367
        %v1369 = vand.u32 %v1097, 4294901760
        %1370 = vmatpush.msra.mxu0 %v1369
        %v1371 = vand.u32 %v1095, 4294901760
        %1372 = vmatpush.msra.mxu0 %v1371
        %v1373 = vand.u32 %v1093, 4294901760
        %1374 = vmatpush.msra.mxu0 %v1373
        %v1375 = vand.u32 %v1091, 4294901760
        %1376 = vmatpush.msra.mxu0 %v1375
        %v1377 = vand.u32 %v1089, 4294901760
        %1378 = vmatpush.msra.mxu0 %v1377
        %v1379 = vand.u32 %v1087, 4294901760
        %1380 = vmatpush.msra.mxu0 %v1379
        %v1381 = vand.u32 %v1085, 4294901760
        %1382 = vmatpush.msra.mxu0 %v1381
        %v1383 = vand.u32 %v1083, 4294901760
        %v1384 = vsub.f32 %v1083, %v1383
        %v1385 = vand.u32 %v1384, 4294901760
        %1386 = vmatmul.f32.gmra.mxu0 %v1385
        %v1387 = vpop.f32.mrf.mxu0
        %v1388 = vadd.f32 %v1349, %v1387
        %1389 = vdwg.mxu0
        %v1390 = vand.u32 %v1115, 4294901760
        %v1391 = vsub.f32 %v1115, %v1390
        %v1392 = vand.u32 %v1391, 4294901760
        %1393 = vmatpush.msra.mxu0 %v1392
        %v1394 = vand.u32 %v1113, 4294901760
        %v1395 = vsub.f32 %v1113, %v1394
        %v1396 = vand.u32 %v1395, 4294901760
        %1397 = vmatpush.msra.mxu0 %v1396
        %v1398 = vand.u32 %v1111, 4294901760
        %v1399 = vsub.f32 %v1111, %v1398
        %v1400 = vand.u32 %v1399, 4294901760
        %1401 = vmatpush.msra.mxu0 %v1400
        %v1402 = vand.u32 %v1109, 4294901760
        %v1403 = vsub.f32 %v1109, %v1402
        %v1404 = vand.u32 %v1403, 4294901760
        %1405 = vmatpush.msra.mxu0 %v1404
        %v1406 = vand.u32 %v1107, 4294901760
        %v1407 = vsub.f32 %v1107, %v1406
        %v1408 = vand.u32 %v1407, 4294901760
        %1409 = vmatpush.msra.mxu0 %v1408
        %v1410 = vand.u32 %v1105, 4294901760
        %v1411 = vsub.f32 %v1105, %v1410
        %v1412 = vand.u32 %v1411, 4294901760
        %1413 = vmatpush.msra.mxu0 %v1412
        %v1414 = vand.u32 %v1103, 4294901760
        %v1415 = vsub.f32 %v1103, %v1414
        %v1416 = vand.u32 %v1415, 4294901760
        %1417 = vmatpush.msra.mxu0 %v1416
        %v1418 = vand.u32 %v1101, 4294901760
        %v1419 = vsub.f32 %v1101, %v1418
        %v1420 = vand.u32 %v1419, 4294901760
        %1421 = vmatpush.msra.mxu0 %v1420
        %v1422 = vand.u32 %v1099, 4294901760
        %v1423 = vsub.f32 %v1099, %v1422
        %v1424 = vand.u32 %v1423, 4294901760
        %1425 = vmatpush.msra.mxu0 %v1424
        %v1426 = vand.u32 %v1097, 4294901760
        %v1427 = vsub.f32 %v1097, %v1426
        %v1428 = vand.u32 %v1427, 4294901760
        %1429 = vmatpush.msra.mxu0 %v1428
        %v1430 = vand.u32 %v1095, 4294901760
        %v1431 = vsub.f32 %v1095, %v1430
        %v1432 = vand.u32 %v1431, 4294901760
        %1433 = vmatpush.msra.mxu0 %v1432
        %v1434 = vand.u32 %v1093, 4294901760
        %v1435 = vsub.f32 %v1093, %v1434
        %v1436 = vand.u32 %v1435, 4294901760
        %1437 = vmatpush.msra.mxu0 %v1436
        %v1438 = vand.u32 %v1091, 4294901760
        %v1439 = vsub.f32 %v1091, %v1438
        %v1440 = vand.u32 %v1439, 4294901760
        %1441 = vmatpush.msra.mxu0 %v1440
        %v1442 = vand.u32 %v1089, 4294901760
        %v1443 = vsub.f32 %v1089, %v1442
        %v1444 = vand.u32 %v1443, 4294901760
        %1445 = vmatpush.msra.mxu0 %v1444
        %v1446 = vand.u32 %v1087, 4294901760
        %v1447 = vsub.f32 %v1087, %v1446
        %v1448 = vand.u32 %v1447, 4294901760
        %1449 = vmatpush.msra.mxu0 %v1448
        %v1450 = vand.u32 %v1085, 4294901760
        %v1451 = vsub.f32 %v1085, %v1450
        %v1452 = vand.u32 %v1451, 4294901760
        %1453 = vmatpush.msra.mxu0 %v1452
        %v1454 = vand.u32 %v1083, 4294901760
        %1455 = vmatmul.f32.gmra.mxu0 %v1454
        %v1456 = vpop.f32.mrf.mxu0
        %v1457 = vadd.f32 %v1388, %v1456
        %1458 = vdwg.mxu0
        %v1459 = vand.u32 %v1115, 4294901760
        %1460 = vmatpush.msra.mxu0 %v1459
        %v1461 = vand.u32 %v1113, 4294901760
        %1462 = vmatpush.msra.mxu0 %v1461
        %v1463 = vand.u32 %v1111, 4294901760
        %1464 = vmatpush.msra.mxu0 %v1463
        %v1465 = vand.u32 %v1109, 4294901760
        %1466 = vmatpush.msra.mxu0 %v1465
        %v1467 = vand.u32 %v1107, 4294901760
        %1468 = vmatpush.msra.mxu0 %v1467
        %v1469 = vand.u32 %v1105, 4294901760
        %1470 = vmatpush.msra.mxu0 %v1469
        %v1471 = vand.u32 %v1103, 4294901760
        %1472 = vmatpush.msra.mxu0 %v1471
        %v1473 = vand.u32 %v1101, 4294901760
        %1474 = vmatpush.msra.mxu0 %v1473
        %v1475 = vand.u32 %v1099, 4294901760
        %1476 = vmatpush.msra.mxu0 %v1475
        %v1477 = vand.u32 %v1097, 4294901760
        %1478 = vmatpush.msra.mxu0 %v1477
        %v1479 = vand.u32 %v1095, 4294901760
        %1480 = vmatpush.msra.mxu0 %v1479
        %v1481 = vand.u32 %v1093, 4294901760
        %1482 = vmatpush.msra.mxu0 %v1481
        %v1483 = vand.u32 %v1091, 4294901760
        %1484 = vmatpush.msra.mxu0 %v1483
        %v1485 = vand.u32 %v1089, 4294901760
        %1486 = vmatpush.msra.mxu0 %v1485
        %v1487 = vand.u32 %v1087, 4294901760
        %1488 = vmatpush.msra.mxu0 %v1487
        %v1489 = vand.u32 %v1085, 4294901760
        %1490 = vmatpush.msra.mxu0 %v1489
        %v1491 = vand.u32 %v1083, 4294901760
        %1492 = vmatmul.f32.gmra.mxu0 %v1491
        %v1493 = vpop.f32.mrf.mxu0
        %v1494 = vadd.f32 %v1457, %v1493
        %1495 = vdwg.mxu0
        %v1496 = vand.u32 %v1147, 4294901760
        %1497 = vmatpush.msra.mxu0 %v1496
        %v1498 = vand.u32 %v1145, 4294901760
        %1499 = vmatpush.msra.mxu0 %v1498
        %v1500 = vand.u32 %v1143, 4294901760
        %1501 = vmatpush.msra.mxu0 %v1500
        %v1502 = vand.u32 %v1141, 4294901760
        %1503 = vmatpush.msra.mxu0 %v1502
        %v1504 = vand.u32 %v1139, 4294901760
        %1505 = vmatpush.msra.mxu0 %v1504
        %v1506 = vand.u32 %v1137, 4294901760
        %1507 = vmatpush.msra.mxu0 %v1506
        %v1508 = vand.u32 %v1135, 4294901760
        %1509 = vmatpush.msra.mxu0 %v1508
        %v1510 = vand.u32 %v1133, 4294901760
        %1511 = vmatpush.msra.mxu0 %v1510
        %v1512 = vand.u32 %v1131, 4294901760
        %1513 = vmatpush.msra.mxu0 %v1512
        %v1514 = vand.u32 %v1129, 4294901760
        %1515 = vmatpush.msra.mxu0 %v1514
        %v1516 = vand.u32 %v1127, 4294901760
        %1517 = vmatpush.msra.mxu0 %v1516
        %v1518 = vand.u32 %v1125, 4294901760
        %1519 = vmatpush.msra.mxu0 %v1518
        %v1520 = vand.u32 %v1123, 4294901760
        %1521 = vmatpush.msra.mxu0 %v1520
        %v1522 = vand.u32 %v1121, 4294901760
        %1523 = vmatpush.msra.mxu0 %v1522
        %v1524 = vand.u32 %v1119, 4294901760
        %1525 = vmatpush.msra.mxu0 %v1524
        %v1526 = vand.u32 %v1117, 4294901760
        %1527 = vmatpush.msra.mxu0 %v1526
        %v1528 = vand.u32 %v1084, 4294901760
        %v1529 = vsub.f32 %v1084, %v1528
        %v1530 = vand.u32 %v1529, 4294901760
        %v1531 = vsub.f32 %v1529, %v1530
        %v1532 = vand.u32 %v1531, 4294901760
        %1533 = vmatmul.f32.gmra.mxu0 %v1532
        %v1534 = vpop.f32.mrf.mxu0
        %v1535 = vadd.f32 %v1494, %v1534
        %1536 = vdwg.mxu0
        %v1537 = vand.u32 %v1147, 4294901760
        %v1538 = vsub.f32 %v1147, %v1537
        %v1539 = vand.u32 %v1538, 4294901760
        %v1540 = vsub.f32 %v1538, %v1539
        %v1541 = vand.u32 %v1540, 4294901760
        %1542 = vmatpush.msra.mxu0 %v1541
        %v1543 = vand.u32 %v1145, 4294901760
        %v1544 = vsub.f32 %v1145, %v1543
        %v1545 = vand.u32 %v1544, 4294901760
        %v1546 = vsub.f32 %v1544, %v1545
        %v1547 = vand.u32 %v1546, 4294901760
        %1548 = vmatpush.msra.mxu0 %v1547
        %v1549 = vand.u32 %v1143, 4294901760
        %v1550 = vsub.f32 %v1143, %v1549
        %v1551 = vand.u32 %v1550, 4294901760
        %v1552 = vsub.f32 %v1550, %v1551
        %v1553 = vand.u32 %v1552, 4294901760
        %1554 = vmatpush.msra.mxu0 %v1553
        %v1555 = vand.u32 %v1141, 4294901760
        %v1556 = vsub.f32 %v1141, %v1555
        %v1557 = vand.u32 %v1556, 4294901760
        %v1558 = vsub.f32 %v1556, %v1557
        %v1559 = vand.u32 %v1558, 4294901760
        %1560 = vmatpush.msra.mxu0 %v1559
        %v1561 = vand.u32 %v1139, 4294901760
        %v1562 = vsub.f32 %v1139, %v1561
        %v1563 = vand.u32 %v1562, 4294901760
        %v1564 = vsub.f32 %v1562, %v1563
        %v1565 = vand.u32 %v1564, 4294901760
        %1566 = vmatpush.msra.mxu0 %v1565
        %v1567 = vand.u32 %v1137, 4294901760
        %v1568 = vsub.f32 %v1137, %v1567
        %v1569 = vand.u32 %v1568, 4294901760
        %v1570 = vsub.f32 %v1568, %v1569
        %v1571 = vand.u32 %v1570, 4294901760
        %1572 = vmatpush.msra.mxu0 %v1571
        %v1573 = vand.u32 %v1135, 4294901760
        %v1574 = vsub.f32 %v1135, %v1573
        %v1575 = vand.u32 %v1574, 4294901760
        %v1576 = vsub.f32 %v1574, %v1575
        %v1577 = vand.u32 %v1576, 4294901760
        %1578 = vmatpush.msra.mxu0 %v1577
        %v1579 = vand.u32 %v1133, 4294901760
        %v1580 = vsub.f32 %v1133, %v1579
        %v1581 = vand.u32 %v1580, 4294901760
        %v1582 = vsub.f32 %v1580, %v1581
        %v1583 = vand.u32 %v1582, 4294901760
        %1584 = vmatpush.msra.mxu0 %v1583
        %v1585 = vand.u32 %v1131, 4294901760
        %v1586 = vsub.f32 %v1131, %v1585
        %v1587 = vand.u32 %v1586, 4294901760
        %v1588 = vsub.f32 %v1586, %v1587
        %v1589 = vand.u32 %v1588, 4294901760
        %1590 = vmatpush.msra.mxu0 %v1589
        %v1591 = vand.u32 %v1129, 4294901760
        %v1592 = vsub.f32 %v1129, %v1591
        %v1593 = vand.u32 %v1592, 4294901760
        %v1594 = vsub.f32 %v1592, %v1593
        %v1595 = vand.u32 %v1594, 4294901760
        %1596 = vmatpush.msra.mxu0 %v1595
        %v1597 = vand.u32 %v1127, 4294901760
        %v1598 = vsub.f32 %v1127, %v1597
        %v1599 = vand.u32 %v1598, 4294901760
        %v1600 = vsub.f32 %v1598, %v1599
        %v1601 = vand.u32 %v1600, 4294901760
        %1602 = vmatpush.msra.mxu0 %v1601
        %v1603 = vand.u32 %v1125, 4294901760
        %v1604 = vsub.f32 %v1125, %v1603
        %v1605 = vand.u32 %v1604, 4294901760
        %v1606 = vsub.f32 %v1604, %v1605
        %v1607 = vand.u32 %v1606, 4294901760
        %1608 = vmatpush.msra.mxu0 %v1607
        %v1609 = vand.u32 %v1123, 4294901760
        %v1610 = vsub.f32 %v1123, %v1609
        %v1611 = vand.u32 %v1610, 4294901760
        %v1612 = vsub.f32 %v1610, %v1611
        %v1613 = vand.u32 %v1612, 4294901760
        %1614 = vmatpush.msra.mxu0 %v1613
        %v1615 = vand.u32 %v1121, 4294901760
        %v1616 = vsub.f32 %v1121, %v1615
        %v1617 = vand.u32 %v1616, 4294901760
        %v1618 = vsub.f32 %v1616, %v1617
        %v1619 = vand.u32 %v1618, 4294901760
        %1620 = vmatpush.msra.mxu0 %v1619
        %v1621 = vand.u32 %v1119, 4294901760
        %v1622 = vsub.f32 %v1119, %v1621
        %v1623 = vand.u32 %v1622, 4294901760
        %v1624 = vsub.f32 %v1622, %v1623
        %v1625 = vand.u32 %v1624, 4294901760
        %1626 = vmatpush.msra.mxu0 %v1625
        %v1627 = vand.u32 %v1117, 4294901760
        %v1628 = vsub.f32 %v1117, %v1627
        %v1629 = vand.u32 %v1628, 4294901760
        %v1630 = vsub.f32 %v1628, %v1629
        %v1631 = vand.u32 %v1630, 4294901760
        %1632 = vmatpush.msra.mxu0 %v1631
        %v1633 = vand.u32 %v1084, 4294901760
        %1634 = vmatmul.f32.gmra.mxu0 %v1633
        %v1635 = vpop.f32.mrf.mxu0
        %v1636 = vadd.f32 %v1535, %v1635
        %1637 = vdwg.mxu0
        %v1638 = vand.u32 %v1147, 4294901760
        %v1639 = vsub.f32 %v1147, %v1638
        %1640 = vmatpush.msra.mxu0 %v1639
        %v1641 = vand.u32 %v1145, 4294901760
        %v1642 = vsub.f32 %v1145, %v1641
        %1643 = vmatpush.msra.mxu0 %v1642
        %v1644 = vand.u32 %v1143, 4294901760
        %v1645 = vsub.f32 %v1143, %v1644
        %1646 = vmatpush.msra.mxu0 %v1645
        %v1647 = vand.u32 %v1141, 4294901760
        %v1648 = vsub.f32 %v1141, %v1647
        %1649 = vmatpush.msra.mxu0 %v1648
        %v1650 = vand.u32 %v1139, 4294901760
        %v1651 = vsub.f32 %v1139, %v1650
        %1652 = vmatpush.msra.mxu0 %v1651
        %v1653 = vand.u32 %v1137, 4294901760
        %v1654 = vsub.f32 %v1137, %v1653
        %1655 = vmatpush.msra.mxu0 %v1654
        %v1656 = vand.u32 %v1135, 4294901760
        %v1657 = vsub.f32 %v1135, %v1656
        %1658 = vmatpush.msra.mxu0 %v1657
        %v1659 = vand.u32 %v1133, 4294901760
        %v1660 = vsub.f32 %v1133, %v1659
        %1661 = vmatpush.msra.mxu0 %v1660
        %v1662 = vand.u32 %v1131, 4294901760
        %v1663 = vsub.f32 %v1131, %v1662
        %1664 = vmatpush.msra.mxu0 %v1663
        %v1665 = vand.u32 %v1129, 4294901760
        %v1666 = vsub.f32 %v1129, %v1665
        %1667 = vmatpush.msra.mxu0 %v1666
        %v1668 = vand.u32 %v1127, 4294901760
        %v1669 = vsub.f32 %v1127, %v1668
        %1670 = vmatpush.msra.mxu0 %v1669
        %v1671 = vand.u32 %v1125, 4294901760
        %v1672 = vsub.f32 %v1125, %v1671
        %1673 = vmatpush.msra.mxu0 %v1672
        %v1674 = vand.u32 %v1123, 4294901760
        %v1675 = vsub.f32 %v1123, %v1674
        %1676 = vmatpush.msra.mxu0 %v1675
        %v1677 = vand.u32 %v1121, 4294901760
        %v1678 = vsub.f32 %v1121, %v1677
        %1679 = vmatpush.msra.mxu0 %v1678
        %v1680 = vand.u32 %v1119, 4294901760
        %v1681 = vsub.f32 %v1119, %v1680
        %1682 = vmatpush.msra.mxu0 %v1681
        %v1683 = vand.u32 %v1117, 4294901760
        %v1684 = vsub.f32 %v1117, %v1683
        %1685 = vmatpush.msra.mxu0 %v1684
        %v1686 = vand.u32 %v1084, 4294901760
        %v1687 = vsub.f32 %v1084, %v1686
        %1688 = vmatmul.f32.gmra.mxu0 %v1687
        %v1689 = vpop.f32.mrf.mxu0
        %v1690 = vadd.f32 %v1636, %v1689
        %1691 = vdwg.mxu0
        %v1692 = vand.u32 %v1147, 4294901760
        %1693 = vmatpush.msra.mxu0 %v1692
        %v1694 = vand.u32 %v1145, 4294901760
        %1695 = vmatpush.msra.mxu0 %v1694
        %v1696 = vand.u32 %v1143, 4294901760
        %1697 = vmatpush.msra.mxu0 %v1696
        %v1698 = vand.u32 %v1141, 4294901760
        %1699 = vmatpush.msra.mxu0 %v1698
        %v1700 = vand.u32 %v1139, 4294901760
        %1701 = vmatpush.msra.mxu0 %v1700
        %v1702 = vand.u32 %v1137, 4294901760
        %1703 = vmatpush.msra.mxu0 %v1702
        %v1704 = vand.u32 %v1135, 4294901760
        %1705 = vmatpush.msra.mxu0 %v1704
        %v1706 = vand.u32 %v1133, 4294901760
        %1707 = vmatpush.msra.mxu0 %v1706
        %v1708 = vand.u32 %v1131, 4294901760
        %1709 = vmatpush.msra.mxu0 %v1708
        %v1710 = vand.u32 %v1129, 4294901760
        %1711 = vmatpush.msra.mxu0 %v1710
        %v1712 = vand.u32 %v1127, 4294901760
        %1713 = vmatpush.msra.mxu0 %v1712
        %v1714 = vand.u32 %v1125, 4294901760
        %1715 = vmatpush.msra.mxu0 %v1714
        %v1716 = vand.u32 %v1123, 4294901760
        %1717 = vmatpush.msra.mxu0 %v1716
        %v1718 = vand.u32 %v1121, 4294901760
        %1719 = vmatpush.msra.mxu0 %v1718
        %v1720 = vand.u32 %v1119, 4294901760
        %1721 = vmatpush.msra.mxu0 %v1720
        %v1722 = vand.u32 %v1117, 4294901760
        %1723 = vmatpush.msra.mxu0 %v1722
        %v1724 = vand.u32 %v1084, 4294901760
        %v1725 = vsub.f32 %v1084, %v1724
        %v1726 = vand.u32 %v1725, 4294901760
        %1727 = vmatmul.f32.gmra.mxu0 %v1726
        %v1728 = vpop.f32.mrf.mxu0
        %v1729 = vadd.f32 %v1690, %v1728
        %1730 = vdwg.mxu0
        %v1731 = vand.u32 %v1147, 4294901760
        %v1732 = vsub.f32 %v1147, %v1731
        %v1733 = vand.u32 %v1732, 4294901760
        %1734 = vmatpush.msra.mxu0 %v1733
        %v1735 = vand.u32 %v1145, 4294901760
        %v1736 = vsub.f32 %v1145, %v1735
        %v1737 = vand.u32 %v1736, 4294901760
        %1738 = vmatpush.msra.mxu0 %v1737
        %v1739 = vand.u32 %v1143, 4294901760
        %v1740 = vsub.f32 %v1143, %v1739
        %v1741 = vand.u32 %v1740, 4294901760
        %1742 = vmatpush.msra.mxu0 %v1741
        %v1743 = vand.u32 %v1141, 4294901760
        %v1744 = vsub.f32 %v1141, %v1743
        %v1745 = vand.u32 %v1744, 4294901760
        %1746 = vmatpush.msra.mxu0 %v1745
        %v1747 = vand.u32 %v1139, 4294901760
        %v1748 = vsub.f32 %v1139, %v1747
        %v1749 = vand.u32 %v1748, 4294901760
        %1750 = vmatpush.msra.mxu0 %v1749
        %v1751 = vand.u32 %v1137, 4294901760
        %v1752 = vsub.f32 %v1137, %v1751
        %v1753 = vand.u32 %v1752, 4294901760
        %1754 = vmatpush.msra.mxu0 %v1753
        %v1755 = vand.u32 %v1135, 4294901760
        %v1756 = vsub.f32 %v1135, %v1755
        %v1757 = vand.u32 %v1756, 4294901760
        %1758 = vmatpush.msra.mxu0 %v1757
        %v1759 = vand.u32 %v1133, 4294901760
        %v1760 = vsub.f32 %v1133, %v1759
        %v1761 = vand.u32 %v1760, 4294901760
        %1762 = vmatpush.msra.mxu0 %v1761
        %v1763 = vand.u32 %v1131, 4294901760
        %v1764 = vsub.f32 %v1131, %v1763
        %v1765 = vand.u32 %v1764, 4294901760
        %1766 = vmatpush.msra.mxu0 %v1765
        %v1767 = vand.u32 %v1129, 4294901760
        %v1768 = vsub.f32 %v1129, %v1767
        %v1769 = vand.u32 %v1768, 4294901760
        %1770 = vmatpush.msra.mxu0 %v1769
        %v1771 = vand.u32 %v1127, 4294901760
        %v1772 = vsub.f32 %v1127, %v1771
        %v1773 = vand.u32 %v1772, 4294901760
        %1774 = vmatpush.msra.mxu0 %v1773
        %v1775 = vand.u32 %v1125, 4294901760
        %v1776 = vsub.f32 %v1125, %v1775
        %v1777 = vand.u32 %v1776, 4294901760
        %1778 = vmatpush.msra.mxu0 %v1777
        %v1779 = vand.u32 %v1123, 4294901760
        %v1780 = vsub.f32 %v1123, %v1779
        %v1781 = vand.u32 %v1780, 4294901760
        %1782 = vmatpush.msra.mxu0 %v1781
        %v1783 = vand.u32 %v1121, 4294901760
        %v1784 = vsub.f32 %v1121, %v1783
        %v1785 = vand.u32 %v1784, 4294901760
        %1786 = vmatpush.msra.mxu0 %v1785
        %v1787 = vand.u32 %v1119, 4294901760
        %v1788 = vsub.f32 %v1119, %v1787
        %v1789 = vand.u32 %v1788, 4294901760
        %1790 = vmatpush.msra.mxu0 %v1789
        %v1791 = vand.u32 %v1117, 4294901760
        %v1792 = vsub.f32 %v1117, %v1791
        %v1793 = vand.u32 %v1792, 4294901760
        %1794 = vmatpush.msra.mxu0 %v1793
        %v1795 = vand.u32 %v1084, 4294901760
        %1796 = vmatmul.f32.gmra.mxu0 %v1795
        %v1797 = vpop.f32.mrf.mxu0
        %v1798 = vadd.f32 %v1729, %v1797
        %1799 = vdwg.mxu0
        %v1800 = vand.u32 %v1147, 4294901760
        %1801 = vmatpush.msra.mxu0 %v1800
        %v1802 = vand.u32 %v1145, 4294901760
        %1803 = vmatpush.msra.mxu0 %v1802
        %v1804 = vand.u32 %v1143, 4294901760
        %1805 = vmatpush.msra.mxu0 %v1804
        %v1806 = vand.u32 %v1141, 4294901760
        %1807 = vmatpush.msra.mxu0 %v1806
        %v1808 = vand.u32 %v1139, 4294901760
        %1809 = vmatpush.msra.mxu0 %v1808
        %v1810 = vand.u32 %v1137, 4294901760
        %1811 = vmatpush.msra.mxu0 %v1810
        %v1812 = vand.u32 %v1135, 4294901760
        %1813 = vmatpush.msra.mxu0 %v1812
        %v1814 = vand.u32 %v1133, 4294901760
        %1815 = vmatpush.msra.mxu0 %v1814
        %v1816 = vand.u32 %v1131, 4294901760
        %1817 = vmatpush.msra.mxu0 %v1816
        %v1818 = vand.u32 %v1129, 4294901760
        %1819 = vmatpush.msra.mxu0 %v1818
        %v1820 = vand.u32 %v1127, 4294901760
        %1821 = vmatpush.msra.mxu0 %v1820
        %v1822 = vand.u32 %v1125, 4294901760
        %1823 = vmatpush.msra.mxu0 %v1822
        %v1824 = vand.u32 %v1123, 4294901760
        %1825 = vmatpush.msra.mxu0 %v1824
        %v1826 = vand.u32 %v1121, 4294901760
        %1827 = vmatpush.msra.mxu0 %v1826
        %v1828 = vand.u32 %v1119, 4294901760
        %1829 = vmatpush.msra.mxu0 %v1828
        %v1830 = vand.u32 %v1117, 4294901760
        %1831 = vmatpush.msra.mxu0 %v1830
        %v1832 = vand.u32 %v1084, 4294901760
        %1833 = vmatmul.f32.gmra.mxu0 %v1832
        %v1834 = vpop.f32.mrf.mxu0
        %v1835 = vadd.f32 %v1798, %v1834
        %1836 = vdwg.mxu0
        %v1837 = vand.u32 %v1116, 4294901760
        %1838 = vmatpush.msra.mxu0 %v1837
        %v1839 = vand.u32 %v1114, 4294901760
        %1840 = vmatpush.msra.mxu0 %v1839
        %v1841 = vand.u32 %v1112, 4294901760
        %1842 = vmatpush.msra.mxu0 %v1841
        %v1843 = vand.u32 %v1110, 4294901760
        %1844 = vmatpush.msra.mxu0 %v1843
        %v1845 = vand.u32 %v1108, 4294901760
        %1846 = vmatpush.msra.mxu0 %v1845
        %v1847 = vand.u32 %v1106, 4294901760
        %1848 = vmatpush.msra.mxu0 %v1847
        %v1849 = vand.u32 %v1104, 4294901760
        %1850 = vmatpush.msra.mxu0 %v1849
        %v1851 = vand.u32 %v1102, 4294901760
        %1852 = vmatpush.msra.mxu0 %v1851
        %v1853 = vand.u32 %v1100, 4294901760
        %1854 = vmatpush.msra.mxu0 %v1853
        %v1855 = vand.u32 %v1098, 4294901760
        %1856 = vmatpush.msra.mxu0 %v1855
        %v1857 = vand.u32 %v1096, 4294901760
        %1858 = vmatpush.msra.mxu0 %v1857
        %v1859 = vand.u32 %v1094, 4294901760
        %1860 = vmatpush.msra.mxu0 %v1859
        %v1861 = vand.u32 %v1092, 4294901760
        %1862 = vmatpush.msra.mxu0 %v1861
        %v1863 = vand.u32 %v1090, 4294901760
        %1864 = vmatpush.msra.mxu0 %v1863
        %v1865 = vand.u32 %v1088, 4294901760
        %1866 = vmatpush.msra.mxu0 %v1865
        %v1867 = vand.u32 %v1086, 4294901760
        %1868 = vmatpush.msra.mxu0 %v1867
        %v1869 = vand.u32 %v1083, 4294901760
        %v1870 = vsub.f32 %v1083, %v1869
        %v1871 = vand.u32 %v1870, 4294901760
        %v1872 = vsub.f32 %v1870, %v1871
        %v1873 = vand.u32 %v1872, 4294901760
        %1874 = vmatmul.f32.gmra.mxu0 %v1873
        %v1875 = vpop.f32.mrf.mxu0
        %v1876 = vadd.f32 %v1152, %v1875
        %1877 = vdwg.mxu0
        %v1878 = vand.u32 %v1116, 4294901760
        %v1879 = vsub.f32 %v1116, %v1878
        %v1880 = vand.u32 %v1879, 4294901760
        %v1881 = vsub.f32 %v1879, %v1880
        %v1882 = vand.u32 %v1881, 4294901760
        %1883 = vmatpush.msra.mxu0 %v1882
        %v1884 = vand.u32 %v1114, 4294901760
        %v1885 = vsub.f32 %v1114, %v1884
        %v1886 = vand.u32 %v1885, 4294901760
        %v1887 = vsub.f32 %v1885, %v1886
        %v1888 = vand.u32 %v1887, 4294901760
        %1889 = vmatpush.msra.mxu0 %v1888
        %v1890 = vand.u32 %v1112, 4294901760
        %v1891 = vsub.f32 %v1112, %v1890
        %v1892 = vand.u32 %v1891, 4294901760
        %v1893 = vsub.f32 %v1891, %v1892
        %v1894 = vand.u32 %v1893, 4294901760
        %1895 = vmatpush.msra.mxu0 %v1894
        %v1896 = vand.u32 %v1110, 4294901760
        %v1897 = vsub.f32 %v1110, %v1896
        %v1898 = vand.u32 %v1897, 4294901760
        %v1899 = vsub.f32 %v1897, %v1898
        %v1900 = vand.u32 %v1899, 4294901760
        %1901 = vmatpush.msra.mxu0 %v1900
        %v1902 = vand.u32 %v1108, 4294901760
        %v1903 = vsub.f32 %v1108, %v1902
        %v1904 = vand.u32 %v1903, 4294901760
        %v1905 = vsub.f32 %v1903, %v1904
        %v1906 = vand.u32 %v1905, 4294901760
        %1907 = vmatpush.msra.mxu0 %v1906
        %v1908 = vand.u32 %v1106, 4294901760
        %v1909 = vsub.f32 %v1106, %v1908
        %v1910 = vand.u32 %v1909, 4294901760
        %v1911 = vsub.f32 %v1909, %v1910
        %v1912 = vand.u32 %v1911, 4294901760
        %1913 = vmatpush.msra.mxu0 %v1912
        %v1914 = vand.u32 %v1104, 4294901760
        %v1915 = vsub.f32 %v1104, %v1914
        %v1916 = vand.u32 %v1915, 4294901760
        %v1917 = vsub.f32 %v1915, %v1916
        %v1918 = vand.u32 %v1917, 4294901760
        %1919 = vmatpush.msra.mxu0 %v1918
        %v1920 = vand.u32 %v1102, 4294901760
        %v1921 = vsub.f32 %v1102, %v1920
        %v1922 = vand.u32 %v1921, 4294901760
        %v1923 = vsub.f32 %v1921, %v1922
        %v1924 = vand.u32 %v1923, 4294901760
        %1925 = vmatpush.msra.mxu0 %v1924
        %v1926 = vand.u32 %v1100, 4294901760
        %v1927 = vsub.f32 %v1100, %v1926
        %v1928 = vand.u32 %v1927, 4294901760
        %v1929 = vsub.f32 %v1927, %v1928
        %v1930 = vand.u32 %v1929, 4294901760
        %1931 = vmatpush.msra.mxu0 %v1930
        %v1932 = vand.u32 %v1098, 4294901760
        %v1933 = vsub.f32 %v1098, %v1932
        %v1934 = vand.u32 %v1933, 4294901760
        %v1935 = vsub.f32 %v1933, %v1934
        %v1936 = vand.u32 %v1935, 4294901760
        %1937 = vmatpush.msra.mxu0 %v1936
        %v1938 = vand.u32 %v1096, 4294901760
        %v1939 = vsub.f32 %v1096, %v1938
        %v1940 = vand.u32 %v1939, 4294901760
        %v1941 = vsub.f32 %v1939, %v1940
        %v1942 = vand.u32 %v1941, 4294901760
        %1943 = vmatpush.msra.mxu0 %v1942
        %v1944 = vand.u32 %v1094, 4294901760
        %v1945 = vsub.f32 %v1094, %v1944
        %v1946 = vand.u32 %v1945, 4294901760
        %v1947 = vsub.f32 %v1945, %v1946
        %v1948 = vand.u32 %v1947, 4294901760
        %1949 = vmatpush.msra.mxu0 %v1948
        %v1950 = vand.u32 %v1092, 4294901760
        %v1951 = vsub.f32 %v1092, %v1950
        %v1952 = vand.u32 %v1951, 4294901760
        %v1953 = vsub.f32 %v1951, %v1952
        %v1954 = vand.u32 %v1953, 4294901760
        %1955 = vmatpush.msra.mxu0 %v1954
        %v1956 = vand.u32 %v1090, 4294901760
        %v1957 = vsub.f32 %v1090, %v1956
        %v1958 = vand.u32 %v1957, 4294901760
        %v1959 = vsub.f32 %v1957, %v1958
        %v1960 = vand.u32 %v1959, 4294901760
        %1961 = vmatpush.msra.mxu0 %v1960
        %v1962 = vand.u32 %v1088, 4294901760
        %v1963 = vsub.f32 %v1088, %v1962
        %v1964 = vand.u32 %v1963, 4294901760
        %v1965 = vsub.f32 %v1963, %v1964
        %v1966 = vand.u32 %v1965, 4294901760
        %1967 = vmatpush.msra.mxu0 %v1966
        %v1968 = vand.u32 %v1086, 4294901760
        %v1969 = vsub.f32 %v1086, %v1968
        %v1970 = vand.u32 %v1969, 4294901760
        %v1971 = vsub.f32 %v1969, %v1970
        %v1972 = vand.u32 %v1971, 4294901760
        %1973 = vmatpush.msra.mxu0 %v1972
        %v1974 = vand.u32 %v1083, 4294901760
        %1975 = vmatmul.f32.gmra.mxu0 %v1974
        %v1976 = vpop.f32.mrf.mxu0
        %v1977 = vadd.f32 %v1876, %v1976
        %1978 = vdwg.mxu0
        %v1979 = vand.u32 %v1116, 4294901760
        %v1980 = vsub.f32 %v1116, %v1979
        %1981 = vmatpush.msra.mxu0 %v1980
        %v1982 = vand.u32 %v1114, 4294901760
        %v1983 = vsub.f32 %v1114, %v1982
        %1984 = vmatpush.msra.mxu0 %v1983
        %v1985 = vand.u32 %v1112, 4294901760
        %v1986 = vsub.f32 %v1112, %v1985
        %1987 = vmatpush.msra.mxu0 %v1986
        %v1988 = vand.u32 %v1110, 4294901760
        %v1989 = vsub.f32 %v1110, %v1988
        %1990 = vmatpush.msra.mxu0 %v1989
        %v1991 = vand.u32 %v1108, 4294901760
        %v1992 = vsub.f32 %v1108, %v1991
        %1993 = vmatpush.msra.mxu0 %v1992
        %v1994 = vand.u32 %v1106, 4294901760
        %v1995 = vsub.f32 %v1106, %v1994
        %1996 = vmatpush.msra.mxu0 %v1995
        %v1997 = vand.u32 %v1104, 4294901760
        %v1998 = vsub.f32 %v1104, %v1997
        %1999 = vmatpush.msra.mxu0 %v1998
        %v2000 = vand.u32 %v1102, 4294901760
        %v2001 = vsub.f32 %v1102, %v2000
        %2002 = vmatpush.msra.mxu0 %v2001
        %v2003 = vand.u32 %v1100, 4294901760
        %v2004 = vsub.f32 %v1100, %v2003
        %2005 = vmatpush.msra.mxu0 %v2004
        %v2006 = vand.u32 %v1098, 4294901760
        %v2007 = vsub.f32 %v1098, %v2006
        %2008 = vmatpush.msra.mxu0 %v2007
        %v2009 = vand.u32 %v1096, 4294901760
        %v2010 = vsub.f32 %v1096, %v2009
        %2011 = vmatpush.msra.mxu0 %v2010
        %v2012 = vand.u32 %v1094, 4294901760
        %v2013 = vsub.f32 %v1094, %v2012
        %2014 = vmatpush.msra.mxu0 %v2013
        %v2015 = vand.u32 %v1092, 4294901760
        %v2016 = vsub.f32 %v1092, %v2015
        %2017 = vmatpush.msra.mxu0 %v2016
        %v2018 = vand.u32 %v1090, 4294901760
        %v2019 = vsub.f32 %v1090, %v2018
        %2020 = vmatpush.msra.mxu0 %v2019
        %v2021 = vand.u32 %v1088, 4294901760
        %v2022 = vsub.f32 %v1088, %v2021
        %2023 = vmatpush.msra.mxu0 %v2022
        %v2024 = vand.u32 %v1086, 4294901760
        %v2025 = vsub.f32 %v1086, %v2024
        %2026 = vmatpush.msra.mxu0 %v2025
        %v2027 = vand.u32 %v1083, 4294901760
        %v2028 = vsub.f32 %v1083, %v2027
        %2029 = vmatmul.f32.gmra.mxu0 %v2028
        %v2030 = vpop.f32.mrf.mxu0
        %v2031 = vadd.f32 %v1977, %v2030
        %2032 = vdwg.mxu0
        %v2033 = vand.u32 %v1116, 4294901760
        %2034 = vmatpush.msra.mxu0 %v2033
        %v2035 = vand.u32 %v1114, 4294901760
        %2036 = vmatpush.msra.mxu0 %v2035
        %v2037 = vand.u32 %v1112, 4294901760
        %2038 = vmatpush.msra.mxu0 %v2037
        %v2039 = vand.u32 %v1110, 4294901760
        %2040 = vmatpush.msra.mxu0 %v2039
        %v2041 = vand.u32 %v1108, 4294901760
        %2042 = vmatpush.msra.mxu0 %v2041
        %v2043 = vand.u32 %v1106, 4294901760
        %2044 = vmatpush.msra.mxu0 %v2043
        %v2045 = vand.u32 %v1104, 4294901760
        %2046 = vmatpush.msra.mxu0 %v2045
        %v2047 = vand.u32 %v1102, 4294901760
        %2048 = vmatpush.msra.mxu0 %v2047
        %v2049 = vand.u32 %v1100, 4294901760
        %2050 = vmatpush.msra.mxu0 %v2049
        %v2051 = vand.u32 %v1098, 4294901760
        %2052 = vmatpush.msra.mxu0 %v2051
        %v2053 = vand.u32 %v1096, 4294901760
        %2054 = vmatpush.msra.mxu0 %v2053
        %v2055 = vand.u32 %v1094, 4294901760
        %2056 = vmatpush.msra.mxu0 %v2055
        %v2057 = vand.u32 %v1092, 4294901760
        %2058 = vmatpush.msra.mxu0 %v2057
        %v2059 = vand.u32 %v1090, 4294901760
        %2060 = vmatpush.msra.mxu0 %v2059
        %v2061 = vand.u32 %v1088, 4294901760
        %2062 = vmatpush.msra.mxu0 %v2061
        %v2063 = vand.u32 %v1086, 4294901760
        %2064 = vmatpush.msra.mxu0 %v2063
        %v2065 = vand.u32 %v1083, 4294901760
        %v2066 = vsub.f32 %v1083, %v2065
        %v2067 = vand.u32 %v2066, 4294901760
        %2068 = vmatmul.f32.gmra.mxu0 %v2067
        %v2069 = vpop.f32.mrf.mxu0
        %v2070 = vadd.f32 %v2031, %v2069
        %2071 = vdwg.mxu0
        %v2072 = vand.u32 %v1116, 4294901760
        %v2073 = vsub.f32 %v1116, %v2072
        %v2074 = vand.u32 %v2073, 4294901760
        %2075 = vmatpush.msra.mxu0 %v2074
        %v2076 = vand.u32 %v1114, 4294901760
        %v2077 = vsub.f32 %v1114, %v2076
        %v2078 = vand.u32 %v2077, 4294901760
        %2079 = vmatpush.msra.mxu0 %v2078
        %v2080 = vand.u32 %v1112, 4294901760
        %v2081 = vsub.f32 %v1112, %v2080
        %v2082 = vand.u32 %v2081, 4294901760
        %2083 = vmatpush.msra.mxu0 %v2082
        %v2084 = vand.u32 %v1110, 4294901760
        %v2085 = vsub.f32 %v1110, %v2084
        %v2086 = vand.u32 %v2085, 4294901760
        %2087 = vmatpush.msra.mxu0 %v2086
        %v2088 = vand.u32 %v1108, 4294901760
        %v2089 = vsub.f32 %v1108, %v2088
        %v2090 = vand.u32 %v2089, 4294901760
        %2091 = vmatpush.msra.mxu0 %v2090
        %v2092 = vand.u32 %v1106, 4294901760
        %v2093 = vsub.f32 %v1106, %v2092
        %v2094 = vand.u32 %v2093, 4294901760
        %2095 = vmatpush.msra.mxu0 %v2094
        %v2096 = vand.u32 %v1104, 4294901760
        %v2097 = vsub.f32 %v1104, %v2096
        %v2098 = vand.u32 %v2097, 4294901760
        %2099 = vmatpush.msra.mxu0 %v2098
        %v2100 = vand.u32 %v1102, 4294901760
        %v2101 = vsub.f32 %v1102, %v2100
        %v2102 = vand.u32 %v2101, 4294901760
        %2103 = vmatpush.msra.mxu0 %v2102
        %v2104 = vand.u32 %v1100, 4294901760
        %v2105 = vsub.f32 %v1100, %v2104
        %v2106 = vand.u32 %v2105, 4294901760
        %2107 = vmatpush.msra.mxu0 %v2106
        %v2108 = vand.u32 %v1098, 4294901760
        %v2109 = vsub.f32 %v1098, %v2108
        %v2110 = vand.u32 %v2109, 4294901760
        %2111 = vmatpush.msra.mxu0 %v2110
        %v2112 = vand.u32 %v1096, 4294901760
        %v2113 = vsub.f32 %v1096, %v2112
        %v2114 = vand.u32 %v2113, 4294901760
        %2115 = vmatpush.msra.mxu0 %v2114
        %v2116 = vand.u32 %v1094, 4294901760
        %v2117 = vsub.f32 %v1094, %v2116
        %v2118 = vand.u32 %v2117, 4294901760
        %2119 = vmatpush.msra.mxu0 %v2118
        %v2120 = vand.u32 %v1092, 4294901760
        %v2121 = vsub.f32 %v1092, %v2120
        %v2122 = vand.u32 %v2121, 4294901760
        %2123 = vmatpush.msra.mxu0 %v2122
        %v2124 = vand.u32 %v1090, 4294901760
        %v2125 = vsub.f32 %v1090, %v2124
        %v2126 = vand.u32 %v2125, 4294901760
        %2127 = vmatpush.msra.mxu0 %v2126
        %v2128 = vand.u32 %v1088, 4294901760
        %v2129 = vsub.f32 %v1088, %v2128
        %v2130 = vand.u32 %v2129, 4294901760
        %2131 = vmatpush.msra.mxu0 %v2130
        %v2132 = vand.u32 %v1086, 4294901760
        %v2133 = vsub.f32 %v1086, %v2132
        %v2134 = vand.u32 %v2133, 4294901760
        %2135 = vmatpush.msra.mxu0 %v2134
        %v2136 = vand.u32 %v1083, 4294901760
        %2137 = vmatmul.f32.gmra.mxu0 %v2136
        %v2138 = vpop.f32.mrf.mxu0
        %v2139 = vadd.f32 %v2070, %v2138
        %2140 = vdwg.mxu0
        %v2141 = vand.u32 %v1116, 4294901760
        %2142 = vmatpush.msra.mxu0 %v2141
        %v2143 = vand.u32 %v1114, 4294901760
        %2144 = vmatpush.msra.mxu0 %v2143
        %v2145 = vand.u32 %v1112, 4294901760
        %2146 = vmatpush.msra.mxu0 %v2145
        %v2147 = vand.u32 %v1110, 4294901760
        %2148 = vmatpush.msra.mxu0 %v2147
        %v2149 = vand.u32 %v1108, 4294901760
        %2150 = vmatpush.msra.mxu0 %v2149
        %v2151 = vand.u32 %v1106, 4294901760
        %2152 = vmatpush.msra.mxu0 %v2151
        %v2153 = vand.u32 %v1104, 4294901760
        %2154 = vmatpush.msra.mxu0 %v2153
        %v2155 = vand.u32 %v1102, 4294901760
        %2156 = vmatpush.msra.mxu0 %v2155
        %v2157 = vand.u32 %v1100, 4294901760
        %2158 = vmatpush.msra.mxu0 %v2157
        %v2159 = vand.u32 %v1098, 4294901760
        %2160 = vmatpush.msra.mxu0 %v2159
        %v2161 = vand.u32 %v1096, 4294901760
        %2162 = vmatpush.msra.mxu0 %v2161
        %v2163 = vand.u32 %v1094, 4294901760
        %2164 = vmatpush.msra.mxu0 %v2163
        %v2165 = vand.u32 %v1092, 4294901760
        %2166 = vmatpush.msra.mxu0 %v2165
        %v2167 = vand.u32 %v1090, 4294901760
        %2168 = vmatpush.msra.mxu0 %v2167
        %v2169 = vand.u32 %v1088, 4294901760
        %2170 = vmatpush.msra.mxu0 %v2169
        %v2171 = vand.u32 %v1086, 4294901760
        %2172 = vmatpush.msra.mxu0 %v2171
        %v2173 = vand.u32 %v1083, 4294901760
        %2174 = vmatmul.f32.gmra.mxu0 %v2173
        %v2175 = vpop.f32.mrf.mxu0
        %v2176 = vadd.f32 %v2139, %v2175
        %2177 = vdwg.mxu0
        %v2178 = vand.u32 %v1148, 4294901760
        %2179 = vmatpush.msra.mxu0 %v2178
        %v2180 = vand.u32 %v1146, 4294901760
        %2181 = vmatpush.msra.mxu0 %v2180
        %v2182 = vand.u32 %v1144, 4294901760
        %2183 = vmatpush.msra.mxu0 %v2182
        %v2184 = vand.u32 %v1142, 4294901760
        %2185 = vmatpush.msra.mxu0 %v2184
        %v2186 = vand.u32 %v1140, 4294901760
        %2187 = vmatpush.msra.mxu0 %v2186
        %v2188 = vand.u32 %v1138, 4294901760
        %2189 = vmatpush.msra.mxu0 %v2188
        %v2190 = vand.u32 %v1136, 4294901760
        %2191 = vmatpush.msra.mxu0 %v2190
        %v2192 = vand.u32 %v1134, 4294901760
        %2193 = vmatpush.msra.mxu0 %v2192
        %v2194 = vand.u32 %v1132, 4294901760
        %2195 = vmatpush.msra.mxu0 %v2194
        %v2196 = vand.u32 %v1130, 4294901760
        %2197 = vmatpush.msra.mxu0 %v2196
        %v2198 = vand.u32 %v1128, 4294901760
        %2199 = vmatpush.msra.mxu0 %v2198
        %v2200 = vand.u32 %v1126, 4294901760
        %2201 = vmatpush.msra.mxu0 %v2200
        %v2202 = vand.u32 %v1124, 4294901760
        %2203 = vmatpush.msra.mxu0 %v2202
        %v2204 = vand.u32 %v1122, 4294901760
        %2205 = vmatpush.msra.mxu0 %v2204
        %v2206 = vand.u32 %v1120, 4294901760
        %2207 = vmatpush.msra.mxu0 %v2206
        %v2208 = vand.u32 %v1118, 4294901760
        %2209 = vmatpush.msra.mxu0 %v2208
        %v2210 = vand.u32 %v1084, 4294901760
        %v2211 = vsub.f32 %v1084, %v2210
        %v2212 = vand.u32 %v2211, 4294901760
        %v2213 = vsub.f32 %v2211, %v2212
        %v2214 = vand.u32 %v2213, 4294901760
        %2215 = vmatmul.f32.gmra.mxu0 %v2214
        %v2216 = vpop.f32.mrf.mxu0
        %v2217 = vadd.f32 %v2176, %v2216
        %2218 = vdwg.mxu0
        %v2219 = vand.u32 %v1148, 4294901760
        %v2220 = vsub.f32 %v1148, %v2219
        %v2221 = vand.u32 %v2220, 4294901760
        %v2222 = vsub.f32 %v2220, %v2221
        %v2223 = vand.u32 %v2222, 4294901760
        %2224 = vmatpush.msra.mxu0 %v2223
        %v2225 = vand.u32 %v1146, 4294901760
        %v2226 = vsub.f32 %v1146, %v2225
        %v2227 = vand.u32 %v2226, 4294901760
        %v2228 = vsub.f32 %v2226, %v2227
        %v2229 = vand.u32 %v2228, 4294901760
        %2230 = vmatpush.msra.mxu0 %v2229
        %v2231 = vand.u32 %v1144, 4294901760
        %v2232 = vsub.f32 %v1144, %v2231
        %v2233 = vand.u32 %v2232, 4294901760
        %v2234 = vsub.f32 %v2232, %v2233
        %v2235 = vand.u32 %v2234, 4294901760
        %2236 = vmatpush.msra.mxu0 %v2235
        %v2237 = vand.u32 %v1142, 4294901760
        %v2238 = vsub.f32 %v1142, %v2237
        %v2239 = vand.u32 %v2238, 4294901760
        %v2240 = vsub.f32 %v2238, %v2239
        %v2241 = vand.u32 %v2240, 4294901760
        %2242 = vmatpush.msra.mxu0 %v2241
        %v2243 = vand.u32 %v1140, 4294901760
        %v2244 = vsub.f32 %v1140, %v2243
        %v2245 = vand.u32 %v2244, 4294901760
        %v2246 = vsub.f32 %v2244, %v2245
        %v2247 = vand.u32 %v2246, 4294901760
        %2248 = vmatpush.msra.mxu0 %v2247
        %v2249 = vand.u32 %v1138, 4294901760
        %v2250 = vsub.f32 %v1138, %v2249
        %v2251 = vand.u32 %v2250, 4294901760
        %v2252 = vsub.f32 %v2250, %v2251
        %v2253 = vand.u32 %v2252, 4294901760
        %2254 = vmatpush.msra.mxu0 %v2253
        %v2255 = vand.u32 %v1136, 4294901760
        %v2256 = vsub.f32 %v1136, %v2255
        %v2257 = vand.u32 %v2256, 4294901760
        %v2258 = vsub.f32 %v2256, %v2257
        %v2259 = vand.u32 %v2258, 4294901760
        %2260 = vmatpush.msra.mxu0 %v2259
        %v2261 = vand.u32 %v1134, 4294901760
        %v2262 = vsub.f32 %v1134, %v2261
        %v2263 = vand.u32 %v2262, 4294901760
        %v2264 = vsub.f32 %v2262, %v2263
        %v2265 = vand.u32 %v2264, 4294901760
        %2266 = vmatpush.msra.mxu0 %v2265
        %v2267 = vand.u32 %v1132, 4294901760
        %v2268 = vsub.f32 %v1132, %v2267
        %v2269 = vand.u32 %v2268, 4294901760
        %v2270 = vsub.f32 %v2268, %v2269
        %v2271 = vand.u32 %v2270, 4294901760
        %2272 = vmatpush.msra.mxu0 %v2271
        %v2273 = vand.u32 %v1130, 4294901760
        %v2274 = vsub.f32 %v1130, %v2273
        %v2275 = vand.u32 %v2274, 4294901760
        %v2276 = vsub.f32 %v2274, %v2275
        %v2277 = vand.u32 %v2276, 4294901760
        %2278 = vmatpush.msra.mxu0 %v2277
        %v2279 = vand.u32 %v1128, 4294901760
        %v2280 = vsub.f32 %v1128, %v2279
        %v2281 = vand.u32 %v2280, 4294901760
        %v2282 = vsub.f32 %v2280, %v2281
        %v2283 = vand.u32 %v2282, 4294901760
        %2284 = vmatpush.msra.mxu0 %v2283
        %v2285 = vand.u32 %v1126, 4294901760
        %v2286 = vsub.f32 %v1126, %v2285
        %v2287 = vand.u32 %v2286, 4294901760
        %v2288 = vsub.f32 %v2286, %v2287
        %v2289 = vand.u32 %v2288, 4294901760
        %2290 = vmatpush.msra.mxu0 %v2289
        %v2291 = vand.u32 %v1124, 4294901760
        %v2292 = vsub.f32 %v1124, %v2291
        %v2293 = vand.u32 %v2292, 4294901760
        %v2294 = vsub.f32 %v2292, %v2293
        %v2295 = vand.u32 %v2294, 4294901760
        %2296 = vmatpush.msra.mxu0 %v2295
        %v2297 = vand.u32 %v1122, 4294901760
        %v2298 = vsub.f32 %v1122, %v2297
        %v2299 = vand.u32 %v2298, 4294901760
        %v2300 = vsub.f32 %v2298, %v2299
        %v2301 = vand.u32 %v2300, 4294901760
        %2302 = vmatpush.msra.mxu0 %v2301
        %v2303 = vand.u32 %v1120, 4294901760
        %v2304 = vsub.f32 %v1120, %v2303
        %v2305 = vand.u32 %v2304, 4294901760
        %v2306 = vsub.f32 %v2304, %v2305
        %v2307 = vand.u32 %v2306, 4294901760
        %2308 = vmatpush.msra.mxu0 %v2307
        %v2309 = vand.u32 %v1118, 4294901760
        %v2310 = vsub.f32 %v1118, %v2309
        %v2311 = vand.u32 %v2310, 4294901760
        %v2312 = vsub.f32 %v2310, %v2311
        %v2313 = vand.u32 %v2312, 4294901760
        %2314 = vmatpush.msra.mxu0 %v2313
        %v2315 = vand.u32 %v1084, 4294901760
        %2316 = vmatmul.f32.gmra.mxu0 %v2315
        %v2317 = vpop.f32.mrf.mxu0
        %v2318 = vadd.f32 %v2217, %v2317
        %2319 = vdwg.mxu0
        %v2320 = vand.u32 %v1148, 4294901760
        %v2321 = vsub.f32 %v1148, %v2320
        %2322 = vmatpush.msra.mxu0 %v2321
        %v2323 = vand.u32 %v1146, 4294901760
        %v2324 = vsub.f32 %v1146, %v2323
        %2325 = vmatpush.msra.mxu0 %v2324
        %v2326 = vand.u32 %v1144, 4294901760
        %v2327 = vsub.f32 %v1144, %v2326
        %2328 = vmatpush.msra.mxu0 %v2327
        %v2329 = vand.u32 %v1142, 4294901760
        %v2330 = vsub.f32 %v1142, %v2329
        %2331 = vmatpush.msra.mxu0 %v2330
        %v2332 = vand.u32 %v1140, 4294901760
        %v2333 = vsub.f32 %v1140, %v2332
        %2334 = vmatpush.msra.mxu0 %v2333
        %v2335 = vand.u32 %v1138, 4294901760
        %v2336 = vsub.f32 %v1138, %v2335
        %2337 = vmatpush.msra.mxu0 %v2336
        %v2338 = vand.u32 %v1136, 4294901760
        %v2339 = vsub.f32 %v1136, %v2338
        %2340 = vmatpush.msra.mxu0 %v2339
        %v2341 = vand.u32 %v1134, 4294901760
        %v2342 = vsub.f32 %v1134, %v2341
        %2343 = vmatpush.msra.mxu0 %v2342
        %v2344 = vand.u32 %v1132, 4294901760
        %v2345 = vsub.f32 %v1132, %v2344
        %2346 = vmatpush.msra.mxu0 %v2345
        %v2347 = vand.u32 %v1130, 4294901760
        %v2348 = vsub.f32 %v1130, %v2347
        %2349 = vmatpush.msra.mxu0 %v2348
        %v2350 = vand.u32 %v1128, 4294901760
        %v2351 = vsub.f32 %v1128, %v2350
        %2352 = vmatpush.msra.mxu0 %v2351
        %v2353 = vand.u32 %v1126, 4294901760
        %v2354 = vsub.f32 %v1126, %v2353
        %2355 = vmatpush.msra.mxu0 %v2354
        %v2356 = vand.u32 %v1124, 4294901760
        %v2357 = vsub.f32 %v1124, %v2356
        %2358 = vmatpush.msra.mxu0 %v2357
        %v2359 = vand.u32 %v1122, 4294901760
        %v2360 = vsub.f32 %v1122, %v2359
        %2361 = vmatpush.msra.mxu0 %v2360
        %v2362 = vand.u32 %v1120, 4294901760
        %v2363 = vsub.f32 %v1120, %v2362
        %2364 = vmatpush.msra.mxu0 %v2363
        %v2365 = vand.u32 %v1118, 4294901760
        %v2366 = vsub.f32 %v1118, %v2365
        %2367 = vmatpush.msra.mxu0 %v2366
        %v2368 = vand.u32 %v1084, 4294901760
        %v2369 = vsub.f32 %v1084, %v2368
        %2370 = vmatmul.f32.gmra.mxu0 %v2369
        %v2371 = vpop.f32.mrf.mxu0
        %v2372 = vadd.f32 %v2318, %v2371
        %2373 = vdwg.mxu0
        %v2374 = vand.u32 %v1148, 4294901760
        %2375 = vmatpush.msra.mxu0 %v2374
        %v2376 = vand.u32 %v1146, 4294901760
        %2377 = vmatpush.msra.mxu0 %v2376
        %v2378 = vand.u32 %v1144, 4294901760
        %2379 = vmatpush.msra.mxu0 %v2378
        %v2380 = vand.u32 %v1142, 4294901760
        %2381 = vmatpush.msra.mxu0 %v2380
        %v2382 = vand.u32 %v1140, 4294901760
        %2383 = vmatpush.msra.mxu0 %v2382
        %v2384 = vand.u32 %v1138, 4294901760
        %2385 = vmatpush.msra.mxu0 %v2384
        %v2386 = vand.u32 %v1136, 4294901760
        %2387 = vmatpush.msra.mxu0 %v2386
        %v2388 = vand.u32 %v1134, 4294901760
        %2389 = vmatpush.msra.mxu0 %v2388
        %v2390 = vand.u32 %v1132, 4294901760
        %2391 = vmatpush.msra.mxu0 %v2390
        %v2392 = vand.u32 %v1130, 4294901760
        %2393 = vmatpush.msra.mxu0 %v2392
        %v2394 = vand.u32 %v1128, 4294901760
        %2395 = vmatpush.msra.mxu0 %v2394
        %v2396 = vand.u32 %v1126, 4294901760
        %2397 = vmatpush.msra.mxu0 %v2396
        %v2398 = vand.u32 %v1124, 4294901760
        %2399 = vmatpush.msra.mxu0 %v2398
        %v2400 = vand.u32 %v1122, 4294901760
        %2401 = vmatpush.msra.mxu0 %v2400
        %v2402 = vand.u32 %v1120, 4294901760
        %2403 = vmatpush.msra.mxu0 %v2402
        %v2404 = vand.u32 %v1118, 4294901760
        %2405 = vmatpush.msra.mxu0 %v2404
        %v2406 = vand.u32 %v1084, 4294901760
        %v2407 = vsub.f32 %v1084, %v2406
        %v2408 = vand.u32 %v2407, 4294901760
        %2409 = vmatmul.f32.gmra.mxu0 %v2408
        %v2410 = vpop.f32.mrf.mxu0
        %v2411 = vadd.f32 %v2372, %v2410
        %2412 = vdwg.mxu0
        %v2413 = vand.u32 %v1148, 4294901760
        %v2414 = vsub.f32 %v1148, %v2413
        %v2415 = vand.u32 %v2414, 4294901760
        %2416 = vmatpush.msra.mxu0 %v2415
        %v2417 = vand.u32 %v1146, 4294901760
        %v2418 = vsub.f32 %v1146, %v2417
        %v2419 = vand.u32 %v2418, 4294901760
        %2420 = vmatpush.msra.mxu0 %v2419
        %v2421 = vand.u32 %v1144, 4294901760
        %v2422 = vsub.f32 %v1144, %v2421
        %v2423 = vand.u32 %v2422, 4294901760
        %2424 = vmatpush.msra.mxu0 %v2423
        %v2425 = vand.u32 %v1142, 4294901760
        %v2426 = vsub.f32 %v1142, %v2425
        %v2427 = vand.u32 %v2426, 4294901760
        %2428 = vmatpush.msra.mxu0 %v2427
        %v2429 = vand.u32 %v1140, 4294901760
        %v2430 = vsub.f32 %v1140, %v2429
        %v2431 = vand.u32 %v2430, 4294901760
        %2432 = vmatpush.msra.mxu0 %v2431
        %v2433 = vand.u32 %v1138, 4294901760
        %v2434 = vsub.f32 %v1138, %v2433
        %v2435 = vand.u32 %v2434, 4294901760
        %2436 = vmatpush.msra.mxu0 %v2435
        %v2437 = vand.u32 %v1136, 4294901760
        %v2438 = vsub.f32 %v1136, %v2437
        %v2439 = vand.u32 %v2438, 4294901760
        %2440 = vmatpush.msra.mxu0 %v2439
        %v2441 = vand.u32 %v1134, 4294901760
        %v2442 = vsub.f32 %v1134, %v2441
        %v2443 = vand.u32 %v2442, 4294901760
        %2444 = vmatpush.msra.mxu0 %v2443
        %v2445 = vand.u32 %v1132, 4294901760
        %v2446 = vsub.f32 %v1132, %v2445
        %v2447 = vand.u32 %v2446, 4294901760
        %2448 = vmatpush.msra.mxu0 %v2447
        %v2449 = vand.u32 %v1130, 4294901760
        %v2450 = vsub.f32 %v1130, %v2449
        %v2451 = vand.u32 %v2450, 4294901760
        %2452 = vmatpush.msra.mxu0 %v2451
        %v2453 = vand.u32 %v1128, 4294901760
        %v2454 = vsub.f32 %v1128, %v2453
        %v2455 = vand.u32 %v2454, 4294901760
        %2456 = vmatpush.msra.mxu0 %v2455
        %v2457 = vand.u32 %v1126, 4294901760
        %v2458 = vsub.f32 %v1126, %v2457
        %v2459 = vand.u32 %v2458, 4294901760
        %2460 = vmatpush.msra.mxu0 %v2459
        %v2461 = vand.u32 %v1124, 4294901760
        %v2462 = vsub.f32 %v1124, %v2461
        %v2463 = vand.u32 %v2462, 4294901760
        %2464 = vmatpush.msra.mxu0 %v2463
        %v2465 = vand.u32 %v1122, 4294901760
        %v2466 = vsub.f32 %v1122, %v2465
        %v2467 = vand.u32 %v2466, 4294901760
        %2468 = vmatpush.msra.mxu0 %v2467
        %v2469 = vand.u32 %v1120, 4294901760
        %v2470 = vsub.f32 %v1120, %v2469
        %v2471 = vand.u32 %v2470, 4294901760
        %2472 = vmatpush.msra.mxu0 %v2471
        %v2473 = vand.u32 %v1118, 4294901760
        %v2474 = vsub.f32 %v1118, %v2473
        %v2475 = vand.u32 %v2474, 4294901760
        %2476 = vmatpush.msra.mxu0 %v2475
        %v2477 = vand.u32 %v1084, 4294901760
        %2478 = vmatmul.f32.gmra.mxu0 %v2477
        %v2479 = vpop.f32.mrf.mxu0
        %v2480 = vadd.f32 %v2411, %v2479
        %2481 = vdwg.mxu0
        %v2482 = vand.u32 %v1148, 4294901760
        %2483 = vmatpush.msra.mxu0 %v2482
        %v2484 = vand.u32 %v1146, 4294901760
        %2485 = vmatpush.msra.mxu0 %v2484
        %v2486 = vand.u32 %v1144, 4294901760
        %2487 = vmatpush.msra.mxu0 %v2486
        %v2488 = vand.u32 %v1142, 4294901760
        %2489 = vmatpush.msra.mxu0 %v2488
        %v2490 = vand.u32 %v1140, 4294901760
        %2491 = vmatpush.msra.mxu0 %v2490
        %v2492 = vand.u32 %v1138, 4294901760
        %2493 = vmatpush.msra.mxu0 %v2492
        %v2494 = vand.u32 %v1136, 4294901760
        %2495 = vmatpush.msra.mxu0 %v2494
        %v2496 = vand.u32 %v1134, 4294901760
        %2497 = vmatpush.msra.mxu0 %v2496
        %v2498 = vand.u32 %v1132, 4294901760
        %2499 = vmatpush.msra.mxu0 %v2498
        %v2500 = vand.u32 %v1130, 4294901760
        %2501 = vmatpush.msra.mxu0 %v2500
        %v2502 = vand.u32 %v1128, 4294901760
        %2503 = vmatpush.msra.mxu0 %v2502
        %v2504 = vand.u32 %v1126, 4294901760
        %2505 = vmatpush.msra.mxu0 %v2504
        %v2506 = vand.u32 %v1124, 4294901760
        %2507 = vmatpush.msra.mxu0 %v2506
        %v2508 = vand.u32 %v1122, 4294901760
        %2509 = vmatpush.msra.mxu0 %v2508
        %v2510 = vand.u32 %v1120, 4294901760
        %2511 = vmatpush.msra.mxu0 %v2510
        %v2512 = vand.u32 %v1118, 4294901760
        %2513 = vmatpush.msra.mxu0 %v2512
        %v2514 = vand.u32 %v1084, 4294901760
        %2515 = vmatmul.f32.gmra.mxu0 %v2514
        %v2516 = vpop.f32.mrf.mxu0
        %v2517 = vadd.f32 %v2480, %v2516
        %2518 = vdwg.mxu0
        %v2519 = vmul.f32 %v1835, 0.01
        %v2520 = vmul.f32 %v2517, 0.01
        %v2521 = vmax.f32 %v1835, %v2519
        %v2522 = vmax.f32 %v2517, %v2520
        %v2523 = vld [vmem:[#allocation10] sm:$0xff]
        %v2524 = vld [vmem:[#allocation10 + $0x8] sm:$0xff]
        %v2525 = vld [vmem:[#allocation10 + $0x10] sm:$0xff]
        %v2526 = vld [vmem:[#allocation10 + $0x18] sm:$0xff]
        %v2527 = vld [vmem:[#allocation10 + $0x20] sm:$0xff]
        %v2528 = vld [vmem:[#allocation10 + $0x28] sm:$0xff]
        %v2529 = vld [vmem:[#allocation10 + $0x30] sm:$0xff]
        %v2530 = vld [vmem:[#allocation10 + $0x38] sm:$0xff]
        %v2531 = vld [vmem:[#allocation10 + $0x40] sm:$0xff]
        %v2532 = vld [vmem:[#allocation10 + $0x48] sm:$0xff]
        %v2533 = vld [vmem:[#allocation10 + $0x50] sm:$0xff]
        %v2534 = vld [vmem:[#allocation10 + $0x58] sm:$0xff]
        %v2535 = vld [vmem:[#allocation10 + $0x60] sm:$0xff]
        %v2536 = vld [vmem:[#allocation10 + $0x68] sm:$0xff]
        %v2537 = vld [vmem:[#allocation10 + $0x70] sm:$0xff]
        %v2538 = vld [vmem:[#allocation10 + $0x78] sm:$0xff]
        %v2539 = vld [vmem:[#allocation10 + $0x80] sm:$0xff]
        %v2540 = vld [vmem:[#allocation10 + $0x88] sm:$0xff]
        %v2541 = vld [vmem:[#allocation10 + $0x90] sm:$0xff]
        %v2542 = vld [vmem:[#allocation10 + $0x98] sm:$0xff]
        %v2543 = vld [vmem:[#allocation10 + $0xa0] sm:$0xff]
        %v2544 = vld [vmem:[#allocation10 + $0xa8] sm:$0xff]
        %v2545 = vld [vmem:[#allocation10 + $0xb0] sm:$0xff]
        %v2546 = vld [vmem:[#allocation10 + $0xb8] sm:$0xff]
        %v2547 = vld [vmem:[#allocation10 + $0xc0] sm:$0xff]
        %v2548 = vld [vmem:[#allocation10 + $0xc8] sm:$0xff]
        %v2549 = vld [vmem:[#allocation10 + $0xd0] sm:$0xff]
        %v2550 = vld [vmem:[#allocation10 + $0xd8] sm:$0xff]
        %v2551 = vld [vmem:[#allocation10 + $0xe0] sm:$0xff]
        %v2552 = vld [vmem:[#allocation10 + $0xe8] sm:$0xff]
        %v2553 = vld [vmem:[#allocation10 + $0xf0] sm:$0xff]
        %v2554 = vld [vmem:[#allocation10 + $0xf8] sm:$0xff]
        %v2555 = vld [vmem:[%s6] sm:$0x1]
        %v2557 = vperm.slane %v2555, 0
        %v2559 = vand.u32 %v2538, 4294901760
        %2560 = vmatpush.msra.mxu0 %v2559
        %v2561 = vand.u32 %v2537, 4294901760
        %2562 = vmatpush.msra.mxu0 %v2561
        %v2563 = vand.u32 %v2536, 4294901760
        %2564 = vmatpush.msra.mxu0 %v2563
        %v2565 = vand.u32 %v2535, 4294901760
        %2566 = vmatpush.msra.mxu0 %v2565
        %v2567 = vand.u32 %v2534, 4294901760
        %2568 = vmatpush.msra.mxu0 %v2567
        %v2569 = vand.u32 %v2533, 4294901760
        %2570 = vmatpush.msra.mxu0 %v2569
        %v2571 = vand.u32 %v2532, 4294901760
        %2572 = vmatpush.msra.mxu0 %v2571
        %v2573 = vand.u32 %v2531, 4294901760
        %2574 = vmatpush.msra.mxu0 %v2573
        %v2575 = vand.u32 %v2530, 4294901760
        %2576 = vmatpush.msra.mxu0 %v2575
        %v2577 = vand.u32 %v2529, 4294901760
        %2578 = vmatpush.msra.mxu0 %v2577
        %v2579 = vand.u32 %v2528, 4294901760
        %2580 = vmatpush.msra.mxu0 %v2579
        %v2581 = vand.u32 %v2527, 4294901760
        %2582 = vmatpush.msra.mxu0 %v2581
        %v2583 = vand.u32 %v2526, 4294901760
        %2584 = vmatpush.msra.mxu0 %v2583
        %v2585 = vand.u32 %v2525, 4294901760
        %2586 = vmatpush.msra.mxu0 %v2585
        %v2587 = vand.u32 %v2524, 4294901760
        %2588 = vmatpush.msra.mxu0 %v2587
        %v2589 = vand.u32 %v2523, 4294901760
        %2590 = vmatpush.msra.mxu0 %v2589
        %v2591 = vand.u32 %v2521, 4294901760
        %v2592 = vsub.f32 %v2521, %v2591
        %v2593 = vand.u32 %v2592, 4294901760
        %v2594 = vsub.f32 %v2592, %v2593
        %v2595 = vand.u32 %v2594, 4294901760
        %2596 = vmatmul.f32.gmra.mxu0 %v2595
        %v2597 = vpop.f32.mrf.mxu0
        %v2598 = vadd.f32 %v2557, %v2597
        %2599 = vdwg.mxu0
        %v2600 = vand.u32 %v2538, 4294901760
        %v2601 = vsub.f32 %v2538, %v2600
        %v2602 = vand.u32 %v2601, 4294901760
        %v2603 = vsub.f32 %v2601, %v2602
        %v2604 = vand.u32 %v2603, 4294901760
        %2605 = vmatpush.msra.mxu0 %v2604
        %v2606 = vand.u32 %v2537, 4294901760
        %v2607 = vsub.f32 %v2537, %v2606
        %v2608 = vand.u32 %v2607, 4294901760
        %v2609 = vsub.f32 %v2607, %v2608
        %v2610 = vand.u32 %v2609, 4294901760
        %2611 = vmatpush.msra.mxu0 %v2610
        %v2612 = vand.u32 %v2536, 4294901760
        %v2613 = vsub.f32 %v2536, %v2612
        %v2614 = vand.u32 %v2613, 4294901760
        %v2615 = vsub.f32 %v2613, %v2614
        %v2616 = vand.u32 %v2615, 4294901760
        %2617 = vmatpush.msra.mxu0 %v2616
        %v2618 = vand.u32 %v2535, 4294901760
        %v2619 = vsub.f32 %v2535, %v2618
        %v2620 = vand.u32 %v2619, 4294901760
        %v2621 = vsub.f32 %v2619, %v2620
        %v2622 = vand.u32 %v2621, 4294901760
        %2623 = vmatpush.msra.mxu0 %v2622
        %v2624 = vand.u32 %v2534, 4294901760
        %v2625 = vsub.f32 %v2534, %v2624
        %v2626 = vand.u32 %v2625, 4294901760
        %v2627 = vsub.f32 %v2625, %v2626
        %v2628 = vand.u32 %v2627, 4294901760
        %2629 = vmatpush.msra.mxu0 %v2628
        %v2630 = vand.u32 %v2533, 4294901760
        %v2631 = vsub.f32 %v2533, %v2630
        %v2632 = vand.u32 %v2631, 4294901760
        %v2633 = vsub.f32 %v2631, %v2632
        %v2634 = vand.u32 %v2633, 4294901760
        %2635 = vmatpush.msra.mxu0 %v2634
        %v2636 = vand.u32 %v2532, 4294901760
        %v2637 = vsub.f32 %v2532, %v2636
        %v2638 = vand.u32 %v2637, 4294901760
        %v2639 = vsub.f32 %v2637, %v2638
        %v2640 = vand.u32 %v2639, 4294901760
        %2641 = vmatpush.msra.mxu0 %v2640
        %v2642 = vand.u32 %v2531, 4294901760
        %v2643 = vsub.f32 %v2531, %v2642
        %v2644 = vand.u32 %v2643, 4294901760
        %v2645 = vsub.f32 %v2643, %v2644
        %v2646 = vand.u32 %v2645, 4294901760
        %2647 = vmatpush.msra.mxu0 %v2646
        %v2648 = vand.u32 %v2530, 4294901760
        %v2649 = vsub.f32 %v2530, %v2648
        %v2650 = vand.u32 %v2649, 4294901760
        %v2651 = vsub.f32 %v2649, %v2650
        %v2652 = vand.u32 %v2651, 4294901760
        %2653 = vmatpush.msra.mxu0 %v2652
        %v2654 = vand.u32 %v2529, 4294901760
        %v2655 = vsub.f32 %v2529, %v2654
        %v2656 = vand.u32 %v2655, 4294901760
        %v2657 = vsub.f32 %v2655, %v2656
        %v2658 = vand.u32 %v2657, 4294901760
        %2659 = vmatpush.msra.mxu0 %v2658
        %v2660 = vand.u32 %v2528, 4294901760
        %v2661 = vsub.f32 %v2528, %v2660
        %v2662 = vand.u32 %v2661, 4294901760
        %v2663 = vsub.f32 %v2661, %v2662
        %v2664 = vand.u32 %v2663, 4294901760
        %2665 = vmatpush.msra.mxu0 %v2664
        %v2666 = vand.u32 %v2527, 4294901760
        %v2667 = vsub.f32 %v2527, %v2666
        %v2668 = vand.u32 %v2667, 4294901760
        %v2669 = vsub.f32 %v2667, %v2668
        %v2670 = vand.u32 %v2669, 4294901760
        %2671 = vmatpush.msra.mxu0 %v2670
        %v2672 = vand.u32 %v2526, 4294901760
        %v2673 = vsub.f32 %v2526, %v2672
        %v2674 = vand.u32 %v2673, 4294901760
        %v2675 = vsub.f32 %v2673, %v2674
        %v2676 = vand.u32 %v2675, 4294901760
        %2677 = vmatpush.msra.mxu0 %v2676
        %v2678 = vand.u32 %v2525, 4294901760
        %v2679 = vsub.f32 %v2525, %v2678
        %v2680 = vand.u32 %v2679, 4294901760
        %v2681 = vsub.f32 %v2679, %v2680
        %v2682 = vand.u32 %v2681, 4294901760
        %2683 = vmatpush.msra.mxu0 %v2682
        %v2684 = vand.u32 %v2524, 4294901760
        %v2685 = vsub.f32 %v2524, %v2684
        %v2686 = vand.u32 %v2685, 4294901760
        %v2687 = vsub.f32 %v2685, %v2686
        %v2688 = vand.u32 %v2687, 4294901760
        %2689 = vmatpush.msra.mxu0 %v2688
        %v2690 = vand.u32 %v2523, 4294901760
        %v2691 = vsub.f32 %v2523, %v2690
        %v2692 = vand.u32 %v2691, 4294901760
        %v2693 = vsub.f32 %v2691, %v2692
        %v2694 = vand.u32 %v2693, 4294901760
        %2695 = vmatpush.msra.mxu0 %v2694
        %v2696 = vand.u32 %v2521, 4294901760
        %2697 = vmatmul.f32.gmra.mxu0 %v2696
        %v2698 = vpop.f32.mrf.mxu0
        %v2699 = vadd.f32 %v2598, %v2698
        %2700 = vdwg.mxu0
        %v2701 = vand.u32 %v2538, 4294901760
        %v2702 = vsub.f32 %v2538, %v2701
        %2703 = vmatpush.msra.mxu0 %v2702
        %v2704 = vand.u32 %v2537, 4294901760
        %v2705 = vsub.f32 %v2537, %v2704
        %2706 = vmatpush.msra.mxu0 %v2705
        %v2707 = vand.u32 %v2536, 4294901760
        %v2708 = vsub.f32 %v2536, %v2707
        %2709 = vmatpush.msra.mxu0 %v2708
        %v2710 = vand.u32 %v2535, 4294901760
        %v2711 = vsub.f32 %v2535, %v2710
        %2712 = vmatpush.msra.mxu0 %v2711
        %v2713 = vand.u32 %v2534, 4294901760
        %v2714 = vsub.f32 %v2534, %v2713
        %2715 = vmatpush.msra.mxu0 %v2714
        %v2716 = vand.u32 %v2533, 4294901760
        %v2717 = vsub.f32 %v2533, %v2716
        %2718 = vmatpush.msra.mxu0 %v2717
        %v2719 = vand.u32 %v2532, 4294901760
        %v2720 = vsub.f32 %v2532, %v2719
        %2721 = vmatpush.msra.mxu0 %v2720
        %v2722 = vand.u32 %v2531, 4294901760
        %v2723 = vsub.f32 %v2531, %v2722
        %2724 = vmatpush.msra.mxu0 %v2723
        %v2725 = vand.u32 %v2530, 4294901760
        %v2726 = vsub.f32 %v2530, %v2725
        %2727 = vmatpush.msra.mxu0 %v2726
        %v2728 = vand.u32 %v2529, 4294901760
        %v2729 = vsub.f32 %v2529, %v2728
        %2730 = vmatpush.msra.mxu0 %v2729
        %v2731 = vand.u32 %v2528, 4294901760
        %v2732 = vsub.f32 %v2528, %v2731
        %2733 = vmatpush.msra.mxu0 %v2732
        %v2734 = vand.u32 %v2527, 4294901760
        %v2735 = vsub.f32 %v2527, %v2734
        %2736 = vmatpush.msra.mxu0 %v2735
        %v2737 = vand.u32 %v2526, 4294901760
        %v2738 = vsub.f32 %v2526, %v2737
        %2739 = vmatpush.msra.mxu0 %v2738
        %v2740 = vand.u32 %v2525, 4294901760
        %v2741 = vsub.f32 %v2525, %v2740
        %2742 = vmatpush.msra.mxu0 %v2741
        %v2743 = vand.u32 %v2524, 4294901760
        %v2744 = vsub.f32 %v2524, %v2743
        %2745 = vmatpush.msra.mxu0 %v2744
        %v2746 = vand.u32 %v2523, 4294901760
        %v2747 = vsub.f32 %v2523, %v2746
        %2748 = vmatpush.msra.mxu0 %v2747
        %v2749 = vand.u32 %v2521, 4294901760
        %v2750 = vsub.f32 %v2521, %v2749
        %2751 = vmatmul.f32.gmra.mxu0 %v2750
        %v2752 = vpop.f32.mrf.mxu0
        %v2753 = vadd.f32 %v2699, %v2752
        %2754 = vdwg.mxu0
        %v2755 = vand.u32 %v2538, 4294901760
        %2756 = vmatpush.msra.mxu0 %v2755
        %v2757 = vand.u32 %v2537, 4294901760
        %2758 = vmatpush.msra.mxu0 %v2757
        %v2759 = vand.u32 %v2536, 4294901760
        %2760 = vmatpush.msra.mxu0 %v2759
        %v2761 = vand.u32 %v2535, 4294901760
        %2762 = vmatpush.msra.mxu0 %v2761
        %v2763 = vand.u32 %v2534, 4294901760
        %2764 = vmatpush.msra.mxu0 %v2763
        %v2765 = vand.u32 %v2533, 4294901760
        %2766 = vmatpush.msra.mxu0 %v2765
        %v2767 = vand.u32 %v2532, 4294901760
        %2768 = vmatpush.msra.mxu0 %v2767
        %v2769 = vand.u32 %v2531, 4294901760
        %2770 = vmatpush.msra.mxu0 %v2769
        %v2771 = vand.u32 %v2530, 4294901760
        %2772 = vmatpush.msra.mxu0 %v2771
        %v2773 = vand.u32 %v2529, 4294901760
        %2774 = vmatpush.msra.mxu0 %v2773
        %v2775 = vand.u32 %v2528, 4294901760
        %2776 = vmatpush.msra.mxu0 %v2775
        %v2777 = vand.u32 %v2527, 4294901760
        %2778 = vmatpush.msra.mxu0 %v2777
        %v2779 = vand.u32 %v2526, 4294901760
        %2780 = vmatpush.msra.mxu0 %v2779
        %v2781 = vand.u32 %v2525, 4294901760
        %2782 = vmatpush.msra.mxu0 %v2781
        %v2783 = vand.u32 %v2524, 4294901760
        %2784 = vmatpush.msra.mxu0 %v2783
        %v2785 = vand.u32 %v2523, 4294901760
        %2786 = vmatpush.msra.mxu0 %v2785
        %v2787 = vand.u32 %v2521, 4294901760
        %v2788 = vsub.f32 %v2521, %v2787
        %v2789 = vand.u32 %v2788, 4294901760
        %2790 = vmatmul.f32.gmra.mxu0 %v2789
        %v2791 = vpop.f32.mrf.mxu0
        %v2792 = vadd.f32 %v2753, %v2791
        %2793 = vdwg.mxu0
        %v2794 = vand.u32 %v2538, 4294901760
        %v2795 = vsub.f32 %v2538, %v2794
        %v2796 = vand.u32 %v2795, 4294901760
        %2797 = vmatpush.msra.mxu0 %v2796
        %v2798 = vand.u32 %v2537, 4294901760
        %v2799 = vsub.f32 %v2537, %v2798
        %v2800 = vand.u32 %v2799, 4294901760
        %2801 = vmatpush.msra.mxu0 %v2800
        %v2802 = vand.u32 %v2536, 4294901760
        %v2803 = vsub.f32 %v2536, %v2802
        %v2804 = vand.u32 %v2803, 4294901760
        %2805 = vmatpush.msra.mxu0 %v2804
        %v2806 = vand.u32 %v2535, 4294901760
        %v2807 = vsub.f32 %v2535, %v2806
        %v2808 = vand.u32 %v2807, 4294901760
        %2809 = vmatpush.msra.mxu0 %v2808
        %v2810 = vand.u32 %v2534, 4294901760
        %v2811 = vsub.f32 %v2534, %v2810
        %v2812 = vand.u32 %v2811, 4294901760
        %2813 = vmatpush.msra.mxu0 %v2812
        %v2814 = vand.u32 %v2533, 4294901760
        %v2815 = vsub.f32 %v2533, %v2814
        %v2816 = vand.u32 %v2815, 4294901760
        %2817 = vmatpush.msra.mxu0 %v2816
        %v2818 = vand.u32 %v2532, 4294901760
        %v2819 = vsub.f32 %v2532, %v2818
        %v2820 = vand.u32 %v2819, 4294901760
        %2821 = vmatpush.msra.mxu0 %v2820
        %v2822 = vand.u32 %v2531, 4294901760
        %v2823 = vsub.f32 %v2531, %v2822
        %v2824 = vand.u32 %v2823, 4294901760
        %2825 = vmatpush.msra.mxu0 %v2824
        %v2826 = vand.u32 %v2530, 4294901760
        %v2827 = vsub.f32 %v2530, %v2826
        %v2828 = vand.u32 %v2827, 4294901760
        %2829 = vmatpush.msra.mxu0 %v2828
        %v2830 = vand.u32 %v2529, 4294901760
        %v2831 = vsub.f32 %v2529, %v2830
        %v2832 = vand.u32 %v2831, 4294901760
        %2833 = vmatpush.msra.mxu0 %v2832
        %v2834 = vand.u32 %v2528, 4294901760
        %v2835 = vsub.f32 %v2528, %v2834
        %v2836 = vand.u32 %v2835, 4294901760
        %2837 = vmatpush.msra.mxu0 %v2836
        %v2838 = vand.u32 %v2527, 4294901760
        %v2839 = vsub.f32 %v2527, %v2838
        %v2840 = vand.u32 %v2839, 4294901760
        %2841 = vmatpush.msra.mxu0 %v2840
        %v2842 = vand.u32 %v2526, 4294901760
        %v2843 = vsub.f32 %v2526, %v2842
        %v2844 = vand.u32 %v2843, 4294901760
        %2845 = vmatpush.msra.mxu0 %v2844
        %v2846 = vand.u32 %v2525, 4294901760
        %v2847 = vsub.f32 %v2525, %v2846
        %v2848 = vand.u32 %v2847, 4294901760
        %2849 = vmatpush.msra.mxu0 %v2848
        %v2850 = vand.u32 %v2524, 4294901760
        %v2851 = vsub.f32 %v2524, %v2850
        %v2852 = vand.u32 %v2851, 4294901760
        %2853 = vmatpush.msra.mxu0 %v2852
        %v2854 = vand.u32 %v2523, 4294901760
        %v2855 = vsub.f32 %v2523, %v2854
        %v2856 = vand.u32 %v2855, 4294901760
        %2857 = vmatpush.msra.mxu0 %v2856
        %v2858 = vand.u32 %v2521, 4294901760
        %2859 = vmatmul.f32.gmra.mxu0 %v2858
        %v2860 = vpop.f32.mrf.mxu0
        %v2861 = vadd.f32 %v2792, %v2860
        %2862 = vdwg.mxu0
        %v2863 = vand.u32 %v2538, 4294901760
        %2864 = vmatpush.msra.mxu0 %v2863
        %v2865 = vand.u32 %v2537, 4294901760
        %2866 = vmatpush.msra.mxu0 %v2865
        %v2867 = vand.u32 %v2536, 4294901760
        %2868 = vmatpush.msra.mxu0 %v2867
        %v2869 = vand.u32 %v2535, 4294901760
        %2870 = vmatpush.msra.mxu0 %v2869
        %v2871 = vand.u32 %v2534, 4294901760
        %2872 = vmatpush.msra.mxu0 %v2871
        %v2873 = vand.u32 %v2533, 4294901760
        %2874 = vmatpush.msra.mxu0 %v2873
        %v2875 = vand.u32 %v2532, 4294901760
        %2876 = vmatpush.msra.mxu0 %v2875
        %v2877 = vand.u32 %v2531, 4294901760
        %2878 = vmatpush.msra.mxu0 %v2877
        %v2879 = vand.u32 %v2530, 4294901760
        %2880 = vmatpush.msra.mxu0 %v2879
        %v2881 = vand.u32 %v2529, 4294901760
        %2882 = vmatpush.msra.mxu0 %v2881
        %v2883 = vand.u32 %v2528, 4294901760
        %2884 = vmatpush.msra.mxu0 %v2883
        %v2885 = vand.u32 %v2527, 4294901760
        %2886 = vmatpush.msra.mxu0 %v2885
        %v2887 = vand.u32 %v2526, 4294901760
        %2888 = vmatpush.msra.mxu0 %v2887
        %v2889 = vand.u32 %v2525, 4294901760
        %2890 = vmatpush.msra.mxu0 %v2889
        %v2891 = vand.u32 %v2524, 4294901760
        %2892 = vmatpush.msra.mxu0 %v2891
        %v2893 = vand.u32 %v2523, 4294901760
        %2894 = vmatpush.msra.mxu0 %v2893
        %v2895 = vand.u32 %v2521, 4294901760
        %2896 = vmatmul.f32.gmra.mxu0 %v2895
        %v2897 = vpop.f32.mrf.mxu0
        %v2898 = vadd.f32 %v2861, %v2897
        %2899 = vdwg.mxu0
        %v2900 = vand.u32 %v2554, 4294901760
        %2901 = vmatpush.msra.mxu0 %v2900
        %v2902 = vand.u32 %v2553, 4294901760
        %2903 = vmatpush.msra.mxu0 %v2902
        %v2904 = vand.u32 %v2552, 4294901760
        %2905 = vmatpush.msra.mxu0 %v2904
        %v2906 = vand.u32 %v2551, 4294901760
        %2907 = vmatpush.msra.mxu0 %v2906
        %v2908 = vand.u32 %v2550, 4294901760
        %2909 = vmatpush.msra.mxu0 %v2908
        %v2910 = vand.u32 %v2549, 4294901760
        %2911 = vmatpush.msra.mxu0 %v2910
        %v2912 = vand.u32 %v2548, 4294901760
        %2913 = vmatpush.msra.mxu0 %v2912
        %v2914 = vand.u32 %v2547, 4294901760
        %2915 = vmatpush.msra.mxu0 %v2914
        %v2916 = vand.u32 %v2546, 4294901760
        %2917 = vmatpush.msra.mxu0 %v2916
        %v2918 = vand.u32 %v2545, 4294901760
        %2919 = vmatpush.msra.mxu0 %v2918
        %v2920 = vand.u32 %v2544, 4294901760
        %2921 = vmatpush.msra.mxu0 %v2920
        %v2922 = vand.u32 %v2543, 4294901760
        %2923 = vmatpush.msra.mxu0 %v2922
        %v2924 = vand.u32 %v2542, 4294901760
        %2925 = vmatpush.msra.mxu0 %v2924
        %v2926 = vand.u32 %v2541, 4294901760
        %2927 = vmatpush.msra.mxu0 %v2926
        %v2928 = vand.u32 %v2540, 4294901760
        %2929 = vmatpush.msra.mxu0 %v2928
        %v2930 = vand.u32 %v2539, 4294901760
        %2931 = vmatpush.msra.mxu0 %v2930
        %v2932 = vand.u32 %v2522, 4294901760
        %v2933 = vsub.f32 %v2522, %v2932
        %v2934 = vand.u32 %v2933, 4294901760
        %v2935 = vsub.f32 %v2933, %v2934
        %v2936 = vand.u32 %v2935, 4294901760
        %2937 = vmatmul.f32.gmra.mxu0 %v2936
        %v2938 = vpop.f32.mrf.mxu0
        %v2939 = vadd.f32 %v2898, %v2938
        %2940 = vdwg.mxu0
        %v2941 = vand.u32 %v2554, 4294901760
        %v2942 = vsub.f32 %v2554, %v2941
        %v2943 = vand.u32 %v2942, 4294901760
        %v2944 = vsub.f32 %v2942, %v2943
        %v2945 = vand.u32 %v2944, 4294901760
        %2946 = vmatpush.msra.mxu0 %v2945
        %v2947 = vand.u32 %v2553, 4294901760
        %v2948 = vsub.f32 %v2553, %v2947
        %v2949 = vand.u32 %v2948, 4294901760
        %v2950 = vsub.f32 %v2948, %v2949
        %v2951 = vand.u32 %v2950, 4294901760
        %2952 = vmatpush.msra.mxu0 %v2951
        %v2953 = vand.u32 %v2552, 4294901760
        %v2954 = vsub.f32 %v2552, %v2953
        %v2955 = vand.u32 %v2954, 4294901760
        %v2956 = vsub.f32 %v2954, %v2955
        %v2957 = vand.u32 %v2956, 4294901760
        %2958 = vmatpush.msra.mxu0 %v2957
        %v2959 = vand.u32 %v2551, 4294901760
        %v2960 = vsub.f32 %v2551, %v2959
        %v2961 = vand.u32 %v2960, 4294901760
        %v2962 = vsub.f32 %v2960, %v2961
        %v2963 = vand.u32 %v2962, 4294901760
        %2964 = vmatpush.msra.mxu0 %v2963
        %v2965 = vand.u32 %v2550, 4294901760
        %v2966 = vsub.f32 %v2550, %v2965
        %v2967 = vand.u32 %v2966, 4294901760
        %v2968 = vsub.f32 %v2966, %v2967
        %v2969 = vand.u32 %v2968, 4294901760
        %2970 = vmatpush.msra.mxu0 %v2969
        %v2971 = vand.u32 %v2549, 4294901760
        %v2972 = vsub.f32 %v2549, %v2971
        %v2973 = vand.u32 %v2972, 4294901760
        %v2974 = vsub.f32 %v2972, %v2973
        %v2975 = vand.u32 %v2974, 4294901760
        %2976 = vmatpush.msra.mxu0 %v2975
        %v2977 = vand.u32 %v2548, 4294901760
        %v2978 = vsub.f32 %v2548, %v2977
        %v2979 = vand.u32 %v2978, 4294901760
        %v2980 = vsub.f32 %v2978, %v2979
        %v2981 = vand.u32 %v2980, 4294901760
        %2982 = vmatpush.msra.mxu0 %v2981
        %v2983 = vand.u32 %v2547, 4294901760
        %v2984 = vsub.f32 %v2547, %v2983
        %v2985 = vand.u32 %v2984, 4294901760
        %v2986 = vsub.f32 %v2984, %v2985
        %v2987 = vand.u32 %v2986, 4294901760
        %2988 = vmatpush.msra.mxu0 %v2987
        %v2989 = vand.u32 %v2546, 4294901760
        %v2990 = vsub.f32 %v2546, %v2989
        %v2991 = vand.u32 %v2990, 4294901760
        %v2992 = vsub.f32 %v2990, %v2991
        %v2993 = vand.u32 %v2992, 4294901760
        %2994 = vmatpush.msra.mxu0 %v2993
        %v2995 = vand.u32 %v2545, 4294901760
        %v2996 = vsub.f32 %v2545, %v2995
        %v2997 = vand.u32 %v2996, 4294901760
        %v2998 = vsub.f32 %v2996, %v2997
        %v2999 = vand.u32 %v2998, 4294901760
        %3000 = vmatpush.msra.mxu0 %v2999
        %v3001 = vand.u32 %v2544, 4294901760
        %v3002 = vsub.f32 %v2544, %v3001
        %v3003 = vand.u32 %v3002, 4294901760
        %v3004 = vsub.f32 %v3002, %v3003
        %v3005 = vand.u32 %v3004, 4294901760
        %3006 = vmatpush.msra.mxu0 %v3005
        %v3007 = vand.u32 %v2543, 4294901760
        %v3008 = vsub.f32 %v2543, %v3007
        %v3009 = vand.u32 %v3008, 4294901760
        %v3010 = vsub.f32 %v3008, %v3009
        %v3011 = vand.u32 %v3010, 4294901760
        %3012 = vmatpush.msra.mxu0 %v3011
        %v3013 = vand.u32 %v2542, 4294901760
        %v3014 = vsub.f32 %v2542, %v3013
        %v3015 = vand.u32 %v3014, 4294901760
        %v3016 = vsub.f32 %v3014, %v3015
        %v3017 = vand.u32 %v3016, 4294901760
        %3018 = vmatpush.msra.mxu0 %v3017
        %v3019 = vand.u32 %v2541, 4294901760
        %v3020 = vsub.f32 %v2541, %v3019
        %v3021 = vand.u32 %v3020, 4294901760
        %v3022 = vsub.f32 %v3020, %v3021
        %v3023 = vand.u32 %v3022, 4294901760
        %3024 = vmatpush.msra.mxu0 %v3023
        %v3025 = vand.u32 %v2540, 4294901760
        %v3026 = vsub.f32 %v2540, %v3025
        %v3027 = vand.u32 %v3026, 4294901760
        %v3028 = vsub.f32 %v3026, %v3027
        %v3029 = vand.u32 %v3028, 4294901760
        %3030 = vmatpush.msra.mxu0 %v3029
        %v3031 = vand.u32 %v2539, 4294901760
        %v3032 = vsub.f32 %v2539, %v3031
        %v3033 = vand.u32 %v3032, 4294901760
        %v3034 = vsub.f32 %v3032, %v3033
        %v3035 = vand.u32 %v3034, 4294901760
        %3036 = vmatpush.msra.mxu0 %v3035
        %v3037 = vand.u32 %v2522, 4294901760
        %3038 = vmatmul.f32.gmra.mxu0 %v3037
        %v3039 = vpop.f32.mrf.mxu0
        %v3040 = vadd.f32 %v2939, %v3039
        %3041 = vdwg.mxu0
        %v3042 = vand.u32 %v2554, 4294901760
        %v3043 = vsub.f32 %v2554, %v3042
        %3044 = vmatpush.msra.mxu0 %v3043
        %v3045 = vand.u32 %v2553, 4294901760
        %v3046 = vsub.f32 %v2553, %v3045
        %3047 = vmatpush.msra.mxu0 %v3046
        %v3048 = vand.u32 %v2552, 4294901760
        %v3049 = vsub.f32 %v2552, %v3048
        %3050 = vmatpush.msra.mxu0 %v3049
        %v3051 = vand.u32 %v2551, 4294901760
        %v3052 = vsub.f32 %v2551, %v3051
        %3053 = vmatpush.msra.mxu0 %v3052
        %v3054 = vand.u32 %v2550, 4294901760
        %v3055 = vsub.f32 %v2550, %v3054
        %3056 = vmatpush.msra.mxu0 %v3055
        %v3057 = vand.u32 %v2549, 4294901760
        %v3058 = vsub.f32 %v2549, %v3057
        %3059 = vmatpush.msra.mxu0 %v3058
        %v3060 = vand.u32 %v2548, 4294901760
        %v3061 = vsub.f32 %v2548, %v3060
        %3062 = vmatpush.msra.mxu0 %v3061
        %v3063 = vand.u32 %v2547, 4294901760
        %v3064 = vsub.f32 %v2547, %v3063
        %3065 = vmatpush.msra.mxu0 %v3064
        %v3066 = vand.u32 %v2546, 4294901760
        %v3067 = vsub.f32 %v2546, %v3066
        %3068 = vmatpush.msra.mxu0 %v3067
        %v3069 = vand.u32 %v2545, 4294901760
        %v3070 = vsub.f32 %v2545, %v3069
        %3071 = vmatpush.msra.mxu0 %v3070
        %v3072 = vand.u32 %v2544, 4294901760
        %v3073 = vsub.f32 %v2544, %v3072
        %3074 = vmatpush.msra.mxu0 %v3073
        %v3075 = vand.u32 %v2543, 4294901760
        %v3076 = vsub.f32 %v2543, %v3075
        %3077 = vmatpush.msra.mxu0 %v3076
        %v3078 = vand.u32 %v2542, 4294901760
        %v3079 = vsub.f32 %v2542, %v3078
        %3080 = vmatpush.msra.mxu0 %v3079
        %v3081 = vand.u32 %v2541, 4294901760
        %v3082 = vsub.f32 %v2541, %v3081
        %3083 = vmatpush.msra.mxu0 %v3082
        %v3084 = vand.u32 %v2540, 4294901760
        %v3085 = vsub.f32 %v2540, %v3084
        %3086 = vmatpush.msra.mxu0 %v3085
        %v3087 = vand.u32 %v2539, 4294901760
        %v3088 = vsub.f32 %v2539, %v3087
        %3089 = vmatpush.msra.mxu0 %v3088
        %v3090 = vand.u32 %v2522, 4294901760
        %v3091 = vsub.f32 %v2522, %v3090
        %3092 = vmatmul.f32.gmra.mxu0 %v3091
        %v3093 = vpop.f32.mrf.mxu0
        %v3094 = vadd.f32 %v3040, %v3093
        %3095 = vdwg.mxu0
        %v3096 = vand.u32 %v2554, 4294901760
        %3097 = vmatpush.msra.mxu0 %v3096
        %v3098 = vand.u32 %v2553, 4294901760
        %3099 = vmatpush.msra.mxu0 %v3098
        %v3100 = vand.u32 %v2552, 4294901760
        %3101 = vmatpush.msra.mxu0 %v3100
        %v3102 = vand.u32 %v2551, 4294901760
        %3103 = vmatpush.msra.mxu0 %v3102
        %v3104 = vand.u32 %v2550, 4294901760
        %3105 = vmatpush.msra.mxu0 %v3104
        %v3106 = vand.u32 %v2549, 4294901760
        %3107 = vmatpush.msra.mxu0 %v3106
        %v3108 = vand.u32 %v2548, 4294901760
        %3109 = vmatpush.msra.mxu0 %v3108
        %v3110 = vand.u32 %v2547, 4294901760
        %3111 = vmatpush.msra.mxu0 %v3110
        %v3112 = vand.u32 %v2546, 4294901760
        %3113 = vmatpush.msra.mxu0 %v3112
        %v3114 = vand.u32 %v2545, 4294901760
        %3115 = vmatpush.msra.mxu0 %v3114
        %v3116 = vand.u32 %v2544, 4294901760
        %3117 = vmatpush.msra.mxu0 %v3116
        %v3118 = vand.u32 %v2543, 4294901760
        %3119 = vmatpush.msra.mxu0 %v3118
        %v3120 = vand.u32 %v2542, 4294901760
        %3121 = vmatpush.msra.mxu0 %v3120
        %v3122 = vand.u32 %v2541, 4294901760
        %3123 = vmatpush.msra.mxu0 %v3122
        %v3124 = vand.u32 %v2540, 4294901760
        %3125 = vmatpush.msra.mxu0 %v3124
        %v3126 = vand.u32 %v2539, 4294901760
        %3127 = vmatpush.msra.mxu0 %v3126
        %v3128 = vand.u32 %v2522, 4294901760
        %v3129 = vsub.f32 %v2522, %v3128
        %v3130 = vand.u32 %v3129, 4294901760
        %3131 = vmatmul.f32.gmra.mxu0 %v3130
        %v3132 = vpop.f32.mrf.mxu0
        %v3133 = vadd.f32 %v3094, %v3132
        %3134 = vdwg.mxu0
        %v3135 = vand.u32 %v2554, 4294901760
        %v3136 = vsub.f32 %v2554, %v3135
        %v3137 = vand.u32 %v3136, 4294901760
        %3138 = vmatpush.msra.mxu0 %v3137
        %v3139 = vand.u32 %v2553, 4294901760
        %v3140 = vsub.f32 %v2553, %v3139
        %v3141 = vand.u32 %v3140, 4294901760
        %3142 = vmatpush.msra.mxu0 %v3141
        %v3143 = vand.u32 %v2552, 4294901760
        %v3144 = vsub.f32 %v2552, %v3143
        %v3145 = vand.u32 %v3144, 4294901760
        %3146 = vmatpush.msra.mxu0 %v3145
        %v3147 = vand.u32 %v2551, 4294901760
        %v3148 = vsub.f32 %v2551, %v3147
        %v3149 = vand.u32 %v3148, 4294901760
        %3150 = vmatpush.msra.mxu0 %v3149
        %v3151 = vand.u32 %v2550, 4294901760
        %v3152 = vsub.f32 %v2550, %v3151
        %v3153 = vand.u32 %v3152, 4294901760
        %3154 = vmatpush.msra.mxu0 %v3153
        %v3155 = vand.u32 %v2549, 4294901760
        %v3156 = vsub.f32 %v2549, %v3155
        %v3157 = vand.u32 %v3156, 4294901760
        %3158 = vmatpush.msra.mxu0 %v3157
        %v3159 = vand.u32 %v2548, 4294901760
        %v3160 = vsub.f32 %v2548, %v3159
        %v3161 = vand.u32 %v3160, 4294901760
        %3162 = vmatpush.msra.mxu0 %v3161
        %v3163 = vand.u32 %v2547, 4294901760
        %v3164 = vsub.f32 %v2547, %v3163
        %v3165 = vand.u32 %v3164, 4294901760
        %3166 = vmatpush.msra.mxu0 %v3165
        %v3167 = vand.u32 %v2546, 4294901760
        %v3168 = vsub.f32 %v2546, %v3167
        %v3169 = vand.u32 %v3168, 4294901760
        %3170 = vmatpush.msra.mxu0 %v3169
        %v3171 = vand.u32 %v2545, 4294901760
        %v3172 = vsub.f32 %v2545, %v3171
        %v3173 = vand.u32 %v3172, 4294901760
        %3174 = vmatpush.msra.mxu0 %v3173
        %v3175 = vand.u32 %v2544, 4294901760
        %v3176 = vsub.f32 %v2544, %v3175
        %v3177 = vand.u32 %v3176, 4294901760
        %3178 = vmatpush.msra.mxu0 %v3177
        %v3179 = vand.u32 %v2543, 4294901760
        %v3180 = vsub.f32 %v2543, %v3179
        %v3181 = vand.u32 %v3180, 4294901760
        %3182 = vmatpush.msra.mxu0 %v3181
        %v3183 = vand.u32 %v2542, 4294901760
        %v3184 = vsub.f32 %v2542, %v3183
        %v3185 = vand.u32 %v3184, 4294901760
        %3186 = vmatpush.msra.mxu0 %v3185
        %v3187 = vand.u32 %v2541, 4294901760
        %v3188 = vsub.f32 %v2541, %v3187
        %v3189 = vand.u32 %v3188, 4294901760
        %3190 = vmatpush.msra.mxu0 %v3189
        %v3191 = vand.u32 %v2540, 4294901760
        %v3192 = vsub.f32 %v2540, %v3191
        %v3193 = vand.u32 %v3192, 4294901760
        %3194 = vmatpush.msra.mxu0 %v3193
        %v3195 = vand.u32 %v2539, 4294901760
        %v3196 = vsub.f32 %v2539, %v3195
        %v3197 = vand.u32 %v3196, 4294901760
        %3198 = vmatpush.msra.mxu0 %v3197
        %v3199 = vand.u32 %v2522, 4294901760
        %3200 = vmatmul.f32.gmra.mxu0 %v3199
        %v3201 = vpop.f32.mrf.mxu0
        %v3202 = vadd.f32 %v3133, %v3201
        %3203 = vdwg.mxu0
        %v3204 = vand.u32 %v2554, 4294901760
        %3205 = vmatpush.msra.mxu0 %v3204
        %v3206 = vand.u32 %v2553, 4294901760
        %3207 = vmatpush.msra.mxu0 %v3206
        %v3208 = vand.u32 %v2552, 4294901760
        %3209 = vmatpush.msra.mxu0 %v3208
        %v3210 = vand.u32 %v2551, 4294901760
        %3211 = vmatpush.msra.mxu0 %v3210
        %v3212 = vand.u32 %v2550, 4294901760
        %3213 = vmatpush.msra.mxu0 %v3212
        %v3214 = vand.u32 %v2549, 4294901760
        %3215 = vmatpush.msra.mxu0 %v3214
        %v3216 = vand.u32 %v2548, 4294901760
        %3217 = vmatpush.msra.mxu0 %v3216
        %v3218 = vand.u32 %v2547, 4294901760
        %3219 = vmatpush.msra.mxu0 %v3218
        %v3220 = vand.u32 %v2546, 4294901760
        %3221 = vmatpush.msra.mxu0 %v3220
        %v3222 = vand.u32 %v2545, 4294901760
        %3223 = vmatpush.msra.mxu0 %v3222
        %v3224 = vand.u32 %v2544, 4294901760
        %3225 = vmatpush.msra.mxu0 %v3224
        %v3226 = vand.u32 %v2543, 4294901760
        %3227 = vmatpush.msra.mxu0 %v3226
        %v3228 = vand.u32 %v2542, 4294901760
        %3229 = vmatpush.msra.mxu0 %v3228
        %v3230 = vand.u32 %v2541, 4294901760
        %3231 = vmatpush.msra.mxu0 %v3230
        %v3232 = vand.u32 %v2540, 4294901760
        %3233 = vmatpush.msra.mxu0 %v3232
        %v3234 = vand.u32 %v2539, 4294901760
        %3235 = vmatpush.msra.mxu0 %v3234
        %v3236 = vand.u32 %v2522, 4294901760
        %3237 = vmatmul.f32.gmra.mxu0 %v3236
        %v3238 = vpop.f32.mrf.mxu0
        %v3239 = vadd.f32 %v3202, %v3238
        %3240 = vdwg.mxu0
        %3241 = vst [vmem:[%s359] sm:$0xff] %v3239
        %s3242 = sand.u32 %s186, 1
        %s3243 = scalar_lea.sflag [#allocation4], %s3242
        %s3244 = sand.u32 %s186, 1
        %s3245 = smul.addr %s3244, 8
        %s3246 = scalar_lea.vmem [#allocation11], %s3245
        // Predicated region
        $region69: #{tpu_custom_call.1} parent=47 // pred_check
          %p3247 = pneg %p196
        $region70: #{tpu_custom_call.1} parent=47 // pred_check_branch
          %3249 = sbr.rel (%p3247) target = $region72
        $region71: #{tpu_custom_call.1} parent=47 // pred_region
          %3251 = vsyncadd %s3243, 0
          %s3252 = smul.addr %s26, 8
          %s3253 = scalar_lea.hbm %s7, %s3252
          %s3255 = sshll.u32 %s3246, 4
          %s3256 = int_to_ptr.vmem [resolvable:$true] %s3255
          %s3257 = sshll.u32 %s3253, 4
          %s3258 = int_to_ptr.hbm [resolvable:$true] %s3257
          %3260 = dma.vmem_to_hbm [thread:$0]  %s3256, 128, %s3258, %s3243
        $region72: #{tpu_custom_call.1} parent=47 // pred_fallthru
          _
      $region48: #{tpu_custom_call.1} parent=5 // pred_fallthru
        _
      %p3261 = scmp.le.s32.totalorder 2, %s21
      // Predicated region
      $region73: #{tpu_custom_call.1} parent=5 // pred_check
        %p3262 = pneg %p3261
      $region74: #{tpu_custom_call.1} parent=5 // pred_check_branch
        %3264 = sbr.rel (%p3262) target = $region76
      $region75: #{tpu_custom_call.1} parent=5 // pred_region
        %s3265 = ssub.s32 %s21, 2
        // Predicated region
        $region77: #{tpu_custom_call.1} parent=75 // pred_check
          %p3266 = pneg %p202
        $region78: #{tpu_custom_call.1} parent=75 // pred_check_branch
          %3268 = sbr.rel (%p3266) target = $region80
        $region79: #{tpu_custom_call.1} parent=75 // pred_region
          %s3269 = sand.u32 %s187, 1
          %s3270 = scalar_lea.sflag [#allocation4], %s3269
          %s3271 = sand.u32 %s187, 1
          %s3272 = smul.addr %s3271, 8
          %s3273 = scalar_lea.vmem [#allocation11], %s3272
          %3275 = dma.done %s3270, 128
        $region80: #{tpu_custom_call.1} parent=75 // pred_fallthru
          _
      $region76: #{tpu_custom_call.1} parent=5 // pred_fallthru
        _
    $region6: #{tpu_custom_call.1} parent=1 // loop_footer
      %s25 = sadd.s32 1, %s21
    $region7: #{tpu_custom_call.1} parent=1 // loop_footer_branch
      %20 = sbr.rel target = $region3
    $region8: #{tpu_custom_call.1} parent=1 // loop_exit
      _
    %3276 = vsyncpa [#allocation3], 1
    %s3277 = scalar_lea.sflag [#allocation3], 1
    %3278 = vsyncpa %s3277, 1
    %3279 = vsyncpa [#allocation6], 1
    %3280 = vsyncpa [#allocation9], 1
    %3281 = vsyncpa [#allocation4], 1
    %s3282 = scalar_lea.sflag [#allocation4], 1
    %3283 = vsyncpa %s3282, 1

</llo_original>
